<compile_context>
chip_gen: v6e
topology: v6e:2x2x1
jax: 0.10.0
libtpu: 0.0.40
codegen_flags: <defaults>
</compile_context>

<pallas_src>
import jax
import jax.numpy as jnp
import numpy as np
from jax.experimental import pallas as pl
from jax.experimental.pallas import tpu as pltpu

EPS = 1e-5


# -------------------------------- kernel ----------------------------------- #

def residual_block_kernel(x_ref, w1_ref, g1_ref, be1_ref, w2_ref, g2_ref, be2_ref,
                          o_ref, pad_ref, col_ref):
    """Fused ResidualBlock forward.

    x_ref   : (N, H, W, C) f32  input activation (unpadded, NHWC)
    w*_ref  : (9*C, C)     bf16 conv weights, rows ordered (tap, cin)
    g*,be*  : (1, C)       f32  BatchNorm gamma / beta
    o_ref   : (N*H*W, C)   f32  output (skip + block)
    pad_ref : (N, H+2, W+2, C) f32 scratch, shared padded activation (x, then h1)
    col_ref : (N*H*W, 9*C) f32 scratch, im2col staging buffer
    """
    N, Hp, Wp, C = pad_ref.shape
    H, W = Hp - 2, Wp - 2
    M = N * H * W

    def load_im2col():
        # Stage the 9 shifted 3x3-tap views of the padded activation into the
        # (M, 9*C) buffer (leading-dim collapse reshapes only), then read it
        # back once as the LHS of a single MXU matmul.
        for k in range(9):               # statically unrolled
            dy, dx = k // 3, k % 3
            tap = pad_ref[:, dy:dy + H, dx:dx + W, :].reshape(M, C)
            col_ref[:, k * C:(k + 1) * C] = tap
        # bf16 operands feed the MXU at full rate; accumulation stays f32.
        return col_ref[...].astype(jnp.bfloat16)

    def bn(y, gamma, beta):
        # Train-mode BatchNorm2d, folded into one FMA on the centered value.
        # Two-pass variance (numerically safe); biased var, eps=1e-5.
        mean = jnp.mean(y, axis=0, keepdims=True)          # (1, C)
        xc = y - mean
        var = jnp.mean(xc * xc, axis=0, keepdims=True)     # (1, C)
        scale = gamma * jax.lax.rsqrt(var + EPS)           # EUP rsqrt
        return xc * scale + beta

    # ---- in-kernel zero padding of the input (Conv2d padding=1) ----
    pad_ref[...] = jnp.zeros_like(pad_ref)
    x_flat = x_ref[...].reshape(M, C)
    pad_ref[:, 1:H + 1, 1:W + 1, :] = x_ref[...]

    # ---- stage 1: conv3x3 (single im2col matmul) -> BN -> ReLU ----
    # Conv bias is dropped: it is exactly cancelled by the BN mean subtraction.
    y1 = jnp.dot(load_im2col(), w1_ref[...], preferred_element_type=jnp.float32)
    h1 = jnp.maximum(bn(y1, g1_ref[...], be1_ref[...]), 0.0)

    # ---- stage 2: h1 stays in VMEM; overwrite only the interior of the padded
    #      scratch (halo is still zero) -> no HBM round-trip between stages ----
    pad_ref[:, 1:H + 1, 1:W + 1, :] = h1.reshape(N, H, W, C)

    y2 = jnp.dot(load_im2col(), w2_ref[...], preferred_element_type=jnp.float32)

    # residual add; note: output last dim = C (lane-sparse) — acceptable at this
    # size, see header comment.
    o_ref[...] = x_flat + bn(y2, g2_ref[...], be2_ref[...])


# -------------------------------- wrapper ----------------------------------- #

_VMEM = pl.BlockSpec(memory_space=pltpu.MemorySpace.VMEM)   # whole array in VMEM


def residual_block(x_nchw, params):
    """params = (w1, b1, g1, be1, w2, b2, g2, be2);
    w* shaped (9*C, C) with rows ordered (kh*kw, Cin) and columns Cout,
    b*/g*/be* shaped (1, C).  Conv biases b1/b2 are accepted for API parity but
    unused: they are exactly cancelled by train-mode BatchNorm."""
    w1, b1, g1, be1, w2, b2, g2, be2 = params
    del b1, b2  # cancelled by BN mean subtraction (forward output unchanged)

    x = jnp.transpose(x_nchw, (0, 2, 3, 1)).astype(jnp.float32)   # NCHW -> NHWC
    N, H, W, C = x.shape
    M = N * H * W

    out = pl.pallas_call(
        residual_block_kernel,
        out_shape=jax.ShapeDtypeStruct((M, C), jnp.float32),
        in_specs=[_VMEM] * 7,
        out_specs=_VMEM,
        scratch_shapes=[
            pltpu.VMEM((N, H + 2, W + 2, C), jnp.float32),   # shared padded act
            pltpu.VMEM((M, 9 * C), jnp.float32),             # im2col staging
        ],
        compiler_params=pltpu.CompilerParams(
            vmem_limit_bytes=32 * 1024 * 1024),
    )(x,
      w1.astype(jnp.bfloat16), g1, be1,
      w2.astype(jnp.bfloat16), g2, be2)

    return jnp.transpose(out.reshape(N, H, W, C), (0, 3, 1, 2))   # NHWC -> NCHW


# ------------------------------ pure-JAX ref -------------------------------- #

def ref_forward(x_nchw, params_hwio):
    """Reference (f32, with conv bias) using lax.conv_general_dilated;
    weights given as (3,3,Cin,Cout)."""
    w1, b1, g1, be1, w2, b2, g2, be2 = params_hwio
    x = jnp.transpose(x_nchw, (0, 2, 3, 1))

    def conv(h, w, b):
        y = jax.lax.conv_general_dilated(
            h, w, (1, 1), "SAME", dimension_numbers=("NHWC", "HWIO", "NHWC"))
        return y + b.reshape(1, 1, 1, -1)

    def bn(y, g, be):
        m = jnp.mean(y, axis=(0, 1, 2), keepdims=True)
        v = jnp.mean(jnp.square(y - m), axis=(0, 1, 2), keepdims=True)
        return (y - m) * jax.lax.rsqrt(v + EPS) * g.reshape(1, 1, 1, -1) \
               + be.reshape(1, 1, 1, -1)

    h = jax.nn.relu(bn(conv(x, w1, b1), g1, be1))
    y = x + bn(conv(h, w2, b2), g2, be2)
    return jnp.transpose(y, (0, 3, 1, 2))


# --------------------------------- main ------------------------------------- #

if __name__ == "__main__":
    C = 4
    key = jax.random.PRNGKey(0)
    ks = jax.random.split(key, 9)

    # PyTorch-style NCHW input
    x = jax.random.normal(ks[0], (2, C, 16, 16), jnp.float32)

    # deterministic synthetic parameters (shapes from the module's __init__)
    w1_hwio = 0.1 * jax.random.normal(ks[1], (3, 3, C, C), jnp.float32)
    b1 = 0.1 * jax.random.normal(ks[2], (1, C), jnp.float32)
    g1 = 1.0 + 0.1 * jax.random.normal(ks[3], (1, C), jnp.float32)
    be1 = 0.1 * jax.random.normal(ks[4], (1, C), jnp.float32)
    w2_hwio = 0.1 * jax.random.normal(ks[5], (3, 3, C, C), jnp.float32)
    b2 = 0.1 * jax.random.normal(ks[6], (1, C), jnp.float32)
    g2 = 1.0 + 0.1 * jax.random.normal(ks[7], (1, C), jnp.float32)
    be2 = 0.1 * jax.random.normal(ks[8], (1, C), jnp.float32)

    # kernel weight layout: (kh*kw*Cin, Cout), row index = (dy*3+dx)*Cin + cin
    params = (w1_hwio.reshape(9 * C, C), b1, g1, be1,
              w2_hwio.reshape(9 * C, C), b2, g2, be2)

    out = jax.block_until_ready(jax.jit(residual_block)(x, params))

    ref = ref_forward(x, (w1_hwio, b1, g1, be1, w2_hwio, b2, g2, be2))
    assert out.shape == x.shape
    # Tolerance accounts for bf16 MXU operands (f32 accumulation, f32 BN stats)
    # vs. the all-f32 reference.
    np.testing.assert_allclose(np.asarray(out), np.asarray(ref),
                               atol=2e-2, rtol=2e-2)
    print("KERNEL_OK")
</pallas_src>

<mosaic_0001>
module attributes {stable_mosaic.version = 11 : i64} {
  func.func @residual_block_kernel(%arg0: memref<2x16x16x4xf32, #tpu.memory_space<vmem>>, %arg1: memref<36x4xbf16, #tpu.memory_space<vmem>>, %arg2: memref<1x4xf32, #tpu.memory_space<vmem>>, %arg3: memref<1x4xf32, #tpu.memory_space<vmem>>, %arg4: memref<36x4xbf16, #tpu.memory_space<vmem>>, %arg5: memref<1x4xf32, #tpu.memory_space<vmem>>, %arg6: memref<1x4xf32, #tpu.memory_space<vmem>>, %arg7: memref<512x4xf32, #tpu.memory_space<vmem>>, %arg8: memref<2x18x18x4xf32, #tpu.memory_space<vmem>>, %arg9: memref<512x36xf32, #tpu.memory_space<vmem>>) attributes {dimension_semantics = [], scalar_prefetch = 0 : i64, scratch_operands = 2 : i64, tpu.core_type = #tpu.core_type<tc>} {
    %cst = arith.constant 0.000000e+00 : f32
    %0 = vector.broadcast %cst : f32 to vector<2x18x18x4xf32>
    %c0 = arith.constant 0 : index
    %c0_0 = arith.constant 0 : index
    %c0_1 = arith.constant 0 : index
    %c0_2 = arith.constant 0 : index
    %1 = vector.load %arg8[%c0, %c0_0, %c0_1, %c0_2] : memref<2x18x18x4xf32, #tpu.memory_space<vmem>>, vector<2x18x18x4xf32>
    tpu.vector_store %arg8[%c0, %c0_0, %c0_1, %c0_2], %0 {strides = array<i32>} : memref<2x18x18x4xf32, #tpu.memory_space<vmem>>, vector<2x18x18x4xf32>,
    %c0_3 = arith.constant 0 : index
    %c0_4 = arith.constant 0 : index
    %c0_5 = arith.constant 0 : index
    %c0_6 = arith.constant 0 : index
    %2 = vector.load %arg0[%c0_3, %c0_4, %c0_5, %c0_6] : memref<2x16x16x4xf32, #tpu.memory_space<vmem>>, vector<2x16x16x4xf32>
    %3 = vector.shape_cast %2 : vector<2x16x16x4xf32> to vector<512x4xf32>
    %c0_7 = arith.constant 0 : index
    %c0_8 = arith.constant 0 : index
    %c0_9 = arith.constant 0 : index
    %c0_10 = arith.constant 0 : index
    %4 = vector.load %arg0[%c0_7, %c0_8, %c0_9, %c0_10] : memref<2x16x16x4xf32, #tpu.memory_space<vmem>>, vector<2x16x16x4xf32>
    %c0_11 = arith.constant 0 : index
    %c1 = arith.constant 1 : index
    %c1_12 = arith.constant 1 : index
    %c0_13 = arith.constant 0 : index
    %5 = vector.load %arg8[%c0_11, %c1, %c1_12, %c0_13] : memref<2x18x18x4xf32, #tpu.memory_space<vmem>>, vector<2x16x16x4xf32>
    tpu.vector_store %arg8[%c0_11, %c1, %c1_12, %c0_13], %4 {strides = array<i32>} : memref<2x18x18x4xf32, #tpu.memory_space<vmem>>, vector<2x16x16x4xf32>,
    %c0_14 = arith.constant 0 : index
    %c0_15 = arith.constant 0 : index
    %c0_16 = arith.constant 0 : index
    %c0_17 = arith.constant 0 : index
    %6 = vector.load %arg8[%c0_14, %c0_15, %c0_16, %c0_17] : memref<2x18x18x4xf32, #tpu.memory_space<vmem>>, vector<2x16x16x4xf32>
    %7 = vector.shape_cast %6 : vector<2x16x16x4xf32> to vector<512x4xf32>
    %c0_18 = arith.constant 0 : index
    %c0_19 = arith.constant 0 : index
    %8 = vector.load %arg9[%c0_18, %c0_19] : memref<512x36xf32, #tpu.memory_space<vmem>>, vector<512x4xf32>
    tpu.vector_store %arg9[%c0_18, %c0_19], %7 {strides = array<i32>} : memref<512x36xf32, #tpu.memory_space<vmem>>, vector<512x4xf32>,
    %c0_20 = arith.constant 0 : index
    %c0_21 = arith.constant 0 : index
    %c1_22 = arith.constant 1 : index
    %c0_23 = arith.constant 0 : index
    %9 = vector.load %arg8[%c0_20, %c0_21, %c1_22, %c0_23] : memref<2x18x18x4xf32, #tpu.memory_space<vmem>>, vector<2x16x16x4xf32>
    %10 = vector.shape_cast %9 : vector<2x16x16x4xf32> to vector<512x4xf32>
    %c0_24 = arith.constant 0 : index
    %c4 = arith.constant 4 : index
    %11 = vector.load %arg9[%c0_24, %c4] : memref<512x36xf32, #tpu.memory_space<vmem>>, vector<512x4xf32>
    tpu.vector_store %arg9[%c0_24, %c4], %10 {strides = array<i32>} : memref<512x36xf32, #tpu.memory_space<vmem>>, vector<512x4xf32>,
    %c0_25 = arith.constant 0 : index
    %c0_26 = arith.constant 0 : index
    %c2 = arith.constant 2 : index
    %c0_27 = arith.constant 0 : index
    %12 = vector.load %arg8[%c0_25, %c0_26, %c2, %c0_27] : memref<2x18x18x4xf32, #tpu.memory_space<vmem>>, vector<2x16x16x4xf32>
    %13 = vector.shape_cast %12 : vector<2x16x16x4xf32> to vector<512x4xf32>
    %c0_28 = arith.constant 0 : index
    %c8 = arith.constant 8 : index
    %14 = vector.load %arg9[%c0_28, %c8] : memref<512x36xf32, #tpu.memory_space<vmem>>, vector<512x4xf32>
    tpu.vector_store %arg9[%c0_28, %c8], %13 {strides = array<i32>} : memref<512x36xf32, #tpu.memory_space<vmem>>, vector<512x4xf32>,
    %c0_29 = arith.constant 0 : index
    %c1_30 = arith.constant 1 : index
    %c0_31 = arith.constant 0 : index
    %c0_32 = arith.constant 0 : index
    %15 = vector.load %arg8[%c0_29, %c1_30, %c0_31, %c0_32] : memref<2x18x18x4xf32, #tpu.memory_space<vmem>>, vector<2x16x16x4xf32>
    %16 = vector.shape_cast %15 : vector<2x16x16x4xf32> to vector<512x4xf32>
    %c0_33 = arith.constant 0 : index
    %c12 = arith.constant 12 : index
    %17 = vector.load %arg9[%c0_33, %c12] : memref<512x36xf32, #tpu.memory_space<vmem>>, vector<512x4xf32>
    tpu.vector_store %arg9[%c0_33, %c12], %16 {strides = array<i32>} : memref<512x36xf32, #tpu.memory_space<vmem>>, vector<512x4xf32>,
    %c0_34 = arith.constant 0 : index
    %c1_35 = arith.constant 1 : index
    %c1_36 = arith.constant 1 : index
    %c0_37 = arith.constant 0 : index
    %18 = vector.load %arg8[%c0_34, %c1_35, %c1_36, %c0_37] : memref<2x18x18x4xf32, #tpu.memory_space<vmem>>, vector<2x16x16x4xf32>
    %19 = vector.shape_cast %18 : vector<2x16x16x4xf32> to vector<512x4xf32>
    %c0_38 = arith.constant 0 : index
    %c16 = arith.constant 16 : index
    %20 = vector.load %arg9[%c0_38, %c16] : memref<512x36xf32, #tpu.memory_space<vmem>>, vector<512x4xf32>
    tpu.vector_store %arg9[%c0_38, %c16], %19 {strides = array<i32>} : memref<512x36xf32, #tpu.memory_space<vmem>>, vector<512x4xf32>,
    %c0_39 = arith.constant 0 : index
    %c1_40 = arith.constant 1 : index
    %c2_41 = arith.constant 2 : index
    %c0_42 = arith.constant 0 : index
    %21 = vector.load %arg8[%c0_39, %c1_40, %c2_41, %c0_42] : memref<2x18x18x4xf32, #tpu.memory_space<vmem>>, vector<2x16x16x4xf32>
    %22 = vector.shape_cast %21 : vector<2x16x16x4xf32> to vector<512x4xf32>
    %c0_43 = arith.constant 0 : index
    %c20 = arith.constant 20 : index
    %23 = vector.load %arg9[%c0_43, %c20] : memref<512x36xf32, #tpu.memory_space<vmem>>, vector<512x4xf32>
    tpu.vector_store %arg9[%c0_43, %c20], %22 {strides = array<i32>} : memref<512x36xf32, #tpu.memory_space<vmem>>, vector<512x4xf32>,
    %c0_44 = arith.constant 0 : index
    %c2_45 = arith.constant 2 : index
    %c0_46 = arith.constant 0 : index
    %c0_47 = arith.constant 0 : index
    %24 = vector.load %arg8[%c0_44, %c2_45, %c0_46, %c0_47] : memref<2x18x18x4xf32, #tpu.memory_space<vmem>>, vector<2x16x16x4xf32>
    %25 = vector.shape_cast %24 : vector<2x16x16x4xf32> to vector<512x4xf32>
    %c0_48 = arith.constant 0 : index
    %c24 = arith.constant 24 : index
    %26 = vector.load %arg9[%c0_48, %c24] : memref<512x36xf32, #tpu.memory_space<vmem>>, vector<512x4xf32>
    tpu.vector_store %arg9[%c0_48, %c24], %25 {strides = array<i32>} : memref<512x36xf32, #tpu.memory_space<vmem>>, vector<512x4xf32>,
    %c0_49 = arith.constant 0 : index
    %c2_50 = arith.constant 2 : index
    %c1_51 = arith.constant 1 : index
    %c0_52 = arith.constant 0 : index
    %27 = vector.load %arg8[%c0_49, %c2_50, %c1_51, %c0_52] : memref<2x18x18x4xf32, #tpu.memory_space<vmem>>, vector<2x16x16x4xf32>
    %28 = vector.shape_cast %27 : vector<2x16x16x4xf32> to vector<512x4xf32>
    %c0_53 = arith.constant 0 : index
    %c28 = arith.constant 28 : index
    %29 = vector.load %arg9[%c0_53, %c28] : memref<512x36xf32, #tpu.memory_space<vmem>>, vector<512x4xf32>
    tpu.vector_store %arg9[%c0_53, %c28], %28 {strides = array<i32>} : memref<512x36xf32, #tpu.memory_space<vmem>>, vector<512x4xf32>,
    %c0_54 = arith.constant 0 : index
    %c2_55 = arith.constant 2 : index
    %c2_56 = arith.constant 2 : index
    %c0_57 = arith.constant 0 : index
    %30 = vector.load %arg8[%c0_54, %c2_55, %c2_56, %c0_57] : memref<2x18x18x4xf32, #tpu.memory_space<vmem>>, vector<2x16x16x4xf32>
    %31 = vector.shape_cast %30 : vector<2x16x16x4xf32> to vector<512x4xf32>
    %c0_58 = arith.constant 0 : index
    %c32 = arith.constant 32 : index
    %32 = vector.load %arg9[%c0_58, %c32] : memref<512x36xf32, #tpu.memory_space<vmem>>, vector<512x4xf32>
    tpu.vector_store %arg9[%c0_58, %c32], %31 {strides = array<i32>} : memref<512x36xf32, #tpu.memory_space<vmem>>, vector<512x4xf32>,
    %c0_59 = arith.constant 0 : index
    %c0_60 = arith.constant 0 : index
    %33 = vector.load %arg9[%c0_59, %c0_60] : memref<512x36xf32, #tpu.memory_space<vmem>>, vector<512x36xf32>
    %34 = arith.truncf %33 : vector<512x36xf32> to vector<512x36xbf16>
    %c0_61 = arith.constant 0 : index
    %c0_62 = arith.constant 0 : index
    %35 = vector.load %arg1[%c0_61, %c0_62] : memref<36x4xbf16, #tpu.memory_space<vmem>>, vector<36x4xbf16>
    %cst_63 = arith.constant dense<0.000000e+00> : vector<512x4xf32>
    %36 = tpu.matmul %34, %35, %cst_63 {dimension_numbers = #tpu.dot_dimension_numbers<[1], [0], [0], [1], [0, 0, 1, 1], [], []>} : vector<512x36xbf16>, vector<36x4xbf16>, vector<512x4xf32> -> vector<512x4xf32>
    %c0_64 = arith.constant 0 : index
    %c0_65 = arith.constant 0 : index
    %37 = vector.load %arg2[%c0_64, %c0_65] : memref<1x4xf32, #tpu.memory_space<vmem>>, vector<1x4xf32>
    %c0_66 = arith.constant 0 : index
    %c0_67 = arith.constant 0 : index
    %38 = vector.load %arg3[%c0_66, %c0_67] : memref<1x4xf32, #tpu.memory_space<vmem>>, vector<1x4xf32>
    %cst_68 = arith.constant dense<0.000000e+00> : vector<4xf32>
    %39 = vector.multi_reduction <add>, %36, %cst_68 [0] : vector<512x4xf32> to vector<4xf32>
    %40 = vector.shape_cast %39 : vector<4xf32> to vector<1x4xf32>
    %cst_69 = arith.constant 5.120000e+02 : f32
    %41 = vector.broadcast %cst_69 : f32 to vector<1x4xf32>
    %42 = arith.divf %40, %41 : vector<1x4xf32>
    %43 = vector.broadcast %42 : vector<1x4xf32> to vector<512x4xf32>
    %44 = arith.subf %36, %43 : vector<512x4xf32>
    %45 = arith.mulf %44, %44 : vector<512x4xf32>
    %cst_70 = arith.constant dense<0.000000e+00> : vector<4xf32>
    %46 = vector.multi_reduction <add>, %45, %cst_70 [0] : vector<512x4xf32> to vector<4xf32>
    %47 = vector.shape_cast %46 : vector<4xf32> to vector<1x4xf32>
    %cst_71 = arith.constant 5.120000e+02 : f32
    %48 = vector.broadcast %cst_71 : f32 to vector<1x4xf32>
    %49 = arith.divf %47, %48 : vector<1x4xf32>
    %cst_72 = arith.constant 9.99999974E-6 : f32
    %50 = vector.broadcast %cst_72 : f32 to vector<1x4xf32>
    %51 = arith.addf %49, %50 : vector<1x4xf32>
    %52 = math.rsqrt %51 : vector<1x4xf32>
    %53 = arith.mulf %37, %52 : vector<1x4xf32>
    %54 = vector.broadcast %53 : vector<1x4xf32> to vector<512x4xf32>
    %55 = arith.mulf %44, %54 : vector<512x4xf32>
    %56 = vector.broadcast %38 : vector<1x4xf32> to vector<512x4xf32>
    %57 = arith.addf %55, %56 : vector<512x4xf32>
    %cst_73 = arith.constant 0.000000e+00 : f32
    %58 = vector.broadcast %cst_73 : f32 to vector<512x4xf32>
    %59 = arith.maximumf %57, %58 : vector<512x4xf32>
    %60 = vector.shape_cast %59 : vector<512x4xf32> to vector<2x16x16x4xf32>
    %c0_74 = arith.constant 0 : index
    %c1_75 = arith.constant 1 : index
    %c1_76 = arith.constant 1 : index
    %c0_77 = arith.constant 0 : index
    %61 = vector.load %arg8[%c0_74, %c1_75, %c1_76, %c0_77] : memref<2x18x18x4xf32, #tpu.memory_space<vmem>>, vector<2x16x16x4xf32>
    tpu.vector_store %arg8[%c0_74, %c1_75, %c1_76, %c0_77], %60 {strides = array<i32>} : memref<2x18x18x4xf32, #tpu.memory_space<vmem>>, vector<2x16x16x4xf32>,
    %c0_78 = arith.constant 0 : index
    %c0_79 = arith.constant 0 : index
    %c0_80 = arith.constant 0 : index
    %c0_81 = arith.constant 0 : index
    %62 = vector.load %arg8[%c0_78, %c0_79, %c0_80, %c0_81] : memref<2x18x18x4xf32, #tpu.memory_space<vmem>>, vector<2x16x16x4xf32>
    %63 = vector.shape_cast %62 : vector<2x16x16x4xf32> to vector<512x4xf32>
    %c0_82 = arith.constant 0 : index
    %c0_83 = arith.constant 0 : index
    %64 = vector.load %arg9[%c0_82, %c0_83] : memref<512x36xf32, #tpu.memory_space<vmem>>, vector<512x4xf32>
    tpu.vector_store %arg9[%c0_82, %c0_83], %63 {strides = array<i32>} : memref<512x36xf32, #tpu.memory_space<vmem>>, vector<512x4xf32>,
    %c0_84 = arith.constant 0 : index
    %c0_85 = arith.constant 0 : index
    %c1_86 = arith.constant 1 : index
    %c0_87 = arith.constant 0 : index
    %65 = vector.load %arg8[%c0_84, %c0_85, %c1_86, %c0_87] : memref<2x18x18x4xf32, #tpu.memory_space<vmem>>, vector<2x16x16x4xf32>
    %66 = vector.shape_cast %65 : vector<2x16x16x4xf32> to vector<512x4xf32>
    %c0_88 = arith.constant 0 : index
    %c4_89 = arith.constant 4 : index
    %67 = vector.load %arg9[%c0_88, %c4_89] : memref<512x36xf32, #tpu.memory_space<vmem>>, vector<512x4xf32>
    tpu.vector_store %arg9[%c0_88, %c4_89], %66 {strides = array<i32>} : memref<512x36xf32, #tpu.memory_space<vmem>>, vector<512x4xf32>,
    %c0_90 = arith.constant 0 : index
    %c0_91 = arith.constant 0 : index
    %c2_92 = arith.constant 2 : index
    %c0_93 = arith.constant 0 : index
    %68 = vector.load %arg8[%c0_90, %c0_91, %c2_92, %c0_93] : memref<2x18x18x4xf32, #tpu.memory_space<vmem>>, vector<2x16x16x4xf32>
    %69 = vector.shape_cast %68 : vector<2x16x16x4xf32> to vector<512x4xf32>
    %c0_94 = arith.constant 0 : index
    %c8_95 = arith.constant 8 : index
    %70 = vector.load %arg9[%c0_94, %c8_95] : memref<512x36xf32, #tpu.memory_space<vmem>>, vector<512x4xf32>
    tpu.vector_store %arg9[%c0_94, %c8_95], %69 {strides = array<i32>} : memref<512x36xf32, #tpu.memory_space<vmem>>, vector<512x4xf32>,
    %c0_96 = arith.constant 0 : index
    %c1_97 = arith.constant 1 : index
    %c0_98 = arith.constant 0 : index
    %c0_99 = arith.constant 0 : index
    %71 = vector.load %arg8[%c0_96, %c1_97, %c0_98, %c0_99] : memref<2x18x18x4xf32, #tpu.memory_space<vmem>>, vector<2x16x16x4xf32>
    %72 = vector.shape_cast %71 : vector<2x16x16x4xf32> to vector<512x4xf32>
    %c0_100 = arith.constant 0 : index
    %c12_101 = arith.constant 12 : index
    %73 = vector.load %arg9[%c0_100, %c12_101] : memref<512x36xf32, #tpu.memory_space<vmem>>, vector<512x4xf32>
    tpu.vector_store %arg9[%c0_100, %c12_101], %72 {strides = array<i32>} : memref<512x36xf32, #tpu.memory_space<vmem>>, vector<512x4xf32>,
    %c0_102 = arith.constant 0 : index
    %c1_103 = arith.constant 1 : index
    %c1_104 = arith.constant 1 : index
    %c0_105 = arith.constant 0 : index
    %74 = vector.load %arg8[%c0_102, %c1_103, %c1_104, %c0_105] : memref<2x18x18x4xf32, #tpu.memory_space<vmem>>, vector<2x16x16x4xf32>
    %75 = vector.shape_cast %74 : vector<2x16x16x4xf32> to vector<512x4xf32>
    %c0_106 = arith.constant 0 : index
    %c16_107 = arith.constant 16 : index
    %76 = vector.load %arg9[%c0_106, %c16_107] : memref<512x36xf32, #tpu.memory_space<vmem>>, vector<512x4xf32>
    tpu.vector_store %arg9[%c0_106, %c16_107], %75 {strides = array<i32>} : memref<512x36xf32, #tpu.memory_space<vmem>>, vector<512x4xf32>,
    %c0_108 = arith.constant 0 : index
    %c1_109 = arith.constant 1 : index
    %c2_110 = arith.constant 2 : index
    %c0_111 = arith.constant 0 : index
    %77 = vector.load %arg8[%c0_108, %c1_109, %c2_110, %c0_111] : memref<2x18x18x4xf32, #tpu.memory_space<vmem>>, vector<2x16x16x4xf32>
    %78 = vector.shape_cast %77 : vector<2x16x16x4xf32> to vector<512x4xf32>
    %c0_112 = arith.constant 0 : index
    %c20_113 = arith.constant 20 : index
    %79 = vector.load %arg9[%c0_112, %c20_113] : memref<512x36xf32, #tpu.memory_space<vmem>>, vector<512x4xf32>
    tpu.vector_store %arg9[%c0_112, %c20_113], %78 {strides = array<i32>} : memref<512x36xf32, #tpu.memory_space<vmem>>, vector<512x4xf32>,
    %c0_114 = arith.constant 0 : index
    %c2_115 = arith.constant 2 : index
    %c0_116 = arith.constant 0 : index
    %c0_117 = arith.constant 0 : index
    %80 = vector.load %arg8[%c0_114, %c2_115, %c0_116, %c0_117] : memref<2x18x18x4xf32, #tpu.memory_space<vmem>>, vector<2x16x16x4xf32>
    %81 = vector.shape_cast %80 : vector<2x16x16x4xf32> to vector<512x4xf32>
    %c0_118 = arith.constant 0 : index
    %c24_119 = arith.constant 24 : index
    %82 = vector.load %arg9[%c0_118, %c24_119] : memref<512x36xf32, #tpu.memory_space<vmem>>, vector<512x4xf32>
    tpu.vector_store %arg9[%c0_118, %c24_119], %81 {strides = array<i32>} : memref<512x36xf32, #tpu.memory_space<vmem>>, vector<512x4xf32>,
    %c0_120 = arith.constant 0 : index
    %c2_121 = arith.constant 2 : index
    %c1_122 = arith.constant 1 : index
    %c0_123 = arith.constant 0 : index
    %83 = vector.load %arg8[%c0_120, %c2_121, %c1_122, %c0_123] : memref<2x18x18x4xf32, #tpu.memory_space<vmem>>, vector<2x16x16x4xf32>
    %84 = vector.shape_cast %83 : vector<2x16x16x4xf32> to vector<512x4xf32>
    %c0_124 = arith.constant 0 : index
    %c28_125 = arith.constant 28 : index
    %85 = vector.load %arg9[%c0_124, %c28_125] : memref<512x36xf32, #tpu.memory_space<vmem>>, vector<512x4xf32>
    tpu.vector_store %arg9[%c0_124, %c28_125], %84 {strides = array<i32>} : memref<512x36xf32, #tpu.memory_space<vmem>>, vector<512x4xf32>,
    %c0_126 = arith.constant 0 : index
    %c2_127 = arith.constant 2 : index
    %c2_128 = arith.constant 2 : index
    %c0_129 = arith.constant 0 : index
    %86 = vector.load %arg8[%c0_126, %c2_127, %c2_128, %c0_129] : memref<2x18x18x4xf32, #tpu.memory_space<vmem>>, vector<2x16x16x4xf32>
    %87 = vector.shape_cast %86 : vector<2x16x16x4xf32> to vector<512x4xf32>
    %c0_130 = arith.constant 0 : index
    %c32_131 = arith.constant 32 : index
    %88 = vector.load %arg9[%c0_130, %c32_131] : memref<512x36xf32, #tpu.memory_space<vmem>>, vector<512x4xf32>
    tpu.vector_store %arg9[%c0_130, %c32_131], %87 {strides = array<i32>} : memref<512x36xf32, #tpu.memory_space<vmem>>, vector<512x4xf32>,
    %c0_132 = arith.constant 0 : index
    %c0_133 = arith.constant 0 : index
    %89 = vector.load %arg9[%c0_132, %c0_133] : memref<512x36xf32, #tpu.memory_space<vmem>>, vector<512x36xf32>
    %90 = arith.truncf %89 : vector<512x36xf32> to vector<512x36xbf16>
    %c0_134 = arith.constant 0 : index
    %c0_135 = arith.constant 0 : index
    %91 = vector.load %arg4[%c0_134, %c0_135] : memref<36x4xbf16, #tpu.memory_space<vmem>>, vector<36x4xbf16>
    %cst_136 = arith.constant dense<0.000000e+00> : vector<512x4xf32>
    %92 = tpu.matmul %90, %91, %cst_136 {dimension_numbers = #tpu.dot_dimension_numbers<[1], [0], [0], [1], [0, 0, 1, 1], [], []>} : vector<512x36xbf16>, vector<36x4xbf16>, vector<512x4xf32> -> vector<512x4xf32>
    %c0_137 = arith.constant 0 : index
    %c0_138 = arith.constant 0 : index
    %93 = vector.load %arg5[%c0_137, %c0_138] : memref<1x4xf32, #tpu.memory_space<vmem>>, vector<1x4xf32>
    %c0_139 = arith.constant 0 : index
    %c0_140 = arith.constant 0 : index
    %94 = vector.load %arg6[%c0_139, %c0_140] : memref<1x4xf32, #tpu.memory_space<vmem>>, vector<1x4xf32>
    %cst_141 = arith.constant dense<0.000000e+00> : vector<4xf32>
    %95 = vector.multi_reduction <add>, %92, %cst_141 [0] : vector<512x4xf32> to vector<4xf32>
    %96 = vector.shape_cast %95 : vector<4xf32> to vector<1x4xf32>
    %cst_142 = arith.constant 5.120000e+02 : f32
    %97 = vector.broadcast %cst_142 : f32 to vector<1x4xf32>
    %98 = arith.divf %96, %97 : vector<1x4xf32>
    %99 = vector.broadcast %98 : vector<1x4xf32> to vector<512x4xf32>
    %100 = arith.subf %92, %99 : vector<512x4xf32>
    %101 = arith.mulf %100, %100 : vector<512x4xf32>
    %cst_143 = arith.constant dense<0.000000e+00> : vector<4xf32>
    %102 = vector.multi_reduction <add>, %101, %cst_143 [0] : vector<512x4xf32> to vector<4xf32>
    %103 = vector.shape_cast %102 : vector<4xf32> to vector<1x4xf32>
    %cst_144 = arith.constant 5.120000e+02 : f32
    %104 = vector.broadcast %cst_144 : f32 to vector<1x4xf32>
    %105 = arith.divf %103, %104 : vector<1x4xf32>
    %cst_145 = arith.constant 9.99999974E-6 : f32
    %106 = vector.broadcast %cst_145 : f32 to vector<1x4xf32>
    %107 = arith.addf %105, %106 : vector<1x4xf32>
    %108 = math.rsqrt %107 : vector<1x4xf32>
    %109 = arith.mulf %93, %108 : vector<1x4xf32>
    %110 = vector.broadcast %109 : vector<1x4xf32> to vector<512x4xf32>
    %111 = arith.mulf %100, %110 : vector<512x4xf32>
    %112 = vector.broadcast %94 : vector<1x4xf32> to vector<512x4xf32>
    %113 = arith.addf %111, %112 : vector<512x4xf32>
    %114 = arith.addf %3, %113 : vector<512x4xf32>
    %c0_146 = arith.constant 0 : index
    %c0_147 = arith.constant 0 : index
    %115 = vector.load %arg7[%c0_146, %c0_147] : memref<512x4xf32, #tpu.memory_space<vmem>>, vector<512x4xf32>
    tpu.vector_store %arg7[%c0_146, %c0_147], %114 {strides = array<i32>} : memref<512x4xf32, #tpu.memory_space<vmem>>, vector<512x4xf32>,
    return
  }
}

</mosaic_0001>

<llo_original>
// kernel: residual_block.1
$region0: #{residual_block.1}
  #allocation0 [shape = 'u32[]', space=smem, size = 0x4, offset = 0x4, fixed_abs, tag = 'smem constant byte address 0x4 - core index']
  #allocation1 [shape = 'u32[144,128]{1,0:T(1,128)}', space=vmem, size = 0x12000, scoped, tag = 'internal scratch']
  #allocation2 [shape = 'f32[2,18,18,4]{3,2,1,0:T(8,128)}', space=vmem, size = 0x6c000, scoped, tag = 'scratch operand']
  #allocation3 [shape = 'f32[512,36]{1,0:T(8,128)}', space=vmem, size = 0x40000, scoped, tag = 'scratch operand']
  %s0 = inlined_call_operand.vmem [shape: f32[2,16,16,4], index: 0, kind: input, shape index: {}]
  %s1 = inlined_call_operand.vmem [shape: bf16[36,4], index: 1, kind: input, shape index: {}]
  %s2 = inlined_call_operand.vmem [shape: f32[1,4], index: 2, kind: input, shape index: {}]
  %s3 = inlined_call_operand.vmem [shape: f32[1,4], index: 3, kind: input, shape index: {}]
  %s4 = inlined_call_operand.vmem [shape: bf16[36,4], index: 4, kind: input, shape index: {}]
  %s5 = inlined_call_operand.vmem [shape: f32[1,4], index: 5, kind: input, shape index: {}]
  %s6 = inlined_call_operand.vmem [shape: f32[1,4], index: 6, kind: input, shape index: {}]
  %s7 = inlined_call_operand.vmem [shape: f32[512,4], index: 7, kind: output, shape index: {}]
  %s8 = sld [smem:[#allocation0]]
  $region38: #{residual_block.1} parent=0
    _
  %s10 = ssub.s32 1, %s8
  %s11 = scalar_select 0, %s10, %s8
  // Predicated region
  $region2: #{residual_block.1} parent=0 // pred_check
    _
  $region3: #{residual_block.1} parent=0 // pred_check_branch
    %13 = sbr.rel (0) target = $region5
  $region4: #{residual_block.1} parent=0 // pred_region
    _
  $region5: #{residual_block.1} parent=0 // pred_fallthru
    _
  // Predicated region
  $region6: #{residual_block.1} parent=0 // pred_check
    _
  $region7: #{residual_block.1} parent=0 // pred_check_branch
    %15 = sbr.rel (0) target = $region9
  $region8: #{residual_block.1} parent=0 // pred_region
    _
  $region9: #{residual_block.1} parent=0 // pred_fallthru
    _
  // Predicated region
  $region10: #{residual_block.1} parent=0 // pred_check
    _
  $region11: #{residual_block.1} parent=0 // pred_check_branch
    %17 = sbr.rel (0) target = $region13
  $region12: #{residual_block.1} parent=0 // pred_region
    _
  $region13: #{residual_block.1} parent=0 // pred_fallthru
    _
  // Predicated region
  $region14: #{residual_block.1} parent=0 // pred_check
    _
  $region15: #{residual_block.1} parent=0 // pred_check_branch
    %19 = sbr.rel (0) target = $region17
  $region16: #{residual_block.1} parent=0 // pred_region
    _
  $region17: #{residual_block.1} parent=0 // pred_fallthru
    _
  // Predicated region
  $region18: #{residual_block.1} parent=0 // pred_check
    _
  $region19: #{residual_block.1} parent=0 // pred_check_branch
    %21 = sbr.rel (0) target = $region21
  $region20: #{residual_block.1} parent=0 // pred_region
    _
  $region21: #{residual_block.1} parent=0 // pred_fallthru
    _
  // Predicated region
  $region22: #{residual_block.1} parent=0 // pred_check
    _
  $region23: #{residual_block.1} parent=0 // pred_check_branch
    %23 = sbr.rel (0) target = $region25
  $region24: #{residual_block.1} parent=0 // pred_region
    _
  $region25: #{residual_block.1} parent=0 // pred_fallthru
    _
  // Predicated region
  $region26: #{residual_block.1} parent=0 // pred_check
    _
  $region27: #{residual_block.1} parent=0 // pred_check_branch
    %25 = sbr.rel (0) target = $region29
  $region28: #{residual_block.1} parent=0 // pred_region
    _
  $region29: #{residual_block.1} parent=0 // pred_fallthru
    _
  %vm27 = vcmask 31744
  %28 = vst.msk [vmem:[#allocation2] sm:$0xff] %vm27, 0.0
  %29 = vst.msk [vmem:[#allocation2 + $0x8] sm:$0xff] %vm27, 0.0
  %vm30 = vcmask 25600
  %31 = vst.msk [vmem:[#allocation2 + $0x10] sm:$0x3] %vm30, 0.0
  %32 = vst.msk [vmem:[#allocation2 + $0x18] sm:$0xff] %vm27, 0.0
  %33 = vst.msk [vmem:[#allocation2 + $0x20] sm:$0xff] %vm27, 0.0
  %34 = vst.msk [vmem:[#allocation2 + $0x28] sm:$0x3] %vm30, 0.0
  %35 = vst.msk [vmem:[#allocation2 + $0x30] sm:$0xff] %vm27, 0.0
  %36 = vst.msk [vmem:[#allocation2 + $0x38] sm:$0xff] %vm27, 0.0
  %37 = vst.msk [vmem:[#allocation2 + $0x40] sm:$0x3] %vm30, 0.0
  %38 = vst.msk [vmem:[#allocation2 + $0x48] sm:$0xff] %vm27, 0.0
  %39 = vst.msk [vmem:[#allocation2 + $0x50] sm:$0xff] %vm27, 0.0
  %40 = vst.msk [vmem:[#allocation2 + $0x58] sm:$0x3] %vm30, 0.0
  %41 = vst.msk [vmem:[#allocation2 + $0x60] sm:$0xff] %vm27, 0.0
  %42 = vst.msk [vmem:[#allocation2 + $0x68] sm:$0xff] %vm27, 0.0
  %43 = vst.msk [vmem:[#allocation2 + $0x70] sm:$0x3] %vm30, 0.0
  %44 = vst.msk [vmem:[#allocation2 + $0x78] sm:$0xff] %vm27, 0.0
  %45 = vst.msk [vmem:[#allocation2 + $0x80] sm:$0xff] %vm27, 0.0
  %46 = vst.msk [vmem:[#allocation2 + $0x88] sm:$0x3] %vm30, 0.0
  %47 = vst.msk [vmem:[#allocation2 + $0x90] sm:$0xff] %vm27, 0.0
  %48 = vst.msk [vmem:[#allocation2 + $0x98] sm:$0xff] %vm27, 0.0
  %49 = vst.msk [vmem:[#allocation2 + $0xa0] sm:$0x3] %vm30, 0.0
  %50 = vst.msk [vmem:[#allocation2 + $0xa8] sm:$0xff] %vm27, 0.0
  %51 = vst.msk [vmem:[#allocation2 + $0xb0] sm:$0xff] %vm27, 0.0
  %52 = vst.msk [vmem:[#allocation2 + $0xb8] sm:$0x3] %vm30, 0.0
  %53 = vst.msk [vmem:[#allocation2 + $0xc0] sm:$0xff] %vm27, 0.0
  %54 = vst.msk [vmem:[#allocation2 + $0xc8] sm:$0xff] %vm27, 0.0
  %55 = vst.msk [vmem:[#allocation2 + $0xd0] sm:$0x3] %vm30, 0.0
  %56 = vst.msk [vmem:[#allocation2 + $0xd8] sm:$0xff] %vm27, 0.0
  %57 = vst.msk [vmem:[#allocation2 + $0xe0] sm:$0xff] %vm27, 0.0
  %58 = vst.msk [vmem:[#allocation2 + $0xe8] sm:$0x3] %vm30, 0.0
  %59 = vst.msk [vmem:[#allocation2 + $0xf0] sm:$0xff] %vm27, 0.0
  %60 = vst.msk [vmem:[#allocation2 + $0xf8] sm:$0xff] %vm27, 0.0
  %61 = vst.msk [vmem:[#allocation2 + $0x100] sm:$0x3] %vm30, 0.0
  %62 = vst.msk [vmem:[#allocation2 + $0x108] sm:$0xff] %vm27, 0.0
  %63 = vst.msk [vmem:[#allocation2 + $0x110] sm:$0xff] %vm27, 0.0
  %64 = vst.msk [vmem:[#allocation2 + $0x118] sm:$0x3] %vm30, 0.0
  %65 = vst.msk [vmem:[#allocation2 + $0x120] sm:$0xff] %vm27, 0.0
  %66 = vst.msk [vmem:[#allocation2 + $0x128] sm:$0xff] %vm27, 0.0
  %67 = vst.msk [vmem:[#allocation2 + $0x130] sm:$0x3] %vm30, 0.0
  %68 = vst.msk [vmem:[#allocation2 + $0x138] sm:$0xff] %vm27, 0.0
  %69 = vst.msk [vmem:[#allocation2 + $0x140] sm:$0xff] %vm27, 0.0
  %70 = vst.msk [vmem:[#allocation2 + $0x148] sm:$0x3] %vm30, 0.0
  %71 = vst.msk [vmem:[#allocation2 + $0x150] sm:$0xff] %vm27, 0.0
  %72 = vst.msk [vmem:[#allocation2 + $0x158] sm:$0xff] %vm27, 0.0
  %73 = vst.msk [vmem:[#allocation2 + $0x160] sm:$0x3] %vm30, 0.0
  %74 = vst.msk [vmem:[#allocation2 + $0x168] sm:$0xff] %vm27, 0.0
  %75 = vst.msk [vmem:[#allocation2 + $0x170] sm:$0xff] %vm27, 0.0
  %76 = vst.msk [vmem:[#allocation2 + $0x178] sm:$0x3] %vm30, 0.0
  %77 = vst.msk [vmem:[#allocation2 + $0x180] sm:$0xff] %vm27, 0.0
  %78 = vst.msk [vmem:[#allocation2 + $0x188] sm:$0xff] %vm27, 0.0
  %79 = vst.msk [vmem:[#allocation2 + $0x190] sm:$0x3] %vm30, 0.0
  %80 = vst.msk [vmem:[#allocation2 + $0x198] sm:$0xff] %vm27, 0.0
  %81 = vst.msk [vmem:[#allocation2 + $0x1a0] sm:$0xff] %vm27, 0.0
  %82 = vst.msk [vmem:[#allocation2 + $0x1a8] sm:$0x3] %vm30, 0.0
  %83 = vst.msk [vmem:[#allocation2 + $0x1b0] sm:$0xff] %vm27, 0.0
  %84 = vst.msk [vmem:[#allocation2 + $0x1b8] sm:$0xff] %vm27, 0.0
  %85 = vst.msk [vmem:[#allocation2 + $0x1c0] sm:$0x3] %vm30, 0.0
  %86 = vst.msk [vmem:[#allocation2 + $0x1c8] sm:$0xff] %vm27, 0.0
  %87 = vst.msk [vmem:[#allocation2 + $0x1d0] sm:$0xff] %vm27, 0.0
  %88 = vst.msk [vmem:[#allocation2 + $0x1d8] sm:$0x3] %vm30, 0.0
  %89 = vst.msk [vmem:[#allocation2 + $0x1e0] sm:$0xff] %vm27, 0.0
  %90 = vst.msk [vmem:[#allocation2 + $0x1e8] sm:$0xff] %vm27, 0.0
  %91 = vst.msk [vmem:[#allocation2 + $0x1f0] sm:$0x3] %vm30, 0.0
  %92 = vst.msk [vmem:[#allocation2 + $0x1f8] sm:$0xff] %vm27, 0.0
  %93 = vst.msk [vmem:[#allocation2 + $0x200] sm:$0xff] %vm27, 0.0
  %94 = vst.msk [vmem:[#allocation2 + $0x208] sm:$0x3] %vm30, 0.0
  %95 = vst.msk [vmem:[#allocation2 + $0x210] sm:$0xff] %vm27, 0.0
  %96 = vst.msk [vmem:[#allocation2 + $0x218] sm:$0xff] %vm27, 0.0
  %97 = vst.msk [vmem:[#allocation2 + $0x220] sm:$0x3] %vm30, 0.0
  %98 = vst.msk [vmem:[#allocation2 + $0x228] sm:$0xff] %vm27, 0.0
  %99 = vst.msk [vmem:[#allocation2 + $0x230] sm:$0xff] %vm27, 0.0
  %100 = vst.msk [vmem:[#allocation2 + $0x238] sm:$0x3] %vm30, 0.0
  %101 = vst.msk [vmem:[#allocation2 + $0x240] sm:$0xff] %vm27, 0.0
  %102 = vst.msk [vmem:[#allocation2 + $0x248] sm:$0xff] %vm27, 0.0
  %103 = vst.msk [vmem:[#allocation2 + $0x250] sm:$0x3] %vm30, 0.0
  %104 = vst.msk [vmem:[#allocation2 + $0x258] sm:$0xff] %vm27, 0.0
  %105 = vst.msk [vmem:[#allocation2 + $0x260] sm:$0xff] %vm27, 0.0
  %106 = vst.msk [vmem:[#allocation2 + $0x268] sm:$0x3] %vm30, 0.0
  %107 = vst.msk [vmem:[#allocation2 + $0x270] sm:$0xff] %vm27, 0.0
  %108 = vst.msk [vmem:[#allocation2 + $0x278] sm:$0xff] %vm27, 0.0
  %109 = vst.msk [vmem:[#allocation2 + $0x280] sm:$0x3] %vm30, 0.0
  %110 = vst.msk [vmem:[#allocation2 + $0x288] sm:$0xff] %vm27, 0.0
  %111 = vst.msk [vmem:[#allocation2 + $0x290] sm:$0xff] %vm27, 0.0
  %112 = vst.msk [vmem:[#allocation2 + $0x298] sm:$0x3] %vm30, 0.0
  %113 = vst.msk [vmem:[#allocation2 + $0x2a0] sm:$0xff] %vm27, 0.0
  %114 = vst.msk [vmem:[#allocation2 + $0x2a8] sm:$0xff] %vm27, 0.0
  %115 = vst.msk [vmem:[#allocation2 + $0x2b0] sm:$0x3] %vm30, 0.0
  %116 = vst.msk [vmem:[#allocation2 + $0x2b8] sm:$0xff] %vm27, 0.0
  %117 = vst.msk [vmem:[#allocation2 + $0x2c0] sm:$0xff] %vm27, 0.0
  %118 = vst.msk [vmem:[#allocation2 + $0x2c8] sm:$0x3] %vm30, 0.0
  %119 = vst.msk [vmem:[#allocation2 + $0x2d0] sm:$0xff] %vm27, 0.0
  %120 = vst.msk [vmem:[#allocation2 + $0x2d8] sm:$0xff] %vm27, 0.0
  %121 = vst.msk [vmem:[#allocation2 + $0x2e0] sm:$0x3] %vm30, 0.0
  %122 = vst.msk [vmem:[#allocation2 + $0x2e8] sm:$0xff] %vm27, 0.0
  %123 = vst.msk [vmem:[#allocation2 + $0x2f0] sm:$0xff] %vm27, 0.0
  %124 = vst.msk [vmem:[#allocation2 + $0x2f8] sm:$0x3] %vm30, 0.0
  %125 = vst.msk [vmem:[#allocation2 + $0x300] sm:$0xff] %vm27, 0.0
  %126 = vst.msk [vmem:[#allocation2 + $0x308] sm:$0xff] %vm27, 0.0
  %127 = vst.msk [vmem:[#allocation2 + $0x310] sm:$0x3] %vm30, 0.0
  %128 = vst.msk [vmem:[#allocation2 + $0x318] sm:$0xff] %vm27, 0.0
  %129 = vst.msk [vmem:[#allocation2 + $0x320] sm:$0xff] %vm27, 0.0
  %130 = vst.msk [vmem:[#allocation2 + $0x328] sm:$0x3] %vm30, 0.0
  %131 = vst.msk [vmem:[#allocation2 + $0x330] sm:$0xff] %vm27, 0.0
  %132 = vst.msk [vmem:[#allocation2 + $0x338] sm:$0xff] %vm27, 0.0
  %133 = vst.msk [vmem:[#allocation2 + $0x340] sm:$0x3] %vm30, 0.0
  %134 = vst.msk [vmem:[#allocation2 + $0x348] sm:$0xff] %vm27, 0.0
  %135 = vst.msk [vmem:[#allocation2 + $0x350] sm:$0xff] %vm27, 0.0
  %136 = vst.msk [vmem:[#allocation2 + $0x358] sm:$0x3] %vm30, 0.0
  %v137 = vld [vmem:[%s0] sm:$0xff]
  %v138 = vld [vmem:[%s0 + $0x8] sm:$0xff]
  %v139 = vld [vmem:[%s0 + $0x10] sm:$0xff]
  %v140 = vld [vmem:[%s0 + $0x18] sm:$0xff]
  %v141 = vld [vmem:[%s0 + $0x20] sm:$0xff]
  %v142 = vld [vmem:[%s0 + $0x28] sm:$0xff]
  %v143 = vld [vmem:[%s0 + $0x30] sm:$0xff]
  %v144 = vld [vmem:[%s0 + $0x38] sm:$0xff]
  %v145 = vld [vmem:[%s0 + $0x40] sm:$0xff]
  %v146 = vld [vmem:[%s0 + $0x48] sm:$0xff]
  %v147 = vld [vmem:[%s0 + $0x50] sm:$0xff]
  %v148 = vld [vmem:[%s0 + $0x58] sm:$0xff]
  %v149 = vld [vmem:[%s0 + $0x60] sm:$0xff]
  %v150 = vld [vmem:[%s0 + $0x68] sm:$0xff]
  %v151 = vld [vmem:[%s0 + $0x70] sm:$0xff]
  %v152 = vld [vmem:[%s0 + $0x78] sm:$0xff]
  %v153 = vld [vmem:[%s0 + $0x80] sm:$0xff]
  %v154 = vld [vmem:[%s0 + $0x88] sm:$0xff]
  %v155 = vld [vmem:[%s0 + $0x90] sm:$0xff]
  %v156 = vld [vmem:[%s0 + $0x98] sm:$0xff]
  %v157 = vld [vmem:[%s0 + $0xa0] sm:$0xff]
  %v158 = vld [vmem:[%s0 + $0xa8] sm:$0xff]
  %v159 = vld [vmem:[%s0 + $0xb0] sm:$0xff]
  %v160 = vld [vmem:[%s0 + $0xb8] sm:$0xff]
  %v161 = vld [vmem:[%s0 + $0xc0] sm:$0xff]
  %v162 = vld [vmem:[%s0 + $0xc8] sm:$0xff]
  %v163 = vld [vmem:[%s0 + $0xd0] sm:$0xff]
  %v164 = vld [vmem:[%s0 + $0xd8] sm:$0xff]
  %v165 = vld [vmem:[%s0 + $0xe0] sm:$0xff]
  %v166 = vld [vmem:[%s0 + $0xe8] sm:$0xff]
  %v167 = vld [vmem:[%s0 + $0xf0] sm:$0xff]
  %v168 = vld [vmem:[%s0 + $0xf8] sm:$0xff]
  %v169 = vld [vmem:[%s0 + $0x100] sm:$0xff]
  %v170 = vld [vmem:[%s0 + $0x108] sm:$0xff]
  %v171 = vld [vmem:[%s0 + $0x110] sm:$0xff]
  %v172 = vld [vmem:[%s0 + $0x118] sm:$0xff]
  %v173 = vld [vmem:[%s0 + $0x120] sm:$0xff]
  %v174 = vld [vmem:[%s0 + $0x128] sm:$0xff]
  %v175 = vld [vmem:[%s0 + $0x130] sm:$0xff]
  %v176 = vld [vmem:[%s0 + $0x138] sm:$0xff]
  %v177 = vld [vmem:[%s0 + $0x140] sm:$0xff]
  %v178 = vld [vmem:[%s0 + $0x148] sm:$0xff]
  %v179 = vld [vmem:[%s0 + $0x150] sm:$0xff]
  %v180 = vld [vmem:[%s0 + $0x158] sm:$0xff]
  %v181 = vld [vmem:[%s0 + $0x160] sm:$0xff]
  %v182 = vld [vmem:[%s0 + $0x168] sm:$0xff]
  %v183 = vld [vmem:[%s0 + $0x170] sm:$0xff]
  %v184 = vld [vmem:[%s0 + $0x178] sm:$0xff]
  %v185 = vld [vmem:[%s0 + $0x180] sm:$0xff]
  %v186 = vld [vmem:[%s0 + $0x188] sm:$0xff]
  %v187 = vld [vmem:[%s0 + $0x190] sm:$0xff]
  %v188 = vld [vmem:[%s0 + $0x198] sm:$0xff]
  %v189 = vld [vmem:[%s0 + $0x1a0] sm:$0xff]
  %v190 = vld [vmem:[%s0 + $0x1a8] sm:$0xff]
  %v191 = vld [vmem:[%s0 + $0x1b0] sm:$0xff]
  %v192 = vld [vmem:[%s0 + $0x1b8] sm:$0xff]
  %v193 = vld [vmem:[%s0 + $0x1c0] sm:$0xff]
  %v194 = vld [vmem:[%s0 + $0x1c8] sm:$0xff]
  %v195 = vld [vmem:[%s0 + $0x1d0] sm:$0xff]
  %v196 = vld [vmem:[%s0 + $0x1d8] sm:$0xff]
  %v197 = vld [vmem:[%s0 + $0x1e0] sm:$0xff]
  %v198 = vld [vmem:[%s0 + $0x1e8] sm:$0xff]
  %v199 = vld [vmem:[%s0 + $0x1f0] sm:$0xff]
  %v200 = vld [vmem:[%s0 + $0x1f8] sm:$0xff]
  %s201 = scalar_lea.vmem [#allocation2], 24
  %202 = vst.msk [vmem:[%s201 + $0x1] sm:$0xff] %vm27, %v137
  %203 = vst.msk [vmem:[%s201 + $0x9] sm:$0xff] %vm27, %v138
  %204 = vst.msk [vmem:[%s201 + $0x19] sm:$0xff] %vm27, %v139
  %205 = vst.msk [vmem:[%s201 + $0x21] sm:$0xff] %vm27, %v140
  %206 = vst.msk [vmem:[%s201 + $0x31] sm:$0xff] %vm27, %v141
  %207 = vst.msk [vmem:[%s201 + $0x39] sm:$0xff] %vm27, %v142
  %208 = vst.msk [vmem:[%s201 + $0x49] sm:$0xff] %vm27, %v143
  %209 = vst.msk [vmem:[%s201 + $0x51] sm:$0xff] %vm27, %v144
  %210 = vst.msk [vmem:[%s201 + $0x61] sm:$0xff] %vm27, %v145
  %211 = vst.msk [vmem:[%s201 + $0x69] sm:$0xff] %vm27, %v146
  %212 = vst.msk [vmem:[%s201 + $0x79] sm:$0xff] %vm27, %v147
  %213 = vst.msk [vmem:[%s201 + $0x81] sm:$0xff] %vm27, %v148
  %214 = vst.msk [vmem:[%s201 + $0x91] sm:$0xff] %vm27, %v149
  %215 = vst.msk [vmem:[%s201 + $0x99] sm:$0xff] %vm27, %v150
  %216 = vst.msk [vmem:[%s201 + $0xa9] sm:$0xff] %vm27, %v151
  %217 = vst.msk [vmem:[%s201 + $0xb1] sm:$0xff] %vm27, %v152
  %218 = vst.msk [vmem:[%s201 + $0xc1] sm:$0xff] %vm27, %v153
  %219 = vst.msk [vmem:[%s201 + $0xc9] sm:$0xff] %vm27, %v154
  %220 = vst.msk [vmem:[%s201 + $0xd9] sm:$0xff] %vm27, %v155
  %221 = vst.msk [vmem:[%s201 + $0xe1] sm:$0xff] %vm27, %v156
  %222 = vst.msk [vmem:[%s201 + $0xf1] sm:$0xff] %vm27, %v157
  %223 = vst.msk [vmem:[%s201 + $0xf9] sm:$0xff] %vm27, %v158
  %224 = vst.msk [vmem:[%s201 + $0x109] sm:$0xff] %vm27, %v159
  %225 = vst.msk [vmem:[%s201 + $0x111] sm:$0xff] %vm27, %v160
  %226 = vst.msk [vmem:[%s201 + $0x121] sm:$0xff] %vm27, %v161
  %227 = vst.msk [vmem:[%s201 + $0x129] sm:$0xff] %vm27, %v162
  %228 = vst.msk [vmem:[%s201 + $0x139] sm:$0xff] %vm27, %v163
  %229 = vst.msk [vmem:[%s201 + $0x141] sm:$0xff] %vm27, %v164
  %230 = vst.msk [vmem:[%s201 + $0x151] sm:$0xff] %vm27, %v165
  %231 = vst.msk [vmem:[%s201 + $0x159] sm:$0xff] %vm27, %v166
  %232 = vst.msk [vmem:[%s201 + $0x169] sm:$0xff] %vm27, %v167
  %233 = vst.msk [vmem:[%s201 + $0x171] sm:$0xff] %vm27, %v168
  %234 = vst.msk [vmem:[%s201 + $0x1b1] sm:$0xff] %vm27, %v169
  %235 = vst.msk [vmem:[%s201 + $0x1b9] sm:$0xff] %vm27, %v170
  %236 = vst.msk [vmem:[%s201 + $0x1c9] sm:$0xff] %vm27, %v171
  %237 = vst.msk [vmem:[%s201 + $0x1d1] sm:$0xff] %vm27, %v172
  %238 = vst.msk [vmem:[%s201 + $0x1e1] sm:$0xff] %vm27, %v173
  %239 = vst.msk [vmem:[%s201 + $0x1e9] sm:$0xff] %vm27, %v174
  %240 = vst.msk [vmem:[%s201 + $0x1f9] sm:$0xff] %vm27, %v175
  %241 = vst.msk [vmem:[%s201 + $0x201] sm:$0xff] %vm27, %v176
  %242 = vst.msk [vmem:[%s201 + $0x211] sm:$0xff] %vm27, %v177
  %243 = vst.msk [vmem:[%s201 + $0x219] sm:$0xff] %vm27, %v178
  %244 = vst.msk [vmem:[%s201 + $0x229] sm:$0xff] %vm27, %v179
  %245 = vst.msk [vmem:[%s201 + $0x231] sm:$0xff] %vm27, %v180
  %246 = vst.msk [vmem:[%s201 + $0x241] sm:$0xff] %vm27, %v181
  %247 = vst.msk [vmem:[%s201 + $0x249] sm:$0xff] %vm27, %v182
  %248 = vst.msk [vmem:[%s201 + $0x259] sm:$0xff] %vm27, %v183
  %249 = vst.msk [vmem:[%s201 + $0x261] sm:$0xff] %vm27, %v184
  %250 = vst.msk [vmem:[%s201 + $0x271] sm:$0xff] %vm27, %v185
  %251 = vst.msk [vmem:[%s201 + $0x279] sm:$0xff] %vm27, %v186
  %252 = vst.msk [vmem:[%s201 + $0x289] sm:$0xff] %vm27, %v187
  %253 = vst.msk [vmem:[%s201 + $0x291] sm:$0xff] %vm27, %v188
  %254 = vst.msk [vmem:[%s201 + $0x2a1] sm:$0xff] %vm27, %v189
  %255 = vst.msk [vmem:[%s201 + $0x2a9] sm:$0xff] %vm27, %v190
  %256 = vst.msk [vmem:[%s201 + $0x2b9] sm:$0xff] %vm27, %v191
  %257 = vst.msk [vmem:[%s201 + $0x2c1] sm:$0xff] %vm27, %v192
  %258 = vst.msk [vmem:[%s201 + $0x2d1] sm:$0xff] %vm27, %v193
  %259 = vst.msk [vmem:[%s201 + $0x2d9] sm:$0xff] %vm27, %v194
  %260 = vst.msk [vmem:[%s201 + $0x2e9] sm:$0xff] %vm27, %v195
  %261 = vst.msk [vmem:[%s201 + $0x2f1] sm:$0xff] %vm27, %v196
  %262 = vst.msk [vmem:[%s201 + $0x301] sm:$0xff] %vm27, %v197
  %263 = vst.msk [vmem:[%s201 + $0x309] sm:$0xff] %vm27, %v198
  %264 = vst.msk [vmem:[%s201 + $0x319] sm:$0xff] %vm27, %v199
  %265 = vst.msk [vmem:[%s201 + $0x321] sm:$0xff] %vm27, %v200
  %v266 = vld [vmem:[#allocation2] sm:$0xff]
  %v267 = vld [vmem:[#allocation2 + $0x8] sm:$0xff]
  %v268 = vld [vmem:[#allocation2 + $0x18] sm:$0xff]
  %v269 = vld [vmem:[#allocation2 + $0x20] sm:$0xff]
  %v270 = vld [vmem:[#allocation2 + $0x30] sm:$0xff]
  %v271 = vld [vmem:[#allocation2 + $0x38] sm:$0xff]
  %v272 = vld [vmem:[#allocation2 + $0x48] sm:$0xff]
  %v273 = vld [vmem:[#allocation2 + $0x50] sm:$0xff]
  %v274 = vld [vmem:[#allocation2 + $0x60] sm:$0xff]
  %v275 = vld [vmem:[#allocation2 + $0x68] sm:$0xff]
  %v276 = vld [vmem:[#allocation2 + $0x78] sm:$0xff]
  %v277 = vld [vmem:[#allocation2 + $0x80] sm:$0xff]
  %v278 = vld [vmem:[#allocation2 + $0x90] sm:$0xff]
  %v279 = vld [vmem:[#allocation2 + $0x98] sm:$0xff]
  %v280 = vld [vmem:[#allocation2 + $0xa8] sm:$0xff]
  %v281 = vld [vmem:[#allocation2 + $0xb0] sm:$0xff]
  %v282 = vld [vmem:[#allocation2 + $0xc0] sm:$0xff]
  %v283 = vld [vmem:[#allocation2 + $0xc8] sm:$0xff]
  %v284 = vld [vmem:[#allocation2 + $0xd8] sm:$0xff]
  %v285 = vld [vmem:[#allocation2 + $0xe0] sm:$0xff]
  %v286 = vld [vmem:[#allocation2 + $0xf0] sm:$0xff]
  %v287 = vld [vmem:[#allocation2 + $0xf8] sm:$0xff]
  %v288 = vld [vmem:[#allocation2 + $0x108] sm:$0xff]
  %v289 = vld [vmem:[#allocation2 + $0x110] sm:$0xff]
  %v290 = vld [vmem:[#allocation2 + $0x120] sm:$0xff]
  %v291 = vld [vmem:[#allocation2 + $0x128] sm:$0xff]
  %v292 = vld [vmem:[#allocation2 + $0x138] sm:$0xff]
  %v293 = vld [vmem:[#allocation2 + $0x140] sm:$0xff]
  %v294 = vld [vmem:[#allocation2 + $0x150] sm:$0xff]
  %v295 = vld [vmem:[#allocation2 + $0x158] sm:$0xff]
  %v296 = vld [vmem:[#allocation2 + $0x168] sm:$0xff]
  %v297 = vld [vmem:[#allocation2 + $0x170] sm:$0xff]
  %v298 = vld [vmem:[#allocation2 + $0x1b0] sm:$0xff]
  %v299 = vld [vmem:[#allocation2 + $0x1b8] sm:$0xff]
  %v300 = vld [vmem:[#allocation2 + $0x1c8] sm:$0xff]
  %v301 = vld [vmem:[#allocation2 + $0x1d0] sm:$0xff]
  %v302 = vld [vmem:[#allocation2 + $0x1e0] sm:$0xff]
  %v303 = vld [vmem:[#allocation2 + $0x1e8] sm:$0xff]
  %v304 = vld [vmem:[#allocation2 + $0x1f8] sm:$0xff]
  %v305 = vld [vmem:[#allocation2 + $0x200] sm:$0xff]
  %v306 = vld [vmem:[#allocation2 + $0x210] sm:$0xff]
  %v307 = vld [vmem:[#allocation2 + $0x218] sm:$0xff]
  %v308 = vld [vmem:[#allocation2 + $0x228] sm:$0xff]
  %v309 = vld [vmem:[#allocation2 + $0x230] sm:$0xff]
  %v310 = vld [vmem:[#allocation2 + $0x240] sm:$0xff]
  %v311 = vld [vmem:[#allocation2 + $0x248] sm:$0xff]
  %v312 = vld [vmem:[#allocation2 + $0x258] sm:$0xff]
  %v313 = vld [vmem:[#allocation2 + $0x260] sm:$0xff]
  %v314 = vld [vmem:[#allocation2 + $0x270] sm:$0xff]
  %v315 = vld [vmem:[#allocation2 + $0x278] sm:$0xff]
  %v316 = vld [vmem:[#allocation2 + $0x288] sm:$0xff]
  %v317 = vld [vmem:[#allocation2 + $0x290] sm:$0xff]
  %v318 = vld [vmem:[#allocation2 + $0x2a0] sm:$0xff]
  %v319 = vld [vmem:[#allocation2 + $0x2a8] sm:$0xff]
  %v320 = vld [vmem:[#allocation2 + $0x2b8] sm:$0xff]
  %v321 = vld [vmem:[#allocation2 + $0x2c0] sm:$0xff]
  %v322 = vld [vmem:[#allocation2 + $0x2d0] sm:$0xff]
  %v323 = vld [vmem:[#allocation2 + $0x2d8] sm:$0xff]
  %v324 = vld [vmem:[#allocation2 + $0x2e8] sm:$0xff]
  %v325 = vld [vmem:[#allocation2 + $0x2f0] sm:$0xff]
  %v326 = vld [vmem:[#allocation2 + $0x300] sm:$0xff]
  %v327 = vld [vmem:[#allocation2 + $0x308] sm:$0xff]
  %v328 = vld [vmem:[#allocation2 + $0x318] sm:$0xff]
  %v329 = vld [vmem:[#allocation2 + $0x320] sm:$0xff]
  %330 = vst.msk [vmem:[#allocation3] sm:$0xff] %vm27, %v266
  %331 = vst.msk [vmem:[#allocation3 + $0x8] sm:$0xff] %vm27, %v267
  %332 = vst.msk [vmem:[#allocation3 + $0x10] sm:$0xff] %vm27, %v268
  %333 = vst.msk [vmem:[#allocation3 + $0x18] sm:$0xff] %vm27, %v269
  %334 = vst.msk [vmem:[#allocation3 + $0x20] sm:$0xff] %vm27, %v270
  %335 = vst.msk [vmem:[#allocation3 + $0x28] sm:$0xff] %vm27, %v271
  %336 = vst.msk [vmem:[#allocation3 + $0x30] sm:$0xff] %vm27, %v272
  %337 = vst.msk [vmem:[#allocation3 + $0x38] sm:$0xff] %vm27, %v273
  %338 = vst.msk [vmem:[#allocation3 + $0x40] sm:$0xff] %vm27, %v274
  %339 = vst.msk [vmem:[#allocation3 + $0x48] sm:$0xff] %vm27, %v275
  %340 = vst.msk [vmem:[#allocation3 + $0x50] sm:$0xff] %vm27, %v276
  %341 = vst.msk [vmem:[#allocation3 + $0x58] sm:$0xff] %vm27, %v277
  %342 = vst.msk [vmem:[#allocation3 + $0x60] sm:$0xff] %vm27, %v278
  %343 = vst.msk [vmem:[#allocation3 + $0x68] sm:$0xff] %vm27, %v279
  %344 = vst.msk [vmem:[#allocation3 + $0x70] sm:$0xff] %vm27, %v280
  %345 = vst.msk [vmem:[#allocation3 + $0x78] sm:$0xff] %vm27, %v281
  %346 = vst.msk [vmem:[#allocation3 + $0x80] sm:$0xff] %vm27, %v282
  %347 = vst.msk [vmem:[#allocation3 + $0x88] sm:$0xff] %vm27, %v283
  %348 = vst.msk [vmem:[#allocation3 + $0x90] sm:$0xff] %vm27, %v284
  %349 = vst.msk [vmem:[#allocation3 + $0x98] sm:$0xff] %vm27, %v285
  %350 = vst.msk [vmem:[#allocation3 + $0xa0] sm:$0xff] %vm27, %v286
  %351 = vst.msk [vmem:[#allocation3 + $0xa8] sm:$0xff] %vm27, %v287
  %352 = vst.msk [vmem:[#allocation3 + $0xb0] sm:$0xff] %vm27, %v288
  %353 = vst.msk [vmem:[#allocation3 + $0xb8] sm:$0xff] %vm27, %v289
  %354 = vst.msk [vmem:[#allocation3 + $0xc0] sm:$0xff] %vm27, %v290
  %355 = vst.msk [vmem:[#allocation3 + $0xc8] sm:$0xff] %vm27, %v291
  %356 = vst.msk [vmem:[#allocation3 + $0xd0] sm:$0xff] %vm27, %v292
  %357 = vst.msk [vmem:[#allocation3 + $0xd8] sm:$0xff] %vm27, %v293
  %358 = vst.msk [vmem:[#allocation3 + $0xe0] sm:$0xff] %vm27, %v294
  %359 = vst.msk [vmem:[#allocation3 + $0xe8] sm:$0xff] %vm27, %v295
  %360 = vst.msk [vmem:[#allocation3 + $0xf0] sm:$0xff] %vm27, %v296
  %361 = vst.msk [vmem:[#allocation3 + $0xf8] sm:$0xff] %vm27, %v297
  %362 = vst.msk [vmem:[#allocation3 + $0x100] sm:$0xff] %vm27, %v298
  %363 = vst.msk [vmem:[#allocation3 + $0x108] sm:$0xff] %vm27, %v299
  %364 = vst.msk [vmem:[#allocation3 + $0x110] sm:$0xff] %vm27, %v300
  %365 = vst.msk [vmem:[#allocation3 + $0x118] sm:$0xff] %vm27, %v301
  %366 = vst.msk [vmem:[#allocation3 + $0x120] sm:$0xff] %vm27, %v302
  %367 = vst.msk [vmem:[#allocation3 + $0x128] sm:$0xff] %vm27, %v303
  %368 = vst.msk [vmem:[#allocation3 + $0x130] sm:$0xff] %vm27, %v304
  %369 = vst.msk [vmem:[#allocation3 + $0x138] sm:$0xff] %vm27, %v305
  %370 = vst.msk [vmem:[#allocation3 + $0x140] sm:$0xff] %vm27, %v306
  %371 = vst.msk [vmem:[#allocation3 + $0x148] sm:$0xff] %vm27, %v307
  %372 = vst.msk [vmem:[#allocation3 + $0x150] sm:$0xff] %vm27, %v308
  %373 = vst.msk [vmem:[#allocation3 + $0x158] sm:$0xff] %vm27, %v309
  %374 = vst.msk [vmem:[#allocation3 + $0x160] sm:$0xff] %vm27, %v310
  %375 = vst.msk [vmem:[#allocation3 + $0x168] sm:$0xff] %vm27, %v311
  %376 = vst.msk [vmem:[#allocation3 + $0x170] sm:$0xff] %vm27, %v312
  %377 = vst.msk [vmem:[#allocation3 + $0x178] sm:$0xff] %vm27, %v313
  %378 = vst.msk [vmem:[#allocation3 + $0x180] sm:$0xff] %vm27, %v314
  %379 = vst.msk [vmem:[#allocation3 + $0x188] sm:$0xff] %vm27, %v315
  %380 = vst.msk [vmem:[#allocation3 + $0x190] sm:$0xff] %vm27, %v316
  %381 = vst.msk [vmem:[#allocation3 + $0x198] sm:$0xff] %vm27, %v317
  %382 = vst.msk [vmem:[#allocation3 + $0x1a0] sm:$0xff] %vm27, %v318
  %383 = vst.msk [vmem:[#allocation3 + $0x1a8] sm:$0xff] %vm27, %v319
  %384 = vst.msk [vmem:[#allocation3 + $0x1b0] sm:$0xff] %vm27, %v320
  %385 = vst.msk [vmem:[#allocation3 + $0x1b8] sm:$0xff] %vm27, %v321
  %386 = vst.msk [vmem:[#allocation3 + $0x1c0] sm:$0xff] %vm27, %v322
  %387 = vst.msk [vmem:[#allocation3 + $0x1c8] sm:$0xff] %vm27, %v323
  %388 = vst.msk [vmem:[#allocation3 + $0x1d0] sm:$0xff] %vm27, %v324
  %389 = vst.msk [vmem:[#allocation3 + $0x1d8] sm:$0xff] %vm27, %v325
  %390 = vst.msk [vmem:[#allocation3 + $0x1e0] sm:$0xff] %vm27, %v326
  %391 = vst.msk [vmem:[#allocation3 + $0x1e8] sm:$0xff] %vm27, %v327
  %392 = vst.msk [vmem:[#allocation3 + $0x1f0] sm:$0xff] %vm27, %v328
  %393 = vst.msk [vmem:[#allocation3 + $0x1f8] sm:$0xff] %vm27, %v329
  %v394 = vld [vmem:[#allocation2 + $0x1] sm:$0xff]
  %v395 = vld [vmem:[#allocation2 + $0x9] sm:$0xff]
  %v396 = vld [vmem:[#allocation2 + $0x19] sm:$0xff]
  %v397 = vld [vmem:[#allocation2 + $0x21] sm:$0xff]
  %v398 = vld [vmem:[#allocation2 + $0x31] sm:$0xff]
  %v399 = vld [vmem:[#allocation2 + $0x39] sm:$0xff]
  %v400 = vld [vmem:[#allocation2 + $0x49] sm:$0xff]
  %v401 = vld [vmem:[#allocation2 + $0x51] sm:$0xff]
  %v402 = vld [vmem:[#allocation2 + $0x61] sm:$0xff]
  %v403 = vld [vmem:[#allocation2 + $0x69] sm:$0xff]
  %v404 = vld [vmem:[#allocation2 + $0x79] sm:$0xff]
  %v405 = vld [vmem:[#allocation2 + $0x81] sm:$0xff]
  %v406 = vld [vmem:[#allocation2 + $0x91] sm:$0xff]
  %v407 = vld [vmem:[#allocation2 + $0x99] sm:$0xff]
  %v408 = vld [vmem:[#allocation2 + $0xa9] sm:$0xff]
  %v409 = vld [vmem:[#allocation2 + $0xb1] sm:$0xff]
  %v410 = vld [vmem:[#allocation2 + $0xc1] sm:$0xff]
  %v411 = vld [vmem:[#allocation2 + $0xc9] sm:$0xff]
  %v412 = vld [vmem:[#allocation2 + $0xd9] sm:$0xff]
  %v413 = vld [vmem:[#allocation2 + $0xe1] sm:$0xff]
  %v414 = vld [vmem:[#allocation2 + $0xf1] sm:$0xff]
  %v415 = vld [vmem:[#allocation2 + $0xf9] sm:$0xff]
  %v416 = vld [vmem:[#allocation2 + $0x109] sm:$0xff]
  %v417 = vld [vmem:[#allocation2 + $0x111] sm:$0xff]
  %v418 = vld [vmem:[#allocation2 + $0x121] sm:$0xff]
  %v419 = vld [vmem:[#allocation2 + $0x129] sm:$0xff]
  %v420 = vld [vmem:[#allocation2 + $0x139] sm:$0xff]
  %v421 = vld [vmem:[#allocation2 + $0x141] sm:$0xff]
  %v422 = vld [vmem:[#allocation2 + $0x151] sm:$0xff]
  %v423 = vld [vmem:[#allocation2 + $0x159] sm:$0xff]
  %v424 = vld [vmem:[#allocation2 + $0x169] sm:$0xff]
  %v425 = vld [vmem:[#allocation2 + $0x171] sm:$0xff]
  %v426 = vld [vmem:[#allocation2 + $0x1b1] sm:$0xff]
  %v427 = vld [vmem:[#allocation2 + $0x1b9] sm:$0xff]
  %v428 = vld [vmem:[#allocation2 + $0x1c9] sm:$0xff]
  %v429 = vld [vmem:[#allocation2 + $0x1d1] sm:$0xff]
  %v430 = vld [vmem:[#allocation2 + $0x1e1] sm:$0xff]
  %v431 = vld [vmem:[#allocation2 + $0x1e9] sm:$0xff]
  %v432 = vld [vmem:[#allocation2 + $0x1f9] sm:$0xff]
  %v433 = vld [vmem:[#allocation2 + $0x201] sm:$0xff]
  %v434 = vld [vmem:[#allocation2 + $0x211] sm:$0xff]
  %v435 = vld [vmem:[#allocation2 + $0x219] sm:$0xff]
  %v436 = vld [vmem:[#allocation2 + $0x229] sm:$0xff]
  %v437 = vld [vmem:[#allocation2 + $0x231] sm:$0xff]
  %v438 = vld [vmem:[#allocation2 + $0x241] sm:$0xff]
  %v439 = vld [vmem:[#allocation2 + $0x249] sm:$0xff]
  %v440 = vld [vmem:[#allocation2 + $0x259] sm:$0xff]
  %v441 = vld [vmem:[#allocation2 + $0x261] sm:$0xff]
  %v442 = vld [vmem:[#allocation2 + $0x271] sm:$0xff]
  %v443 = vld [vmem:[#allocation2 + $0x279] sm:$0xff]
  %v444 = vld [vmem:[#allocation2 + $0x289] sm:$0xff]
  %v445 = vld [vmem:[#allocation2 + $0x291] sm:$0xff]
  %v446 = vld [vmem:[#allocation2 + $0x2a1] sm:$0xff]
  %v447 = vld [vmem:[#allocation2 + $0x2a9] sm:$0xff]
  %v448 = vld [vmem:[#allocation2 + $0x2b9] sm:$0xff]
  %v449 = vld [vmem:[#allocation2 + $0x2c1] sm:$0xff]
  %v450 = vld [vmem:[#allocation2 + $0x2d1] sm:$0xff]
  %v451 = vld [vmem:[#allocation2 + $0x2d9] sm:$0xff]
  %v452 = vld [vmem:[#allocation2 + $0x2e9] sm:$0xff]
  %v453 = vld [vmem:[#allocation2 + $0x2f1] sm:$0xff]
  %v454 = vld [vmem:[#allocation2 + $0x301] sm:$0xff]
  %v455 = vld [vmem:[#allocation2 + $0x309] sm:$0xff]
  %v456 = vld [vmem:[#allocation2 + $0x319] sm:$0xff]
  %v457 = vld [vmem:[#allocation2 + $0x321] sm:$0xff]
  %522 = vrot.lane.b32.xlu0 %v394, 4
  %v523 = vpop.permute.xlu0 %522
  %524 = vrot.lane.b32.xlu0 %v395, 4
  %v525 = vpop.permute.xlu0 %524
  %526 = vrot.lane.b32.xlu0 %v396, 4
  %v527 = vpop.permute.xlu0 %526
  %528 = vrot.lane.b32.xlu0 %v397, 4
  %v529 = vpop.permute.xlu0 %528
  %530 = vrot.lane.b32.xlu0 %v398, 4
  %v531 = vpop.permute.xlu0 %530
  %532 = vrot.lane.b32.xlu0 %v399, 4
  %v533 = vpop.permute.xlu0 %532
  %534 = vrot.lane.b32.xlu0 %v400, 4
  %v535 = vpop.permute.xlu0 %534
  %536 = vrot.lane.b32.xlu0 %v401, 4
  %v537 = vpop.permute.xlu0 %536
  %538 = vrot.lane.b32.xlu0 %v402, 4
  %v539 = vpop.permute.xlu0 %538
  %540 = vrot.lane.b32.xlu0 %v403, 4
  %v541 = vpop.permute.xlu0 %540
  %542 = vrot.lane.b32.xlu0 %v404, 4
  %v543 = vpop.permute.xlu0 %542
  %544 = vrot.lane.b32.xlu0 %v405, 4
  %v545 = vpop.permute.xlu0 %544
  %546 = vrot.lane.b32.xlu0 %v406, 4
  %v547 = vpop.permute.xlu0 %546
  %548 = vrot.lane.b32.xlu0 %v407, 4
  %v549 = vpop.permute.xlu0 %548
  %550 = vrot.lane.b32.xlu0 %v408, 4
  %v551 = vpop.permute.xlu0 %550
  %552 = vrot.lane.b32.xlu0 %v409, 4
  %v553 = vpop.permute.xlu0 %552
  %554 = vrot.lane.b32.xlu0 %v410, 4
  %v555 = vpop.permute.xlu0 %554
  %556 = vrot.lane.b32.xlu0 %v411, 4
  %v557 = vpop.permute.xlu0 %556
  %558 = vrot.lane.b32.xlu0 %v412, 4
  %v559 = vpop.permute.xlu0 %558
  %560 = vrot.lane.b32.xlu0 %v413, 4
  %v561 = vpop.permute.xlu0 %560
  %562 = vrot.lane.b32.xlu0 %v414, 4
  %v563 = vpop.permute.xlu0 %562
  %564 = vrot.lane.b32.xlu0 %v415, 4
  %v565 = vpop.permute.xlu0 %564
  %566 = vrot.lane.b32.xlu0 %v416, 4
  %v567 = vpop.permute.xlu0 %566
  %568 = vrot.lane.b32.xlu0 %v417, 4
  %v569 = vpop.permute.xlu0 %568
  %570 = vrot.lane.b32.xlu0 %v418, 4
  %v571 = vpop.permute.xlu0 %570
  %572 = vrot.lane.b32.xlu0 %v419, 4
  %v573 = vpop.permute.xlu0 %572
  %574 = vrot.lane.b32.xlu0 %v420, 4
  %v575 = vpop.permute.xlu0 %574
  %576 = vrot.lane.b32.xlu0 %v421, 4
  %v577 = vpop.permute.xlu0 %576
  %578 = vrot.lane.b32.xlu0 %v422, 4
  %v579 = vpop.permute.xlu0 %578
  %580 = vrot.lane.b32.xlu0 %v423, 4
  %v581 = vpop.permute.xlu0 %580
  %582 = vrot.lane.b32.xlu0 %v424, 4
  %v583 = vpop.permute.xlu0 %582
  %584 = vrot.lane.b32.xlu0 %v425, 4
  %v585 = vpop.permute.xlu0 %584
  %586 = vrot.lane.b32.xlu0 %v426, 4
  %v587 = vpop.permute.xlu0 %586
  %588 = vrot.lane.b32.xlu0 %v427, 4
  %v589 = vpop.permute.xlu0 %588
  %590 = vrot.lane.b32.xlu0 %v428, 4
  %v591 = vpop.permute.xlu0 %590
  %592 = vrot.lane.b32.xlu0 %v429, 4
  %v593 = vpop.permute.xlu0 %592
  %594 = vrot.lane.b32.xlu0 %v430, 4
  %v595 = vpop.permute.xlu0 %594
  %596 = vrot.lane.b32.xlu0 %v431, 4
  %v597 = vpop.permute.xlu0 %596
  %598 = vrot.lane.b32.xlu0 %v432, 4
  %v599 = vpop.permute.xlu0 %598
  %600 = vrot.lane.b32.xlu0 %v433, 4
  %v601 = vpop.permute.xlu0 %600
  %602 = vrot.lane.b32.xlu0 %v434, 4
  %v603 = vpop.permute.xlu0 %602
  %604 = vrot.lane.b32.xlu0 %v435, 4
  %v605 = vpop.permute.xlu0 %604
  %606 = vrot.lane.b32.xlu0 %v436, 4
  %v607 = vpop.permute.xlu0 %606
  %608 = vrot.lane.b32.xlu0 %v437, 4
  %v609 = vpop.permute.xlu0 %608
  %610 = vrot.lane.b32.xlu0 %v438, 4
  %v611 = vpop.permute.xlu0 %610
  %612 = vrot.lane.b32.xlu0 %v439, 4
  %v613 = vpop.permute.xlu0 %612
  %614 = vrot.lane.b32.xlu0 %v440, 4
  %v615 = vpop.permute.xlu0 %614
  %616 = vrot.lane.b32.xlu0 %v441, 4
  %v617 = vpop.permute.xlu0 %616
  %618 = vrot.lane.b32.xlu0 %v442, 4
  %v619 = vpop.permute.xlu0 %618
  %620 = vrot.lane.b32.xlu0 %v443, 4
  %v621 = vpop.permute.xlu0 %620
  %622 = vrot.lane.b32.xlu0 %v444, 4
  %v623 = vpop.permute.xlu0 %622
  %624 = vrot.lane.b32.xlu0 %v445, 4
  %v625 = vpop.permute.xlu0 %624
  %626 = vrot.lane.b32.xlu0 %v446, 4
  %v627 = vpop.permute.xlu0 %626
  %628 = vrot.lane.b32.xlu0 %v447, 4
  %v629 = vpop.permute.xlu0 %628
  %630 = vrot.lane.b32.xlu0 %v448, 4
  %v631 = vpop.permute.xlu0 %630
  %632 = vrot.lane.b32.xlu0 %v449, 4
  %v633 = vpop.permute.xlu0 %632
  %634 = vrot.lane.b32.xlu0 %v450, 4
  %v635 = vpop.permute.xlu0 %634
  %636 = vrot.lane.b32.xlu0 %v451, 4
  %v637 = vpop.permute.xlu0 %636
  %638 = vrot.lane.b32.xlu0 %v452, 4
  %v639 = vpop.permute.xlu0 %638
  %640 = vrot.lane.b32.xlu0 %v453, 4
  %v641 = vpop.permute.xlu0 %640
  %642 = vrot.lane.b32.xlu0 %v454, 4
  %v643 = vpop.permute.xlu0 %642
  %644 = vrot.lane.b32.xlu0 %v455, 4
  %v645 = vpop.permute.xlu0 %644
  %646 = vrot.lane.b32.xlu0 %v456, 4
  %v647 = vpop.permute.xlu0 %646
  %648 = vrot.lane.b32.xlu0 %v457, 4
  %v649 = vpop.permute.xlu0 %648
  %vm714 = vcmask 64544
  %715 = vst.msk [vmem:[#allocation3] sm:$0xff] %vm714, %v523
  %716 = vst.msk [vmem:[#allocation3 + $0x8] sm:$0xff] %vm714, %v525
  %717 = vst.msk [vmem:[#allocation3 + $0x10] sm:$0xff] %vm714, %v527
  %718 = vst.msk [vmem:[#allocation3 + $0x18] sm:$0xff] %vm714, %v529
  %719 = vst.msk [vmem:[#allocation3 + $0x20] sm:$0xff] %vm714, %v531
  %720 = vst.msk [vmem:[#allocation3 + $0x28] sm:$0xff] %vm714, %v533
  %721 = vst.msk [vmem:[#allocation3 + $0x30] sm:$0xff] %vm714, %v535
  %722 = vst.msk [vmem:[#allocation3 + $0x38] sm:$0xff] %vm714, %v537
  %723 = vst.msk [vmem:[#allocation3 + $0x40] sm:$0xff] %vm714, %v539
  %724 = vst.msk [vmem:[#allocation3 + $0x48] sm:$0xff] %vm714, %v541
  %725 = vst.msk [vmem:[#allocation3 + $0x50] sm:$0xff] %vm714, %v543
  %726 = vst.msk [vmem:[#allocation3 + $0x58] sm:$0xff] %vm714, %v545
  %727 = vst.msk [vmem:[#allocation3 + $0x60] sm:$0xff] %vm714, %v547
  %728 = vst.msk [vmem:[#allocation3 + $0x68] sm:$0xff] %vm714, %v549
  %729 = vst.msk [vmem:[#allocation3 + $0x70] sm:$0xff] %vm714, %v551
  %730 = vst.msk [vmem:[#allocation3 + $0x78] sm:$0xff] %vm714, %v553
  %731 = vst.msk [vmem:[#allocation3 + $0x80] sm:$0xff] %vm714, %v555
  %732 = vst.msk [vmem:[#allocation3 + $0x88] sm:$0xff] %vm714, %v557
  %733 = vst.msk [vmem:[#allocation3 + $0x90] sm:$0xff] %vm714, %v559
  %734 = vst.msk [vmem:[#allocation3 + $0x98] sm:$0xff] %vm714, %v561
  %735 = vst.msk [vmem:[#allocation3 + $0xa0] sm:$0xff] %vm714, %v563
  %736 = vst.msk [vmem:[#allocation3 + $0xa8] sm:$0xff] %vm714, %v565
  %737 = vst.msk [vmem:[#allocation3 + $0xb0] sm:$0xff] %vm714, %v567
  %738 = vst.msk [vmem:[#allocation3 + $0xb8] sm:$0xff] %vm714, %v569
  %739 = vst.msk [vmem:[#allocation3 + $0xc0] sm:$0xff] %vm714, %v571
  %740 = vst.msk [vmem:[#allocation3 + $0xc8] sm:$0xff] %vm714, %v573
  %741 = vst.msk [vmem:[#allocation3 + $0xd0] sm:$0xff] %vm714, %v575
  %742 = vst.msk [vmem:[#allocation3 + $0xd8] sm:$0xff] %vm714, %v577
  %743 = vst.msk [vmem:[#allocation3 + $0xe0] sm:$0xff] %vm714, %v579
  %744 = vst.msk [vmem:[#allocation3 + $0xe8] sm:$0xff] %vm714, %v581
  %745 = vst.msk [vmem:[#allocation3 + $0xf0] sm:$0xff] %vm714, %v583
  %746 = vst.msk [vmem:[#allocation3 + $0xf8] sm:$0xff] %vm714, %v585
  %747 = vst.msk [vmem:[#allocation3 + $0x100] sm:$0xff] %vm714, %v587
  %748 = vst.msk [vmem:[#allocation3 + $0x108] sm:$0xff] %vm714, %v589
  %749 = vst.msk [vmem:[#allocation3 + $0x110] sm:$0xff] %vm714, %v591
  %750 = vst.msk [vmem:[#allocation3 + $0x118] sm:$0xff] %vm714, %v593
  %751 = vst.msk [vmem:[#allocation3 + $0x120] sm:$0xff] %vm714, %v595
  %752 = vst.msk [vmem:[#allocation3 + $0x128] sm:$0xff] %vm714, %v597
  %753 = vst.msk [vmem:[#allocation3 + $0x130] sm:$0xff] %vm714, %v599
  %754 = vst.msk [vmem:[#allocation3 + $0x138] sm:$0xff] %vm714, %v601
  %755 = vst.msk [vmem:[#allocation3 + $0x140] sm:$0xff] %vm714, %v603
  %756 = vst.msk [vmem:[#allocation3 + $0x148] sm:$0xff] %vm714, %v605
  %757 = vst.msk [vmem:[#allocation3 + $0x150] sm:$0xff] %vm714, %v607
  %758 = vst.msk [vmem:[#allocation3 + $0x158] sm:$0xff] %vm714, %v609
  %759 = vst.msk [vmem:[#allocation3 + $0x160] sm:$0xff] %vm714, %v611
  %760 = vst.msk [vmem:[#allocation3 + $0x168] sm:$0xff] %vm714, %v613
  %761 = vst.msk [vmem:[#allocation3 + $0x170] sm:$0xff] %vm714, %v615
  %762 = vst.msk [vmem:[#allocation3 + $0x178] sm:$0xff] %vm714, %v617
  %763 = vst.msk [vmem:[#allocation3 + $0x180] sm:$0xff] %vm714, %v619
  %764 = vst.msk [vmem:[#allocation3 + $0x188] sm:$0xff] %vm714, %v621
  %765 = vst.msk [vmem:[#allocation3 + $0x190] sm:$0xff] %vm714, %v623
  %766 = vst.msk [vmem:[#allocation3 + $0x198] sm:$0xff] %vm714, %v625
  %767 = vst.msk [vmem:[#allocation3 + $0x1a0] sm:$0xff] %vm714, %v627
  %768 = vst.msk [vmem:[#allocation3 + $0x1a8] sm:$0xff] %vm714, %v629
  %769 = vst.msk [vmem:[#allocation3 + $0x1b0] sm:$0xff] %vm714, %v631
  %770 = vst.msk [vmem:[#allocation3 + $0x1b8] sm:$0xff] %vm714, %v633
  %771 = vst.msk [vmem:[#allocation3 + $0x1c0] sm:$0xff] %vm714, %v635
  %772 = vst.msk [vmem:[#allocation3 + $0x1c8] sm:$0xff] %vm714, %v637
  %773 = vst.msk [vmem:[#allocation3 + $0x1d0] sm:$0xff] %vm714, %v639
  %774 = vst.msk [vmem:[#allocation3 + $0x1d8] sm:$0xff] %vm714, %v641
  %775 = vst.msk [vmem:[#allocation3 + $0x1e0] sm:$0xff] %vm714, %v643
  %776 = vst.msk [vmem:[#allocation3 + $0x1e8] sm:$0xff] %vm714, %v645
  %777 = vst.msk [vmem:[#allocation3 + $0x1f0] sm:$0xff] %vm714, %v647
  %778 = vst.msk [vmem:[#allocation3 + $0x1f8] sm:$0xff] %vm714, %v649
  %v779 = vld [vmem:[#allocation2 + $0x2] sm:$0xff]
  %v780 = vld [vmem:[#allocation2 + $0xa] sm:$0xff]
  %v781 = vld [vmem:[#allocation2 + $0x1a] sm:$0xff]
  %v782 = vld [vmem:[#allocation2 + $0x22] sm:$0xff]
  %v783 = vld [vmem:[#allocation2 + $0x32] sm:$0xff]
  %v784 = vld [vmem:[#allocation2 + $0x3a] sm:$0xff]
  %v785 = vld [vmem:[#allocation2 + $0x4a] sm:$0xff]
  %v786 = vld [vmem:[#allocation2 + $0x52] sm:$0xff]
  %v787 = vld [vmem:[#allocation2 + $0x62] sm:$0xff]
  %v788 = vld [vmem:[#allocation2 + $0x6a] sm:$0xff]
  %v789 = vld [vmem:[#allocation2 + $0x7a] sm:$0xff]
  %v790 = vld [vmem:[#allocation2 + $0x82] sm:$0xff]
  %v791 = vld [vmem:[#allocation2 + $0x92] sm:$0xff]
  %v792 = vld [vmem:[#allocation2 + $0x9a] sm:$0xff]
  %v793 = vld [vmem:[#allocation2 + $0xaa] sm:$0xff]
  %v794 = vld [vmem:[#allocation2 + $0xb2] sm:$0xff]
  %v795 = vld [vmem:[#allocation2 + $0xc2] sm:$0xff]
  %v796 = vld [vmem:[#allocation2 + $0xca] sm:$0xff]
  %v797 = vld [vmem:[#allocation2 + $0xda] sm:$0xff]
  %v798 = vld [vmem:[#allocation2 + $0xe2] sm:$0xff]
  %v799 = vld [vmem:[#allocation2 + $0xf2] sm:$0xff]
  %v800 = vld [vmem:[#allocation2 + $0xfa] sm:$0xff]
  %v801 = vld [vmem:[#allocation2 + $0x10a] sm:$0xff]
  %v802 = vld [vmem:[#allocation2 + $0x112] sm:$0xff]
  %v803 = vld [vmem:[#allocation2 + $0x122] sm:$0xff]
  %v804 = vld [vmem:[#allocation2 + $0x12a] sm:$0xff]
  %v805 = vld [vmem:[#allocation2 + $0x13a] sm:$0xff]
  %v806 = vld [vmem:[#allocation2 + $0x142] sm:$0xff]
  %v807 = vld [vmem:[#allocation2 + $0x152] sm:$0xff]
  %v808 = vld [vmem:[#allocation2 + $0x15a] sm:$0xff]
  %v809 = vld [vmem:[#allocation2 + $0x16a] sm:$0xff]
  %v810 = vld [vmem:[#allocation2 + $0x172] sm:$0xff]
  %v811 = vld [vmem:[#allocation2 + $0x1b2] sm:$0xff]
  %v812 = vld [vmem:[#allocation2 + $0x1ba] sm:$0xff]
  %v813 = vld [vmem:[#allocation2 + $0x1ca] sm:$0xff]
  %v814 = vld [vmem:[#allocation2 + $0x1d2] sm:$0xff]
  %v815 = vld [vmem:[#allocation2 + $0x1e2] sm:$0xff]
  %v816 = vld [vmem:[#allocation2 + $0x1ea] sm:$0xff]
  %v817 = vld [vmem:[#allocation2 + $0x1fa] sm:$0xff]
  %v818 = vld [vmem:[#allocation2 + $0x202] sm:$0xff]
  %v819 = vld [vmem:[#allocation2 + $0x212] sm:$0xff]
  %v820 = vld [vmem:[#allocation2 + $0x21a] sm:$0xff]
  %v821 = vld [vmem:[#allocation2 + $0x22a] sm:$0xff]
  %v822 = vld [vmem:[#allocation2 + $0x232] sm:$0xff]
  %v823 = vld [vmem:[#allocation2 + $0x242] sm:$0xff]
  %v824 = vld [vmem:[#allocation2 + $0x24a] sm:$0xff]
  %v825 = vld [vmem:[#allocation2 + $0x25a] sm:$0xff]
  %v826 = vld [vmem:[#allocation2 + $0x262] sm:$0xff]
  %v827 = vld [vmem:[#allocation2 + $0x272] sm:$0xff]
  %v828 = vld [vmem:[#allocation2 + $0x27a] sm:$0xff]
  %v829 = vld [vmem:[#allocation2 + $0x28a] sm:$0xff]
  %v830 = vld [vmem:[#allocation2 + $0x292] sm:$0xff]
  %v831 = vld [vmem:[#allocation2 + $0x2a2] sm:$0xff]
  %v832 = vld [vmem:[#allocation2 + $0x2aa] sm:$0xff]
  %v833 = vld [vmem:[#allocation2 + $0x2ba] sm:$0xff]
  %v834 = vld [vmem:[#allocation2 + $0x2c2] sm:$0xff]
  %v835 = vld [vmem:[#allocation2 + $0x2d2] sm:$0xff]
  %v836 = vld [vmem:[#allocation2 + $0x2da] sm:$0xff]
  %v837 = vld [vmem:[#allocation2 + $0x2ea] sm:$0xff]
  %v838 = vld [vmem:[#allocation2 + $0x2f2] sm:$0xff]
  %v839 = vld [vmem:[#allocation2 + $0x302] sm:$0xff]
  %v840 = vld [vmem:[#allocation2 + $0x30a] sm:$0xff]
  %v841 = vld [vmem:[#allocation2 + $0x31a] sm:$0xff]
  %v842 = vld [vmem:[#allocation2 + $0x322] sm:$0xff]
  %907 = vrot.lane.b32.xlu0 %v779, 8
  %v908 = vpop.permute.xlu0 %907
  %909 = vrot.lane.b32.xlu0 %v780, 8
  %v910 = vpop.permute.xlu0 %909
  %911 = vrot.lane.b32.xlu0 %v781, 8
  %v912 = vpop.permute.xlu0 %911
  %913 = vrot.lane.b32.xlu0 %v782, 8
  %v914 = vpop.permute.xlu0 %913
  %915 = vrot.lane.b32.xlu0 %v783, 8
  %v916 = vpop.permute.xlu0 %915
  %917 = vrot.lane.b32.xlu0 %v784, 8
  %v918 = vpop.permute.xlu0 %917
  %919 = vrot.lane.b32.xlu0 %v785, 8
  %v920 = vpop.permute.xlu0 %919
  %921 = vrot.lane.b32.xlu0 %v786, 8
  %v922 = vpop.permute.xlu0 %921
  %923 = vrot.lane.b32.xlu0 %v787, 8
  %v924 = vpop.permute.xlu0 %923
  %925 = vrot.lane.b32.xlu0 %v788, 8
  %v926 = vpop.permute.xlu0 %925
  %927 = vrot.lane.b32.xlu0 %v789, 8
  %v928 = vpop.permute.xlu0 %927
  %929 = vrot.lane.b32.xlu0 %v790, 8
  %v930 = vpop.permute.xlu0 %929
  %931 = vrot.lane.b32.xlu0 %v791, 8
  %v932 = vpop.permute.xlu0 %931
  %933 = vrot.lane.b32.xlu0 %v792, 8
  %v934 = vpop.permute.xlu0 %933
  %935 = vrot.lane.b32.xlu0 %v793, 8
  %v936 = vpop.permute.xlu0 %935
  %937 = vrot.lane.b32.xlu0 %v794, 8
  %v938 = vpop.permute.xlu0 %937
  %939 = vrot.lane.b32.xlu0 %v795, 8
  %v940 = vpop.permute.xlu0 %939
  %941 = vrot.lane.b32.xlu0 %v796, 8
  %v942 = vpop.permute.xlu0 %941
  %943 = vrot.lane.b32.xlu0 %v797, 8
  %v944 = vpop.permute.xlu0 %943
  %945 = vrot.lane.b32.xlu0 %v798, 8
  %v946 = vpop.permute.xlu0 %945
  %947 = vrot.lane.b32.xlu0 %v799, 8
  %v948 = vpop.permute.xlu0 %947
  %949 = vrot.lane.b32.xlu0 %v800, 8
  %v950 = vpop.permute.xlu0 %949
  %951 = vrot.lane.b32.xlu0 %v801, 8
  %v952 = vpop.permute.xlu0 %951
  %953 = vrot.lane.b32.xlu0 %v802, 8
  %v954 = vpop.permute.xlu0 %953
  %955 = vrot.lane.b32.xlu0 %v803, 8
  %v956 = vpop.permute.xlu0 %955
  %957 = vrot.lane.b32.xlu0 %v804, 8
  %v958 = vpop.permute.xlu0 %957
  %959 = vrot.lane.b32.xlu0 %v805, 8
  %v960 = vpop.permute.xlu0 %959
  %961 = vrot.lane.b32.xlu0 %v806, 8
  %v962 = vpop.permute.xlu0 %961
  %963 = vrot.lane.b32.xlu0 %v807, 8
  %v964 = vpop.permute.xlu0 %963
  %965 = vrot.lane.b32.xlu0 %v808, 8
  %v966 = vpop.permute.xlu0 %965
  %967 = vrot.lane.b32.xlu0 %v809, 8
  %v968 = vpop.permute.xlu0 %967
  %969 = vrot.lane.b32.xlu0 %v810, 8
  %v970 = vpop.permute.xlu0 %969
  %971 = vrot.lane.b32.xlu0 %v811, 8
  %v972 = vpop.permute.xlu0 %971
  %973 = vrot.lane.b32.xlu0 %v812, 8
  %v974 = vpop.permute.xlu0 %973
  %975 = vrot.lane.b32.xlu0 %v813, 8
  %v976 = vpop.permute.xlu0 %975
  %977 = vrot.lane.b32.xlu0 %v814, 8
  %v978 = vpop.permute.xlu0 %977
  %979 = vrot.lane.b32.xlu0 %v815, 8
  %v980 = vpop.permute.xlu0 %979
  %981 = vrot.lane.b32.xlu0 %v816, 8
  %v982 = vpop.permute.xlu0 %981
  %983 = vrot.lane.b32.xlu0 %v817, 8
  %v984 = vpop.permute.xlu0 %983
  %985 = vrot.lane.b32.xlu0 %v818, 8
  %v986 = vpop.permute.xlu0 %985
  %987 = vrot.lane.b32.xlu0 %v819, 8
  %v988 = vpop.permute.xlu0 %987
  %989 = vrot.lane.b32.xlu0 %v820, 8
  %v990 = vpop.permute.xlu0 %989
  %991 = vrot.lane.b32.xlu0 %v821, 8
  %v992 = vpop.permute.xlu0 %991
  %993 = vrot.lane.b32.xlu0 %v822, 8
  %v994 = vpop.permute.xlu0 %993
  %995 = vrot.lane.b32.xlu0 %v823, 8
  %v996 = vpop.permute.xlu0 %995
  %997 = vrot.lane.b32.xlu0 %v824, 8
  %v998 = vpop.permute.xlu0 %997
  %999 = vrot.lane.b32.xlu0 %v825, 8
  %v1000 = vpop.permute.xlu0 %999
  %1001 = vrot.lane.b32.xlu0 %v826, 8
  %v1002 = vpop.permute.xlu0 %1001
  %1003 = vrot.lane.b32.xlu0 %v827, 8
  %v1004 = vpop.permute.xlu0 %1003
  %1005 = vrot.lane.b32.xlu0 %v828, 8
  %v1006 = vpop.permute.xlu0 %1005
  %1007 = vrot.lane.b32.xlu0 %v829, 8
  %v1008 = vpop.permute.xlu0 %1007
  %1009 = vrot.lane.b32.xlu0 %v830, 8
  %v1010 = vpop.permute.xlu0 %1009
  %1011 = vrot.lane.b32.xlu0 %v831, 8
  %v1012 = vpop.permute.xlu0 %1011
  %1013 = vrot.lane.b32.xlu0 %v832, 8
  %v1014 = vpop.permute.xlu0 %1013
  %1015 = vrot.lane.b32.xlu0 %v833, 8
  %v1016 = vpop.permute.xlu0 %1015
  %1017 = vrot.lane.b32.xlu0 %v834, 8
  %v1018 = vpop.permute.xlu0 %1017
  %1019 = vrot.lane.b32.xlu0 %v835, 8
  %v1020 = vpop.permute.xlu0 %1019
  %1021 = vrot.lane.b32.xlu0 %v836, 8
  %v1022 = vpop.permute.xlu0 %1021
  %1023 = vrot.lane.b32.xlu0 %v837, 8
  %v1024 = vpop.permute.xlu0 %1023
  %1025 = vrot.lane.b32.xlu0 %v838, 8
  %v1026 = vpop.permute.xlu0 %1025
  %1027 = vrot.lane.b32.xlu0 %v839, 8
  %v1028 = vpop.permute.xlu0 %1027
  %1029 = vrot.lane.b32.xlu0 %v840, 8
  %v1030 = vpop.permute.xlu0 %1029
  %1031 = vrot.lane.b32.xlu0 %v841, 8
  %v1032 = vpop.permute.xlu0 %1031
  %1033 = vrot.lane.b32.xlu0 %v842, 8
  %v1034 = vpop.permute.xlu0 %1033
  %vm1099 = vcmask 97344
  %1100 = vst.msk [vmem:[#allocation3] sm:$0xff] %vm1099, %v908
  %1101 = vst.msk [vmem:[#allocation3 + $0x8] sm:$0xff] %vm1099, %v910
  %1102 = vst.msk [vmem:[#allocation3 + $0x10] sm:$0xff] %vm1099, %v912
  %1103 = vst.msk [vmem:[#allocation3 + $0x18] sm:$0xff] %vm1099, %v914
  %1104 = vst.msk [vmem:[#allocation3 + $0x20] sm:$0xff] %vm1099, %v916
  %1105 = vst.msk [vmem:[#allocation3 + $0x28] sm:$0xff] %vm1099, %v918
  %1106 = vst.msk [vmem:[#allocation3 + $0x30] sm:$0xff] %vm1099, %v920
  %1107 = vst.msk [vmem:[#allocation3 + $0x38] sm:$0xff] %vm1099, %v922
  %1108 = vst.msk [vmem:[#allocation3 + $0x40] sm:$0xff] %vm1099, %v924
  %1109 = vst.msk [vmem:[#allocation3 + $0x48] sm:$0xff] %vm1099, %v926
  %1110 = vst.msk [vmem:[#allocation3 + $0x50] sm:$0xff] %vm1099, %v928
  %1111 = vst.msk [vmem:[#allocation3 + $0x58] sm:$0xff] %vm1099, %v930
  %1112 = vst.msk [vmem:[#allocation3 + $0x60] sm:$0xff] %vm1099, %v932
  %1113 = vst.msk [vmem:[#allocation3 + $0x68] sm:$0xff] %vm1099, %v934
  %1114 = vst.msk [vmem:[#allocation3 + $0x70] sm:$0xff] %vm1099, %v936
  %1115 = vst.msk [vmem:[#allocation3 + $0x78] sm:$0xff] %vm1099, %v938
  %1116 = vst.msk [vmem:[#allocation3 + $0x80] sm:$0xff] %vm1099, %v940
  %1117 = vst.msk [vmem:[#allocation3 + $0x88] sm:$0xff] %vm1099, %v942
  %1118 = vst.msk [vmem:[#allocation3 + $0x90] sm:$0xff] %vm1099, %v944
  %1119 = vst.msk [vmem:[#allocation3 + $0x98] sm:$0xff] %vm1099, %v946
  %1120 = vst.msk [vmem:[#allocation3 + $0xa0] sm:$0xff] %vm1099, %v948
  %1121 = vst.msk [vmem:[#allocation3 + $0xa8] sm:$0xff] %vm1099, %v950
  %1122 = vst.msk [vmem:[#allocation3 + $0xb0] sm:$0xff] %vm1099, %v952
  %1123 = vst.msk [vmem:[#allocation3 + $0xb8] sm:$0xff] %vm1099, %v954
  %1124 = vst.msk [vmem:[#allocation3 + $0xc0] sm:$0xff] %vm1099, %v956
  %1125 = vst.msk [vmem:[#allocation3 + $0xc8] sm:$0xff] %vm1099, %v958
  %1126 = vst.msk [vmem:[#allocation3 + $0xd0] sm:$0xff] %vm1099, %v960
  %1127 = vst.msk [vmem:[#allocation3 + $0xd8] sm:$0xff] %vm1099, %v962
  %1128 = vst.msk [vmem:[#allocation3 + $0xe0] sm:$0xff] %vm1099, %v964
  %1129 = vst.msk [vmem:[#allocation3 + $0xe8] sm:$0xff] %vm1099, %v966
  %1130 = vst.msk [vmem:[#allocation3 + $0xf0] sm:$0xff] %vm1099, %v968
  %1131 = vst.msk [vmem:[#allocation3 + $0xf8] sm:$0xff] %vm1099, %v970
  %1132 = vst.msk [vmem:[#allocation3 + $0x100] sm:$0xff] %vm1099, %v972
  %1133 = vst.msk [vmem:[#allocation3 + $0x108] sm:$0xff] %vm1099, %v974
  %1134 = vst.msk [vmem:[#allocation3 + $0x110] sm:$0xff] %vm1099, %v976
  %1135 = vst.msk [vmem:[#allocation3 + $0x118] sm:$0xff] %vm1099, %v978
  %1136 = vst.msk [vmem:[#allocation3 + $0x120] sm:$0xff] %vm1099, %v980
  %1137 = vst.msk [vmem:[#allocation3 + $0x128] sm:$0xff] %vm1099, %v982
  %1138 = vst.msk [vmem:[#allocation3 + $0x130] sm:$0xff] %vm1099, %v984
  %1139 = vst.msk [vmem:[#allocation3 + $0x138] sm:$0xff] %vm1099, %v986
  %1140 = vst.msk [vmem:[#allocation3 + $0x140] sm:$0xff] %vm1099, %v988
  %1141 = vst.msk [vmem:[#allocation3 + $0x148] sm:$0xff] %vm1099, %v990
  %1142 = vst.msk [vmem:[#allocation3 + $0x150] sm:$0xff] %vm1099, %v992
  %1143 = vst.msk [vmem:[#allocation3 + $0x158] sm:$0xff] %vm1099, %v994
  %1144 = vst.msk [vmem:[#allocation3 + $0x160] sm:$0xff] %vm1099, %v996
  %1145 = vst.msk [vmem:[#allocation3 + $0x168] sm:$0xff] %vm1099, %v998
  %1146 = vst.msk [vmem:[#allocation3 + $0x170] sm:$0xff] %vm1099, %v1000
  %1147 = vst.msk [vmem:[#allocation3 + $0x178] sm:$0xff] %vm1099, %v1002
  %1148 = vst.msk [vmem:[#allocation3 + $0x180] sm:$0xff] %vm1099, %v1004
  %1149 = vst.msk [vmem:[#allocation3 + $0x188] sm:$0xff] %vm1099, %v1006
  %1150 = vst.msk [vmem:[#allocation3 + $0x190] sm:$0xff] %vm1099, %v1008
  %1151 = vst.msk [vmem:[#allocation3 + $0x198] sm:$0xff] %vm1099, %v1010
  %1152 = vst.msk [vmem:[#allocation3 + $0x1a0] sm:$0xff] %vm1099, %v1012
  %1153 = vst.msk [vmem:[#allocation3 + $0x1a8] sm:$0xff] %vm1099, %v1014
  %1154 = vst.msk [vmem:[#allocation3 + $0x1b0] sm:$0xff] %vm1099, %v1016
  %1155 = vst.msk [vmem:[#allocation3 + $0x1b8] sm:$0xff] %vm1099, %v1018
  %1156 = vst.msk [vmem:[#allocation3 + $0x1c0] sm:$0xff] %vm1099, %v1020
  %1157 = vst.msk [vmem:[#allocation3 + $0x1c8] sm:$0xff] %vm1099, %v1022
  %1158 = vst.msk [vmem:[#allocation3 + $0x1d0] sm:$0xff] %vm1099, %v1024
  %1159 = vst.msk [vmem:[#allocation3 + $0x1d8] sm:$0xff] %vm1099, %v1026
  %1160 = vst.msk [vmem:[#allocation3 + $0x1e0] sm:$0xff] %vm1099, %v1028
  %1161 = vst.msk [vmem:[#allocation3 + $0x1e8] sm:$0xff] %vm1099, %v1030
  %1162 = vst.msk [vmem:[#allocation3 + $0x1f0] sm:$0xff] %vm1099, %v1032
  %1163 = vst.msk [vmem:[#allocation3 + $0x1f8] sm:$0xff] %vm1099, %v1034
  %v1164 = vld [vmem:[%s201] sm:$0xff]
  %v1165 = vld [vmem:[%s201 + $0x8] sm:$0xff]
  %v1166 = vld [vmem:[%s201 + $0x18] sm:$0xff]
  %v1167 = vld [vmem:[%s201 + $0x20] sm:$0xff]
  %v1168 = vld [vmem:[%s201 + $0x30] sm:$0xff]
  %v1169 = vld [vmem:[%s201 + $0x38] sm:$0xff]
  %v1170 = vld [vmem:[%s201 + $0x48] sm:$0xff]
  %v1171 = vld [vmem:[%s201 + $0x50] sm:$0xff]
  %v1172 = vld [vmem:[%s201 + $0x60] sm:$0xff]
  %v1173 = vld [vmem:[%s201 + $0x68] sm:$0xff]
  %v1174 = vld [vmem:[%s201 + $0x78] sm:$0xff]
  %v1175 = vld [vmem:[%s201 + $0x80] sm:$0xff]
  %v1176 = vld [vmem:[%s201 + $0x90] sm:$0xff]
  %v1177 = vld [vmem:[%s201 + $0x98] sm:$0xff]
  %v1178 = vld [vmem:[%s201 + $0xa8] sm:$0xff]
  %v1179 = vld [vmem:[%s201 + $0xb0] sm:$0xff]
  %v1180 = vld [vmem:[%s201 + $0xc0] sm:$0xff]
  %v1181 = vld [vmem:[%s201 + $0xc8] sm:$0xff]
  %v1182 = vld [vmem:[%s201 + $0xd8] sm:$0xff]
  %v1183 = vld [vmem:[%s201 + $0xe0] sm:$0xff]
  %v1184 = vld [vmem:[%s201 + $0xf0] sm:$0xff]
  %v1185 = vld [vmem:[%s201 + $0xf8] sm:$0xff]
  %v1186 = vld [vmem:[%s201 + $0x108] sm:$0xff]
  %v1187 = vld [vmem:[%s201 + $0x110] sm:$0xff]
  %v1188 = vld [vmem:[%s201 + $0x120] sm:$0xff]
  %v1189 = vld [vmem:[%s201 + $0x128] sm:$0xff]
  %v1190 = vld [vmem:[%s201 + $0x138] sm:$0xff]
  %v1191 = vld [vmem:[%s201 + $0x140] sm:$0xff]
  %v1192 = vld [vmem:[%s201 + $0x150] sm:$0xff]
  %v1193 = vld [vmem:[%s201 + $0x158] sm:$0xff]
  %v1194 = vld [vmem:[%s201 + $0x168] sm:$0xff]
  %v1195 = vld [vmem:[%s201 + $0x170] sm:$0xff]
  %v1196 = vld [vmem:[%s201 + $0x1b0] sm:$0xff]
  %v1197 = vld [vmem:[%s201 + $0x1b8] sm:$0xff]
  %v1198 = vld [vmem:[%s201 + $0x1c8] sm:$0xff]
  %v1199 = vld [vmem:[%s201 + $0x1d0] sm:$0xff]
  %v1200 = vld [vmem:[%s201 + $0x1e0] sm:$0xff]
  %v1201 = vld [vmem:[%s201 + $0x1e8] sm:$0xff]
  %v1202 = vld [vmem:[%s201 + $0x1f8] sm:$0xff]
  %v1203 = vld [vmem:[%s201 + $0x200] sm:$0xff]
  %v1204 = vld [vmem:[%s201 + $0x210] sm:$0xff]
  %v1205 = vld [vmem:[%s201 + $0x218] sm:$0xff]
  %v1206 = vld [vmem:[%s201 + $0x228] sm:$0xff]
  %v1207 = vld [vmem:[%s201 + $0x230] sm:$0xff]
  %v1208 = vld [vmem:[%s201 + $0x240] sm:$0xff]
  %v1209 = vld [vmem:[%s201 + $0x248] sm:$0xff]
  %v1210 = vld [vmem:[%s201 + $0x258] sm:$0xff]
  %v1211 = vld [vmem:[%s201 + $0x260] sm:$0xff]
  %v1212 = vld [vmem:[%s201 + $0x270] sm:$0xff]
  %v1213 = vld [vmem:[%s201 + $0x278] sm:$0xff]
  %v1214 = vld [vmem:[%s201 + $0x288] sm:$0xff]
  %v1215 = vld [vmem:[%s201 + $0x290] sm:$0xff]
  %v1216 = vld [vmem:[%s201 + $0x2a0] sm:$0xff]
  %v1217 = vld [vmem:[%s201 + $0x2a8] sm:$0xff]
  %v1218 = vld [vmem:[%s201 + $0x2b8] sm:$0xff]
  %v1219 = vld [vmem:[%s201 + $0x2c0] sm:$0xff]
  %v1220 = vld [vmem:[%s201 + $0x2d0] sm:$0xff]
  %v1221 = vld [vmem:[%s201 + $0x2d8] sm:$0xff]
  %v1222 = vld [vmem:[%s201 + $0x2e8] sm:$0xff]
  %v1223 = vld [vmem:[%s201 + $0x2f0] sm:$0xff]
  %v1224 = vld [vmem:[%s201 + $0x300] sm:$0xff]
  %v1225 = vld [vmem:[%s201 + $0x308] sm:$0xff]
  %v1226 = vld [vmem:[%s201 + $0x318] sm:$0xff]
  %v1227 = vld [vmem:[%s201 + $0x320] sm:$0xff]
  %1292 = vrot.lane.b32.xlu0 %v1164, 12
  %v1293 = vpop.permute.xlu0 %1292
  %1294 = vrot.lane.b32.xlu0 %v1165, 12
  %v1295 = vpop.permute.xlu0 %1294
  %1296 = vrot.lane.b32.xlu0 %v1166, 12
  %v1297 = vpop.permute.xlu0 %1296
  %1298 = vrot.lane.b32.xlu0 %v1167, 12
  %v1299 = vpop.permute.xlu0 %1298
  %1300 = vrot.lane.b32.xlu0 %v1168, 12
  %v1301 = vpop.permute.xlu0 %1300
  %1302 = vrot.lane.b32.xlu0 %v1169, 12
  %v1303 = vpop.permute.xlu0 %1302
  %1304 = vrot.lane.b32.xlu0 %v1170, 12
  %v1305 = vpop.permute.xlu0 %1304
  %1306 = vrot.lane.b32.xlu0 %v1171, 12
  %v1307 = vpop.permute.xlu0 %1306
  %1308 = vrot.lane.b32.xlu0 %v1172, 12
  %v1309 = vpop.permute.xlu0 %1308
  %1310 = vrot.lane.b32.xlu0 %v1173, 12
  %v1311 = vpop.permute.xlu0 %1310
  %1312 = vrot.lane.b32.xlu0 %v1174, 12
  %v1313 = vpop.permute.xlu0 %1312
  %1314 = vrot.lane.b32.xlu0 %v1175, 12
  %v1315 = vpop.permute.xlu0 %1314
  %1316 = vrot.lane.b32.xlu0 %v1176, 12
  %v1317 = vpop.permute.xlu0 %1316
  %1318 = vrot.lane.b32.xlu0 %v1177, 12
  %v1319 = vpop.permute.xlu0 %1318
  %1320 = vrot.lane.b32.xlu0 %v1178, 12
  %v1321 = vpop.permute.xlu0 %1320
  %1322 = vrot.lane.b32.xlu0 %v1179, 12
  %v1323 = vpop.permute.xlu0 %1322
  %1324 = vrot.lane.b32.xlu0 %v1180, 12
  %v1325 = vpop.permute.xlu0 %1324
  %1326 = vrot.lane.b32.xlu0 %v1181, 12
  %v1327 = vpop.permute.xlu0 %1326
  %1328 = vrot.lane.b32.xlu0 %v1182, 12
  %v1329 = vpop.permute.xlu0 %1328
  %1330 = vrot.lane.b32.xlu0 %v1183, 12
  %v1331 = vpop.permute.xlu0 %1330
  %1332 = vrot.lane.b32.xlu0 %v1184, 12
  %v1333 = vpop.permute.xlu0 %1332
  %1334 = vrot.lane.b32.xlu0 %v1185, 12
  %v1335 = vpop.permute.xlu0 %1334
  %1336 = vrot.lane.b32.xlu0 %v1186, 12
  %v1337 = vpop.permute.xlu0 %1336
  %1338 = vrot.lane.b32.xlu0 %v1187, 12
  %v1339 = vpop.permute.xlu0 %1338
  %1340 = vrot.lane.b32.xlu0 %v1188, 12
  %v1341 = vpop.permute.xlu0 %1340
  %1342 = vrot.lane.b32.xlu0 %v1189, 12
  %v1343 = vpop.permute.xlu0 %1342
  %1344 = vrot.lane.b32.xlu0 %v1190, 12
  %v1345 = vpop.permute.xlu0 %1344
  %1346 = vrot.lane.b32.xlu0 %v1191, 12
  %v1347 = vpop.permute.xlu0 %1346
  %1348 = vrot.lane.b32.xlu0 %v1192, 12
  %v1349 = vpop.permute.xlu0 %1348
  %1350 = vrot.lane.b32.xlu0 %v1193, 12
  %v1351 = vpop.permute.xlu0 %1350
  %1352 = vrot.lane.b32.xlu0 %v1194, 12
  %v1353 = vpop.permute.xlu0 %1352
  %1354 = vrot.lane.b32.xlu0 %v1195, 12
  %v1355 = vpop.permute.xlu0 %1354
  %1356 = vrot.lane.b32.xlu0 %v1196, 12
  %v1357 = vpop.permute.xlu0 %1356
  %1358 = vrot.lane.b32.xlu0 %v1197, 12
  %v1359 = vpop.permute.xlu0 %1358
  %1360 = vrot.lane.b32.xlu0 %v1198, 12
  %v1361 = vpop.permute.xlu0 %1360
  %1362 = vrot.lane.b32.xlu0 %v1199, 12
  %v1363 = vpop.permute.xlu0 %1362
  %1364 = vrot.lane.b32.xlu0 %v1200, 12
  %v1365 = vpop.permute.xlu0 %1364
  %1366 = vrot.lane.b32.xlu0 %v1201, 12
  %v1367 = vpop.permute.xlu0 %1366
  %1368 = vrot.lane.b32.xlu0 %v1202, 12
  %v1369 = vpop.permute.xlu0 %1368
  %1370 = vrot.lane.b32.xlu0 %v1203, 12
  %v1371 = vpop.permute.xlu0 %1370
  %1372 = vrot.lane.b32.xlu0 %v1204, 12
  %v1373 = vpop.permute.xlu0 %1372
  %1374 = vrot.lane.b32.xlu0 %v1205, 12
  %v1375 = vpop.permute.xlu0 %1374
  %1376 = vrot.lane.b32.xlu0 %v1206, 12
  %v1377 = vpop.permute.xlu0 %1376
  %1378 = vrot.lane.b32.xlu0 %v1207, 12
  %v1379 = vpop.permute.xlu0 %1378
  %1380 = vrot.lane.b32.xlu0 %v1208, 12
  %v1381 = vpop.permute.xlu0 %1380
  %1382 = vrot.lane.b32.xlu0 %v1209, 12
  %v1383 = vpop.permute.xlu0 %1382
  %1384 = vrot.lane.b32.xlu0 %v1210, 12
  %v1385 = vpop.permute.xlu0 %1384
  %1386 = vrot.lane.b32.xlu0 %v1211, 12
  %v1387 = vpop.permute.xlu0 %1386
  %1388 = vrot.lane.b32.xlu0 %v1212, 12
  %v1389 = vpop.permute.xlu0 %1388
  %1390 = vrot.lane.b32.xlu0 %v1213, 12
  %v1391 = vpop.permute.xlu0 %1390
  %1392 = vrot.lane.b32.xlu0 %v1214, 12
  %v1393 = vpop.permute.xlu0 %1392
  %1394 = vrot.lane.b32.xlu0 %v1215, 12
  %v1395 = vpop.permute.xlu0 %1394
  %1396 = vrot.lane.b32.xlu0 %v1216, 12
  %v1397 = vpop.permute.xlu0 %1396
  %1398 = vrot.lane.b32.xlu0 %v1217, 12
  %v1399 = vpop.permute.xlu0 %1398
  %1400 = vrot.lane.b32.xlu0 %v1218, 12
  %v1401 = vpop.permute.xlu0 %1400
  %1402 = vrot.lane.b32.xlu0 %v1219, 12
  %v1403 = vpop.permute.xlu0 %1402
  %1404 = vrot.lane.b32.xlu0 %v1220, 12
  %v1405 = vpop.permute.xlu0 %1404
  %1406 = vrot.lane.b32.xlu0 %v1221, 12
  %v1407 = vpop.permute.xlu0 %1406
  %1408 = vrot.lane.b32.xlu0 %v1222, 12
  %v1409 = vpop.permute.xlu0 %1408
  %1410 = vrot.lane.b32.xlu0 %v1223, 12
  %v1411 = vpop.permute.xlu0 %1410
  %1412 = vrot.lane.b32.xlu0 %v1224, 12
  %v1413 = vpop.permute.xlu0 %1412
  %1414 = vrot.lane.b32.xlu0 %v1225, 12
  %v1415 = vpop.permute.xlu0 %1414
  %1416 = vrot.lane.b32.xlu0 %v1226, 12
  %v1417 = vpop.permute.xlu0 %1416
  %1418 = vrot.lane.b32.xlu0 %v1227, 12
  %v1419 = vpop.permute.xlu0 %1418
  %vm1484 = vcmask 130144
  %1485 = vst.msk [vmem:[#allocation3] sm:$0xff] %vm1484, %v1293
  %1486 = vst.msk [vmem:[#allocation3 + $0x8] sm:$0xff] %vm1484, %v1295
  %1487 = vst.msk [vmem:[#allocation3 + $0x10] sm:$0xff] %vm1484, %v1297
  %1488 = vst.msk [vmem:[#allocation3 + $0x18] sm:$0xff] %vm1484, %v1299
  %1489 = vst.msk [vmem:[#allocation3 + $0x20] sm:$0xff] %vm1484, %v1301
  %1490 = vst.msk [vmem:[#allocation3 + $0x28] sm:$0xff] %vm1484, %v1303
  %1491 = vst.msk [vmem:[#allocation3 + $0x30] sm:$0xff] %vm1484, %v1305
  %1492 = vst.msk [vmem:[#allocation3 + $0x38] sm:$0xff] %vm1484, %v1307
  %1493 = vst.msk [vmem:[#allocation3 + $0x40] sm:$0xff] %vm1484, %v1309
  %1494 = vst.msk [vmem:[#allocation3 + $0x48] sm:$0xff] %vm1484, %v1311
  %1495 = vst.msk [vmem:[#allocation3 + $0x50] sm:$0xff] %vm1484, %v1313
  %1496 = vst.msk [vmem:[#allocation3 + $0x58] sm:$0xff] %vm1484, %v1315
  %1497 = vst.msk [vmem:[#allocation3 + $0x60] sm:$0xff] %vm1484, %v1317
  %1498 = vst.msk [vmem:[#allocation3 + $0x68] sm:$0xff] %vm1484, %v1319
  %1499 = vst.msk [vmem:[#allocation3 + $0x70] sm:$0xff] %vm1484, %v1321
  %1500 = vst.msk [vmem:[#allocation3 + $0x78] sm:$0xff] %vm1484, %v1323
  %1501 = vst.msk [vmem:[#allocation3 + $0x80] sm:$0xff] %vm1484, %v1325
  %1502 = vst.msk [vmem:[#allocation3 + $0x88] sm:$0xff] %vm1484, %v1327
  %1503 = vst.msk [vmem:[#allocation3 + $0x90] sm:$0xff] %vm1484, %v1329
  %1504 = vst.msk [vmem:[#allocation3 + $0x98] sm:$0xff] %vm1484, %v1331
  %1505 = vst.msk [vmem:[#allocation3 + $0xa0] sm:$0xff] %vm1484, %v1333
  %1506 = vst.msk [vmem:[#allocation3 + $0xa8] sm:$0xff] %vm1484, %v1335
  %1507 = vst.msk [vmem:[#allocation3 + $0xb0] sm:$0xff] %vm1484, %v1337
  %1508 = vst.msk [vmem:[#allocation3 + $0xb8] sm:$0xff] %vm1484, %v1339
  %1509 = vst.msk [vmem:[#allocation3 + $0xc0] sm:$0xff] %vm1484, %v1341
  %1510 = vst.msk [vmem:[#allocation3 + $0xc8] sm:$0xff] %vm1484, %v1343
  %1511 = vst.msk [vmem:[#allocation3 + $0xd0] sm:$0xff] %vm1484, %v1345
  %1512 = vst.msk [vmem:[#allocation3 + $0xd8] sm:$0xff] %vm1484, %v1347
  %1513 = vst.msk [vmem:[#allocation3 + $0xe0] sm:$0xff] %vm1484, %v1349
  %1514 = vst.msk [vmem:[#allocation3 + $0xe8] sm:$0xff] %vm1484, %v1351
  %1515 = vst.msk [vmem:[#allocation3 + $0xf0] sm:$0xff] %vm1484, %v1353
  %1516 = vst.msk [vmem:[#allocation3 + $0xf8] sm:$0xff] %vm1484, %v1355
  %1517 = vst.msk [vmem:[#allocation3 + $0x100] sm:$0xff] %vm1484, %v1357
  %1518 = vst.msk [vmem:[#allocation3 + $0x108] sm:$0xff] %vm1484, %v1359
  %1519 = vst.msk [vmem:[#allocation3 + $0x110] sm:$0xff] %vm1484, %v1361
  %1520 = vst.msk [vmem:[#allocation3 + $0x118] sm:$0xff] %vm1484, %v1363
  %1521 = vst.msk [vmem:[#allocation3 + $0x120] sm:$0xff] %vm1484, %v1365
  %1522 = vst.msk [vmem:[#allocation3 + $0x128] sm:$0xff] %vm1484, %v1367
  %1523 = vst.msk [vmem:[#allocation3 + $0x130] sm:$0xff] %vm1484, %v1369
  %1524 = vst.msk [vmem:[#allocation3 + $0x138] sm:$0xff] %vm1484, %v1371
  %1525 = vst.msk [vmem:[#allocation3 + $0x140] sm:$0xff] %vm1484, %v1373
  %1526 = vst.msk [vmem:[#allocation3 + $0x148] sm:$0xff] %vm1484, %v1375
  %1527 = vst.msk [vmem:[#allocation3 + $0x150] sm:$0xff] %vm1484, %v1377
  %1528 = vst.msk [vmem:[#allocation3 + $0x158] sm:$0xff] %vm1484, %v1379
  %1529 = vst.msk [vmem:[#allocation3 + $0x160] sm:$0xff] %vm1484, %v1381
  %1530 = vst.msk [vmem:[#allocation3 + $0x168] sm:$0xff] %vm1484, %v1383
  %1531 = vst.msk [vmem:[#allocation3 + $0x170] sm:$0xff] %vm1484, %v1385
  %1532 = vst.msk [vmem:[#allocation3 + $0x178] sm:$0xff] %vm1484, %v1387
  %1533 = vst.msk [vmem:[#allocation3 + $0x180] sm:$0xff] %vm1484, %v1389
  %1534 = vst.msk [vmem:[#allocation3 + $0x188] sm:$0xff] %vm1484, %v1391
  %1535 = vst.msk [vmem:[#allocation3 + $0x190] sm:$0xff] %vm1484, %v1393
  %1536 = vst.msk [vmem:[#allocation3 + $0x198] sm:$0xff] %vm1484, %v1395
  %1537 = vst.msk [vmem:[#allocation3 + $0x1a0] sm:$0xff] %vm1484, %v1397
  %1538 = vst.msk [vmem:[#allocation3 + $0x1a8] sm:$0xff] %vm1484, %v1399
  %1539 = vst.msk [vmem:[#allocation3 + $0x1b0] sm:$0xff] %vm1484, %v1401
  %1540 = vst.msk [vmem:[#allocation3 + $0x1b8] sm:$0xff] %vm1484, %v1403
  %1541 = vst.msk [vmem:[#allocation3 + $0x1c0] sm:$0xff] %vm1484, %v1405
  %1542 = vst.msk [vmem:[#allocation3 + $0x1c8] sm:$0xff] %vm1484, %v1407
  %1543 = vst.msk [vmem:[#allocation3 + $0x1d0] sm:$0xff] %vm1484, %v1409
  %1544 = vst.msk [vmem:[#allocation3 + $0x1d8] sm:$0xff] %vm1484, %v1411
  %1545 = vst.msk [vmem:[#allocation3 + $0x1e0] sm:$0xff] %vm1484, %v1413
  %1546 = vst.msk [vmem:[#allocation3 + $0x1e8] sm:$0xff] %vm1484, %v1415
  %1547 = vst.msk [vmem:[#allocation3 + $0x1f0] sm:$0xff] %vm1484, %v1417
  %1548 = vst.msk [vmem:[#allocation3 + $0x1f8] sm:$0xff] %vm1484, %v1419
  %v1549 = vld [vmem:[%s201 + $0x1] sm:$0xff]
  %v1550 = vld [vmem:[%s201 + $0x9] sm:$0xff]
  %v1551 = vld [vmem:[%s201 + $0x19] sm:$0xff]
  %v1552 = vld [vmem:[%s201 + $0x21] sm:$0xff]
  %v1553 = vld [vmem:[%s201 + $0x31] sm:$0xff]
  %v1554 = vld [vmem:[%s201 + $0x39] sm:$0xff]
  %v1555 = vld [vmem:[%s201 + $0x49] sm:$0xff]
  %v1556 = vld [vmem:[%s201 + $0x51] sm:$0xff]
  %v1557 = vld [vmem:[%s201 + $0x61] sm:$0xff]
  %v1558 = vld [vmem:[%s201 + $0x69] sm:$0xff]
  %v1559 = vld [vmem:[%s201 + $0x79] sm:$0xff]
  %v1560 = vld [vmem:[%s201 + $0x81] sm:$0xff]
  %v1561 = vld [vmem:[%s201 + $0x91] sm:$0xff]
  %v1562 = vld [vmem:[%s201 + $0x99] sm:$0xff]
  %v1563 = vld [vmem:[%s201 + $0xa9] sm:$0xff]
  %v1564 = vld [vmem:[%s201 + $0xb1] sm:$0xff]
  %v1565 = vld [vmem:[%s201 + $0xc1] sm:$0xff]
  %v1566 = vld [vmem:[%s201 + $0xc9] sm:$0xff]
  %v1567 = vld [vmem:[%s201 + $0xd9] sm:$0xff]
  %v1568 = vld [vmem:[%s201 + $0xe1] sm:$0xff]
  %v1569 = vld [vmem:[%s201 + $0xf1] sm:$0xff]
  %v1570 = vld [vmem:[%s201 + $0xf9] sm:$0xff]
  %v1571 = vld [vmem:[%s201 + $0x109] sm:$0xff]
  %v1572 = vld [vmem:[%s201 + $0x111] sm:$0xff]
  %v1573 = vld [vmem:[%s201 + $0x121] sm:$0xff]
  %v1574 = vld [vmem:[%s201 + $0x129] sm:$0xff]
  %v1575 = vld [vmem:[%s201 + $0x139] sm:$0xff]
  %v1576 = vld [vmem:[%s201 + $0x141] sm:$0xff]
  %v1577 = vld [vmem:[%s201 + $0x151] sm:$0xff]
  %v1578 = vld [vmem:[%s201 + $0x159] sm:$0xff]
  %v1579 = vld [vmem:[%s201 + $0x169] sm:$0xff]
  %v1580 = vld [vmem:[%s201 + $0x171] sm:$0xff]
  %v1581 = vld [vmem:[%s201 + $0x1b1] sm:$0xff]
  %v1582 = vld [vmem:[%s201 + $0x1b9] sm:$0xff]
  %v1583 = vld [vmem:[%s201 + $0x1c9] sm:$0xff]
  %v1584 = vld [vmem:[%s201 + $0x1d1] sm:$0xff]
  %v1585 = vld [vmem:[%s201 + $0x1e1] sm:$0xff]
  %v1586 = vld [vmem:[%s201 + $0x1e9] sm:$0xff]
  %v1587 = vld [vmem:[%s201 + $0x1f9] sm:$0xff]
  %v1588 = vld [vmem:[%s201 + $0x201] sm:$0xff]
  %v1589 = vld [vmem:[%s201 + $0x211] sm:$0xff]
  %v1590 = vld [vmem:[%s201 + $0x219] sm:$0xff]
  %v1591 = vld [vmem:[%s201 + $0x229] sm:$0xff]
  %v1592 = vld [vmem:[%s201 + $0x231] sm:$0xff]
  %v1593 = vld [vmem:[%s201 + $0x241] sm:$0xff]
  %v1594 = vld [vmem:[%s201 + $0x249] sm:$0xff]
  %v1595 = vld [vmem:[%s201 + $0x259] sm:$0xff]
  %v1596 = vld [vmem:[%s201 + $0x261] sm:$0xff]
  %v1597 = vld [vmem:[%s201 + $0x271] sm:$0xff]
  %v1598 = vld [vmem:[%s201 + $0x279] sm:$0xff]
  %v1599 = vld [vmem:[%s201 + $0x289] sm:$0xff]
  %v1600 = vld [vmem:[%s201 + $0x291] sm:$0xff]
  %v1601 = vld [vmem:[%s201 + $0x2a1] sm:$0xff]
  %v1602 = vld [vmem:[%s201 + $0x2a9] sm:$0xff]
  %v1603 = vld [vmem:[%s201 + $0x2b9] sm:$0xff]
  %v1604 = vld [vmem:[%s201 + $0x2c1] sm:$0xff]
  %v1605 = vld [vmem:[%s201 + $0x2d1] sm:$0xff]
  %v1606 = vld [vmem:[%s201 + $0x2d9] sm:$0xff]
  %v1607 = vld [vmem:[%s201 + $0x2e9] sm:$0xff]
  %v1608 = vld [vmem:[%s201 + $0x2f1] sm:$0xff]
  %v1609 = vld [vmem:[%s201 + $0x301] sm:$0xff]
  %v1610 = vld [vmem:[%s201 + $0x309] sm:$0xff]
  %v1611 = vld [vmem:[%s201 + $0x319] sm:$0xff]
  %v1612 = vld [vmem:[%s201 + $0x321] sm:$0xff]
  %1677 = vrot.lane.b32.xlu0 %v1549, 16
  %v1678 = vpop.permute.xlu0 %1677
  %1679 = vrot.lane.b32.xlu0 %v1550, 16
  %v1680 = vpop.permute.xlu0 %1679
  %1681 = vrot.lane.b32.xlu0 %v1551, 16
  %v1682 = vpop.permute.xlu0 %1681
  %1683 = vrot.lane.b32.xlu0 %v1552, 16
  %v1684 = vpop.permute.xlu0 %1683
  %1685 = vrot.lane.b32.xlu0 %v1553, 16
  %v1686 = vpop.permute.xlu0 %1685
  %1687 = vrot.lane.b32.xlu0 %v1554, 16
  %v1688 = vpop.permute.xlu0 %1687
  %1689 = vrot.lane.b32.xlu0 %v1555, 16
  %v1690 = vpop.permute.xlu0 %1689
  %1691 = vrot.lane.b32.xlu0 %v1556, 16
  %v1692 = vpop.permute.xlu0 %1691
  %1693 = vrot.lane.b32.xlu0 %v1557, 16
  %v1694 = vpop.permute.xlu0 %1693
  %1695 = vrot.lane.b32.xlu0 %v1558, 16
  %v1696 = vpop.permute.xlu0 %1695
  %1697 = vrot.lane.b32.xlu0 %v1559, 16
  %v1698 = vpop.permute.xlu0 %1697
  %1699 = vrot.lane.b32.xlu0 %v1560, 16
  %v1700 = vpop.permute.xlu0 %1699
  %1701 = vrot.lane.b32.xlu0 %v1561, 16
  %v1702 = vpop.permute.xlu0 %1701
  %1703 = vrot.lane.b32.xlu0 %v1562, 16
  %v1704 = vpop.permute.xlu0 %1703
  %1705 = vrot.lane.b32.xlu0 %v1563, 16
  %v1706 = vpop.permute.xlu0 %1705
  %1707 = vrot.lane.b32.xlu0 %v1564, 16
  %v1708 = vpop.permute.xlu0 %1707
  %1709 = vrot.lane.b32.xlu0 %v1565, 16
  %v1710 = vpop.permute.xlu0 %1709
  %1711 = vrot.lane.b32.xlu0 %v1566, 16
  %v1712 = vpop.permute.xlu0 %1711
  %1713 = vrot.lane.b32.xlu0 %v1567, 16
  %v1714 = vpop.permute.xlu0 %1713
  %1715 = vrot.lane.b32.xlu0 %v1568, 16
  %v1716 = vpop.permute.xlu0 %1715
  %1717 = vrot.lane.b32.xlu0 %v1569, 16
  %v1718 = vpop.permute.xlu0 %1717
  %1719 = vrot.lane.b32.xlu0 %v1570, 16
  %v1720 = vpop.permute.xlu0 %1719
  %1721 = vrot.lane.b32.xlu0 %v1571, 16
  %v1722 = vpop.permute.xlu0 %1721
  %1723 = vrot.lane.b32.xlu0 %v1572, 16
  %v1724 = vpop.permute.xlu0 %1723
  %1725 = vrot.lane.b32.xlu0 %v1573, 16
  %v1726 = vpop.permute.xlu0 %1725
  %1727 = vrot.lane.b32.xlu0 %v1574, 16
  %v1728 = vpop.permute.xlu0 %1727
  %1729 = vrot.lane.b32.xlu0 %v1575, 16
  %v1730 = vpop.permute.xlu0 %1729
  %1731 = vrot.lane.b32.xlu0 %v1576, 16
  %v1732 = vpop.permute.xlu0 %1731
  %1733 = vrot.lane.b32.xlu0 %v1577, 16
  %v1734 = vpop.permute.xlu0 %1733
  %1735 = vrot.lane.b32.xlu0 %v1578, 16
  %v1736 = vpop.permute.xlu0 %1735
  %1737 = vrot.lane.b32.xlu0 %v1579, 16
  %v1738 = vpop.permute.xlu0 %1737
  %1739 = vrot.lane.b32.xlu0 %v1580, 16
  %v1740 = vpop.permute.xlu0 %1739
  %1741 = vrot.lane.b32.xlu0 %v1581, 16
  %v1742 = vpop.permute.xlu0 %1741
  %1743 = vrot.lane.b32.xlu0 %v1582, 16
  %v1744 = vpop.permute.xlu0 %1743
  %1745 = vrot.lane.b32.xlu0 %v1583, 16
  %v1746 = vpop.permute.xlu0 %1745
  %1747 = vrot.lane.b32.xlu0 %v1584, 16
  %v1748 = vpop.permute.xlu0 %1747
  %1749 = vrot.lane.b32.xlu0 %v1585, 16
  %v1750 = vpop.permute.xlu0 %1749
  %1751 = vrot.lane.b32.xlu0 %v1586, 16
  %v1752 = vpop.permute.xlu0 %1751
  %1753 = vrot.lane.b32.xlu0 %v1587, 16
  %v1754 = vpop.permute.xlu0 %1753
  %1755 = vrot.lane.b32.xlu0 %v1588, 16
  %v1756 = vpop.permute.xlu0 %1755
  %1757 = vrot.lane.b32.xlu0 %v1589, 16
  %v1758 = vpop.permute.xlu0 %1757
  %1759 = vrot.lane.b32.xlu0 %v1590, 16
  %v1760 = vpop.permute.xlu0 %1759
  %1761 = vrot.lane.b32.xlu0 %v1591, 16
  %v1762 = vpop.permute.xlu0 %1761
  %1763 = vrot.lane.b32.xlu0 %v1592, 16
  %v1764 = vpop.permute.xlu0 %1763
  %1765 = vrot.lane.b32.xlu0 %v1593, 16
  %v1766 = vpop.permute.xlu0 %1765
  %1767 = vrot.lane.b32.xlu0 %v1594, 16
  %v1768 = vpop.permute.xlu0 %1767
  %1769 = vrot.lane.b32.xlu0 %v1595, 16
  %v1770 = vpop.permute.xlu0 %1769
  %1771 = vrot.lane.b32.xlu0 %v1596, 16
  %v1772 = vpop.permute.xlu0 %1771
  %1773 = vrot.lane.b32.xlu0 %v1597, 16
  %v1774 = vpop.permute.xlu0 %1773
  %1775 = vrot.lane.b32.xlu0 %v1598, 16
  %v1776 = vpop.permute.xlu0 %1775
  %1777 = vrot.lane.b32.xlu0 %v1599, 16
  %v1778 = vpop.permute.xlu0 %1777
  %1779 = vrot.lane.b32.xlu0 %v1600, 16
  %v1780 = vpop.permute.xlu0 %1779
  %1781 = vrot.lane.b32.xlu0 %v1601, 16
  %v1782 = vpop.permute.xlu0 %1781
  %1783 = vrot.lane.b32.xlu0 %v1602, 16
  %v1784 = vpop.permute.xlu0 %1783
  %1785 = vrot.lane.b32.xlu0 %v1603, 16
  %v1786 = vpop.permute.xlu0 %1785
  %1787 = vrot.lane.b32.xlu0 %v1604, 16
  %v1788 = vpop.permute.xlu0 %1787
  %1789 = vrot.lane.b32.xlu0 %v1605, 16
  %v1790 = vpop.permute.xlu0 %1789
  %1791 = vrot.lane.b32.xlu0 %v1606, 16
  %v1792 = vpop.permute.xlu0 %1791
  %1793 = vrot.lane.b32.xlu0 %v1607, 16
  %v1794 = vpop.permute.xlu0 %1793
  %1795 = vrot.lane.b32.xlu0 %v1608, 16
  %v1796 = vpop.permute.xlu0 %1795
  %1797 = vrot.lane.b32.xlu0 %v1609, 16
  %v1798 = vpop.permute.xlu0 %1797
  %1799 = vrot.lane.b32.xlu0 %v1610, 16
  %v1800 = vpop.permute.xlu0 %1799
  %1801 = vrot.lane.b32.xlu0 %v1611, 16
  %v1802 = vpop.permute.xlu0 %1801
  %1803 = vrot.lane.b32.xlu0 %v1612, 16
  %v1804 = vpop.permute.xlu0 %1803
  %vm1869 = vcmask 162944
  %1870 = vst.msk [vmem:[#allocation3] sm:$0xff] %vm1869, %v1678
  %1871 = vst.msk [vmem:[#allocation3 + $0x8] sm:$0xff] %vm1869, %v1680
  %1872 = vst.msk [vmem:[#allocation3 + $0x10] sm:$0xff] %vm1869, %v1682
  %1873 = vst.msk [vmem:[#allocation3 + $0x18] sm:$0xff] %vm1869, %v1684
  %1874 = vst.msk [vmem:[#allocation3 + $0x20] sm:$0xff] %vm1869, %v1686
  %1875 = vst.msk [vmem:[#allocation3 + $0x28] sm:$0xff] %vm1869, %v1688
  %1876 = vst.msk [vmem:[#allocation3 + $0x30] sm:$0xff] %vm1869, %v1690
  %1877 = vst.msk [vmem:[#allocation3 + $0x38] sm:$0xff] %vm1869, %v1692
  %1878 = vst.msk [vmem:[#allocation3 + $0x40] sm:$0xff] %vm1869, %v1694
  %1879 = vst.msk [vmem:[#allocation3 + $0x48] sm:$0xff] %vm1869, %v1696
  %1880 = vst.msk [vmem:[#allocation3 + $0x50] sm:$0xff] %vm1869, %v1698
  %1881 = vst.msk [vmem:[#allocation3 + $0x58] sm:$0xff] %vm1869, %v1700
  %1882 = vst.msk [vmem:[#allocation3 + $0x60] sm:$0xff] %vm1869, %v1702
  %1883 = vst.msk [vmem:[#allocation3 + $0x68] sm:$0xff] %vm1869, %v1704
  %1884 = vst.msk [vmem:[#allocation3 + $0x70] sm:$0xff] %vm1869, %v1706
  %1885 = vst.msk [vmem:[#allocation3 + $0x78] sm:$0xff] %vm1869, %v1708
  %1886 = vst.msk [vmem:[#allocation3 + $0x80] sm:$0xff] %vm1869, %v1710
  %1887 = vst.msk [vmem:[#allocation3 + $0x88] sm:$0xff] %vm1869, %v1712
  %1888 = vst.msk [vmem:[#allocation3 + $0x90] sm:$0xff] %vm1869, %v1714
  %1889 = vst.msk [vmem:[#allocation3 + $0x98] sm:$0xff] %vm1869, %v1716
  %1890 = vst.msk [vmem:[#allocation3 + $0xa0] sm:$0xff] %vm1869, %v1718
  %1891 = vst.msk [vmem:[#allocation3 + $0xa8] sm:$0xff] %vm1869, %v1720
  %1892 = vst.msk [vmem:[#allocation3 + $0xb0] sm:$0xff] %vm1869, %v1722
  %1893 = vst.msk [vmem:[#allocation3 + $0xb8] sm:$0xff] %vm1869, %v1724
  %1894 = vst.msk [vmem:[#allocation3 + $0xc0] sm:$0xff] %vm1869, %v1726
  %1895 = vst.msk [vmem:[#allocation3 + $0xc8] sm:$0xff] %vm1869, %v1728
  %1896 = vst.msk [vmem:[#allocation3 + $0xd0] sm:$0xff] %vm1869, %v1730
  %1897 = vst.msk [vmem:[#allocation3 + $0xd8] sm:$0xff] %vm1869, %v1732
  %1898 = vst.msk [vmem:[#allocation3 + $0xe0] sm:$0xff] %vm1869, %v1734
  %1899 = vst.msk [vmem:[#allocation3 + $0xe8] sm:$0xff] %vm1869, %v1736
  %1900 = vst.msk [vmem:[#allocation3 + $0xf0] sm:$0xff] %vm1869, %v1738
  %1901 = vst.msk [vmem:[#allocation3 + $0xf8] sm:$0xff] %vm1869, %v1740
  %1902 = vst.msk [vmem:[#allocation3 + $0x100] sm:$0xff] %vm1869, %v1742
  %1903 = vst.msk [vmem:[#allocation3 + $0x108] sm:$0xff] %vm1869, %v1744
  %1904 = vst.msk [vmem:[#allocation3 + $0x110] sm:$0xff] %vm1869, %v1746
  %1905 = vst.msk [vmem:[#allocation3 + $0x118] sm:$0xff] %vm1869, %v1748
  %1906 = vst.msk [vmem:[#allocation3 + $0x120] sm:$0xff] %vm1869, %v1750
  %1907 = vst.msk [vmem:[#allocation3 + $0x128] sm:$0xff] %vm1869, %v1752
  %1908 = vst.msk [vmem:[#allocation3 + $0x130] sm:$0xff] %vm1869, %v1754
  %1909 = vst.msk [vmem:[#allocation3 + $0x138] sm:$0xff] %vm1869, %v1756
  %1910 = vst.msk [vmem:[#allocation3 + $0x140] sm:$0xff] %vm1869, %v1758
  %1911 = vst.msk [vmem:[#allocation3 + $0x148] sm:$0xff] %vm1869, %v1760
  %1912 = vst.msk [vmem:[#allocation3 + $0x150] sm:$0xff] %vm1869, %v1762
  %1913 = vst.msk [vmem:[#allocation3 + $0x158] sm:$0xff] %vm1869, %v1764
  %1914 = vst.msk [vmem:[#allocation3 + $0x160] sm:$0xff] %vm1869, %v1766
  %1915 = vst.msk [vmem:[#allocation3 + $0x168] sm:$0xff] %vm1869, %v1768
  %1916 = vst.msk [vmem:[#allocation3 + $0x170] sm:$0xff] %vm1869, %v1770
  %1917 = vst.msk [vmem:[#allocation3 + $0x178] sm:$0xff] %vm1869, %v1772
  %1918 = vst.msk [vmem:[#allocation3 + $0x180] sm:$0xff] %vm1869, %v1774
  %1919 = vst.msk [vmem:[#allocation3 + $0x188] sm:$0xff] %vm1869, %v1776
  %1920 = vst.msk [vmem:[#allocation3 + $0x190] sm:$0xff] %vm1869, %v1778
  %1921 = vst.msk [vmem:[#allocation3 + $0x198] sm:$0xff] %vm1869, %v1780
  %1922 = vst.msk [vmem:[#allocation3 + $0x1a0] sm:$0xff] %vm1869, %v1782
  %1923 = vst.msk [vmem:[#allocation3 + $0x1a8] sm:$0xff] %vm1869, %v1784
  %1924 = vst.msk [vmem:[#allocation3 + $0x1b0] sm:$0xff] %vm1869, %v1786
  %1925 = vst.msk [vmem:[#allocation3 + $0x1b8] sm:$0xff] %vm1869, %v1788
  %1926 = vst.msk [vmem:[#allocation3 + $0x1c0] sm:$0xff] %vm1869, %v1790
  %1927 = vst.msk [vmem:[#allocation3 + $0x1c8] sm:$0xff] %vm1869, %v1792
  %1928 = vst.msk [vmem:[#allocation3 + $0x1d0] sm:$0xff] %vm1869, %v1794
  %1929 = vst.msk [vmem:[#allocation3 + $0x1d8] sm:$0xff] %vm1869, %v1796
  %1930 = vst.msk [vmem:[#allocation3 + $0x1e0] sm:$0xff] %vm1869, %v1798
  %1931 = vst.msk [vmem:[#allocation3 + $0x1e8] sm:$0xff] %vm1869, %v1800
  %1932 = vst.msk [vmem:[#allocation3 + $0x1f0] sm:$0xff] %vm1869, %v1802
  %1933 = vst.msk [vmem:[#allocation3 + $0x1f8] sm:$0xff] %vm1869, %v1804
  %v1934 = vld [vmem:[%s201 + $0x2] sm:$0xff]
  %v1935 = vld [vmem:[%s201 + $0xa] sm:$0xff]
  %v1936 = vld [vmem:[%s201 + $0x1a] sm:$0xff]
  %v1937 = vld [vmem:[%s201 + $0x22] sm:$0xff]
  %v1938 = vld [vmem:[%s201 + $0x32] sm:$0xff]
  %v1939 = vld [vmem:[%s201 + $0x3a] sm:$0xff]
  %v1940 = vld [vmem:[%s201 + $0x4a] sm:$0xff]
  %v1941 = vld [vmem:[%s201 + $0x52] sm:$0xff]
  %v1942 = vld [vmem:[%s201 + $0x62] sm:$0xff]
  %v1943 = vld [vmem:[%s201 + $0x6a] sm:$0xff]
  %v1944 = vld [vmem:[%s201 + $0x7a] sm:$0xff]
  %v1945 = vld [vmem:[%s201 + $0x82] sm:$0xff]
  %v1946 = vld [vmem:[%s201 + $0x92] sm:$0xff]
  %v1947 = vld [vmem:[%s201 + $0x9a] sm:$0xff]
  %v1948 = vld [vmem:[%s201 + $0xaa] sm:$0xff]
  %v1949 = vld [vmem:[%s201 + $0xb2] sm:$0xff]
  %v1950 = vld [vmem:[%s201 + $0xc2] sm:$0xff]
  %v1951 = vld [vmem:[%s201 + $0xca] sm:$0xff]
  %v1952 = vld [vmem:[%s201 + $0xda] sm:$0xff]
  %v1953 = vld [vmem:[%s201 + $0xe2] sm:$0xff]
  %v1954 = vld [vmem:[%s201 + $0xf2] sm:$0xff]
  %v1955 = vld [vmem:[%s201 + $0xfa] sm:$0xff]
  %v1956 = vld [vmem:[%s201 + $0x10a] sm:$0xff]
  %v1957 = vld [vmem:[%s201 + $0x112] sm:$0xff]
  %v1958 = vld [vmem:[%s201 + $0x122] sm:$0xff]
  %v1959 = vld [vmem:[%s201 + $0x12a] sm:$0xff]
  %v1960 = vld [vmem:[%s201 + $0x13a] sm:$0xff]
  %v1961 = vld [vmem:[%s201 + $0x142] sm:$0xff]
  %v1962 = vld [vmem:[%s201 + $0x152] sm:$0xff]
  %v1963 = vld [vmem:[%s201 + $0x15a] sm:$0xff]
  %v1964 = vld [vmem:[%s201 + $0x16a] sm:$0xff]
  %v1965 = vld [vmem:[%s201 + $0x172] sm:$0xff]
  %v1966 = vld [vmem:[%s201 + $0x1b2] sm:$0xff]
  %v1967 = vld [vmem:[%s201 + $0x1ba] sm:$0xff]
  %v1968 = vld [vmem:[%s201 + $0x1ca] sm:$0xff]
  %v1969 = vld [vmem:[%s201 + $0x1d2] sm:$0xff]
  %v1970 = vld [vmem:[%s201 + $0x1e2] sm:$0xff]
  %v1971 = vld [vmem:[%s201 + $0x1ea] sm:$0xff]
  %v1972 = vld [vmem:[%s201 + $0x1fa] sm:$0xff]
  %v1973 = vld [vmem:[%s201 + $0x202] sm:$0xff]
  %v1974 = vld [vmem:[%s201 + $0x212] sm:$0xff]
  %v1975 = vld [vmem:[%s201 + $0x21a] sm:$0xff]
  %v1976 = vld [vmem:[%s201 + $0x22a] sm:$0xff]
  %v1977 = vld [vmem:[%s201 + $0x232] sm:$0xff]
  %v1978 = vld [vmem:[%s201 + $0x242] sm:$0xff]
  %v1979 = vld [vmem:[%s201 + $0x24a] sm:$0xff]
  %v1980 = vld [vmem:[%s201 + $0x25a] sm:$0xff]
  %v1981 = vld [vmem:[%s201 + $0x262] sm:$0xff]
  %v1982 = vld [vmem:[%s201 + $0x272] sm:$0xff]
  %v1983 = vld [vmem:[%s201 + $0x27a] sm:$0xff]
  %v1984 = vld [vmem:[%s201 + $0x28a] sm:$0xff]
  %v1985 = vld [vmem:[%s201 + $0x292] sm:$0xff]
  %v1986 = vld [vmem:[%s201 + $0x2a2] sm:$0xff]
  %v1987 = vld [vmem:[%s201 + $0x2aa] sm:$0xff]
  %v1988 = vld [vmem:[%s201 + $0x2ba] sm:$0xff]
  %v1989 = vld [vmem:[%s201 + $0x2c2] sm:$0xff]
  %v1990 = vld [vmem:[%s201 + $0x2d2] sm:$0xff]
  %v1991 = vld [vmem:[%s201 + $0x2da] sm:$0xff]
  %v1992 = vld [vmem:[%s201 + $0x2ea] sm:$0xff]
  %v1993 = vld [vmem:[%s201 + $0x2f2] sm:$0xff]
  %v1994 = vld [vmem:[%s201 + $0x302] sm:$0xff]
  %v1995 = vld [vmem:[%s201 + $0x30a] sm:$0xff]
  %v1996 = vld [vmem:[%s201 + $0x31a] sm:$0xff]
  %v1997 = vld [vmem:[%s201 + $0x322] sm:$0xff]
  %2062 = vrot.lane.b32.xlu0 %v1934, 20
  %v2063 = vpop.permute.xlu0 %2062
  %2064 = vrot.lane.b32.xlu0 %v1935, 20
  %v2065 = vpop.permute.xlu0 %2064
  %2066 = vrot.lane.b32.xlu0 %v1936, 20
  %v2067 = vpop.permute.xlu0 %2066
  %2068 = vrot.lane.b32.xlu0 %v1937, 20
  %v2069 = vpop.permute.xlu0 %2068
  %2070 = vrot.lane.b32.xlu0 %v1938, 20
  %v2071 = vpop.permute.xlu0 %2070
  %2072 = vrot.lane.b32.xlu0 %v1939, 20
  %v2073 = vpop.permute.xlu0 %2072
  %2074 = vrot.lane.b32.xlu0 %v1940, 20
  %v2075 = vpop.permute.xlu0 %2074
  %2076 = vrot.lane.b32.xlu0 %v1941, 20
  %v2077 = vpop.permute.xlu0 %2076
  %2078 = vrot.lane.b32.xlu0 %v1942, 20
  %v2079 = vpop.permute.xlu0 %2078
  %2080 = vrot.lane.b32.xlu0 %v1943, 20
  %v2081 = vpop.permute.xlu0 %2080
  %2082 = vrot.lane.b32.xlu0 %v1944, 20
  %v2083 = vpop.permute.xlu0 %2082
  %2084 = vrot.lane.b32.xlu0 %v1945, 20
  %v2085 = vpop.permute.xlu0 %2084
  %2086 = vrot.lane.b32.xlu0 %v1946, 20
  %v2087 = vpop.permute.xlu0 %2086
  %2088 = vrot.lane.b32.xlu0 %v1947, 20
  %v2089 = vpop.permute.xlu0 %2088
  %2090 = vrot.lane.b32.xlu0 %v1948, 20
  %v2091 = vpop.permute.xlu0 %2090
  %2092 = vrot.lane.b32.xlu0 %v1949, 20
  %v2093 = vpop.permute.xlu0 %2092
  %2094 = vrot.lane.b32.xlu0 %v1950, 20
  %v2095 = vpop.permute.xlu0 %2094
  %2096 = vrot.lane.b32.xlu0 %v1951, 20
  %v2097 = vpop.permute.xlu0 %2096
  %2098 = vrot.lane.b32.xlu0 %v1952, 20
  %v2099 = vpop.permute.xlu0 %2098
  %2100 = vrot.lane.b32.xlu0 %v1953, 20
  %v2101 = vpop.permute.xlu0 %2100
  %2102 = vrot.lane.b32.xlu0 %v1954, 20
  %v2103 = vpop.permute.xlu0 %2102
  %2104 = vrot.lane.b32.xlu0 %v1955, 20
  %v2105 = vpop.permute.xlu0 %2104
  %2106 = vrot.lane.b32.xlu0 %v1956, 20
  %v2107 = vpop.permute.xlu0 %2106
  %2108 = vrot.lane.b32.xlu0 %v1957, 20
  %v2109 = vpop.permute.xlu0 %2108
  %2110 = vrot.lane.b32.xlu0 %v1958, 20
  %v2111 = vpop.permute.xlu0 %2110
  %2112 = vrot.lane.b32.xlu0 %v1959, 20
  %v2113 = vpop.permute.xlu0 %2112
  %2114 = vrot.lane.b32.xlu0 %v1960, 20
  %v2115 = vpop.permute.xlu0 %2114
  %2116 = vrot.lane.b32.xlu0 %v1961, 20
  %v2117 = vpop.permute.xlu0 %2116
  %2118 = vrot.lane.b32.xlu0 %v1962, 20
  %v2119 = vpop.permute.xlu0 %2118
  %2120 = vrot.lane.b32.xlu0 %v1963, 20
  %v2121 = vpop.permute.xlu0 %2120
  %2122 = vrot.lane.b32.xlu0 %v1964, 20
  %v2123 = vpop.permute.xlu0 %2122
  %2124 = vrot.lane.b32.xlu0 %v1965, 20
  %v2125 = vpop.permute.xlu0 %2124
  %2126 = vrot.lane.b32.xlu0 %v1966, 20
  %v2127 = vpop.permute.xlu0 %2126
  %2128 = vrot.lane.b32.xlu0 %v1967, 20
  %v2129 = vpop.permute.xlu0 %2128
  %2130 = vrot.lane.b32.xlu0 %v1968, 20
  %v2131 = vpop.permute.xlu0 %2130
  %2132 = vrot.lane.b32.xlu0 %v1969, 20
  %v2133 = vpop.permute.xlu0 %2132
  %2134 = vrot.lane.b32.xlu0 %v1970, 20
  %v2135 = vpop.permute.xlu0 %2134
  %2136 = vrot.lane.b32.xlu0 %v1971, 20
  %v2137 = vpop.permute.xlu0 %2136
  %2138 = vrot.lane.b32.xlu0 %v1972, 20
  %v2139 = vpop.permute.xlu0 %2138
  %2140 = vrot.lane.b32.xlu0 %v1973, 20
  %v2141 = vpop.permute.xlu0 %2140
  %2142 = vrot.lane.b32.xlu0 %v1974, 20
  %v2143 = vpop.permute.xlu0 %2142
  %2144 = vrot.lane.b32.xlu0 %v1975, 20
  %v2145 = vpop.permute.xlu0 %2144
  %2146 = vrot.lane.b32.xlu0 %v1976, 20
  %v2147 = vpop.permute.xlu0 %2146
  %2148 = vrot.lane.b32.xlu0 %v1977, 20
  %v2149 = vpop.permute.xlu0 %2148
  %2150 = vrot.lane.b32.xlu0 %v1978, 20
  %v2151 = vpop.permute.xlu0 %2150
  %2152 = vrot.lane.b32.xlu0 %v1979, 20
  %v2153 = vpop.permute.xlu0 %2152
  %2154 = vrot.lane.b32.xlu0 %v1980, 20
  %v2155 = vpop.permute.xlu0 %2154
  %2156 = vrot.lane.b32.xlu0 %v1981, 20
  %v2157 = vpop.permute.xlu0 %2156
  %2158 = vrot.lane.b32.xlu0 %v1982, 20
  %v2159 = vpop.permute.xlu0 %2158
  %2160 = vrot.lane.b32.xlu0 %v1983, 20
  %v2161 = vpop.permute.xlu0 %2160
  %2162 = vrot.lane.b32.xlu0 %v1984, 20
  %v2163 = vpop.permute.xlu0 %2162
  %2164 = vrot.lane.b32.xlu0 %v1985, 20
  %v2165 = vpop.permute.xlu0 %2164
  %2166 = vrot.lane.b32.xlu0 %v1986, 20
  %v2167 = vpop.permute.xlu0 %2166
  %2168 = vrot.lane.b32.xlu0 %v1987, 20
  %v2169 = vpop.permute.xlu0 %2168
  %2170 = vrot.lane.b32.xlu0 %v1988, 20
  %v2171 = vpop.permute.xlu0 %2170
  %2172 = vrot.lane.b32.xlu0 %v1989, 20
  %v2173 = vpop.permute.xlu0 %2172
  %2174 = vrot.lane.b32.xlu0 %v1990, 20
  %v2175 = vpop.permute.xlu0 %2174
  %2176 = vrot.lane.b32.xlu0 %v1991, 20
  %v2177 = vpop.permute.xlu0 %2176
  %2178 = vrot.lane.b32.xlu0 %v1992, 20
  %v2179 = vpop.permute.xlu0 %2178
  %2180 = vrot.lane.b32.xlu0 %v1993, 20
  %v2181 = vpop.permute.xlu0 %2180
  %2182 = vrot.lane.b32.xlu0 %v1994, 20
  %v2183 = vpop.permute.xlu0 %2182
  %2184 = vrot.lane.b32.xlu0 %v1995, 20
  %v2185 = vpop.permute.xlu0 %2184
  %2186 = vrot.lane.b32.xlu0 %v1996, 20
  %v2187 = vpop.permute.xlu0 %2186
  %2188 = vrot.lane.b32.xlu0 %v1997, 20
  %v2189 = vpop.permute.xlu0 %2188
  %vm2254 = vcmask 195744
  %2255 = vst.msk [vmem:[#allocation3] sm:$0xff] %vm2254, %v2063
  %2256 = vst.msk [vmem:[#allocation3 + $0x8] sm:$0xff] %vm2254, %v2065
  %2257 = vst.msk [vmem:[#allocation3 + $0x10] sm:$0xff] %vm2254, %v2067
  %2258 = vst.msk [vmem:[#allocation3 + $0x18] sm:$0xff] %vm2254, %v2069
  %2259 = vst.msk [vmem:[#allocation3 + $0x20] sm:$0xff] %vm2254, %v2071
  %2260 = vst.msk [vmem:[#allocation3 + $0x28] sm:$0xff] %vm2254, %v2073
  %2261 = vst.msk [vmem:[#allocation3 + $0x30] sm:$0xff] %vm2254, %v2075
  %2262 = vst.msk [vmem:[#allocation3 + $0x38] sm:$0xff] %vm2254, %v2077
  %2263 = vst.msk [vmem:[#allocation3 + $0x40] sm:$0xff] %vm2254, %v2079
  %2264 = vst.msk [vmem:[#allocation3 + $0x48] sm:$0xff] %vm2254, %v2081
  %2265 = vst.msk [vmem:[#allocation3 + $0x50] sm:$0xff] %vm2254, %v2083
  %2266 = vst.msk [vmem:[#allocation3 + $0x58] sm:$0xff] %vm2254, %v2085
  %2267 = vst.msk [vmem:[#allocation3 + $0x60] sm:$0xff] %vm2254, %v2087
  %2268 = vst.msk [vmem:[#allocation3 + $0x68] sm:$0xff] %vm2254, %v2089
  %2269 = vst.msk [vmem:[#allocation3 + $0x70] sm:$0xff] %vm2254, %v2091
  %2270 = vst.msk [vmem:[#allocation3 + $0x78] sm:$0xff] %vm2254, %v2093
  %2271 = vst.msk [vmem:[#allocation3 + $0x80] sm:$0xff] %vm2254, %v2095
  %2272 = vst.msk [vmem:[#allocation3 + $0x88] sm:$0xff] %vm2254, %v2097
  %2273 = vst.msk [vmem:[#allocation3 + $0x90] sm:$0xff] %vm2254, %v2099
  %2274 = vst.msk [vmem:[#allocation3 + $0x98] sm:$0xff] %vm2254, %v2101
  %2275 = vst.msk [vmem:[#allocation3 + $0xa0] sm:$0xff] %vm2254, %v2103
  %2276 = vst.msk [vmem:[#allocation3 + $0xa8] sm:$0xff] %vm2254, %v2105
  %2277 = vst.msk [vmem:[#allocation3 + $0xb0] sm:$0xff] %vm2254, %v2107
  %2278 = vst.msk [vmem:[#allocation3 + $0xb8] sm:$0xff] %vm2254, %v2109
  %2279 = vst.msk [vmem:[#allocation3 + $0xc0] sm:$0xff] %vm2254, %v2111
  %2280 = vst.msk [vmem:[#allocation3 + $0xc8] sm:$0xff] %vm2254, %v2113
  %2281 = vst.msk [vmem:[#allocation3 + $0xd0] sm:$0xff] %vm2254, %v2115
  %2282 = vst.msk [vmem:[#allocation3 + $0xd8] sm:$0xff] %vm2254, %v2117
  %2283 = vst.msk [vmem:[#allocation3 + $0xe0] sm:$0xff] %vm2254, %v2119
  %2284 = vst.msk [vmem:[#allocation3 + $0xe8] sm:$0xff] %vm2254, %v2121
  %2285 = vst.msk [vmem:[#allocation3 + $0xf0] sm:$0xff] %vm2254, %v2123
  %2286 = vst.msk [vmem:[#allocation3 + $0xf8] sm:$0xff] %vm2254, %v2125
  %2287 = vst.msk [vmem:[#allocation3 + $0x100] sm:$0xff] %vm2254, %v2127
  %2288 = vst.msk [vmem:[#allocation3 + $0x108] sm:$0xff] %vm2254, %v2129
  %2289 = vst.msk [vmem:[#allocation3 + $0x110] sm:$0xff] %vm2254, %v2131
  %2290 = vst.msk [vmem:[#allocation3 + $0x118] sm:$0xff] %vm2254, %v2133
  %2291 = vst.msk [vmem:[#allocation3 + $0x120] sm:$0xff] %vm2254, %v2135
  %2292 = vst.msk [vmem:[#allocation3 + $0x128] sm:$0xff] %vm2254, %v2137
  %2293 = vst.msk [vmem:[#allocation3 + $0x130] sm:$0xff] %vm2254, %v2139
  %2294 = vst.msk [vmem:[#allocation3 + $0x138] sm:$0xff] %vm2254, %v2141
  %2295 = vst.msk [vmem:[#allocation3 + $0x140] sm:$0xff] %vm2254, %v2143
  %2296 = vst.msk [vmem:[#allocation3 + $0x148] sm:$0xff] %vm2254, %v2145
  %2297 = vst.msk [vmem:[#allocation3 + $0x150] sm:$0xff] %vm2254, %v2147
  %2298 = vst.msk [vmem:[#allocation3 + $0x158] sm:$0xff] %vm2254, %v2149
  %2299 = vst.msk [vmem:[#allocation3 + $0x160] sm:$0xff] %vm2254, %v2151
  %2300 = vst.msk [vmem:[#allocation3 + $0x168] sm:$0xff] %vm2254, %v2153
  %2301 = vst.msk [vmem:[#allocation3 + $0x170] sm:$0xff] %vm2254, %v2155
  %2302 = vst.msk [vmem:[#allocation3 + $0x178] sm:$0xff] %vm2254, %v2157
  %2303 = vst.msk [vmem:[#allocation3 + $0x180] sm:$0xff] %vm2254, %v2159
  %2304 = vst.msk [vmem:[#allocation3 + $0x188] sm:$0xff] %vm2254, %v2161
  %2305 = vst.msk [vmem:[#allocation3 + $0x190] sm:$0xff] %vm2254, %v2163
  %2306 = vst.msk [vmem:[#allocation3 + $0x198] sm:$0xff] %vm2254, %v2165
  %2307 = vst.msk [vmem:[#allocation3 + $0x1a0] sm:$0xff] %vm2254, %v2167
  %2308 = vst.msk [vmem:[#allocation3 + $0x1a8] sm:$0xff] %vm2254, %v2169
  %2309 = vst.msk [vmem:[#allocation3 + $0x1b0] sm:$0xff] %vm2254, %v2171
  %2310 = vst.msk [vmem:[#allocation3 + $0x1b8] sm:$0xff] %vm2254, %v2173
  %2311 = vst.msk [vmem:[#allocation3 + $0x1c0] sm:$0xff] %vm2254, %v2175
  %2312 = vst.msk [vmem:[#allocation3 + $0x1c8] sm:$0xff] %vm2254, %v2177
  %2313 = vst.msk [vmem:[#allocation3 + $0x1d0] sm:$0xff] %vm2254, %v2179
  %2314 = vst.msk [vmem:[#allocation3 + $0x1d8] sm:$0xff] %vm2254, %v2181
  %2315 = vst.msk [vmem:[#allocation3 + $0x1e0] sm:$0xff] %vm2254, %v2183
  %2316 = vst.msk [vmem:[#allocation3 + $0x1e8] sm:$0xff] %vm2254, %v2185
  %2317 = vst.msk [vmem:[#allocation3 + $0x1f0] sm:$0xff] %vm2254, %v2187
  %2318 = vst.msk [vmem:[#allocation3 + $0x1f8] sm:$0xff] %vm2254, %v2189
  %s2319 = scalar_lea.vmem [#allocation2], 48
  %v2320 = vld [vmem:[%s2319] sm:$0xff]
  %v2321 = vld [vmem:[%s2319 + $0x8] sm:$0xff]
  %v2322 = vld [vmem:[%s2319 + $0x18] sm:$0xff]
  %v2323 = vld [vmem:[%s2319 + $0x20] sm:$0xff]
  %v2324 = vld [vmem:[%s2319 + $0x30] sm:$0xff]
  %v2325 = vld [vmem:[%s2319 + $0x38] sm:$0xff]
  %v2326 = vld [vmem:[%s2319 + $0x48] sm:$0xff]
  %v2327 = vld [vmem:[%s2319 + $0x50] sm:$0xff]
  %v2328 = vld [vmem:[%s2319 + $0x60] sm:$0xff]
  %v2329 = vld [vmem:[%s2319 + $0x68] sm:$0xff]
  %v2330 = vld [vmem:[%s2319 + $0x78] sm:$0xff]
  %v2331 = vld [vmem:[%s2319 + $0x80] sm:$0xff]
  %v2332 = vld [vmem:[%s2319 + $0x90] sm:$0xff]
  %v2333 = vld [vmem:[%s2319 + $0x98] sm:$0xff]
  %v2334 = vld [vmem:[%s2319 + $0xa8] sm:$0xff]
  %v2335 = vld [vmem:[%s2319 + $0xb0] sm:$0xff]
  %v2336 = vld [vmem:[%s2319 + $0xc0] sm:$0xff]
  %v2337 = vld [vmem:[%s2319 + $0xc8] sm:$0xff]
  %v2338 = vld [vmem:[%s2319 + $0xd8] sm:$0xff]
  %v2339 = vld [vmem:[%s2319 + $0xe0] sm:$0xff]
  %v2340 = vld [vmem:[%s2319 + $0xf0] sm:$0xff]
  %v2341 = vld [vmem:[%s2319 + $0xf8] sm:$0xff]
  %v2342 = vld [vmem:[%s2319 + $0x108] sm:$0xff]
  %v2343 = vld [vmem:[%s2319 + $0x110] sm:$0xff]
  %v2344 = vld [vmem:[%s2319 + $0x120] sm:$0xff]
  %v2345 = vld [vmem:[%s2319 + $0x128] sm:$0xff]
  %v2346 = vld [vmem:[%s2319 + $0x138] sm:$0xff]
  %v2347 = vld [vmem:[%s2319 + $0x140] sm:$0xff]
  %v2348 = vld [vmem:[%s2319 + $0x150] sm:$0xff]
  %v2349 = vld [vmem:[%s2319 + $0x158] sm:$0xff]
  %v2350 = vld [vmem:[%s2319 + $0x168] sm:$0xff]
  %v2351 = vld [vmem:[%s2319 + $0x170] sm:$0xff]
  %v2352 = vld [vmem:[%s2319 + $0x1b0] sm:$0xff]
  %v2353 = vld [vmem:[%s2319 + $0x1b8] sm:$0xff]
  %v2354 = vld [vmem:[%s2319 + $0x1c8] sm:$0xff]
  %v2355 = vld [vmem:[%s2319 + $0x1d0] sm:$0xff]
  %v2356 = vld [vmem:[%s2319 + $0x1e0] sm:$0xff]
  %v2357 = vld [vmem:[%s2319 + $0x1e8] sm:$0xff]
  %v2358 = vld [vmem:[%s2319 + $0x1f8] sm:$0xff]
  %v2359 = vld [vmem:[%s2319 + $0x200] sm:$0xff]
  %v2360 = vld [vmem:[%s2319 + $0x210] sm:$0xff]
  %v2361 = vld [vmem:[%s2319 + $0x218] sm:$0xff]
  %v2362 = vld [vmem:[%s2319 + $0x228] sm:$0xff]
  %v2363 = vld [vmem:[%s2319 + $0x230] sm:$0xff]
  %v2364 = vld [vmem:[%s2319 + $0x240] sm:$0xff]
  %v2365 = vld [vmem:[%s2319 + $0x248] sm:$0xff]
  %v2366 = vld [vmem:[%s2319 + $0x258] sm:$0xff]
  %v2367 = vld [vmem:[%s2319 + $0x260] sm:$0xff]
  %v2368 = vld [vmem:[%s2319 + $0x270] sm:$0xff]
  %v2369 = vld [vmem:[%s2319 + $0x278] sm:$0xff]
  %v2370 = vld [vmem:[%s2319 + $0x288] sm:$0xff]
  %v2371 = vld [vmem:[%s2319 + $0x290] sm:$0xff]
  %v2372 = vld [vmem:[%s2319 + $0x2a0] sm:$0xff]
  %v2373 = vld [vmem:[%s2319 + $0x2a8] sm:$0xff]
  %v2374 = vld [vmem:[%s2319 + $0x2b8] sm:$0xff]
  %v2375 = vld [vmem:[%s2319 + $0x2c0] sm:$0xff]
  %v2376 = vld [vmem:[%s2319 + $0x2d0] sm:$0xff]
  %v2377 = vld [vmem:[%s2319 + $0x2d8] sm:$0xff]
  %v2378 = vld [vmem:[%s2319 + $0x2e8] sm:$0xff]
  %v2379 = vld [vmem:[%s2319 + $0x2f0] sm:$0xff]
  %v2380 = vld [vmem:[%s2319 + $0x300] sm:$0xff]
  %v2381 = vld [vmem:[%s2319 + $0x308] sm:$0xff]
  %v2382 = vld [vmem:[%s2319 + $0x318] sm:$0xff]
  %v2383 = vld [vmem:[%s2319 + $0x320] sm:$0xff]
  %2448 = vrot.lane.b32.xlu0 %v2320, 24
  %v2449 = vpop.permute.xlu0 %2448
  %2450 = vrot.lane.b32.xlu0 %v2321, 24
  %v2451 = vpop.permute.xlu0 %2450
  %2452 = vrot.lane.b32.xlu0 %v2322, 24
  %v2453 = vpop.permute.xlu0 %2452
  %2454 = vrot.lane.b32.xlu0 %v2323, 24
  %v2455 = vpop.permute.xlu0 %2454
  %2456 = vrot.lane.b32.xlu0 %v2324, 24
  %v2457 = vpop.permute.xlu0 %2456
  %2458 = vrot.lane.b32.xlu0 %v2325, 24
  %v2459 = vpop.permute.xlu0 %2458
  %2460 = vrot.lane.b32.xlu0 %v2326, 24
  %v2461 = vpop.permute.xlu0 %2460
  %2462 = vrot.lane.b32.xlu0 %v2327, 24
  %v2463 = vpop.permute.xlu0 %2462
  %2464 = vrot.lane.b32.xlu0 %v2328, 24
  %v2465 = vpop.permute.xlu0 %2464
  %2466 = vrot.lane.b32.xlu0 %v2329, 24
  %v2467 = vpop.permute.xlu0 %2466
  %2468 = vrot.lane.b32.xlu0 %v2330, 24
  %v2469 = vpop.permute.xlu0 %2468
  %2470 = vrot.lane.b32.xlu0 %v2331, 24
  %v2471 = vpop.permute.xlu0 %2470
  %2472 = vrot.lane.b32.xlu0 %v2332, 24
  %v2473 = vpop.permute.xlu0 %2472
  %2474 = vrot.lane.b32.xlu0 %v2333, 24
  %v2475 = vpop.permute.xlu0 %2474
  %2476 = vrot.lane.b32.xlu0 %v2334, 24
  %v2477 = vpop.permute.xlu0 %2476
  %2478 = vrot.lane.b32.xlu0 %v2335, 24
  %v2479 = vpop.permute.xlu0 %2478
  %2480 = vrot.lane.b32.xlu0 %v2336, 24
  %v2481 = vpop.permute.xlu0 %2480
  %2482 = vrot.lane.b32.xlu0 %v2337, 24
  %v2483 = vpop.permute.xlu0 %2482
  %2484 = vrot.lane.b32.xlu0 %v2338, 24
  %v2485 = vpop.permute.xlu0 %2484
  %2486 = vrot.lane.b32.xlu0 %v2339, 24
  %v2487 = vpop.permute.xlu0 %2486
  %2488 = vrot.lane.b32.xlu0 %v2340, 24
  %v2489 = vpop.permute.xlu0 %2488
  %2490 = vrot.lane.b32.xlu0 %v2341, 24
  %v2491 = vpop.permute.xlu0 %2490
  %2492 = vrot.lane.b32.xlu0 %v2342, 24
  %v2493 = vpop.permute.xlu0 %2492
  %2494 = vrot.lane.b32.xlu0 %v2343, 24
  %v2495 = vpop.permute.xlu0 %2494
  %2496 = vrot.lane.b32.xlu0 %v2344, 24
  %v2497 = vpop.permute.xlu0 %2496
  %2498 = vrot.lane.b32.xlu0 %v2345, 24
  %v2499 = vpop.permute.xlu0 %2498
  %2500 = vrot.lane.b32.xlu0 %v2346, 24
  %v2501 = vpop.permute.xlu0 %2500
  %2502 = vrot.lane.b32.xlu0 %v2347, 24
  %v2503 = vpop.permute.xlu0 %2502
  %2504 = vrot.lane.b32.xlu0 %v2348, 24
  %v2505 = vpop.permute.xlu0 %2504
  %2506 = vrot.lane.b32.xlu0 %v2349, 24
  %v2507 = vpop.permute.xlu0 %2506
  %2508 = vrot.lane.b32.xlu0 %v2350, 24
  %v2509 = vpop.permute.xlu0 %2508
  %2510 = vrot.lane.b32.xlu0 %v2351, 24
  %v2511 = vpop.permute.xlu0 %2510
  %2512 = vrot.lane.b32.xlu0 %v2352, 24
  %v2513 = vpop.permute.xlu0 %2512
  %2514 = vrot.lane.b32.xlu0 %v2353, 24
  %v2515 = vpop.permute.xlu0 %2514
  %2516 = vrot.lane.b32.xlu0 %v2354, 24
  %v2517 = vpop.permute.xlu0 %2516
  %2518 = vrot.lane.b32.xlu0 %v2355, 24
  %v2519 = vpop.permute.xlu0 %2518
  %2520 = vrot.lane.b32.xlu0 %v2356, 24
  %v2521 = vpop.permute.xlu0 %2520
  %2522 = vrot.lane.b32.xlu0 %v2357, 24
  %v2523 = vpop.permute.xlu0 %2522
  %2524 = vrot.lane.b32.xlu0 %v2358, 24
  %v2525 = vpop.permute.xlu0 %2524
  %2526 = vrot.lane.b32.xlu0 %v2359, 24
  %v2527 = vpop.permute.xlu0 %2526
  %2528 = vrot.lane.b32.xlu0 %v2360, 24
  %v2529 = vpop.permute.xlu0 %2528
  %2530 = vrot.lane.b32.xlu0 %v2361, 24
  %v2531 = vpop.permute.xlu0 %2530
  %2532 = vrot.lane.b32.xlu0 %v2362, 24
  %v2533 = vpop.permute.xlu0 %2532
  %2534 = vrot.lane.b32.xlu0 %v2363, 24
  %v2535 = vpop.permute.xlu0 %2534
  %2536 = vrot.lane.b32.xlu0 %v2364, 24
  %v2537 = vpop.permute.xlu0 %2536
  %2538 = vrot.lane.b32.xlu0 %v2365, 24
  %v2539 = vpop.permute.xlu0 %2538
  %2540 = vrot.lane.b32.xlu0 %v2366, 24
  %v2541 = vpop.permute.xlu0 %2540
  %2542 = vrot.lane.b32.xlu0 %v2367, 24
  %v2543 = vpop.permute.xlu0 %2542
  %2544 = vrot.lane.b32.xlu0 %v2368, 24
  %v2545 = vpop.permute.xlu0 %2544
  %2546 = vrot.lane.b32.xlu0 %v2369, 24
  %v2547 = vpop.permute.xlu0 %2546
  %2548 = vrot.lane.b32.xlu0 %v2370, 24
  %v2549 = vpop.permute.xlu0 %2548
  %2550 = vrot.lane.b32.xlu0 %v2371, 24
  %v2551 = vpop.permute.xlu0 %2550
  %2552 = vrot.lane.b32.xlu0 %v2372, 24
  %v2553 = vpop.permute.xlu0 %2552
  %2554 = vrot.lane.b32.xlu0 %v2373, 24
  %v2555 = vpop.permute.xlu0 %2554
  %2556 = vrot.lane.b32.xlu0 %v2374, 24
  %v2557 = vpop.permute.xlu0 %2556
  %2558 = vrot.lane.b32.xlu0 %v2375, 24
  %v2559 = vpop.permute.xlu0 %2558
  %2560 = vrot.lane.b32.xlu0 %v2376, 24
  %v2561 = vpop.permute.xlu0 %2560
  %2562 = vrot.lane.b32.xlu0 %v2377, 24
  %v2563 = vpop.permute.xlu0 %2562
  %2564 = vrot.lane.b32.xlu0 %v2378, 24
  %v2565 = vpop.permute.xlu0 %2564
  %2566 = vrot.lane.b32.xlu0 %v2379, 24
  %v2567 = vpop.permute.xlu0 %2566
  %2568 = vrot.lane.b32.xlu0 %v2380, 24
  %v2569 = vpop.permute.xlu0 %2568
  %2570 = vrot.lane.b32.xlu0 %v2381, 24
  %v2571 = vpop.permute.xlu0 %2570
  %2572 = vrot.lane.b32.xlu0 %v2382, 24
  %v2573 = vpop.permute.xlu0 %2572
  %2574 = vrot.lane.b32.xlu0 %v2383, 24
  %v2575 = vpop.permute.xlu0 %2574
  %vm2640 = vcmask 228544
  %2641 = vst.msk [vmem:[#allocation3] sm:$0xff] %vm2640, %v2449
  %2642 = vst.msk [vmem:[#allocation3 + $0x8] sm:$0xff] %vm2640, %v2451
  %2643 = vst.msk [vmem:[#allocation3 + $0x10] sm:$0xff] %vm2640, %v2453
  %2644 = vst.msk [vmem:[#allocation3 + $0x18] sm:$0xff] %vm2640, %v2455
  %2645 = vst.msk [vmem:[#allocation3 + $0x20] sm:$0xff] %vm2640, %v2457
  %2646 = vst.msk [vmem:[#allocation3 + $0x28] sm:$0xff] %vm2640, %v2459
  %2647 = vst.msk [vmem:[#allocation3 + $0x30] sm:$0xff] %vm2640, %v2461
  %2648 = vst.msk [vmem:[#allocation3 + $0x38] sm:$0xff] %vm2640, %v2463
  %2649 = vst.msk [vmem:[#allocation3 + $0x40] sm:$0xff] %vm2640, %v2465
  %2650 = vst.msk [vmem:[#allocation3 + $0x48] sm:$0xff] %vm2640, %v2467
  %2651 = vst.msk [vmem:[#allocation3 + $0x50] sm:$0xff] %vm2640, %v2469
  %2652 = vst.msk [vmem:[#allocation3 + $0x58] sm:$0xff] %vm2640, %v2471
  %2653 = vst.msk [vmem:[#allocation3 + $0x60] sm:$0xff] %vm2640, %v2473
  %2654 = vst.msk [vmem:[#allocation3 + $0x68] sm:$0xff] %vm2640, %v2475
  %2655 = vst.msk [vmem:[#allocation3 + $0x70] sm:$0xff] %vm2640, %v2477
  %2656 = vst.msk [vmem:[#allocation3 + $0x78] sm:$0xff] %vm2640, %v2479
  %2657 = vst.msk [vmem:[#allocation3 + $0x80] sm:$0xff] %vm2640, %v2481
  %2658 = vst.msk [vmem:[#allocation3 + $0x88] sm:$0xff] %vm2640, %v2483
  %2659 = vst.msk [vmem:[#allocation3 + $0x90] sm:$0xff] %vm2640, %v2485
  %2660 = vst.msk [vmem:[#allocation3 + $0x98] sm:$0xff] %vm2640, %v2487
  %2661 = vst.msk [vmem:[#allocation3 + $0xa0] sm:$0xff] %vm2640, %v2489
  %2662 = vst.msk [vmem:[#allocation3 + $0xa8] sm:$0xff] %vm2640, %v2491
  %2663 = vst.msk [vmem:[#allocation3 + $0xb0] sm:$0xff] %vm2640, %v2493
  %2664 = vst.msk [vmem:[#allocation3 + $0xb8] sm:$0xff] %vm2640, %v2495
  %2665 = vst.msk [vmem:[#allocation3 + $0xc0] sm:$0xff] %vm2640, %v2497
  %2666 = vst.msk [vmem:[#allocation3 + $0xc8] sm:$0xff] %vm2640, %v2499
  %2667 = vst.msk [vmem:[#allocation3 + $0xd0] sm:$0xff] %vm2640, %v2501
  %2668 = vst.msk [vmem:[#allocation3 + $0xd8] sm:$0xff] %vm2640, %v2503
  %2669 = vst.msk [vmem:[#allocation3 + $0xe0] sm:$0xff] %vm2640, %v2505
  %2670 = vst.msk [vmem:[#allocation3 + $0xe8] sm:$0xff] %vm2640, %v2507
  %2671 = vst.msk [vmem:[#allocation3 + $0xf0] sm:$0xff] %vm2640, %v2509
  %2672 = vst.msk [vmem:[#allocation3 + $0xf8] sm:$0xff] %vm2640, %v2511
  %2673 = vst.msk [vmem:[#allocation3 + $0x100] sm:$0xff] %vm2640, %v2513
  %2674 = vst.msk [vmem:[#allocation3 + $0x108] sm:$0xff] %vm2640, %v2515
  %2675 = vst.msk [vmem:[#allocation3 + $0x110] sm:$0xff] %vm2640, %v2517
  %2676 = vst.msk [vmem:[#allocation3 + $0x118] sm:$0xff] %vm2640, %v2519
  %2677 = vst.msk [vmem:[#allocation3 + $0x120] sm:$0xff] %vm2640, %v2521
  %2678 = vst.msk [vmem:[#allocation3 + $0x128] sm:$0xff] %vm2640, %v2523
  %2679 = vst.msk [vmem:[#allocation3 + $0x130] sm:$0xff] %vm2640, %v2525
  %2680 = vst.msk [vmem:[#allocation3 + $0x138] sm:$0xff] %vm2640, %v2527
  %2681 = vst.msk [vmem:[#allocation3 + $0x140] sm:$0xff] %vm2640, %v2529
  %2682 = vst.msk [vmem:[#allocation3 + $0x148] sm:$0xff] %vm2640, %v2531
  %2683 = vst.msk [vmem:[#allocation3 + $0x150] sm:$0xff] %vm2640, %v2533
  %2684 = vst.msk [vmem:[#allocation3 + $0x158] sm:$0xff] %vm2640, %v2535
  %2685 = vst.msk [vmem:[#allocation3 + $0x160] sm:$0xff] %vm2640, %v2537
  %2686 = vst.msk [vmem:[#allocation3 + $0x168] sm:$0xff] %vm2640, %v2539
  %2687 = vst.msk [vmem:[#allocation3 + $0x170] sm:$0xff] %vm2640, %v2541
  %2688 = vst.msk [vmem:[#allocation3 + $0x178] sm:$0xff] %vm2640, %v2543
  %2689 = vst.msk [vmem:[#allocation3 + $0x180] sm:$0xff] %vm2640, %v2545
  %2690 = vst.msk [vmem:[#allocation3 + $0x188] sm:$0xff] %vm2640, %v2547
  %2691 = vst.msk [vmem:[#allocation3 + $0x190] sm:$0xff] %vm2640, %v2549
  %2692 = vst.msk [vmem:[#allocation3 + $0x198] sm:$0xff] %vm2640, %v2551
  %2693 = vst.msk [vmem:[#allocation3 + $0x1a0] sm:$0xff] %vm2640, %v2553
  %2694 = vst.msk [vmem:[#allocation3 + $0x1a8] sm:$0xff] %vm2640, %v2555
  %2695 = vst.msk [vmem:[#allocation3 + $0x1b0] sm:$0xff] %vm2640, %v2557
  %2696 = vst.msk [vmem:[#allocation3 + $0x1b8] sm:$0xff] %vm2640, %v2559
  %2697 = vst.msk [vmem:[#allocation3 + $0x1c0] sm:$0xff] %vm2640, %v2561
  %2698 = vst.msk [vmem:[#allocation3 + $0x1c8] sm:$0xff] %vm2640, %v2563
  %2699 = vst.msk [vmem:[#allocation3 + $0x1d0] sm:$0xff] %vm2640, %v2565
  %2700 = vst.msk [vmem:[#allocation3 + $0x1d8] sm:$0xff] %vm2640, %v2567
  %2701 = vst.msk [vmem:[#allocation3 + $0x1e0] sm:$0xff] %vm2640, %v2569
  %2702 = vst.msk [vmem:[#allocation3 + $0x1e8] sm:$0xff] %vm2640, %v2571
  %2703 = vst.msk [vmem:[#allocation3 + $0x1f0] sm:$0xff] %vm2640, %v2573
  %2704 = vst.msk [vmem:[#allocation3 + $0x1f8] sm:$0xff] %vm2640, %v2575
  %v2705 = vld [vmem:[%s2319 + $0x1] sm:$0xff]
  %v2706 = vld [vmem:[%s2319 + $0x9] sm:$0xff]
  %v2707 = vld [vmem:[%s2319 + $0x19] sm:$0xff]
  %v2708 = vld [vmem:[%s2319 + $0x21] sm:$0xff]
  %v2709 = vld [vmem:[%s2319 + $0x31] sm:$0xff]
  %v2710 = vld [vmem:[%s2319 + $0x39] sm:$0xff]
  %v2711 = vld [vmem:[%s2319 + $0x49] sm:$0xff]
  %v2712 = vld [vmem:[%s2319 + $0x51] sm:$0xff]
  %v2713 = vld [vmem:[%s2319 + $0x61] sm:$0xff]
  %v2714 = vld [vmem:[%s2319 + $0x69] sm:$0xff]
  %v2715 = vld [vmem:[%s2319 + $0x79] sm:$0xff]
  %v2716 = vld [vmem:[%s2319 + $0x81] sm:$0xff]
  %v2717 = vld [vmem:[%s2319 + $0x91] sm:$0xff]
  %v2718 = vld [vmem:[%s2319 + $0x99] sm:$0xff]
  %v2719 = vld [vmem:[%s2319 + $0xa9] sm:$0xff]
  %v2720 = vld [vmem:[%s2319 + $0xb1] sm:$0xff]
  %v2721 = vld [vmem:[%s2319 + $0xc1] sm:$0xff]
  %v2722 = vld [vmem:[%s2319 + $0xc9] sm:$0xff]
  %v2723 = vld [vmem:[%s2319 + $0xd9] sm:$0xff]
  %v2724 = vld [vmem:[%s2319 + $0xe1] sm:$0xff]
  %v2725 = vld [vmem:[%s2319 + $0xf1] sm:$0xff]
  %v2726 = vld [vmem:[%s2319 + $0xf9] sm:$0xff]
  %v2727 = vld [vmem:[%s2319 + $0x109] sm:$0xff]
  %v2728 = vld [vmem:[%s2319 + $0x111] sm:$0xff]
  %v2729 = vld [vmem:[%s2319 + $0x121] sm:$0xff]
  %v2730 = vld [vmem:[%s2319 + $0x129] sm:$0xff]
  %v2731 = vld [vmem:[%s2319 + $0x139] sm:$0xff]
  %v2732 = vld [vmem:[%s2319 + $0x141] sm:$0xff]
  %v2733 = vld [vmem:[%s2319 + $0x151] sm:$0xff]
  %v2734 = vld [vmem:[%s2319 + $0x159] sm:$0xff]
  %v2735 = vld [vmem:[%s2319 + $0x169] sm:$0xff]
  %v2736 = vld [vmem:[%s2319 + $0x171] sm:$0xff]
  %v2737 = vld [vmem:[%s2319 + $0x1b1] sm:$0xff]
  %v2738 = vld [vmem:[%s2319 + $0x1b9] sm:$0xff]
  %v2739 = vld [vmem:[%s2319 + $0x1c9] sm:$0xff]
  %v2740 = vld [vmem:[%s2319 + $0x1d1] sm:$0xff]
  %v2741 = vld [vmem:[%s2319 + $0x1e1] sm:$0xff]
  %v2742 = vld [vmem:[%s2319 + $0x1e9] sm:$0xff]
  %v2743 = vld [vmem:[%s2319 + $0x1f9] sm:$0xff]
  %v2744 = vld [vmem:[%s2319 + $0x201] sm:$0xff]
  %v2745 = vld [vmem:[%s2319 + $0x211] sm:$0xff]
  %v2746 = vld [vmem:[%s2319 + $0x219] sm:$0xff]
  %v2747 = vld [vmem:[%s2319 + $0x229] sm:$0xff]
  %v2748 = vld [vmem:[%s2319 + $0x231] sm:$0xff]
  %v2749 = vld [vmem:[%s2319 + $0x241] sm:$0xff]
  %v2750 = vld [vmem:[%s2319 + $0x249] sm:$0xff]
  %v2751 = vld [vmem:[%s2319 + $0x259] sm:$0xff]
  %v2752 = vld [vmem:[%s2319 + $0x261] sm:$0xff]
  %v2753 = vld [vmem:[%s2319 + $0x271] sm:$0xff]
  %v2754 = vld [vmem:[%s2319 + $0x279] sm:$0xff]
  %v2755 = vld [vmem:[%s2319 + $0x289] sm:$0xff]
  %v2756 = vld [vmem:[%s2319 + $0x291] sm:$0xff]
  %v2757 = vld [vmem:[%s2319 + $0x2a1] sm:$0xff]
  %v2758 = vld [vmem:[%s2319 + $0x2a9] sm:$0xff]
  %v2759 = vld [vmem:[%s2319 + $0x2b9] sm:$0xff]
  %v2760 = vld [vmem:[%s2319 + $0x2c1] sm:$0xff]
  %v2761 = vld [vmem:[%s2319 + $0x2d1] sm:$0xff]
  %v2762 = vld [vmem:[%s2319 + $0x2d9] sm:$0xff]
  %v2763 = vld [vmem:[%s2319 + $0x2e9] sm:$0xff]
  %v2764 = vld [vmem:[%s2319 + $0x2f1] sm:$0xff]
  %v2765 = vld [vmem:[%s2319 + $0x301] sm:$0xff]
  %v2766 = vld [vmem:[%s2319 + $0x309] sm:$0xff]
  %v2767 = vld [vmem:[%s2319 + $0x319] sm:$0xff]
  %v2768 = vld [vmem:[%s2319 + $0x321] sm:$0xff]
  %2833 = vrot.lane.b32.xlu0 %v2705, 28
  %v2834 = vpop.permute.xlu0 %2833
  %2835 = vrot.lane.b32.xlu0 %v2706, 28
  %v2836 = vpop.permute.xlu0 %2835
  %2837 = vrot.lane.b32.xlu0 %v2707, 28
  %v2838 = vpop.permute.xlu0 %2837
  %2839 = vrot.lane.b32.xlu0 %v2708, 28
  %v2840 = vpop.permute.xlu0 %2839
  %2841 = vrot.lane.b32.xlu0 %v2709, 28
  %v2842 = vpop.permute.xlu0 %2841
  %2843 = vrot.lane.b32.xlu0 %v2710, 28
  %v2844 = vpop.permute.xlu0 %2843
  %2845 = vrot.lane.b32.xlu0 %v2711, 28
  %v2846 = vpop.permute.xlu0 %2845
  %2847 = vrot.lane.b32.xlu0 %v2712, 28
  %v2848 = vpop.permute.xlu0 %2847
  %2849 = vrot.lane.b32.xlu0 %v2713, 28
  %v2850 = vpop.permute.xlu0 %2849
  %2851 = vrot.lane.b32.xlu0 %v2714, 28
  %v2852 = vpop.permute.xlu0 %2851
  %2853 = vrot.lane.b32.xlu0 %v2715, 28
  %v2854 = vpop.permute.xlu0 %2853
  %2855 = vrot.lane.b32.xlu0 %v2716, 28
  %v2856 = vpop.permute.xlu0 %2855
  %2857 = vrot.lane.b32.xlu0 %v2717, 28
  %v2858 = vpop.permute.xlu0 %2857
  %2859 = vrot.lane.b32.xlu0 %v2718, 28
  %v2860 = vpop.permute.xlu0 %2859
  %2861 = vrot.lane.b32.xlu0 %v2719, 28
  %v2862 = vpop.permute.xlu0 %2861
  %2863 = vrot.lane.b32.xlu0 %v2720, 28
  %v2864 = vpop.permute.xlu0 %2863
  %2865 = vrot.lane.b32.xlu0 %v2721, 28
  %v2866 = vpop.permute.xlu0 %2865
  %2867 = vrot.lane.b32.xlu0 %v2722, 28
  %v2868 = vpop.permute.xlu0 %2867
  %2869 = vrot.lane.b32.xlu0 %v2723, 28
  %v2870 = vpop.permute.xlu0 %2869
  %2871 = vrot.lane.b32.xlu0 %v2724, 28
  %v2872 = vpop.permute.xlu0 %2871
  %2873 = vrot.lane.b32.xlu0 %v2725, 28
  %v2874 = vpop.permute.xlu0 %2873
  %2875 = vrot.lane.b32.xlu0 %v2726, 28
  %v2876 = vpop.permute.xlu0 %2875
  %2877 = vrot.lane.b32.xlu0 %v2727, 28
  %v2878 = vpop.permute.xlu0 %2877
  %2879 = vrot.lane.b32.xlu0 %v2728, 28
  %v2880 = vpop.permute.xlu0 %2879
  %2881 = vrot.lane.b32.xlu0 %v2729, 28
  %v2882 = vpop.permute.xlu0 %2881
  %2883 = vrot.lane.b32.xlu0 %v2730, 28
  %v2884 = vpop.permute.xlu0 %2883
  %2885 = vrot.lane.b32.xlu0 %v2731, 28
  %v2886 = vpop.permute.xlu0 %2885
  %2887 = vrot.lane.b32.xlu0 %v2732, 28
  %v2888 = vpop.permute.xlu0 %2887
  %2889 = vrot.lane.b32.xlu0 %v2733, 28
  %v2890 = vpop.permute.xlu0 %2889
  %2891 = vrot.lane.b32.xlu0 %v2734, 28
  %v2892 = vpop.permute.xlu0 %2891
  %2893 = vrot.lane.b32.xlu0 %v2735, 28
  %v2894 = vpop.permute.xlu0 %2893
  %2895 = vrot.lane.b32.xlu0 %v2736, 28
  %v2896 = vpop.permute.xlu0 %2895
  %2897 = vrot.lane.b32.xlu0 %v2737, 28
  %v2898 = vpop.permute.xlu0 %2897
  %2899 = vrot.lane.b32.xlu0 %v2738, 28
  %v2900 = vpop.permute.xlu0 %2899
  %2901 = vrot.lane.b32.xlu0 %v2739, 28
  %v2902 = vpop.permute.xlu0 %2901
  %2903 = vrot.lane.b32.xlu0 %v2740, 28
  %v2904 = vpop.permute.xlu0 %2903
  %2905 = vrot.lane.b32.xlu0 %v2741, 28
  %v2906 = vpop.permute.xlu0 %2905
  %2907 = vrot.lane.b32.xlu0 %v2742, 28
  %v2908 = vpop.permute.xlu0 %2907
  %2909 = vrot.lane.b32.xlu0 %v2743, 28
  %v2910 = vpop.permute.xlu0 %2909
  %2911 = vrot.lane.b32.xlu0 %v2744, 28
  %v2912 = vpop.permute.xlu0 %2911
  %2913 = vrot.lane.b32.xlu0 %v2745, 28
  %v2914 = vpop.permute.xlu0 %2913
  %2915 = vrot.lane.b32.xlu0 %v2746, 28
  %v2916 = vpop.permute.xlu0 %2915
  %2917 = vrot.lane.b32.xlu0 %v2747, 28
  %v2918 = vpop.permute.xlu0 %2917
  %2919 = vrot.lane.b32.xlu0 %v2748, 28
  %v2920 = vpop.permute.xlu0 %2919
  %2921 = vrot.lane.b32.xlu0 %v2749, 28
  %v2922 = vpop.permute.xlu0 %2921
  %2923 = vrot.lane.b32.xlu0 %v2750, 28
  %v2924 = vpop.permute.xlu0 %2923
  %2925 = vrot.lane.b32.xlu0 %v2751, 28
  %v2926 = vpop.permute.xlu0 %2925
  %2927 = vrot.lane.b32.xlu0 %v2752, 28
  %v2928 = vpop.permute.xlu0 %2927
  %2929 = vrot.lane.b32.xlu0 %v2753, 28
  %v2930 = vpop.permute.xlu0 %2929
  %2931 = vrot.lane.b32.xlu0 %v2754, 28
  %v2932 = vpop.permute.xlu0 %2931
  %2933 = vrot.lane.b32.xlu0 %v2755, 28
  %v2934 = vpop.permute.xlu0 %2933
  %2935 = vrot.lane.b32.xlu0 %v2756, 28
  %v2936 = vpop.permute.xlu0 %2935
  %2937 = vrot.lane.b32.xlu0 %v2757, 28
  %v2938 = vpop.permute.xlu0 %2937
  %2939 = vrot.lane.b32.xlu0 %v2758, 28
  %v2940 = vpop.permute.xlu0 %2939
  %2941 = vrot.lane.b32.xlu0 %v2759, 28
  %v2942 = vpop.permute.xlu0 %2941
  %2943 = vrot.lane.b32.xlu0 %v2760, 28
  %v2944 = vpop.permute.xlu0 %2943
  %2945 = vrot.lane.b32.xlu0 %v2761, 28
  %v2946 = vpop.permute.xlu0 %2945
  %2947 = vrot.lane.b32.xlu0 %v2762, 28
  %v2948 = vpop.permute.xlu0 %2947
  %2949 = vrot.lane.b32.xlu0 %v2763, 28
  %v2950 = vpop.permute.xlu0 %2949
  %2951 = vrot.lane.b32.xlu0 %v2764, 28
  %v2952 = vpop.permute.xlu0 %2951
  %2953 = vrot.lane.b32.xlu0 %v2765, 28
  %v2954 = vpop.permute.xlu0 %2953
  %2955 = vrot.lane.b32.xlu0 %v2766, 28
  %v2956 = vpop.permute.xlu0 %2955
  %2957 = vrot.lane.b32.xlu0 %v2767, 28
  %v2958 = vpop.permute.xlu0 %2957
  %2959 = vrot.lane.b32.xlu0 %v2768, 28
  %v2960 = vpop.permute.xlu0 %2959
  %vm3025 = vcmask 261344
  %3026 = vst.msk [vmem:[#allocation3] sm:$0xff] %vm3025, %v2834
  %3027 = vst.msk [vmem:[#allocation3 + $0x8] sm:$0xff] %vm3025, %v2836
  %3028 = vst.msk [vmem:[#allocation3 + $0x10] sm:$0xff] %vm3025, %v2838
  %3029 = vst.msk [vmem:[#allocation3 + $0x18] sm:$0xff] %vm3025, %v2840
  %3030 = vst.msk [vmem:[#allocation3 + $0x20] sm:$0xff] %vm3025, %v2842
  %3031 = vst.msk [vmem:[#allocation3 + $0x28] sm:$0xff] %vm3025, %v2844
  %3032 = vst.msk [vmem:[#allocation3 + $0x30] sm:$0xff] %vm3025, %v2846
  %3033 = vst.msk [vmem:[#allocation3 + $0x38] sm:$0xff] %vm3025, %v2848
  %3034 = vst.msk [vmem:[#allocation3 + $0x40] sm:$0xff] %vm3025, %v2850
  %3035 = vst.msk [vmem:[#allocation3 + $0x48] sm:$0xff] %vm3025, %v2852
  %3036 = vst.msk [vmem:[#allocation3 + $0x50] sm:$0xff] %vm3025, %v2854
  %3037 = vst.msk [vmem:[#allocation3 + $0x58] sm:$0xff] %vm3025, %v2856
  %3038 = vst.msk [vmem:[#allocation3 + $0x60] sm:$0xff] %vm3025, %v2858
  %3039 = vst.msk [vmem:[#allocation3 + $0x68] sm:$0xff] %vm3025, %v2860
  %3040 = vst.msk [vmem:[#allocation3 + $0x70] sm:$0xff] %vm3025, %v2862
  %3041 = vst.msk [vmem:[#allocation3 + $0x78] sm:$0xff] %vm3025, %v2864
  %3042 = vst.msk [vmem:[#allocation3 + $0x80] sm:$0xff] %vm3025, %v2866
  %3043 = vst.msk [vmem:[#allocation3 + $0x88] sm:$0xff] %vm3025, %v2868
  %3044 = vst.msk [vmem:[#allocation3 + $0x90] sm:$0xff] %vm3025, %v2870
  %3045 = vst.msk [vmem:[#allocation3 + $0x98] sm:$0xff] %vm3025, %v2872
  %3046 = vst.msk [vmem:[#allocation3 + $0xa0] sm:$0xff] %vm3025, %v2874
  %3047 = vst.msk [vmem:[#allocation3 + $0xa8] sm:$0xff] %vm3025, %v2876
  %3048 = vst.msk [vmem:[#allocation3 + $0xb0] sm:$0xff] %vm3025, %v2878
  %3049 = vst.msk [vmem:[#allocation3 + $0xb8] sm:$0xff] %vm3025, %v2880
  %3050 = vst.msk [vmem:[#allocation3 + $0xc0] sm:$0xff] %vm3025, %v2882
  %3051 = vst.msk [vmem:[#allocation3 + $0xc8] sm:$0xff] %vm3025, %v2884
  %3052 = vst.msk [vmem:[#allocation3 + $0xd0] sm:$0xff] %vm3025, %v2886
  %3053 = vst.msk [vmem:[#allocation3 + $0xd8] sm:$0xff] %vm3025, %v2888
  %3054 = vst.msk [vmem:[#allocation3 + $0xe0] sm:$0xff] %vm3025, %v2890
  %3055 = vst.msk [vmem:[#allocation3 + $0xe8] sm:$0xff] %vm3025, %v2892
  %3056 = vst.msk [vmem:[#allocation3 + $0xf0] sm:$0xff] %vm3025, %v2894
  %3057 = vst.msk [vmem:[#allocation3 + $0xf8] sm:$0xff] %vm3025, %v2896
  %3058 = vst.msk [vmem:[#allocation3 + $0x100] sm:$0xff] %vm3025, %v2898
  %3059 = vst.msk [vmem:[#allocation3 + $0x108] sm:$0xff] %vm3025, %v2900
  %3060 = vst.msk [vmem:[#allocation3 + $0x110] sm:$0xff] %vm3025, %v2902
  %3061 = vst.msk [vmem:[#allocation3 + $0x118] sm:$0xff] %vm3025, %v2904
  %3062 = vst.msk [vmem:[#allocation3 + $0x120] sm:$0xff] %vm3025, %v2906
  %3063 = vst.msk [vmem:[#allocation3 + $0x128] sm:$0xff] %vm3025, %v2908
  %3064 = vst.msk [vmem:[#allocation3 + $0x130] sm:$0xff] %vm3025, %v2910
  %3065 = vst.msk [vmem:[#allocation3 + $0x138] sm:$0xff] %vm3025, %v2912
  %3066 = vst.msk [vmem:[#allocation3 + $0x140] sm:$0xff] %vm3025, %v2914
  %3067 = vst.msk [vmem:[#allocation3 + $0x148] sm:$0xff] %vm3025, %v2916
  %3068 = vst.msk [vmem:[#allocation3 + $0x150] sm:$0xff] %vm3025, %v2918
  %3069 = vst.msk [vmem:[#allocation3 + $0x158] sm:$0xff] %vm3025, %v2920
  %3070 = vst.msk [vmem:[#allocation3 + $0x160] sm:$0xff] %vm3025, %v2922
  %3071 = vst.msk [vmem:[#allocation3 + $0x168] sm:$0xff] %vm3025, %v2924
  %3072 = vst.msk [vmem:[#allocation3 + $0x170] sm:$0xff] %vm3025, %v2926
  %3073 = vst.msk [vmem:[#allocation3 + $0x178] sm:$0xff] %vm3025, %v2928
  %3074 = vst.msk [vmem:[#allocation3 + $0x180] sm:$0xff] %vm3025, %v2930
  %3075 = vst.msk [vmem:[#allocation3 + $0x188] sm:$0xff] %vm3025, %v2932
  %3076 = vst.msk [vmem:[#allocation3 + $0x190] sm:$0xff] %vm3025, %v2934
  %3077 = vst.msk [vmem:[#allocation3 + $0x198] sm:$0xff] %vm3025, %v2936
  %3078 = vst.msk [vmem:[#allocation3 + $0x1a0] sm:$0xff] %vm3025, %v2938
  %3079 = vst.msk [vmem:[#allocation3 + $0x1a8] sm:$0xff] %vm3025, %v2940
  %3080 = vst.msk [vmem:[#allocation3 + $0x1b0] sm:$0xff] %vm3025, %v2942
  %3081 = vst.msk [vmem:[#allocation3 + $0x1b8] sm:$0xff] %vm3025, %v2944
  %3082 = vst.msk [vmem:[#allocation3 + $0x1c0] sm:$0xff] %vm3025, %v2946
  %3083 = vst.msk [vmem:[#allocation3 + $0x1c8] sm:$0xff] %vm3025, %v2948
  %3084 = vst.msk [vmem:[#allocation3 + $0x1d0] sm:$0xff] %vm3025, %v2950
  %3085 = vst.msk [vmem:[#allocation3 + $0x1d8] sm:$0xff] %vm3025, %v2952
  %3086 = vst.msk [vmem:[#allocation3 + $0x1e0] sm:$0xff] %vm3025, %v2954
  %3087 = vst.msk [vmem:[#allocation3 + $0x1e8] sm:$0xff] %vm3025, %v2956
  %3088 = vst.msk [vmem:[#allocation3 + $0x1f0] sm:$0xff] %vm3025, %v2958
  %3089 = vst.msk [vmem:[#allocation3 + $0x1f8] sm:$0xff] %vm3025, %v2960
  %v3090 = vld [vmem:[%s2319 + $0x2] sm:$0xff]
  %v3091 = vld [vmem:[%s2319 + $0xa] sm:$0xff]
  %v3092 = vld [vmem:[%s2319 + $0x1a] sm:$0xff]
  %v3093 = vld [vmem:[%s2319 + $0x22] sm:$0xff]
  %v3094 = vld [vmem:[%s2319 + $0x32] sm:$0xff]
  %v3095 = vld [vmem:[%s2319 + $0x3a] sm:$0xff]
  %v3096 = vld [vmem:[%s2319 + $0x4a] sm:$0xff]
  %v3097 = vld [vmem:[%s2319 + $0x52] sm:$0xff]
  %v3098 = vld [vmem:[%s2319 + $0x62] sm:$0xff]
  %v3099 = vld [vmem:[%s2319 + $0x6a] sm:$0xff]
  %v3100 = vld [vmem:[%s2319 + $0x7a] sm:$0xff]
  %v3101 = vld [vmem:[%s2319 + $0x82] sm:$0xff]
  %v3102 = vld [vmem:[%s2319 + $0x92] sm:$0xff]
  %v3103 = vld [vmem:[%s2319 + $0x9a] sm:$0xff]
  %v3104 = vld [vmem:[%s2319 + $0xaa] sm:$0xff]
  %v3105 = vld [vmem:[%s2319 + $0xb2] sm:$0xff]
  %v3106 = vld [vmem:[%s2319 + $0xc2] sm:$0xff]
  %v3107 = vld [vmem:[%s2319 + $0xca] sm:$0xff]
  %v3108 = vld [vmem:[%s2319 + $0xda] sm:$0xff]
  %v3109 = vld [vmem:[%s2319 + $0xe2] sm:$0xff]
  %v3110 = vld [vmem:[%s2319 + $0xf2] sm:$0xff]
  %v3111 = vld [vmem:[%s2319 + $0xfa] sm:$0xff]
  %v3112 = vld [vmem:[%s2319 + $0x10a] sm:$0xff]
  %v3113 = vld [vmem:[%s2319 + $0x112] sm:$0xff]
  %v3114 = vld [vmem:[%s2319 + $0x122] sm:$0xff]
  %v3115 = vld [vmem:[%s2319 + $0x12a] sm:$0xff]
  %v3116 = vld [vmem:[%s2319 + $0x13a] sm:$0xff]
  %v3117 = vld [vmem:[%s2319 + $0x142] sm:$0xff]
  %v3118 = vld [vmem:[%s2319 + $0x152] sm:$0xff]
  %v3119 = vld [vmem:[%s2319 + $0x15a] sm:$0xff]
  %v3120 = vld [vmem:[%s2319 + $0x16a] sm:$0xff]
  %v3121 = vld [vmem:[%s2319 + $0x172] sm:$0xff]
  %v3122 = vld [vmem:[%s2319 + $0x1b2] sm:$0xff]
  %v3123 = vld [vmem:[%s2319 + $0x1ba] sm:$0xff]
  %v3124 = vld [vmem:[%s2319 + $0x1ca] sm:$0xff]
  %v3125 = vld [vmem:[%s2319 + $0x1d2] sm:$0xff]
  %v3126 = vld [vmem:[%s2319 + $0x1e2] sm:$0xff]
  %v3127 = vld [vmem:[%s2319 + $0x1ea] sm:$0xff]
  %v3128 = vld [vmem:[%s2319 + $0x1fa] sm:$0xff]
  %v3129 = vld [vmem:[%s2319 + $0x202] sm:$0xff]
  %v3130 = vld [vmem:[%s2319 + $0x212] sm:$0xff]
  %v3131 = vld [vmem:[%s2319 + $0x21a] sm:$0xff]
  %v3132 = vld [vmem:[%s2319 + $0x22a] sm:$0xff]
  %v3133 = vld [vmem:[%s2319 + $0x232] sm:$0xff]
  %v3134 = vld [vmem:[%s2319 + $0x242] sm:$0xff]
  %v3135 = vld [vmem:[%s2319 + $0x24a] sm:$0xff]
  %v3136 = vld [vmem:[%s2319 + $0x25a] sm:$0xff]
  %v3137 = vld [vmem:[%s2319 + $0x262] sm:$0xff]
  %v3138 = vld [vmem:[%s2319 + $0x272] sm:$0xff]
  %v3139 = vld [vmem:[%s2319 + $0x27a] sm:$0xff]
  %v3140 = vld [vmem:[%s2319 + $0x28a] sm:$0xff]
  %v3141 = vld [vmem:[%s2319 + $0x292] sm:$0xff]
  %v3142 = vld [vmem:[%s2319 + $0x2a2] sm:$0xff]
  %v3143 = vld [vmem:[%s2319 + $0x2aa] sm:$0xff]
  %v3144 = vld [vmem:[%s2319 + $0x2ba] sm:$0xff]
  %v3145 = vld [vmem:[%s2319 + $0x2c2] sm:$0xff]
  %v3146 = vld [vmem:[%s2319 + $0x2d2] sm:$0xff]
  %v3147 = vld [vmem:[%s2319 + $0x2da] sm:$0xff]
  %v3148 = vld [vmem:[%s2319 + $0x2ea] sm:$0xff]
  %v3149 = vld [vmem:[%s2319 + $0x2f2] sm:$0xff]
  %v3150 = vld [vmem:[%s2319 + $0x302] sm:$0xff]
  %v3151 = vld [vmem:[%s2319 + $0x30a] sm:$0xff]
  %v3152 = vld [vmem:[%s2319 + $0x31a] sm:$0xff]
  %v3153 = vld [vmem:[%s2319 + $0x322] sm:$0xff]
  %3218 = vrot.lane.b32.xlu0 %v3090, 32
  %v3219 = vpop.permute.xlu0 %3218
  %3220 = vrot.lane.b32.xlu0 %v3091, 32
  %v3221 = vpop.permute.xlu0 %3220
  %3222 = vrot.lane.b32.xlu0 %v3092, 32
  %v3223 = vpop.permute.xlu0 %3222
  %3224 = vrot.lane.b32.xlu0 %v3093, 32
  %v3225 = vpop.permute.xlu0 %3224
  %3226 = vrot.lane.b32.xlu0 %v3094, 32
  %v3227 = vpop.permute.xlu0 %3226
  %3228 = vrot.lane.b32.xlu0 %v3095, 32
  %v3229 = vpop.permute.xlu0 %3228
  %3230 = vrot.lane.b32.xlu0 %v3096, 32
  %v3231 = vpop.permute.xlu0 %3230
  %3232 = vrot.lane.b32.xlu0 %v3097, 32
  %v3233 = vpop.permute.xlu0 %3232
  %3234 = vrot.lane.b32.xlu0 %v3098, 32
  %v3235 = vpop.permute.xlu0 %3234
  %3236 = vrot.lane.b32.xlu0 %v3099, 32
  %v3237 = vpop.permute.xlu0 %3236
  %3238 = vrot.lane.b32.xlu0 %v3100, 32
  %v3239 = vpop.permute.xlu0 %3238
  %3240 = vrot.lane.b32.xlu0 %v3101, 32
  %v3241 = vpop.permute.xlu0 %3240
  %3242 = vrot.lane.b32.xlu0 %v3102, 32
  %v3243 = vpop.permute.xlu0 %3242
  %3244 = vrot.lane.b32.xlu0 %v3103, 32
  %v3245 = vpop.permute.xlu0 %3244
  %3246 = vrot.lane.b32.xlu0 %v3104, 32
  %v3247 = vpop.permute.xlu0 %3246
  %3248 = vrot.lane.b32.xlu0 %v3105, 32
  %v3249 = vpop.permute.xlu0 %3248
  %3250 = vrot.lane.b32.xlu0 %v3106, 32
  %v3251 = vpop.permute.xlu0 %3250
  %3252 = vrot.lane.b32.xlu0 %v3107, 32
  %v3253 = vpop.permute.xlu0 %3252
  %3254 = vrot.lane.b32.xlu0 %v3108, 32
  %v3255 = vpop.permute.xlu0 %3254
  %3256 = vrot.lane.b32.xlu0 %v3109, 32
  %v3257 = vpop.permute.xlu0 %3256
  %3258 = vrot.lane.b32.xlu0 %v3110, 32
  %v3259 = vpop.permute.xlu0 %3258
  %3260 = vrot.lane.b32.xlu0 %v3111, 32
  %v3261 = vpop.permute.xlu0 %3260
  %3262 = vrot.lane.b32.xlu0 %v3112, 32
  %v3263 = vpop.permute.xlu0 %3262
  %3264 = vrot.lane.b32.xlu0 %v3113, 32
  %v3265 = vpop.permute.xlu0 %3264
  %3266 = vrot.lane.b32.xlu0 %v3114, 32
  %v3267 = vpop.permute.xlu0 %3266
  %3268 = vrot.lane.b32.xlu0 %v3115, 32
  %v3269 = vpop.permute.xlu0 %3268
  %3270 = vrot.lane.b32.xlu0 %v3116, 32
  %v3271 = vpop.permute.xlu0 %3270
  %3272 = vrot.lane.b32.xlu0 %v3117, 32
  %v3273 = vpop.permute.xlu0 %3272
  %3274 = vrot.lane.b32.xlu0 %v3118, 32
  %v3275 = vpop.permute.xlu0 %3274
  %3276 = vrot.lane.b32.xlu0 %v3119, 32
  %v3277 = vpop.permute.xlu0 %3276
  %3278 = vrot.lane.b32.xlu0 %v3120, 32
  %v3279 = vpop.permute.xlu0 %3278
  %3280 = vrot.lane.b32.xlu0 %v3121, 32
  %v3281 = vpop.permute.xlu0 %3280
  %3282 = vrot.lane.b32.xlu0 %v3122, 32
  %v3283 = vpop.permute.xlu0 %3282
  %3284 = vrot.lane.b32.xlu0 %v3123, 32
  %v3285 = vpop.permute.xlu0 %3284
  %3286 = vrot.lane.b32.xlu0 %v3124, 32
  %v3287 = vpop.permute.xlu0 %3286
  %3288 = vrot.lane.b32.xlu0 %v3125, 32
  %v3289 = vpop.permute.xlu0 %3288
  %3290 = vrot.lane.b32.xlu0 %v3126, 32
  %v3291 = vpop.permute.xlu0 %3290
  %3292 = vrot.lane.b32.xlu0 %v3127, 32
  %v3293 = vpop.permute.xlu0 %3292
  %3294 = vrot.lane.b32.xlu0 %v3128, 32
  %v3295 = vpop.permute.xlu0 %3294
  %3296 = vrot.lane.b32.xlu0 %v3129, 32
  %v3297 = vpop.permute.xlu0 %3296
  %3298 = vrot.lane.b32.xlu0 %v3130, 32
  %v3299 = vpop.permute.xlu0 %3298
  %3300 = vrot.lane.b32.xlu0 %v3131, 32
  %v3301 = vpop.permute.xlu0 %3300
  %3302 = vrot.lane.b32.xlu0 %v3132, 32
  %v3303 = vpop.permute.xlu0 %3302
  %3304 = vrot.lane.b32.xlu0 %v3133, 32
  %v3305 = vpop.permute.xlu0 %3304
  %3306 = vrot.lane.b32.xlu0 %v3134, 32
  %v3307 = vpop.permute.xlu0 %3306
  %3308 = vrot.lane.b32.xlu0 %v3135, 32
  %v3309 = vpop.permute.xlu0 %3308
  %3310 = vrot.lane.b32.xlu0 %v3136, 32
  %v3311 = vpop.permute.xlu0 %3310
  %3312 = vrot.lane.b32.xlu0 %v3137, 32
  %v3313 = vpop.permute.xlu0 %3312
  %3314 = vrot.lane.b32.xlu0 %v3138, 32
  %v3315 = vpop.permute.xlu0 %3314
  %3316 = vrot.lane.b32.xlu0 %v3139, 32
  %v3317 = vpop.permute.xlu0 %3316
  %3318 = vrot.lane.b32.xlu0 %v3140, 32
  %v3319 = vpop.permute.xlu0 %3318
  %3320 = vrot.lane.b32.xlu0 %v3141, 32
  %v3321 = vpop.permute.xlu0 %3320
  %3322 = vrot.lane.b32.xlu0 %v3142, 32
  %v3323 = vpop.permute.xlu0 %3322
  %3324 = vrot.lane.b32.xlu0 %v3143, 32
  %v3325 = vpop.permute.xlu0 %3324
  %3326 = vrot.lane.b32.xlu0 %v3144, 32
  %v3327 = vpop.permute.xlu0 %3326
  %3328 = vrot.lane.b32.xlu0 %v3145, 32
  %v3329 = vpop.permute.xlu0 %3328
  %3330 = vrot.lane.b32.xlu0 %v3146, 32
  %v3331 = vpop.permute.xlu0 %3330
  %3332 = vrot.lane.b32.xlu0 %v3147, 32
  %v3333 = vpop.permute.xlu0 %3332
  %3334 = vrot.lane.b32.xlu0 %v3148, 32
  %v3335 = vpop.permute.xlu0 %3334
  %3336 = vrot.lane.b32.xlu0 %v3149, 32
  %v3337 = vpop.permute.xlu0 %3336
  %3338 = vrot.lane.b32.xlu0 %v3150, 32
  %v3339 = vpop.permute.xlu0 %3338
  %3340 = vrot.lane.b32.xlu0 %v3151, 32
  %v3341 = vpop.permute.xlu0 %3340
  %3342 = vrot.lane.b32.xlu0 %v3152, 32
  %v3343 = vpop.permute.xlu0 %3342
  %3344 = vrot.lane.b32.xlu0 %v3153, 32
  %v3345 = vpop.permute.xlu0 %3344
  %vm3410 = vcmask 294144
  %3411 = vst.msk [vmem:[#allocation3] sm:$0xff] %vm3410, %v3219
  %3412 = vst.msk [vmem:[#allocation3 + $0x8] sm:$0xff] %vm3410, %v3221
  %3413 = vst.msk [vmem:[#allocation3 + $0x10] sm:$0xff] %vm3410, %v3223
  %3414 = vst.msk [vmem:[#allocation3 + $0x18] sm:$0xff] %vm3410, %v3225
  %3415 = vst.msk [vmem:[#allocation3 + $0x20] sm:$0xff] %vm3410, %v3227
  %3416 = vst.msk [vmem:[#allocation3 + $0x28] sm:$0xff] %vm3410, %v3229
  %3417 = vst.msk [vmem:[#allocation3 + $0x30] sm:$0xff] %vm3410, %v3231
  %3418 = vst.msk [vmem:[#allocation3 + $0x38] sm:$0xff] %vm3410, %v3233
  %3419 = vst.msk [vmem:[#allocation3 + $0x40] sm:$0xff] %vm3410, %v3235
  %3420 = vst.msk [vmem:[#allocation3 + $0x48] sm:$0xff] %vm3410, %v3237
  %3421 = vst.msk [vmem:[#allocation3 + $0x50] sm:$0xff] %vm3410, %v3239
  %3422 = vst.msk [vmem:[#allocation3 + $0x58] sm:$0xff] %vm3410, %v3241
  %3423 = vst.msk [vmem:[#allocation3 + $0x60] sm:$0xff] %vm3410, %v3243
  %3424 = vst.msk [vmem:[#allocation3 + $0x68] sm:$0xff] %vm3410, %v3245
  %3425 = vst.msk [vmem:[#allocation3 + $0x70] sm:$0xff] %vm3410, %v3247
  %3426 = vst.msk [vmem:[#allocation3 + $0x78] sm:$0xff] %vm3410, %v3249
  %3427 = vst.msk [vmem:[#allocation3 + $0x80] sm:$0xff] %vm3410, %v3251
  %3428 = vst.msk [vmem:[#allocation3 + $0x88] sm:$0xff] %vm3410, %v3253
  %3429 = vst.msk [vmem:[#allocation3 + $0x90] sm:$0xff] %vm3410, %v3255
  %3430 = vst.msk [vmem:[#allocation3 + $0x98] sm:$0xff] %vm3410, %v3257
  %3431 = vst.msk [vmem:[#allocation3 + $0xa0] sm:$0xff] %vm3410, %v3259
  %3432 = vst.msk [vmem:[#allocation3 + $0xa8] sm:$0xff] %vm3410, %v3261
  %3433 = vst.msk [vmem:[#allocation3 + $0xb0] sm:$0xff] %vm3410, %v3263
  %3434 = vst.msk [vmem:[#allocation3 + $0xb8] sm:$0xff] %vm3410, %v3265
  %3435 = vst.msk [vmem:[#allocation3 + $0xc0] sm:$0xff] %vm3410, %v3267
  %3436 = vst.msk [vmem:[#allocation3 + $0xc8] sm:$0xff] %vm3410, %v3269
  %3437 = vst.msk [vmem:[#allocation3 + $0xd0] sm:$0xff] %vm3410, %v3271
  %3438 = vst.msk [vmem:[#allocation3 + $0xd8] sm:$0xff] %vm3410, %v3273
  %3439 = vst.msk [vmem:[#allocation3 + $0xe0] sm:$0xff] %vm3410, %v3275
  %3440 = vst.msk [vmem:[#allocation3 + $0xe8] sm:$0xff] %vm3410, %v3277
  %3441 = vst.msk [vmem:[#allocation3 + $0xf0] sm:$0xff] %vm3410, %v3279
  %3442 = vst.msk [vmem:[#allocation3 + $0xf8] sm:$0xff] %vm3410, %v3281
  %3443 = vst.msk [vmem:[#allocation3 + $0x100] sm:$0xff] %vm3410, %v3283
  %3444 = vst.msk [vmem:[#allocation3 + $0x108] sm:$0xff] %vm3410, %v3285
  %3445 = vst.msk [vmem:[#allocation3 + $0x110] sm:$0xff] %vm3410, %v3287
  %3446 = vst.msk [vmem:[#allocation3 + $0x118] sm:$0xff] %vm3410, %v3289
  %3447 = vst.msk [vmem:[#allocation3 + $0x120] sm:$0xff] %vm3410, %v3291
  %3448 = vst.msk [vmem:[#allocation3 + $0x128] sm:$0xff] %vm3410, %v3293
  %3449 = vst.msk [vmem:[#allocation3 + $0x130] sm:$0xff] %vm3410, %v3295
  %3450 = vst.msk [vmem:[#allocation3 + $0x138] sm:$0xff] %vm3410, %v3297
  %3451 = vst.msk [vmem:[#allocation3 + $0x140] sm:$0xff] %vm3410, %v3299
  %3452 = vst.msk [vmem:[#allocation3 + $0x148] sm:$0xff] %vm3410, %v3301
  %3453 = vst.msk [vmem:[#allocation3 + $0x150] sm:$0xff] %vm3410, %v3303
  %3454 = vst.msk [vmem:[#allocation3 + $0x158] sm:$0xff] %vm3410, %v3305
  %3455 = vst.msk [vmem:[#allocation3 + $0x160] sm:$0xff] %vm3410, %v3307
  %3456 = vst.msk [vmem:[#allocation3 + $0x168] sm:$0xff] %vm3410, %v3309
  %3457 = vst.msk [vmem:[#allocation3 + $0x170] sm:$0xff] %vm3410, %v3311
  %3458 = vst.msk [vmem:[#allocation3 + $0x178] sm:$0xff] %vm3410, %v3313
  %3459 = vst.msk [vmem:[#allocation3 + $0x180] sm:$0xff] %vm3410, %v3315
  %3460 = vst.msk [vmem:[#allocation3 + $0x188] sm:$0xff] %vm3410, %v3317
  %3461 = vst.msk [vmem:[#allocation3 + $0x190] sm:$0xff] %vm3410, %v3319
  %3462 = vst.msk [vmem:[#allocation3 + $0x198] sm:$0xff] %vm3410, %v3321
  %3463 = vst.msk [vmem:[#allocation3 + $0x1a0] sm:$0xff] %vm3410, %v3323
  %3464 = vst.msk [vmem:[#allocation3 + $0x1a8] sm:$0xff] %vm3410, %v3325
  %3465 = vst.msk [vmem:[#allocation3 + $0x1b0] sm:$0xff] %vm3410, %v3327
  %3466 = vst.msk [vmem:[#allocation3 + $0x1b8] sm:$0xff] %vm3410, %v3329
  %3467 = vst.msk [vmem:[#allocation3 + $0x1c0] sm:$0xff] %vm3410, %v3331
  %3468 = vst.msk [vmem:[#allocation3 + $0x1c8] sm:$0xff] %vm3410, %v3333
  %3469 = vst.msk [vmem:[#allocation3 + $0x1d0] sm:$0xff] %vm3410, %v3335
  %3470 = vst.msk [vmem:[#allocation3 + $0x1d8] sm:$0xff] %vm3410, %v3337
  %3471 = vst.msk [vmem:[#allocation3 + $0x1e0] sm:$0xff] %vm3410, %v3339
  %3472 = vst.msk [vmem:[#allocation3 + $0x1e8] sm:$0xff] %vm3410, %v3341
  %3473 = vst.msk [vmem:[#allocation3 + $0x1f0] sm:$0xff] %vm3410, %v3343
  %3474 = vst.msk [vmem:[#allocation3 + $0x1f8] sm:$0xff] %vm3410, %v3345
  %v3475 = vld [vmem:[#allocation3] sm:$0xff]
  %v3476 = vld [vmem:[#allocation3 + $0x8] sm:$0xff]
  %v3477 = vld [vmem:[#allocation3 + $0x10] sm:$0xff]
  %v3478 = vld [vmem:[#allocation3 + $0x18] sm:$0xff]
  %v3479 = vld [vmem:[#allocation3 + $0x20] sm:$0xff]
  %v3480 = vld [vmem:[#allocation3 + $0x28] sm:$0xff]
  %v3481 = vld [vmem:[#allocation3 + $0x30] sm:$0xff]
  %v3482 = vld [vmem:[#allocation3 + $0x38] sm:$0xff]
  %v3483 = vld [vmem:[#allocation3 + $0x40] sm:$0xff]
  %v3484 = vld [vmem:[#allocation3 + $0x48] sm:$0xff]
  %v3485 = vld [vmem:[#allocation3 + $0x50] sm:$0xff]
  %v3486 = vld [vmem:[#allocation3 + $0x58] sm:$0xff]
  %v3487 = vld [vmem:[#allocation3 + $0x60] sm:$0xff]
  %v3488 = vld [vmem:[#allocation3 + $0x68] sm:$0xff]
  %v3489 = vld [vmem:[#allocation3 + $0x70] sm:$0xff]
  %v3490 = vld [vmem:[#allocation3 + $0x78] sm:$0xff]
  %v3491 = vld [vmem:[#allocation3 + $0x80] sm:$0xff]
  %v3492 = vld [vmem:[#allocation3 + $0x88] sm:$0xff]
  %v3493 = vld [vmem:[#allocation3 + $0x90] sm:$0xff]
  %v3494 = vld [vmem:[#allocation3 + $0x98] sm:$0xff]
  %v3495 = vld [vmem:[#allocation3 + $0xa0] sm:$0xff]
  %v3496 = vld [vmem:[#allocation3 + $0xa8] sm:$0xff]
  %v3497 = vld [vmem:[#allocation3 + $0xb0] sm:$0xff]
  %v3498 = vld [vmem:[#allocation3 + $0xb8] sm:$0xff]
  %v3499 = vld [vmem:[#allocation3 + $0xc0] sm:$0xff]
  %v3500 = vld [vmem:[#allocation3 + $0xc8] sm:$0xff]
  %v3501 = vld [vmem:[#allocation3 + $0xd0] sm:$0xff]
  %v3502 = vld [vmem:[#allocation3 + $0xd8] sm:$0xff]
  %v3503 = vld [vmem:[#allocation3 + $0xe0] sm:$0xff]
  %v3504 = vld [vmem:[#allocation3 + $0xe8] sm:$0xff]
  %v3505 = vld [vmem:[#allocation3 + $0xf0] sm:$0xff]
  %v3506 = vld [vmem:[#allocation3 + $0xf8] sm:$0xff]
  %v3507 = vld [vmem:[#allocation3 + $0x100] sm:$0xff]
  %v3508 = vld [vmem:[#allocation3 + $0x108] sm:$0xff]
  %v3509 = vld [vmem:[#allocation3 + $0x110] sm:$0xff]
  %v3510 = vld [vmem:[#allocation3 + $0x118] sm:$0xff]
  %v3511 = vld [vmem:[#allocation3 + $0x120] sm:$0xff]
  %v3512 = vld [vmem:[#allocation3 + $0x128] sm:$0xff]
  %v3513 = vld [vmem:[#allocation3 + $0x130] sm:$0xff]
  %v3514 = vld [vmem:[#allocation3 + $0x138] sm:$0xff]
  %v3515 = vld [vmem:[#allocation3 + $0x140] sm:$0xff]
  %v3516 = vld [vmem:[#allocation3 + $0x148] sm:$0xff]
  %v3517 = vld [vmem:[#allocation3 + $0x150] sm:$0xff]
  %v3518 = vld [vmem:[#allocation3 + $0x158] sm:$0xff]
  %v3519 = vld [vmem:[#allocation3 + $0x160] sm:$0xff]
  %v3520 = vld [vmem:[#allocation3 + $0x168] sm:$0xff]
  %v3521 = vld [vmem:[#allocation3 + $0x170] sm:$0xff]
  %v3522 = vld [vmem:[#allocation3 + $0x178] sm:$0xff]
  %v3523 = vld [vmem:[#allocation3 + $0x180] sm:$0xff]
  %v3524 = vld [vmem:[#allocation3 + $0x188] sm:$0xff]
  %v3525 = vld [vmem:[#allocation3 + $0x190] sm:$0xff]
  %v3526 = vld [vmem:[#allocation3 + $0x198] sm:$0xff]
  %v3527 = vld [vmem:[#allocation3 + $0x1a0] sm:$0xff]
  %v3528 = vld [vmem:[#allocation3 + $0x1a8] sm:$0xff]
  %v3529 = vld [vmem:[#allocation3 + $0x1b0] sm:$0xff]
  %v3530 = vld [vmem:[#allocation3 + $0x1b8] sm:$0xff]
  %v3531 = vld [vmem:[#allocation3 + $0x1c0] sm:$0xff]
  %v3532 = vld [vmem:[#allocation3 + $0x1c8] sm:$0xff]
  %v3533 = vld [vmem:[#allocation3 + $0x1d0] sm:$0xff]
  %v3534 = vld [vmem:[#allocation3 + $0x1d8] sm:$0xff]
  %v3535 = vld [vmem:[#allocation3 + $0x1e0] sm:$0xff]
  %v3536 = vld [vmem:[#allocation3 + $0x1e8] sm:$0xff]
  %v3537 = vld [vmem:[#allocation3 + $0x1f0] sm:$0xff]
  %v3538 = vld [vmem:[#allocation3 + $0x1f8] sm:$0xff]
  %v3539 = vpack.c.bf16 %v3476, %v3475
  %v3540 = vpack.c.bf16 %v3478, %v3477
  %v3541 = vpack.c.bf16 %v3480, %v3479
  %v3542 = vpack.c.bf16 %v3482, %v3481
  %v3543 = vpack.c.bf16 %v3484, %v3483
  %v3544 = vpack.c.bf16 %v3486, %v3485
  %v3545 = vpack.c.bf16 %v3488, %v3487
  %v3546 = vpack.c.bf16 %v3490, %v3489
  %v3547 = vpack.c.bf16 %v3492, %v3491
  %v3548 = vpack.c.bf16 %v3494, %v3493
  %v3549 = vpack.c.bf16 %v3496, %v3495
  %v3550 = vpack.c.bf16 %v3498, %v3497
  %v3551 = vpack.c.bf16 %v3500, %v3499
  %v3552 = vpack.c.bf16 %v3502, %v3501
  %v3553 = vpack.c.bf16 %v3504, %v3503
  %v3554 = vpack.c.bf16 %v3506, %v3505
  %v3555 = vpack.c.bf16 %v3508, %v3507
  %v3556 = vpack.c.bf16 %v3510, %v3509
  %v3557 = vpack.c.bf16 %v3512, %v3511
  %v3558 = vpack.c.bf16 %v3514, %v3513
  %v3559 = vpack.c.bf16 %v3516, %v3515
  %v3560 = vpack.c.bf16 %v3518, %v3517
  %v3561 = vpack.c.bf16 %v3520, %v3519
  %v3562 = vpack.c.bf16 %v3522, %v3521
  %v3563 = vpack.c.bf16 %v3524, %v3523
  %v3564 = vpack.c.bf16 %v3526, %v3525
  %v3565 = vpack.c.bf16 %v3528, %v3527
  %v3566 = vpack.c.bf16 %v3530, %v3529
  %v3567 = vpack.c.bf16 %v3532, %v3531
  %v3568 = vpack.c.bf16 %v3534, %v3533
  %v3569 = vpack.c.bf16 %v3536, %v3535
  %v3570 = vpack.c.bf16 %v3538, %v3537
  %v3571 = vld [vmem:[%s1] sm:$0xf]
  %v3572 = vld [vmem:[%s1 + $0x4] sm:$0xf]
  %v3573 = vld [vmem:[%s1 + $0x8] sm:$0xf]
  %v3574 = vld [vmem:[%s1 + $0xc] sm:$0xf]
  %v3575 = vld [vmem:[%s1 + $0x10] sm:$0x3]
  %v3581 = vunpack.c.l.b16 %v3571
  %v3582 = vunpack.c.l.b16 %v3572
  %v3583 = vunpack.c.l.b16 %v3573
  %v3584 = vunpack.c.l.b16 %v3574
  %v3585 = vunpack.c.l.b16 %v3575
  %v3586 = vpack.c.b16 %v3582, %v3581
  %v3587 = vpack.c.b16 %v3584, %v3583
  %v3588 = vpack.c.b16 %v3585, %v3585
  %vm3591 = vcmask 293888
  %v3593 = vsel %vm3591, %v3539, 0
  %v3596 = vsel %vm3591, %v3540, 0
  %v3599 = vsel %vm3591, %v3541, 0
  %v3602 = vsel %vm3591, %v3542, 0
  %v3605 = vsel %vm3591, %v3543, 0
  %v3608 = vsel %vm3591, %v3544, 0
  %v3611 = vsel %vm3591, %v3545, 0
  %v3614 = vsel %vm3591, %v3546, 0
  %v3617 = vsel %vm3591, %v3547, 0
  %v3620 = vsel %vm3591, %v3548, 0
  %v3623 = vsel %vm3591, %v3549, 0
  %v3626 = vsel %vm3591, %v3550, 0
  %v3629 = vsel %vm3591, %v3551, 0
  %v3632 = vsel %vm3591, %v3552, 0
  %v3635 = vsel %vm3591, %v3553, 0
  %v3638 = vsel %vm3591, %v3554, 0
  %v3641 = vsel %vm3591, %v3555, 0
  %v3644 = vsel %vm3591, %v3556, 0
  %v3647 = vsel %vm3591, %v3557, 0
  %v3650 = vsel %vm3591, %v3558, 0
  %v3653 = vsel %vm3591, %v3559, 0
  %v3656 = vsel %vm3591, %v3560, 0
  %v3659 = vsel %vm3591, %v3561, 0
  %v3662 = vsel %vm3591, %v3562, 0
  %v3665 = vsel %vm3591, %v3563, 0
  %v3668 = vsel %vm3591, %v3564, 0
  %v3671 = vsel %vm3591, %v3565, 0
  %v3674 = vsel %vm3591, %v3566, 0
  %v3677 = vsel %vm3591, %v3567, 0
  %v3680 = vsel %vm3591, %v3568, 0
  %v3683 = vsel %vm3591, %v3569, 0
  %v3686 = vsel %vm3591, %v3570, 0
  %vm3688 = vcmask 1041408
  %v3690 = vsel %vm3688, %v3588, 0
  %3692 = vmatprep.subr.bf16.mxu0 0
  %3693 = vmatpush1.bf16.msra.mxu0 0
  %3694 = vmatprep.subr.bf16.mxu0 0
  %3695 = vmatpush1.bf16.msra.mxu0 0
  %3696 = vmatprep.subr.bf16.mxu0 0
  %3697 = vmatpush1.bf16.msra.mxu0 0
  %3698 = vmatprep.subr.bf16.mxu0 0
  %3699 = vmatpush1.bf16.msra.mxu0 0
  %3700 = vmatprep.subr.bf16.mxu0 0
  %3701 = vmatpush1.bf16.msra.mxu0 0
  %3702 = vmatprep.subr.bf16.mxu0 0
  %3703 = vmatpush1.bf16.msra.mxu0 %v3690
  %3704 = vmatprep.subr.bf16.mxu0 0
  %3705 = vmatpush1.bf16.msra.mxu0 %v3587
  %3706 = vmatprep.subr.bf16.mxu0 0
  %3707 = vmatpush1.bf16.msra.mxu0 %v3586
  %3708 = vmatprep.subr.bf16.mxu0 0
  %3709 = vmatpush2.bf16.msra.mxu0 0
  %3710 = vmatprep.subr.bf16.mxu0 0
  %3711 = vmatpush2.bf16.msra.mxu0 0
  %3712 = vmatprep.subr.bf16.mxu0 0
  %3713 = vmatpush2.bf16.msra.mxu0 0
  %3714 = vmatprep.subr.bf16.mxu0 0
  %3715 = vmatpush2.bf16.msra.mxu0 0
  %3716 = vmatprep.subr.bf16.mxu0 0
  %3717 = vmatpush2.bf16.msra.mxu0 0
  %3718 = vmatprep.subr.bf16.mxu0 0
  %3719 = vmatpush2.bf16.msra.mxu0 0
  %3720 = vmatprep.subr.bf16.mxu0 0
  %3721 = vmatpush2.bf16.msra.mxu0 0
  %3722 = vmatprep.subr.bf16.mxu0 0
  %3723 = vmatpush2.bf16.msra.mxu0 0
  %3724 = vmatprep.mubr.bf16.mxu0 0
  %3725 = vmatmul.mubr.bf16.gmra.mxu0 %v3593
  %v3726 = vpop.f32.mrf.mxu0
  %v3727 = vadd.f32 0.0, %v3726
  %v3728 = vpop.f32.mrf.mxu0
  %v3729 = vpop.f32.mrf.mxu0
  %v3730 = vadd.f32 0.0, %v3729
  %v3731 = vpop.f32.mrf.mxu0
  %3732 = vmatprep.mubr.bf16.mxu0 0
  %3733 = vmatmul.mubr.bf16.gmra.mxu0 %v3596
  %v3734 = vpop.f32.mrf.mxu0
  %v3735 = vadd.f32 0.0, %v3734
  %v3736 = vpop.f32.mrf.mxu0
  %v3737 = vpop.f32.mrf.mxu0
  %v3738 = vadd.f32 0.0, %v3737
  %v3739 = vpop.f32.mrf.mxu0
  %3740 = vmatprep.mubr.bf16.mxu0 0
  %3741 = vmatmul.mubr.bf16.gmra.mxu0 %v3599
  %v3742 = vpop.f32.mrf.mxu0
  %v3743 = vadd.f32 0.0, %v3742
  %v3744 = vpop.f32.mrf.mxu0
  %v3745 = vpop.f32.mrf.mxu0
  %v3746 = vadd.f32 0.0, %v3745
  %v3747 = vpop.f32.mrf.mxu0
  %3748 = vmatprep.mubr.bf16.mxu0 0
  %3749 = vmatmul.mubr.bf16.gmra.mxu0 %v3602
  %v3750 = vpop.f32.mrf.mxu0
  %v3751 = vadd.f32 0.0, %v3750
  %v3752 = vpop.f32.mrf.mxu0
  %v3753 = vpop.f32.mrf.mxu0
  %v3754 = vadd.f32 0.0, %v3753
  %v3755 = vpop.f32.mrf.mxu0
  %3756 = vmatprep.mubr.bf16.mxu0 0
  %3757 = vmatmul.mubr.bf16.gmra.mxu0 %v3605
  %v3758 = vpop.f32.mrf.mxu0
  %v3759 = vadd.f32 0.0, %v3758
  %v3760 = vpop.f32.mrf.mxu0
  %v3761 = vpop.f32.mrf.mxu0
  %v3762 = vadd.f32 0.0, %v3761
  %v3763 = vpop.f32.mrf.mxu0
  %3764 = vmatprep.mubr.bf16.mxu0 0
  %3765 = vmatmul.mubr.bf16.gmra.mxu0 %v3608
  %v3766 = vpop.f32.mrf.mxu0
  %v3767 = vadd.f32 0.0, %v3766
  %v3768 = vpop.f32.mrf.mxu0
  %v3769 = vpop.f32.mrf.mxu0
  %v3770 = vadd.f32 0.0, %v3769
  %v3771 = vpop.f32.mrf.mxu0
  %3772 = vmatprep.mubr.bf16.mxu0 0
  %3773 = vmatmul.mubr.bf16.gmra.mxu0 %v3611
  %v3774 = vpop.f32.mrf.mxu0
  %v3775 = vadd.f32 0.0, %v3774
  %v3776 = vpop.f32.mrf.mxu0
  %v3777 = vpop.f32.mrf.mxu0
  %v3778 = vadd.f32 0.0, %v3777
  %v3779 = vpop.f32.mrf.mxu0
  %3780 = vmatprep.mubr.bf16.mxu0 0
  %3781 = vmatmul.mubr.bf16.gmra.mxu0 %v3614
  %v3782 = vpop.f32.mrf.mxu0
  %v3783 = vadd.f32 0.0, %v3782
  %v3784 = vpop.f32.mrf.mxu0
  %v3785 = vpop.f32.mrf.mxu0
  %v3786 = vadd.f32 0.0, %v3785
  %v3787 = vpop.f32.mrf.mxu0
  %3788 = vmatprep.mubr.bf16.mxu0 0
  %3789 = vmatmul.mubr.bf16.gmra.mxu0 %v3617
  %v3790 = vpop.f32.mrf.mxu0
  %v3791 = vadd.f32 0.0, %v3790
  %v3792 = vpop.f32.mrf.mxu0
  %v3793 = vpop.f32.mrf.mxu0
  %v3794 = vadd.f32 0.0, %v3793
  %v3795 = vpop.f32.mrf.mxu0
  %3796 = vmatprep.mubr.bf16.mxu0 0
  %3797 = vmatmul.mubr.bf16.gmra.mxu0 %v3620
  %v3798 = vpop.f32.mrf.mxu0
  %v3799 = vadd.f32 0.0, %v3798
  %v3800 = vpop.f32.mrf.mxu0
  %v3801 = vpop.f32.mrf.mxu0
  %v3802 = vadd.f32 0.0, %v3801
  %v3803 = vpop.f32.mrf.mxu0
  %3804 = vmatprep.mubr.bf16.mxu0 0
  %3805 = vmatmul.mubr.bf16.gmra.mxu0 %v3623
  %v3806 = vpop.f32.mrf.mxu0
  %v3807 = vadd.f32 0.0, %v3806
  %v3808 = vpop.f32.mrf.mxu0
  %v3809 = vpop.f32.mrf.mxu0
  %v3810 = vadd.f32 0.0, %v3809
  %v3811 = vpop.f32.mrf.mxu0
  %3812 = vmatprep.mubr.bf16.mxu0 0
  %3813 = vmatmul.mubr.bf16.gmra.mxu0 %v3626
  %v3814 = vpop.f32.mrf.mxu0
  %v3815 = vadd.f32 0.0, %v3814
  %v3816 = vpop.f32.mrf.mxu0
  %v3817 = vpop.f32.mrf.mxu0
  %v3818 = vadd.f32 0.0, %v3817
  %v3819 = vpop.f32.mrf.mxu0
  %3820 = vmatprep.mubr.bf16.mxu0 0
  %3821 = vmatmul.mubr.bf16.gmra.mxu0 %v3629
  %v3822 = vpop.f32.mrf.mxu0
  %v3823 = vadd.f32 0.0, %v3822
  %v3824 = vpop.f32.mrf.mxu0
  %v3825 = vpop.f32.mrf.mxu0
  %v3826 = vadd.f32 0.0, %v3825
  %v3827 = vpop.f32.mrf.mxu0
  %3828 = vmatprep.mubr.bf16.mxu0 0
  %3829 = vmatmul.mubr.bf16.gmra.mxu0 %v3632
  %v3830 = vpop.f32.mrf.mxu0
  %v3831 = vadd.f32 0.0, %v3830
  %v3832 = vpop.f32.mrf.mxu0
  %v3833 = vpop.f32.mrf.mxu0
  %v3834 = vadd.f32 0.0, %v3833
  %v3835 = vpop.f32.mrf.mxu0
  %3836 = vmatprep.mubr.bf16.mxu0 0
  %3837 = vmatmul.mubr.bf16.gmra.mxu0 %v3635
  %v3838 = vpop.f32.mrf.mxu0
  %v3839 = vadd.f32 0.0, %v3838
  %v3840 = vpop.f32.mrf.mxu0
  %v3841 = vpop.f32.mrf.mxu0
  %v3842 = vadd.f32 0.0, %v3841
  %v3843 = vpop.f32.mrf.mxu0
  %3844 = vmatprep.mubr.bf16.mxu0 0
  %3845 = vmatmul.mubr.bf16.gmra.mxu0 %v3638
  %v3846 = vpop.f32.mrf.mxu0
  %v3847 = vadd.f32 0.0, %v3846
  %v3848 = vpop.f32.mrf.mxu0
  %v3849 = vpop.f32.mrf.mxu0
  %v3850 = vadd.f32 0.0, %v3849
  %v3851 = vpop.f32.mrf.mxu0
  %3852 = vmatprep.mubr.bf16.mxu0 0
  %3853 = vmatmul.mubr.bf16.gmra.mxu0 %v3641
  %v3854 = vpop.f32.mrf.mxu0
  %v3855 = vadd.f32 0.0, %v3854
  %v3856 = vpop.f32.mrf.mxu0
  %v3857 = vpop.f32.mrf.mxu0
  %v3858 = vadd.f32 0.0, %v3857
  %v3859 = vpop.f32.mrf.mxu0
  %3860 = vmatprep.mubr.bf16.mxu0 0
  %3861 = vmatmul.mubr.bf16.gmra.mxu0 %v3644
  %v3862 = vpop.f32.mrf.mxu0
  %v3863 = vadd.f32 0.0, %v3862
  %v3864 = vpop.f32.mrf.mxu0
  %v3865 = vpop.f32.mrf.mxu0
  %v3866 = vadd.f32 0.0, %v3865
  %v3867 = vpop.f32.mrf.mxu0
  %3868 = vmatprep.mubr.bf16.mxu0 0
  %3869 = vmatmul.mubr.bf16.gmra.mxu0 %v3647
  %v3870 = vpop.f32.mrf.mxu0
  %v3871 = vadd.f32 0.0, %v3870
  %v3872 = vpop.f32.mrf.mxu0
  %v3873 = vpop.f32.mrf.mxu0
  %v3874 = vadd.f32 0.0, %v3873
  %v3875 = vpop.f32.mrf.mxu0
  %3876 = vmatprep.mubr.bf16.mxu0 0
  %3877 = vmatmul.mubr.bf16.gmra.mxu0 %v3650
  %v3878 = vpop.f32.mrf.mxu0
  %v3879 = vadd.f32 0.0, %v3878
  %v3880 = vpop.f32.mrf.mxu0
  %v3881 = vpop.f32.mrf.mxu0
  %v3882 = vadd.f32 0.0, %v3881
  %v3883 = vpop.f32.mrf.mxu0
  %3884 = vmatprep.mubr.bf16.mxu0 0
  %3885 = vmatmul.mubr.bf16.gmra.mxu0 %v3653
  %v3886 = vpop.f32.mrf.mxu0
  %v3887 = vadd.f32 0.0, %v3886
  %v3888 = vpop.f32.mrf.mxu0
  %v3889 = vpop.f32.mrf.mxu0
  %v3890 = vadd.f32 0.0, %v3889
  %v3891 = vpop.f32.mrf.mxu0
  %3892 = vmatprep.mubr.bf16.mxu0 0
  %3893 = vmatmul.mubr.bf16.gmra.mxu0 %v3656
  %v3894 = vpop.f32.mrf.mxu0
  %v3895 = vadd.f32 0.0, %v3894
  %v3896 = vpop.f32.mrf.mxu0
  %v3897 = vpop.f32.mrf.mxu0
  %v3898 = vadd.f32 0.0, %v3897
  %v3899 = vpop.f32.mrf.mxu0
  %3900 = vmatprep.mubr.bf16.mxu0 0
  %3901 = vmatmul.mubr.bf16.gmra.mxu0 %v3659
  %v3902 = vpop.f32.mrf.mxu0
  %v3903 = vadd.f32 0.0, %v3902
  %v3904 = vpop.f32.mrf.mxu0
  %v3905 = vpop.f32.mrf.mxu0
  %v3906 = vadd.f32 0.0, %v3905
  %v3907 = vpop.f32.mrf.mxu0
  %3908 = vmatprep.mubr.bf16.mxu0 0
  %3909 = vmatmul.mubr.bf16.gmra.mxu0 %v3662
  %v3910 = vpop.f32.mrf.mxu0
  %v3911 = vadd.f32 0.0, %v3910
  %v3912 = vpop.f32.mrf.mxu0
  %v3913 = vpop.f32.mrf.mxu0
  %v3914 = vadd.f32 0.0, %v3913
  %v3915 = vpop.f32.mrf.mxu0
  %3916 = vmatprep.mubr.bf16.mxu0 0
  %3917 = vmatmul.mubr.bf16.gmra.mxu0 %v3665
  %v3918 = vpop.f32.mrf.mxu0
  %v3919 = vadd.f32 0.0, %v3918
  %v3920 = vpop.f32.mrf.mxu0
  %v3921 = vpop.f32.mrf.mxu0
  %v3922 = vadd.f32 0.0, %v3921
  %v3923 = vpop.f32.mrf.mxu0
  %3924 = vmatprep.mubr.bf16.mxu0 0
  %3925 = vmatmul.mubr.bf16.gmra.mxu0 %v3668
  %v3926 = vpop.f32.mrf.mxu0
  %v3927 = vadd.f32 0.0, %v3926
  %v3928 = vpop.f32.mrf.mxu0
  %v3929 = vpop.f32.mrf.mxu0
  %v3930 = vadd.f32 0.0, %v3929
  %v3931 = vpop.f32.mrf.mxu0
  %3932 = vmatprep.mubr.bf16.mxu0 0
  %3933 = vmatmul.mubr.bf16.gmra.mxu0 %v3671
  %v3934 = vpop.f32.mrf.mxu0
  %v3935 = vadd.f32 0.0, %v3934
  %v3936 = vpop.f32.mrf.mxu0
  %v3937 = vpop.f32.mrf.mxu0
  %v3938 = vadd.f32 0.0, %v3937
  %v3939 = vpop.f32.mrf.mxu0
  %3940 = vmatprep.mubr.bf16.mxu0 0
  %3941 = vmatmul.mubr.bf16.gmra.mxu0 %v3674
  %v3942 = vpop.f32.mrf.mxu0
  %v3943 = vadd.f32 0.0, %v3942
  %v3944 = vpop.f32.mrf.mxu0
  %v3945 = vpop.f32.mrf.mxu0
  %v3946 = vadd.f32 0.0, %v3945
  %v3947 = vpop.f32.mrf.mxu0
  %3948 = vmatprep.mubr.bf16.mxu0 0
  %3949 = vmatmul.mubr.bf16.gmra.mxu0 %v3677
  %v3950 = vpop.f32.mrf.mxu0
  %v3951 = vadd.f32 0.0, %v3950
  %v3952 = vpop.f32.mrf.mxu0
  %v3953 = vpop.f32.mrf.mxu0
  %v3954 = vadd.f32 0.0, %v3953
  %v3955 = vpop.f32.mrf.mxu0
  %3956 = vmatprep.mubr.bf16.mxu0 0
  %3957 = vmatmul.mubr.bf16.gmra.mxu0 %v3680
  %v3958 = vpop.f32.mrf.mxu0
  %v3959 = vadd.f32 0.0, %v3958
  %v3960 = vpop.f32.mrf.mxu0
  %v3961 = vpop.f32.mrf.mxu0
  %v3962 = vadd.f32 0.0, %v3961
  %v3963 = vpop.f32.mrf.mxu0
  %3964 = vmatprep.mubr.bf16.mxu0 0
  %3965 = vmatmul.mubr.bf16.gmra.mxu0 %v3683
  %v3966 = vpop.f32.mrf.mxu0
  %v3967 = vadd.f32 0.0, %v3966
  %v3968 = vpop.f32.mrf.mxu0
  %v3969 = vpop.f32.mrf.mxu0
  %v3970 = vadd.f32 0.0, %v3969
  %v3971 = vpop.f32.mrf.mxu0
  %3972 = vmatprep.mubr.bf16.mxu0 0
  %3973 = vmatmul.mubr.bf16.gmra.mxu0 %v3686
  %v3974 = vpop.f32.mrf.mxu0
  %v3975 = vadd.f32 0.0, %v3974
  %v3976 = vpop.f32.mrf.mxu0
  %v3977 = vpop.f32.mrf.mxu0
  %v3978 = vadd.f32 0.0, %v3977
  %v3979 = vpop.f32.mrf.mxu0
  %3980 = vdwg.mxu0
  %v3981 = vld [vmem:[%s2] sm:$0x1]
  %v3982 = vld [vmem:[%s3] sm:$0x1]
  %v3983 = vsel %vm27, %v3727, 0.0
  %v3984 = vsel %vm27, %v3730, 0.0
  %v3985 = vadd.f32 %v3983, %v3984
  %v3986 = vsel %vm27, %v3735, 0.0
  %v3987 = vadd.f32 %v3985, %v3986
  %v3988 = vsel %vm27, %v3738, 0.0
  %v3989 = vadd.f32 %v3987, %v3988
  %v3990 = vsel %vm27, %v3743, 0.0
  %v3991 = vadd.f32 %v3989, %v3990
  %v3992 = vsel %vm27, %v3746, 0.0
  %v3993 = vadd.f32 %v3991, %v3992
  %v3994 = vsel %vm27, %v3751, 0.0
  %v3995 = vadd.f32 %v3993, %v3994
  %v3996 = vsel %vm27, %v3754, 0.0
  %v3997 = vadd.f32 %v3995, %v3996
  %v3998 = vsel %vm27, %v3759, 0.0
  %v3999 = vadd.f32 %v3997, %v3998
  %v4000 = vsel %vm27, %v3762, 0.0
  %v4001 = vadd.f32 %v3999, %v4000
  %v4002 = vsel %vm27, %v3767, 0.0
  %v4003 = vadd.f32 %v4001, %v4002
  %v4004 = vsel %vm27, %v3770, 0.0
  %v4005 = vadd.f32 %v4003, %v4004
  %v4006 = vsel %vm27, %v3775, 0.0
  %v4007 = vadd.f32 %v4005, %v4006
  %v4008 = vsel %vm27, %v3778, 0.0
  %v4009 = vadd.f32 %v4007, %v4008
  %v4010 = vsel %vm27, %v3783, 0.0
  %v4011 = vadd.f32 %v4009, %v4010
  %v4012 = vsel %vm27, %v3786, 0.0
  %v4013 = vadd.f32 %v4011, %v4012
  %v4014 = vsel %vm27, %v3791, 0.0
  %v4015 = vadd.f32 %v4013, %v4014
  %v4016 = vsel %vm27, %v3794, 0.0
  %v4017 = vadd.f32 %v4015, %v4016
  %v4018 = vsel %vm27, %v3799, 0.0
  %v4019 = vadd.f32 %v4017, %v4018
  %v4020 = vsel %vm27, %v3802, 0.0
  %v4021 = vadd.f32 %v4019, %v4020
  %v4022 = vsel %vm27, %v3807, 0.0
  %v4023 = vadd.f32 %v4021, %v4022
  %v4024 = vsel %vm27, %v3810, 0.0
  %v4025 = vadd.f32 %v4023, %v4024
  %v4026 = vsel %vm27, %v3815, 0.0
  %v4027 = vadd.f32 %v4025, %v4026
  %v4028 = vsel %vm27, %v3818, 0.0
  %v4029 = vadd.f32 %v4027, %v4028
  %v4030 = vsel %vm27, %v3823, 0.0
  %v4031 = vadd.f32 %v4029, %v4030
  %v4032 = vsel %vm27, %v3826, 0.0
  %v4033 = vadd.f32 %v4031, %v4032
  %v4034 = vsel %vm27, %v3831, 0.0
  %v4035 = vadd.f32 %v4033, %v4034
  %v4036 = vsel %vm27, %v3834, 0.0
  %v4037 = vadd.f32 %v4035, %v4036
  %v4038 = vsel %vm27, %v3839, 0.0
  %v4039 = vadd.f32 %v4037, %v4038
  %v4040 = vsel %vm27, %v3842, 0.0
  %v4041 = vadd.f32 %v4039, %v4040
  %v4042 = vsel %vm27, %v3847, 0.0
  %v4043 = vadd.f32 %v4041, %v4042
  %v4044 = vsel %vm27, %v3850, 0.0
  %v4045 = vadd.f32 %v4043, %v4044
  %v4046 = vsel %vm27, %v3855, 0.0
  %v4047 = vadd.f32 %v4045, %v4046
  %v4048 = vsel %vm27, %v3858, 0.0
  %v4049 = vadd.f32 %v4047, %v4048
  %v4050 = vsel %vm27, %v3863, 0.0
  %v4051 = vadd.f32 %v4049, %v4050
  %v4052 = vsel %vm27, %v3866, 0.0
  %v4053 = vadd.f32 %v4051, %v4052
  %v4054 = vsel %vm27, %v3871, 0.0
  %v4055 = vadd.f32 %v4053, %v4054
  %v4056 = vsel %vm27, %v3874, 0.0
  %v4057 = vadd.f32 %v4055, %v4056
  %v4058 = vsel %vm27, %v3879, 0.0
  %v4059 = vadd.f32 %v4057, %v4058
  %v4060 = vsel %vm27, %v3882, 0.0
  %v4061 = vadd.f32 %v4059, %v4060
  %v4062 = vsel %vm27, %v3887, 0.0
  %v4063 = vadd.f32 %v4061, %v4062
  %v4064 = vsel %vm27, %v3890, 0.0
  %v4065 = vadd.f32 %v4063, %v4064
  %v4066 = vsel %vm27, %v3895, 0.0
  %v4067 = vadd.f32 %v4065, %v4066
  %v4068 = vsel %vm27, %v3898, 0.0
  %v4069 = vadd.f32 %v4067, %v4068
  %v4070 = vsel %vm27, %v3903, 0.0
  %v4071 = vadd.f32 %v4069, %v4070
  %v4072 = vsel %vm27, %v3906, 0.0
  %v4073 = vadd.f32 %v4071, %v4072
  %v4074 = vsel %vm27, %v3911, 0.0
  %v4075 = vadd.f32 %v4073, %v4074
  %v4076 = vsel %vm27, %v3914, 0.0
  %v4077 = vadd.f32 %v4075, %v4076
  %v4078 = vsel %vm27, %v3919, 0.0
  %v4079 = vadd.f32 %v4077, %v4078
  %v4080 = vsel %vm27, %v3922, 0.0
  %v4081 = vadd.f32 %v4079, %v4080
  %v4082 = vsel %vm27, %v3927, 0.0
  %v4083 = vadd.f32 %v4081, %v4082
  %v4084 = vsel %vm27, %v3930, 0.0
  %v4085 = vadd.f32 %v4083, %v4084
  %v4086 = vsel %vm27, %v3935, 0.0
  %v4087 = vadd.f32 %v4085, %v4086
  %v4088 = vsel %vm27, %v3938, 0.0
  %v4089 = vadd.f32 %v4087, %v4088
  %v4090 = vsel %vm27, %v3943, 0.0
  %v4091 = vadd.f32 %v4089, %v4090
  %v4092 = vsel %vm27, %v3946, 0.0
  %v4093 = vadd.f32 %v4091, %v4092
  %v4094 = vsel %vm27, %v3951, 0.0
  %v4095 = vadd.f32 %v4093, %v4094
  %v4096 = vsel %vm27, %v3954, 0.0
  %v4097 = vadd.f32 %v4095, %v4096
  %v4098 = vsel %vm27, %v3959, 0.0
  %v4099 = vadd.f32 %v4097, %v4098
  %v4100 = vsel %vm27, %v3962, 0.0
  %v4101 = vadd.f32 %v4099, %v4100
  %v4102 = vsel %vm27, %v3967, 0.0
  %v4103 = vadd.f32 %v4101, %v4102
  %v4104 = vsel %vm27, %v3970, 0.0
  %v4105 = vadd.f32 %v4103, %v4104
  %v4106 = vsel %vm27, %v3975, 0.0
  %v4107 = vadd.f32 %v4105, %v4106
  %v4108 = vsel %vm27, %v3978, 0.0
  %v4109 = vadd.f32 %v4107, %v4108
  %v4110 = vrot.slane %v4109, 4
  %v4111 = vadd.f32 %v4109, %v4110
  %v4112 = vrot.slane %v4111, 2
  %v4113 = vadd.f32 %v4111, %v4112
  %v4114 = vrot.slane %v4113, 1
  %v4115 = vadd.f32 %v4113, %v4114
  %v4116 = vrcp.pop 512.0
  %v4117 = vmul.f32 %v4115, %v4116
  %v4118 = vsub.f32 %v3727, %v4117
  %v4119 = vsub.f32 %v3730, %v4117
  %v4120 = vsub.f32 %v3735, %v4117
  %v4121 = vsub.f32 %v3738, %v4117
  %v4122 = vsub.f32 %v3743, %v4117
  %v4123 = vsub.f32 %v3746, %v4117
  %v4124 = vsub.f32 %v3751, %v4117
  %v4125 = vsub.f32 %v3754, %v4117
  %v4126 = vsub.f32 %v3759, %v4117
  %v4127 = vsub.f32 %v3762, %v4117
  %v4128 = vsub.f32 %v3767, %v4117
  %v4129 = vsub.f32 %v3770, %v4117
  %v4130 = vsub.f32 %v3775, %v4117
  %v4131 = vsub.f32 %v3778, %v4117
  %v4132 = vsub.f32 %v3783, %v4117
  %v4133 = vsub.f32 %v3786, %v4117
  %v4134 = vsub.f32 %v3791, %v4117
  %v4135 = vsub.f32 %v3794, %v4117
  %v4136 = vsub.f32 %v3799, %v4117
  %v4137 = vsub.f32 %v3802, %v4117
  %v4138 = vsub.f32 %v3807, %v4117
  %v4139 = vsub.f32 %v3810, %v4117
  %v4140 = vsub.f32 %v3815, %v4117
  %v4141 = vsub.f32 %v3818, %v4117
  %v4142 = vsub.f32 %v3823, %v4117
  %v4143 = vsub.f32 %v3826, %v4117
  %v4144 = vsub.f32 %v3831, %v4117
  %v4145 = vsub.f32 %v3834, %v4117
  %v4146 = vsub.f32 %v3839, %v4117
  %v4147 = vsub.f32 %v3842, %v4117
  %v4148 = vsub.f32 %v3847, %v4117
  %v4149 = vsub.f32 %v3850, %v4117
  %v4150 = vsub.f32 %v3855, %v4117
  %v4151 = vsub.f32 %v3858, %v4117
  %v4152 = vsub.f32 %v3863, %v4117
  %v4153 = vsub.f32 %v3866, %v4117
  %v4154 = vsub.f32 %v3871, %v4117
  %v4155 = vsub.f32 %v3874, %v4117
  %v4156 = vsub.f32 %v3879, %v4117
  %v4157 = vsub.f32 %v3882, %v4117
  %v4158 = vsub.f32 %v3887, %v4117
  %v4159 = vsub.f32 %v3890, %v4117
  %v4160 = vsub.f32 %v3895, %v4117
  %v4161 = vsub.f32 %v3898, %v4117
  %v4162 = vsub.f32 %v3903, %v4117
  %v4163 = vsub.f32 %v3906, %v4117
  %v4164 = vsub.f32 %v3911, %v4117
  %v4165 = vsub.f32 %v3914, %v4117
  %v4166 = vsub.f32 %v3919, %v4117
  %v4167 = vsub.f32 %v3922, %v4117
  %v4168 = vsub.f32 %v3927, %v4117
  %v4169 = vsub.f32 %v3930, %v4117
  %v4170 = vsub.f32 %v3935, %v4117
  %v4171 = vsub.f32 %v3938, %v4117
  %v4172 = vsub.f32 %v3943, %v4117
  %v4173 = vsub.f32 %v3946, %v4117
  %v4174 = vsub.f32 %v3951, %v4117
  %v4175 = vsub.f32 %v3954, %v4117
  %v4176 = vsub.f32 %v3959, %v4117
  %v4177 = vsub.f32 %v3962, %v4117
  %v4178 = vsub.f32 %v3967, %v4117
  %v4179 = vsub.f32 %v3970, %v4117
  %v4180 = vsub.f32 %v3975, %v4117
  %v4181 = vsub.f32 %v3978, %v4117
  %v4182 = vmul.f32 %v4118, %v4118
  %v4183 = vmul.f32 %v4119, %v4119
  %v4184 = vmul.f32 %v4120, %v4120
  %v4185 = vmul.f32 %v4121, %v4121
  %v4186 = vmul.f32 %v4122, %v4122
  %v4187 = vmul.f32 %v4123, %v4123
  %v4188 = vmul.f32 %v4124, %v4124
  %v4189 = vmul.f32 %v4125, %v4125
  %v4190 = vmul.f32 %v4126, %v4126
  %v4191 = vmul.f32 %v4127, %v4127
  %v4192 = vmul.f32 %v4128, %v4128
  %v4193 = vmul.f32 %v4129, %v4129
  %v4194 = vmul.f32 %v4130, %v4130
  %v4195 = vmul.f32 %v4131, %v4131
  %v4196 = vmul.f32 %v4132, %v4132
  %v4197 = vmul.f32 %v4133, %v4133
  %v4198 = vmul.f32 %v4134, %v4134
  %v4199 = vmul.f32 %v4135, %v4135
  %v4200 = vmul.f32 %v4136, %v4136
  %v4201 = vmul.f32 %v4137, %v4137
  %v4202 = vmul.f32 %v4138, %v4138
  %v4203 = vmul.f32 %v4139, %v4139
  %v4204 = vmul.f32 %v4140, %v4140
  %v4205 = vmul.f32 %v4141, %v4141
  %v4206 = vmul.f32 %v4142, %v4142
  %v4207 = vmul.f32 %v4143, %v4143
  %v4208 = vmul.f32 %v4144, %v4144
  %v4209 = vmul.f32 %v4145, %v4145
  %v4210 = vmul.f32 %v4146, %v4146
  %v4211 = vmul.f32 %v4147, %v4147
  %v4212 = vmul.f32 %v4148, %v4148
  %v4213 = vmul.f32 %v4149, %v4149
  %v4214 = vmul.f32 %v4150, %v4150
  %v4215 = vmul.f32 %v4151, %v4151
  %v4216 = vmul.f32 %v4152, %v4152
  %v4217 = vmul.f32 %v4153, %v4153
  %v4218 = vmul.f32 %v4154, %v4154
  %v4219 = vmul.f32 %v4155, %v4155
  %v4220 = vmul.f32 %v4156, %v4156
  %v4221 = vmul.f32 %v4157, %v4157
  %v4222 = vmul.f32 %v4158, %v4158
  %v4223 = vmul.f32 %v4159, %v4159
  %v4224 = vmul.f32 %v4160, %v4160
  %v4225 = vmul.f32 %v4161, %v4161
  %v4226 = vmul.f32 %v4162, %v4162
  %v4227 = vmul.f32 %v4163, %v4163
  %v4228 = vmul.f32 %v4164, %v4164
  %v4229 = vmul.f32 %v4165, %v4165
  %v4230 = vmul.f32 %v4166, %v4166
  %v4231 = vmul.f32 %v4167, %v4167
  %v4232 = vmul.f32 %v4168, %v4168
  %v4233 = vmul.f32 %v4169, %v4169
  %v4234 = vmul.f32 %v4170, %v4170
  %v4235 = vmul.f32 %v4171, %v4171
  %v4236 = vmul.f32 %v4172, %v4172
  %v4237 = vmul.f32 %v4173, %v4173
  %v4238 = vmul.f32 %v4174, %v4174
  %v4239 = vmul.f32 %v4175, %v4175
  %v4240 = vmul.f32 %v4176, %v4176
  %v4241 = vmul.f32 %v4177, %v4177
  %v4242 = vmul.f32 %v4178, %v4178
  %v4243 = vmul.f32 %v4179, %v4179
  %v4244 = vmul.f32 %v4180, %v4180
  %v4245 = vmul.f32 %v4181, %v4181
  %v4246 = vsel %vm27, %v4182, 0.0
  %v4247 = vsel %vm27, %v4183, 0.0
  %v4248 = vadd.f32 %v4246, %v4247
  %v4249 = vsel %vm27, %v4184, 0.0
  %v4250 = vadd.f32 %v4248, %v4249
  %v4251 = vsel %vm27, %v4185, 0.0
  %v4252 = vadd.f32 %v4250, %v4251
  %v4253 = vsel %vm27, %v4186, 0.0
  %v4254 = vadd.f32 %v4252, %v4253
  %v4255 = vsel %vm27, %v4187, 0.0
  %v4256 = vadd.f32 %v4254, %v4255
  %v4257 = vsel %vm27, %v4188, 0.0
  %v4258 = vadd.f32 %v4256, %v4257
  %v4259 = vsel %vm27, %v4189, 0.0
  %v4260 = vadd.f32 %v4258, %v4259
  %v4261 = vsel %vm27, %v4190, 0.0
  %v4262 = vadd.f32 %v4260, %v4261
  %v4263 = vsel %vm27, %v4191, 0.0
  %v4264 = vadd.f32 %v4262, %v4263
  %v4265 = vsel %vm27, %v4192, 0.0
  %v4266 = vadd.f32 %v4264, %v4265
  %v4267 = vsel %vm27, %v4193, 0.0
  %v4268 = vadd.f32 %v4266, %v4267
  %v4269 = vsel %vm27, %v4194, 0.0
  %v4270 = vadd.f32 %v4268, %v4269
  %v4271 = vsel %vm27, %v4195, 0.0
  %v4272 = vadd.f32 %v4270, %v4271
  %v4273 = vsel %vm27, %v4196, 0.0
  %v4274 = vadd.f32 %v4272, %v4273
  %v4275 = vsel %vm27, %v4197, 0.0
  %v4276 = vadd.f32 %v4274, %v4275
  %v4277 = vsel %vm27, %v4198, 0.0
  %v4278 = vadd.f32 %v4276, %v4277
  %v4279 = vsel %vm27, %v4199, 0.0
  %v4280 = vadd.f32 %v4278, %v4279
  %v4281 = vsel %vm27, %v4200, 0.0
  %v4282 = vadd.f32 %v4280, %v4281
  %v4283 = vsel %vm27, %v4201, 0.0
  %v4284 = vadd.f32 %v4282, %v4283
  %v4285 = vsel %vm27, %v4202, 0.0
  %v4286 = vadd.f32 %v4284, %v4285
  %v4287 = vsel %vm27, %v4203, 0.0
  %v4288 = vadd.f32 %v4286, %v4287
  %v4289 = vsel %vm27, %v4204, 0.0
  %v4290 = vadd.f32 %v4288, %v4289
  %v4291 = vsel %vm27, %v4205, 0.0
  %v4292 = vadd.f32 %v4290, %v4291
  %v4293 = vsel %vm27, %v4206, 0.0
  %v4294 = vadd.f32 %v4292, %v4293
  %v4295 = vsel %vm27, %v4207, 0.0
  %v4296 = vadd.f32 %v4294, %v4295
  %v4297 = vsel %vm27, %v4208, 0.0
  %v4298 = vadd.f32 %v4296, %v4297
  %v4299 = vsel %vm27, %v4209, 0.0
  %v4300 = vadd.f32 %v4298, %v4299
  %v4301 = vsel %vm27, %v4210, 0.0
  %v4302 = vadd.f32 %v4300, %v4301
  %v4303 = vsel %vm27, %v4211, 0.0
  %v4304 = vadd.f32 %v4302, %v4303
  %v4305 = vsel %vm27, %v4212, 0.0
  %v4306 = vadd.f32 %v4304, %v4305
  %v4307 = vsel %vm27, %v4213, 0.0
  %v4308 = vadd.f32 %v4306, %v4307
  %v4309 = vsel %vm27, %v4214, 0.0
  %v4310 = vadd.f32 %v4308, %v4309
  %v4311 = vsel %vm27, %v4215, 0.0
  %v4312 = vadd.f32 %v4310, %v4311
  %v4313 = vsel %vm27, %v4216, 0.0
  %v4314 = vadd.f32 %v4312, %v4313
  %v4315 = vsel %vm27, %v4217, 0.0
  %v4316 = vadd.f32 %v4314, %v4315
  %v4317 = vsel %vm27, %v4218, 0.0
  %v4318 = vadd.f32 %v4316, %v4317
  %v4319 = vsel %vm27, %v4219, 0.0
  %v4320 = vadd.f32 %v4318, %v4319
  %v4321 = vsel %vm27, %v4220, 0.0
  %v4322 = vadd.f32 %v4320, %v4321
  %v4323 = vsel %vm27, %v4221, 0.0
  %v4324 = vadd.f32 %v4322, %v4323
  %v4325 = vsel %vm27, %v4222, 0.0
  %v4326 = vadd.f32 %v4324, %v4325
  %v4327 = vsel %vm27, %v4223, 0.0
  %v4328 = vadd.f32 %v4326, %v4327
  %v4329 = vsel %vm27, %v4224, 0.0
  %v4330 = vadd.f32 %v4328, %v4329
  %v4331 = vsel %vm27, %v4225, 0.0
  %v4332 = vadd.f32 %v4330, %v4331
  %v4333 = vsel %vm27, %v4226, 0.0
  %v4334 = vadd.f32 %v4332, %v4333
  %v4335 = vsel %vm27, %v4227, 0.0
  %v4336 = vadd.f32 %v4334, %v4335
  %v4337 = vsel %vm27, %v4228, 0.0
  %v4338 = vadd.f32 %v4336, %v4337
  %v4339 = vsel %vm27, %v4229, 0.0
  %v4340 = vadd.f32 %v4338, %v4339
  %v4341 = vsel %vm27, %v4230, 0.0
  %v4342 = vadd.f32 %v4340, %v4341
  %v4343 = vsel %vm27, %v4231, 0.0
  %v4344 = vadd.f32 %v4342, %v4343
  %v4345 = vsel %vm27, %v4232, 0.0
  %v4346 = vadd.f32 %v4344, %v4345
  %v4347 = vsel %vm27, %v4233, 0.0
  %v4348 = vadd.f32 %v4346, %v4347
  %v4349 = vsel %vm27, %v4234, 0.0
  %v4350 = vadd.f32 %v4348, %v4349
  %v4351 = vsel %vm27, %v4235, 0.0
  %v4352 = vadd.f32 %v4350, %v4351
  %v4353 = vsel %vm27, %v4236, 0.0
  %v4354 = vadd.f32 %v4352, %v4353
  %v4355 = vsel %vm27, %v4237, 0.0
  %v4356 = vadd.f32 %v4354, %v4355
  %v4357 = vsel %vm27, %v4238, 0.0
  %v4358 = vadd.f32 %v4356, %v4357
  %v4359 = vsel %vm27, %v4239, 0.0
  %v4360 = vadd.f32 %v4358, %v4359
  %v4361 = vsel %vm27, %v4240, 0.0
  %v4362 = vadd.f32 %v4360, %v4361
  %v4363 = vsel %vm27, %v4241, 0.0
  %v4364 = vadd.f32 %v4362, %v4363
  %v4365 = vsel %vm27, %v4242, 0.0
  %v4366 = vadd.f32 %v4364, %v4365
  %v4367 = vsel %vm27, %v4243, 0.0
  %v4368 = vadd.f32 %v4366, %v4367
  %v4369 = vsel %vm27, %v4244, 0.0
  %v4370 = vadd.f32 %v4368, %v4369
  %v4371 = vsel %vm27, %v4245, 0.0
  %v4372 = vadd.f32 %v4370, %v4371
  %v4373 = vrot.slane %v4372, 4
  %v4374 = vadd.f32 %v4372, %v4373
  %v4375 = vrot.slane %v4374, 2
  %v4376 = vadd.f32 %v4374, %v4375
  %v4377 = vrot.slane %v4376, 1
  %v4378 = vadd.f32 %v4376, %v4377
  %v4379 = vmul.f32 %v4378, %v4116
  %v4380 = vadd.f32 %v4379, 1e-05
  %v4381 = vrsqrt.pop %v4380
  %v4382 = vmul.f32 %v3981, %v4381
  %v4384 = vlaneseq
  %v4385 = vshrl.u32 %v4384, 7
  %v4386 = vsub.s32 0, %v4385
  %v4387 = vrot.slane %v4382, %v4386
  %v4389 = vmul.f32 %v4118, %v4387
  %v4390 = vmul.f32 %v4119, %v4387
  %v4391 = vmul.f32 %v4120, %v4387
  %v4392 = vmul.f32 %v4121, %v4387
  %v4393 = vmul.f32 %v4122, %v4387
  %v4394 = vmul.f32 %v4123, %v4387
  %v4395 = vmul.f32 %v4124, %v4387
  %v4396 = vmul.f32 %v4125, %v4387
  %v4397 = vmul.f32 %v4126, %v4387
  %v4398 = vmul.f32 %v4127, %v4387
  %v4399 = vmul.f32 %v4128, %v4387
  %v4400 = vmul.f32 %v4129, %v4387
  %v4401 = vmul.f32 %v4130, %v4387
  %v4402 = vmul.f32 %v4131, %v4387
  %v4403 = vmul.f32 %v4132, %v4387
  %v4404 = vmul.f32 %v4133, %v4387
  %v4405 = vmul.f32 %v4134, %v4387
  %v4406 = vmul.f32 %v4135, %v4387
  %v4407 = vmul.f32 %v4136, %v4387
  %v4408 = vmul.f32 %v4137, %v4387
  %v4409 = vmul.f32 %v4138, %v4387
  %v4410 = vmul.f32 %v4139, %v4387
  %v4411 = vmul.f32 %v4140, %v4387
  %v4412 = vmul.f32 %v4141, %v4387
  %v4413 = vmul.f32 %v4142, %v4387
  %v4414 = vmul.f32 %v4143, %v4387
  %v4415 = vmul.f32 %v4144, %v4387
  %v4416 = vmul.f32 %v4145, %v4387
  %v4417 = vmul.f32 %v4146, %v4387
  %v4418 = vmul.f32 %v4147, %v4387
  %v4419 = vmul.f32 %v4148, %v4387
  %v4420 = vmul.f32 %v4149, %v4387
  %v4421 = vmul.f32 %v4150, %v4387
  %v4422 = vmul.f32 %v4151, %v4387
  %v4423 = vmul.f32 %v4152, %v4387
  %v4424 = vmul.f32 %v4153, %v4387
  %v4425 = vmul.f32 %v4154, %v4387
  %v4426 = vmul.f32 %v4155, %v4387
  %v4427 = vmul.f32 %v4156, %v4387
  %v4428 = vmul.f32 %v4157, %v4387
  %v4429 = vmul.f32 %v4158, %v4387
  %v4430 = vmul.f32 %v4159, %v4387
  %v4431 = vmul.f32 %v4160, %v4387
  %v4432 = vmul.f32 %v4161, %v4387
  %v4433 = vmul.f32 %v4162, %v4387
  %v4434 = vmul.f32 %v4163, %v4387
  %v4435 = vmul.f32 %v4164, %v4387
  %v4436 = vmul.f32 %v4165, %v4387
  %v4437 = vmul.f32 %v4166, %v4387
  %v4438 = vmul.f32 %v4167, %v4387
  %v4439 = vmul.f32 %v4168, %v4387
  %v4440 = vmul.f32 %v4169, %v4387
  %v4441 = vmul.f32 %v4170, %v4387
  %v4442 = vmul.f32 %v4171, %v4387
  %v4443 = vmul.f32 %v4172, %v4387
  %v4444 = vmul.f32 %v4173, %v4387
  %v4445 = vmul.f32 %v4174, %v4387
  %v4446 = vmul.f32 %v4175, %v4387
  %v4447 = vmul.f32 %v4176, %v4387
  %v4448 = vmul.f32 %v4177, %v4387
  %v4449 = vmul.f32 %v4178, %v4387
  %v4450 = vmul.f32 %v4179, %v4387
  %v4451 = vmul.f32 %v4180, %v4387
  %v4452 = vmul.f32 %v4181, %v4387
  %v4454 = vlaneseq
  %v4455 = vshrl.u32 %v4454, 7
  %v4456 = vsub.s32 0, %v4455
  %v4457 = vrot.slane %v3982, %v4456
  %v4459 = vadd.f32 %v4389, %v4457
  %v4460 = vadd.f32 %v4390, %v4457
  %v4461 = vadd.f32 %v4391, %v4457
  %v4462 = vadd.f32 %v4392, %v4457
  %v4463 = vadd.f32 %v4393, %v4457
  %v4464 = vadd.f32 %v4394, %v4457
  %v4465 = vadd.f32 %v4395, %v4457
  %v4466 = vadd.f32 %v4396, %v4457
  %v4467 = vadd.f32 %v4397, %v4457
  %v4468 = vadd.f32 %v4398, %v4457
  %v4469 = vadd.f32 %v4399, %v4457
  %v4470 = vadd.f32 %v4400, %v4457
  %v4471 = vadd.f32 %v4401, %v4457
  %v4472 = vadd.f32 %v4402, %v4457
  %v4473 = vadd.f32 %v4403, %v4457
  %v4474 = vadd.f32 %v4404, %v4457
  %v4475 = vadd.f32 %v4405, %v4457
  %v4476 = vadd.f32 %v4406, %v4457
  %v4477 = vadd.f32 %v4407, %v4457
  %v4478 = vadd.f32 %v4408, %v4457
  %v4479 = vadd.f32 %v4409, %v4457
  %v4480 = vadd.f32 %v4410, %v4457
  %v4481 = vadd.f32 %v4411, %v4457
  %v4482 = vadd.f32 %v4412, %v4457
  %v4483 = vadd.f32 %v4413, %v4457
  %v4484 = vadd.f32 %v4414, %v4457
  %v4485 = vadd.f32 %v4415, %v4457
  %v4486 = vadd.f32 %v4416, %v4457
  %v4487 = vadd.f32 %v4417, %v4457
  %v4488 = vadd.f32 %v4418, %v4457
  %v4489 = vadd.f32 %v4419, %v4457
  %v4490 = vadd.f32 %v4420, %v4457
  %v4491 = vadd.f32 %v4421, %v4457
  %v4492 = vadd.f32 %v4422, %v4457
  %v4493 = vadd.f32 %v4423, %v4457
  %v4494 = vadd.f32 %v4424, %v4457
  %v4495 = vadd.f32 %v4425, %v4457
  %v4496 = vadd.f32 %v4426, %v4457
  %v4497 = vadd.f32 %v4427, %v4457
  %v4498 = vadd.f32 %v4428, %v4457
  %v4499 = vadd.f32 %v4429, %v4457
  %v4500 = vadd.f32 %v4430, %v4457
  %v4501 = vadd.f32 %v4431, %v4457
  %v4502 = vadd.f32 %v4432, %v4457
  %v4503 = vadd.f32 %v4433, %v4457
  %v4504 = vadd.f32 %v4434, %v4457
  %v4505 = vadd.f32 %v4435, %v4457
  %v4506 = vadd.f32 %v4436, %v4457
  %v4507 = vadd.f32 %v4437, %v4457
  %v4508 = vadd.f32 %v4438, %v4457
  %v4509 = vadd.f32 %v4439, %v4457
  %v4510 = vadd.f32 %v4440, %v4457
  %v4511 = vadd.f32 %v4441, %v4457
  %v4512 = vadd.f32 %v4442, %v4457
  %v4513 = vadd.f32 %v4443, %v4457
  %v4514 = vadd.f32 %v4444, %v4457
  %v4515 = vadd.f32 %v4445, %v4457
  %v4516 = vadd.f32 %v4446, %v4457
  %v4517 = vadd.f32 %v4447, %v4457
  %v4518 = vadd.f32 %v4448, %v4457
  %v4519 = vadd.f32 %v4449, %v4457
  %v4520 = vadd.f32 %v4450, %v4457
  %v4521 = vadd.f32 %v4451, %v4457
  %v4522 = vadd.f32 %v4452, %v4457
  %v4523 = vmax.f32 %v4459, 0.0
  %v4524 = vmax.f32 %v4460, 0.0
  %v4525 = vmax.f32 %v4461, 0.0
  %v4526 = vmax.f32 %v4462, 0.0
  %v4527 = vmax.f32 %v4463, 0.0
  %v4528 = vmax.f32 %v4464, 0.0
  %v4529 = vmax.f32 %v4465, 0.0
  %v4530 = vmax.f32 %v4466, 0.0
  %v4531 = vmax.f32 %v4467, 0.0
  %v4532 = vmax.f32 %v4468, 0.0
  %v4533 = vmax.f32 %v4469, 0.0
  %v4534 = vmax.f32 %v4470, 0.0
  %v4535 = vmax.f32 %v4471, 0.0
  %v4536 = vmax.f32 %v4472, 0.0
  %v4537 = vmax.f32 %v4473, 0.0
  %v4538 = vmax.f32 %v4474, 0.0
  %v4539 = vmax.f32 %v4475, 0.0
  %v4540 = vmax.f32 %v4476, 0.0
  %v4541 = vmax.f32 %v4477, 0.0
  %v4542 = vmax.f32 %v4478, 0.0
  %v4543 = vmax.f32 %v4479, 0.0
  %v4544 = vmax.f32 %v4480, 0.0
  %v4545 = vmax.f32 %v4481, 0.0
  %v4546 = vmax.f32 %v4482, 0.0
  %v4547 = vmax.f32 %v4483, 0.0
  %v4548 = vmax.f32 %v4484, 0.0
  %v4549 = vmax.f32 %v4485, 0.0
  %v4550 = vmax.f32 %v4486, 0.0
  %v4551 = vmax.f32 %v4487, 0.0
  %v4552 = vmax.f32 %v4488, 0.0
  %v4553 = vmax.f32 %v4489, 0.0
  %v4554 = vmax.f32 %v4490, 0.0
  %v4555 = vmax.f32 %v4491, 0.0
  %v4556 = vmax.f32 %v4492, 0.0
  %v4557 = vmax.f32 %v4493, 0.0
  %v4558 = vmax.f32 %v4494, 0.0
  %v4559 = vmax.f32 %v4495, 0.0
  %v4560 = vmax.f32 %v4496, 0.0
  %v4561 = vmax.f32 %v4497, 0.0
  %v4562 = vmax.f32 %v4498, 0.0
  %v4563 = vmax.f32 %v4499, 0.0
  %v4564 = vmax.f32 %v4500, 0.0
  %v4565 = vmax.f32 %v4501, 0.0
  %v4566 = vmax.f32 %v4502, 0.0
  %v4567 = vmax.f32 %v4503, 0.0
  %v4568 = vmax.f32 %v4504, 0.0
  %v4569 = vmax.f32 %v4505, 0.0
  %v4570 = vmax.f32 %v4506, 0.0
  %v4571 = vmax.f32 %v4507, 0.0
  %v4572 = vmax.f32 %v4508, 0.0
  %v4573 = vmax.f32 %v4509, 0.0
  %v4574 = vmax.f32 %v4510, 0.0
  %v4575 = vmax.f32 %v4511, 0.0
  %v4576 = vmax.f32 %v4512, 0.0
  %v4577 = vmax.f32 %v4513, 0.0
  %v4578 = vmax.f32 %v4514, 0.0
  %v4579 = vmax.f32 %v4515, 0.0
  %v4580 = vmax.f32 %v4516, 0.0
  %v4581 = vmax.f32 %v4517, 0.0
  %v4582 = vmax.f32 %v4518, 0.0
  %v4583 = vmax.f32 %v4519, 0.0
  %v4584 = vmax.f32 %v4520, 0.0
  %v4585 = vmax.f32 %v4521, 0.0
  %v4586 = vmax.f32 %v4522, 0.0
  %4587 = vst.msk [vmem:[%s201 + $0x1] sm:$0xff] %vm27, %v4523
  %4588 = vst.msk [vmem:[%s201 + $0x9] sm:$0xff] %vm27, %v4524
  %4589 = vst.msk [vmem:[%s201 + $0x19] sm:$0xff] %vm27, %v4525
  %4590 = vst.msk [vmem:[%s201 + $0x21] sm:$0xff] %vm27, %v4526
  %4591 = vst.msk [vmem:[%s201 + $0x31] sm:$0xff] %vm27, %v4527
  %4592 = vst.msk [vmem:[%s201 + $0x39] sm:$0xff] %vm27, %v4528
  %4593 = vst.msk [vmem:[%s201 + $0x49] sm:$0xff] %vm27, %v4529
  %4594 = vst.msk [vmem:[%s201 + $0x51] sm:$0xff] %vm27, %v4530
  %4595 = vst.msk [vmem:[%s201 + $0x61] sm:$0xff] %vm27, %v4531
  %4596 = vst.msk [vmem:[%s201 + $0x69] sm:$0xff] %vm27, %v4532
  %4597 = vst.msk [vmem:[%s201 + $0x79] sm:$0xff] %vm27, %v4533
  %4598 = vst.msk [vmem:[%s201 + $0x81] sm:$0xff] %vm27, %v4534
  %4599 = vst.msk [vmem:[%s201 + $0x91] sm:$0xff] %vm27, %v4535
  %4600 = vst.msk [vmem:[%s201 + $0x99] sm:$0xff] %vm27, %v4536
  %4601 = vst.msk [vmem:[%s201 + $0xa9] sm:$0xff] %vm27, %v4537
  %4602 = vst.msk [vmem:[%s201 + $0xb1] sm:$0xff] %vm27, %v4538
  %4603 = vst.msk [vmem:[%s201 + $0xc1] sm:$0xff] %vm27, %v4539
  %4604 = vst.msk [vmem:[%s201 + $0xc9] sm:$0xff] %vm27, %v4540
  %4605 = vst.msk [vmem:[%s201 + $0xd9] sm:$0xff] %vm27, %v4541
  %4606 = vst.msk [vmem:[%s201 + $0xe1] sm:$0xff] %vm27, %v4542
  %4607 = vst.msk [vmem:[%s201 + $0xf1] sm:$0xff] %vm27, %v4543
  %4608 = vst.msk [vmem:[%s201 + $0xf9] sm:$0xff] %vm27, %v4544
  %4609 = vst.msk [vmem:[%s201 + $0x109] sm:$0xff] %vm27, %v4545
  %4610 = vst.msk [vmem:[%s201 + $0x111] sm:$0xff] %vm27, %v4546
  %4611 = vst.msk [vmem:[%s201 + $0x121] sm:$0xff] %vm27, %v4547
  %4612 = vst.msk [vmem:[%s201 + $0x129] sm:$0xff] %vm27, %v4548
  %4613 = vst.msk [vmem:[%s201 + $0x139] sm:$0xff] %vm27, %v4549
  %4614 = vst.msk [vmem:[%s201 + $0x141] sm:$0xff] %vm27, %v4550
  %4615 = vst.msk [vmem:[%s201 + $0x151] sm:$0xff] %vm27, %v4551
  %4616 = vst.msk [vmem:[%s201 + $0x159] sm:$0xff] %vm27, %v4552
  %4617 = vst.msk [vmem:[%s201 + $0x169] sm:$0xff] %vm27, %v4553
  %4618 = vst.msk [vmem:[%s201 + $0x171] sm:$0xff] %vm27, %v4554
  %4619 = vst.msk [vmem:[%s201 + $0x1b1] sm:$0xff] %vm27, %v4555
  %4620 = vst.msk [vmem:[%s201 + $0x1b9] sm:$0xff] %vm27, %v4556
  %4621 = vst.msk [vmem:[%s201 + $0x1c9] sm:$0xff] %vm27, %v4557
  %4622 = vst.msk [vmem:[%s201 + $0x1d1] sm:$0xff] %vm27, %v4558
  %4623 = vst.msk [vmem:[%s201 + $0x1e1] sm:$0xff] %vm27, %v4559
  %4624 = vst.msk [vmem:[%s201 + $0x1e9] sm:$0xff] %vm27, %v4560
  %4625 = vst.msk [vmem:[%s201 + $0x1f9] sm:$0xff] %vm27, %v4561
  %4626 = vst.msk [vmem:[%s201 + $0x201] sm:$0xff] %vm27, %v4562
  %4627 = vst.msk [vmem:[%s201 + $0x211] sm:$0xff] %vm27, %v4563
  %4628 = vst.msk [vmem:[%s201 + $0x219] sm:$0xff] %vm27, %v4564
  %4629 = vst.msk [vmem:[%s201 + $0x229] sm:$0xff] %vm27, %v4565
  %4630 = vst.msk [vmem:[%s201 + $0x231] sm:$0xff] %vm27, %v4566
  %4631 = vst.msk [vmem:[%s201 + $0x241] sm:$0xff] %vm27, %v4567
  %4632 = vst.msk [vmem:[%s201 + $0x249] sm:$0xff] %vm27, %v4568
  %4633 = vst.msk [vmem:[%s201 + $0x259] sm:$0xff] %vm27, %v4569
  %4634 = vst.msk [vmem:[%s201 + $0x261] sm:$0xff] %vm27, %v4570
  %4635 = vst.msk [vmem:[%s201 + $0x271] sm:$0xff] %vm27, %v4571
  %4636 = vst.msk [vmem:[%s201 + $0x279] sm:$0xff] %vm27, %v4572
  %4637 = vst.msk [vmem:[%s201 + $0x289] sm:$0xff] %vm27, %v4573
  %4638 = vst.msk [vmem:[%s201 + $0x291] sm:$0xff] %vm27, %v4574
  %4639 = vst.msk [vmem:[%s201 + $0x2a1] sm:$0xff] %vm27, %v4575
  %4640 = vst.msk [vmem:[%s201 + $0x2a9] sm:$0xff] %vm27, %v4576
  %4641 = vst.msk [vmem:[%s201 + $0x2b9] sm:$0xff] %vm27, %v4577
  %4642 = vst.msk [vmem:[%s201 + $0x2c1] sm:$0xff] %vm27, %v4578
  %4643 = vst.msk [vmem:[%s201 + $0x2d1] sm:$0xff] %vm27, %v4579
  %4644 = vst.msk [vmem:[%s201 + $0x2d9] sm:$0xff] %vm27, %v4580
  %4645 = vst.msk [vmem:[%s201 + $0x2e9] sm:$0xff] %vm27, %v4581
  %4646 = vst.msk [vmem:[%s201 + $0x2f1] sm:$0xff] %vm27, %v4582
  %4647 = vst.msk [vmem:[%s201 + $0x301] sm:$0xff] %vm27, %v4583
  %4648 = vst.msk [vmem:[%s201 + $0x309] sm:$0xff] %vm27, %v4584
  %4649 = vst.msk [vmem:[%s201 + $0x319] sm:$0xff] %vm27, %v4585
  %4650 = vst.msk [vmem:[%s201 + $0x321] sm:$0xff] %vm27, %v4586
  %v4651 = vld [vmem:[#allocation2] sm:$0xff]
  %v4652 = vld [vmem:[#allocation2 + $0x8] sm:$0xff]
  %v4653 = vld [vmem:[#allocation2 + $0x18] sm:$0xff]
  %v4654 = vld [vmem:[#allocation2 + $0x20] sm:$0xff]
  %v4655 = vld [vmem:[#allocation2 + $0x30] sm:$0xff]
  %v4656 = vld [vmem:[#allocation2 + $0x38] sm:$0xff]
  %v4657 = vld [vmem:[#allocation2 + $0x48] sm:$0xff]
  %v4658 = vld [vmem:[#allocation2 + $0x50] sm:$0xff]
  %v4659 = vld [vmem:[#allocation2 + $0x60] sm:$0xff]
  %v4660 = vld [vmem:[#allocation2 + $0x68] sm:$0xff]
  %v4661 = vld [vmem:[#allocation2 + $0x78] sm:$0xff]
  %v4662 = vld [vmem:[#allocation2 + $0x80] sm:$0xff]
  %v4663 = vld [vmem:[#allocation2 + $0x90] sm:$0xff]
  %v4664 = vld [vmem:[#allocation2 + $0x98] sm:$0xff]
  %v4665 = vld [vmem:[#allocation2 + $0xa8] sm:$0xff]
  %v4666 = vld [vmem:[#allocation2 + $0xb0] sm:$0xff]
  %v4667 = vld [vmem:[#allocation2 + $0xc0] sm:$0xff]
  %v4668 = vld [vmem:[#allocation2 + $0xc8] sm:$0xff]
  %v4669 = vld [vmem:[#allocation2 + $0xd8] sm:$0xff]
  %v4670 = vld [vmem:[#allocation2 + $0xe0] sm:$0xff]
  %v4671 = vld [vmem:[#allocation2 + $0xf0] sm:$0xff]
  %v4672 = vld [vmem:[#allocation2 + $0xf8] sm:$0xff]
  %v4673 = vld [vmem:[#allocation2 + $0x108] sm:$0xff]
  %v4674 = vld [vmem:[#allocation2 + $0x110] sm:$0xff]
  %v4675 = vld [vmem:[#allocation2 + $0x120] sm:$0xff]
  %v4676 = vld [vmem:[#allocation2 + $0x128] sm:$0xff]
  %v4677 = vld [vmem:[#allocation2 + $0x138] sm:$0xff]
  %v4678 = vld [vmem:[#allocation2 + $0x140] sm:$0xff]
  %v4679 = vld [vmem:[#allocation2 + $0x150] sm:$0xff]
  %v4680 = vld [vmem:[#allocation2 + $0x158] sm:$0xff]
  %v4681 = vld [vmem:[#allocation2 + $0x168] sm:$0xff]
  %v4682 = vld [vmem:[#allocation2 + $0x170] sm:$0xff]
  %v4683 = vld [vmem:[#allocation2 + $0x1b0] sm:$0xff]
  %v4684 = vld [vmem:[#allocation2 + $0x1b8] sm:$0xff]
  %v4685 = vld [vmem:[#allocation2 + $0x1c8] sm:$0xff]
  %v4686 = vld [vmem:[#allocation2 + $0x1d0] sm:$0xff]
  %v4687 = vld [vmem:[#allocation2 + $0x1e0] sm:$0xff]
  %v4688 = vld [vmem:[#allocation2 + $0x1e8] sm:$0xff]
  %v4689 = vld [vmem:[#allocation2 + $0x1f8] sm:$0xff]
  %v4690 = vld [vmem:[#allocation2 + $0x200] sm:$0xff]
  %v4691 = vld [vmem:[#allocation2 + $0x210] sm:$0xff]
  %v4692 = vld [vmem:[#allocation2 + $0x218] sm:$0xff]
  %v4693 = vld [vmem:[#allocation2 + $0x228] sm:$0xff]
  %v4694 = vld [vmem:[#allocation2 + $0x230] sm:$0xff]
  %v4695 = vld [vmem:[#allocation2 + $0x240] sm:$0xff]
  %v4696 = vld [vmem:[#allocation2 + $0x248] sm:$0xff]
  %v4697 = vld [vmem:[#allocation2 + $0x258] sm:$0xff]
  %v4698 = vld [vmem:[#allocation2 + $0x260] sm:$0xff]
  %v4699 = vld [vmem:[#allocation2 + $0x270] sm:$0xff]
  %v4700 = vld [vmem:[#allocation2 + $0x278] sm:$0xff]
  %v4701 = vld [vmem:[#allocation2 + $0x288] sm:$0xff]
  %v4702 = vld [vmem:[#allocation2 + $0x290] sm:$0xff]
  %v4703 = vld [vmem:[#allocation2 + $0x2a0] sm:$0xff]
  %v4704 = vld [vmem:[#allocation2 + $0x2a8] sm:$0xff]
  %v4705 = vld [vmem:[#allocation2 + $0x2b8] sm:$0xff]
  %v4706 = vld [vmem:[#allocation2 + $0x2c0] sm:$0xff]
  %v4707 = vld [vmem:[#allocation2 + $0x2d0] sm:$0xff]
  %v4708 = vld [vmem:[#allocation2 + $0x2d8] sm:$0xff]
  %v4709 = vld [vmem:[#allocation2 + $0x2e8] sm:$0xff]
  %v4710 = vld [vmem:[#allocation2 + $0x2f0] sm:$0xff]
  %v4711 = vld [vmem:[#allocation2 + $0x300] sm:$0xff]
  %v4712 = vld [vmem:[#allocation2 + $0x308] sm:$0xff]
  %v4713 = vld [vmem:[#allocation2 + $0x318] sm:$0xff]
  %v4714 = vld [vmem:[#allocation2 + $0x320] sm:$0xff]
  %4715 = vst.msk [vmem:[#allocation3] sm:$0xff] %vm27, %v4651
  %4716 = vst.msk [vmem:[#allocation3 + $0x8] sm:$0xff] %vm27, %v4652
  %4717 = vst.msk [vmem:[#allocation3 + $0x10] sm:$0xff] %vm27, %v4653
  %4718 = vst.msk [vmem:[#allocation3 + $0x18] sm:$0xff] %vm27, %v4654
  %4719 = vst.msk [vmem:[#allocation3 + $0x20] sm:$0xff] %vm27, %v4655
  %4720 = vst.msk [vmem:[#allocation3 + $0x28] sm:$0xff] %vm27, %v4656
  %4721 = vst.msk [vmem:[#allocation3 + $0x30] sm:$0xff] %vm27, %v4657
  %4722 = vst.msk [vmem:[#allocation3 + $0x38] sm:$0xff] %vm27, %v4658
  %4723 = vst.msk [vmem:[#allocation3 + $0x40] sm:$0xff] %vm27, %v4659
  %4724 = vst.msk [vmem:[#allocation3 + $0x48] sm:$0xff] %vm27, %v4660
  %4725 = vst.msk [vmem:[#allocation3 + $0x50] sm:$0xff] %vm27, %v4661
  %4726 = vst.msk [vmem:[#allocation3 + $0x58] sm:$0xff] %vm27, %v4662
  %4727 = vst.msk [vmem:[#allocation3 + $0x60] sm:$0xff] %vm27, %v4663
  %4728 = vst.msk [vmem:[#allocation3 + $0x68] sm:$0xff] %vm27, %v4664
  %4729 = vst.msk [vmem:[#allocation3 + $0x70] sm:$0xff] %vm27, %v4665
  %4730 = vst.msk [vmem:[#allocation3 + $0x78] sm:$0xff] %vm27, %v4666
  %4731 = vst.msk [vmem:[#allocation3 + $0x80] sm:$0xff] %vm27, %v4667
  %4732 = vst.msk [vmem:[#allocation3 + $0x88] sm:$0xff] %vm27, %v4668
  %4733 = vst.msk [vmem:[#allocation3 + $0x90] sm:$0xff] %vm27, %v4669
  %4734 = vst.msk [vmem:[#allocation3 + $0x98] sm:$0xff] %vm27, %v4670
  %4735 = vst.msk [vmem:[#allocation3 + $0xa0] sm:$0xff] %vm27, %v4671
  %4736 = vst.msk [vmem:[#allocation3 + $0xa8] sm:$0xff] %vm27, %v4672
  %4737 = vst.msk [vmem:[#allocation3 + $0xb0] sm:$0xff] %vm27, %v4673
  %4738 = vst.msk [vmem:[#allocation3 + $0xb8] sm:$0xff] %vm27, %v4674
  %4739 = vst.msk [vmem:[#allocation3 + $0xc0] sm:$0xff] %vm27, %v4675
  %4740 = vst.msk [vmem:[#allocation3 + $0xc8] sm:$0xff] %vm27, %v4676
  %4741 = vst.msk [vmem:[#allocation3 + $0xd0] sm:$0xff] %vm27, %v4677
  %4742 = vst.msk [vmem:[#allocation3 + $0xd8] sm:$0xff] %vm27, %v4678
  %4743 = vst.msk [vmem:[#allocation3 + $0xe0] sm:$0xff] %vm27, %v4679
  %4744 = vst.msk [vmem:[#allocation3 + $0xe8] sm:$0xff] %vm27, %v4680
  %4745 = vst.msk [vmem:[#allocation3 + $0xf0] sm:$0xff] %vm27, %v4681
  %4746 = vst.msk [vmem:[#allocation3 + $0xf8] sm:$0xff] %vm27, %v4682
  %4747 = vst.msk [vmem:[#allocation3 + $0x100] sm:$0xff] %vm27, %v4683
  %4748 = vst.msk [vmem:[#allocation3 + $0x108] sm:$0xff] %vm27, %v4684
  %4749 = vst.msk [vmem:[#allocation3 + $0x110] sm:$0xff] %vm27, %v4685
  %4750 = vst.msk [vmem:[#allocation3 + $0x118] sm:$0xff] %vm27, %v4686
  %4751 = vst.msk [vmem:[#allocation3 + $0x120] sm:$0xff] %vm27, %v4687
  %4752 = vst.msk [vmem:[#allocation3 + $0x128] sm:$0xff] %vm27, %v4688
  %4753 = vst.msk [vmem:[#allocation3 + $0x130] sm:$0xff] %vm27, %v4689
  %4754 = vst.msk [vmem:[#allocation3 + $0x138] sm:$0xff] %vm27, %v4690
  %4755 = vst.msk [vmem:[#allocation3 + $0x140] sm:$0xff] %vm27, %v4691
  %4756 = vst.msk [vmem:[#allocation3 + $0x148] sm:$0xff] %vm27, %v4692
  %4757 = vst.msk [vmem:[#allocation3 + $0x150] sm:$0xff] %vm27, %v4693
  %4758 = vst.msk [vmem:[#allocation3 + $0x158] sm:$0xff] %vm27, %v4694
  %4759 = vst.msk [vmem:[#allocation3 + $0x160] sm:$0xff] %vm27, %v4695
  %4760 = vst.msk [vmem:[#allocation3 + $0x168] sm:$0xff] %vm27, %v4696
  %4761 = vst.msk [vmem:[#allocation3 + $0x170] sm:$0xff] %vm27, %v4697
  %4762 = vst.msk [vmem:[#allocation3 + $0x178] sm:$0xff] %vm27, %v4698
  %4763 = vst.msk [vmem:[#allocation3 + $0x180] sm:$0xff] %vm27, %v4699
  %4764 = vst.msk [vmem:[#allocation3 + $0x188] sm:$0xff] %vm27, %v4700
  %4765 = vst.msk [vmem:[#allocation3 + $0x190] sm:$0xff] %vm27, %v4701
  %4766 = vst.msk [vmem:[#allocation3 + $0x198] sm:$0xff] %vm27, %v4702
  %4767 = vst.msk [vmem:[#allocation3 + $0x1a0] sm:$0xff] %vm27, %v4703
  %4768 = vst.msk [vmem:[#allocation3 + $0x1a8] sm:$0xff] %vm27, %v4704
  %4769 = vst.msk [vmem:[#allocation3 + $0x1b0] sm:$0xff] %vm27, %v4705
  %4770 = vst.msk [vmem:[#allocation3 + $0x1b8] sm:$0xff] %vm27, %v4706
  %4771 = vst.msk [vmem:[#allocation3 + $0x1c0] sm:$0xff] %vm27, %v4707
  %4772 = vst.msk [vmem:[#allocation3 + $0x1c8] sm:$0xff] %vm27, %v4708
  %4773 = vst.msk [vmem:[#allocation3 + $0x1d0] sm:$0xff] %vm27, %v4709
  %4774 = vst.msk [vmem:[#allocation3 + $0x1d8] sm:$0xff] %vm27, %v4710
  %4775 = vst.msk [vmem:[#allocation3 + $0x1e0] sm:$0xff] %vm27, %v4711
  %4776 = vst.msk [vmem:[#allocation3 + $0x1e8] sm:$0xff] %vm27, %v4712
  %4777 = vst.msk [vmem:[#allocation3 + $0x1f0] sm:$0xff] %vm27, %v4713
  %4778 = vst.msk [vmem:[#allocation3 + $0x1f8] sm:$0xff] %vm27, %v4714
  %v4779 = vld [vmem:[#allocation2 + $0x1] sm:$0xff]
  %v4780 = vld [vmem:[#allocation2 + $0x9] sm:$0xff]
  %v4781 = vld [vmem:[#allocation2 + $0x19] sm:$0xff]
  %v4782 = vld [vmem:[#allocation2 + $0x21] sm:$0xff]
  %v4783 = vld [vmem:[#allocation2 + $0x31] sm:$0xff]
  %v4784 = vld [vmem:[#allocation2 + $0x39] sm:$0xff]
  %v4785 = vld [vmem:[#allocation2 + $0x49] sm:$0xff]
  %v4786 = vld [vmem:[#allocation2 + $0x51] sm:$0xff]
  %v4787 = vld [vmem:[#allocation2 + $0x61] sm:$0xff]
  %v4788 = vld [vmem:[#allocation2 + $0x69] sm:$0xff]
  %v4789 = vld [vmem:[#allocation2 + $0x79] sm:$0xff]
  %v4790 = vld [vmem:[#allocation2 + $0x81] sm:$0xff]
  %v4791 = vld [vmem:[#allocation2 + $0x91] sm:$0xff]
  %v4792 = vld [vmem:[#allocation2 + $0x99] sm:$0xff]
  %v4793 = vld [vmem:[#allocation2 + $0xa9] sm:$0xff]
  %v4794 = vld [vmem:[#allocation2 + $0xb1] sm:$0xff]
  %v4795 = vld [vmem:[#allocation2 + $0xc1] sm:$0xff]
  %v4796 = vld [vmem:[#allocation2 + $0xc9] sm:$0xff]
  %v4797 = vld [vmem:[#allocation2 + $0xd9] sm:$0xff]
  %v4798 = vld [vmem:[#allocation2 + $0xe1] sm:$0xff]
  %v4799 = vld [vmem:[#allocation2 + $0xf1] sm:$0xff]
  %v4800 = vld [vmem:[#allocation2 + $0xf9] sm:$0xff]
  %v4801 = vld [vmem:[#allocation2 + $0x109] sm:$0xff]
  %v4802 = vld [vmem:[#allocation2 + $0x111] sm:$0xff]
  %v4803 = vld [vmem:[#allocation2 + $0x121] sm:$0xff]
  %v4804 = vld [vmem:[#allocation2 + $0x129] sm:$0xff]
  %v4805 = vld [vmem:[#allocation2 + $0x139] sm:$0xff]
  %v4806 = vld [vmem:[#allocation2 + $0x141] sm:$0xff]
  %v4807 = vld [vmem:[#allocation2 + $0x151] sm:$0xff]
  %v4808 = vld [vmem:[#allocation2 + $0x159] sm:$0xff]
  %v4809 = vld [vmem:[#allocation2 + $0x169] sm:$0xff]
  %v4810 = vld [vmem:[#allocation2 + $0x171] sm:$0xff]
  %v4811 = vld [vmem:[#allocation2 + $0x1b1] sm:$0xff]
  %v4812 = vld [vmem:[#allocation2 + $0x1b9] sm:$0xff]
  %v4813 = vld [vmem:[#allocation2 + $0x1c9] sm:$0xff]
  %v4814 = vld [vmem:[#allocation2 + $0x1d1] sm:$0xff]
  %v4815 = vld [vmem:[#allocation2 + $0x1e1] sm:$0xff]
  %v4816 = vld [vmem:[#allocation2 + $0x1e9] sm:$0xff]
  %v4817 = vld [vmem:[#allocation2 + $0x1f9] sm:$0xff]
  %v4818 = vld [vmem:[#allocation2 + $0x201] sm:$0xff]
  %v4819 = vld [vmem:[#allocation2 + $0x211] sm:$0xff]
  %v4820 = vld [vmem:[#allocation2 + $0x219] sm:$0xff]
  %v4821 = vld [vmem:[#allocation2 + $0x229] sm:$0xff]
  %v4822 = vld [vmem:[#allocation2 + $0x231] sm:$0xff]
  %v4823 = vld [vmem:[#allocation2 + $0x241] sm:$0xff]
  %v4824 = vld [vmem:[#allocation2 + $0x249] sm:$0xff]
  %v4825 = vld [vmem:[#allocation2 + $0x259] sm:$0xff]
  %v4826 = vld [vmem:[#allocation2 + $0x261] sm:$0xff]
  %v4827 = vld [vmem:[#allocation2 + $0x271] sm:$0xff]
  %v4828 = vld [vmem:[#allocation2 + $0x279] sm:$0xff]
  %v4829 = vld [vmem:[#allocation2 + $0x289] sm:$0xff]
  %v4830 = vld [vmem:[#allocation2 + $0x291] sm:$0xff]
  %v4831 = vld [vmem:[#allocation2 + $0x2a1] sm:$0xff]
  %v4832 = vld [vmem:[#allocation2 + $0x2a9] sm:$0xff]
  %v4833 = vld [vmem:[#allocation2 + $0x2b9] sm:$0xff]
  %v4834 = vld [vmem:[#allocation2 + $0x2c1] sm:$0xff]
  %v4835 = vld [vmem:[#allocation2 + $0x2d1] sm:$0xff]
  %v4836 = vld [vmem:[#allocation2 + $0x2d9] sm:$0xff]
  %v4837 = vld [vmem:[#allocation2 + $0x2e9] sm:$0xff]
  %v4838 = vld [vmem:[#allocation2 + $0x2f1] sm:$0xff]
  %v4839 = vld [vmem:[#allocation2 + $0x301] sm:$0xff]
  %v4840 = vld [vmem:[#allocation2 + $0x309] sm:$0xff]
  %v4841 = vld [vmem:[#allocation2 + $0x319] sm:$0xff]
  %v4842 = vld [vmem:[#allocation2 + $0x321] sm:$0xff]
  %4907 = vrot.lane.b32.xlu0 %v4779, 4
  %v4908 = vpop.permute.xlu0 %4907
  %4909 = vrot.lane.b32.xlu0 %v4780, 4
  %v4910 = vpop.permute.xlu0 %4909
  %4911 = vrot.lane.b32.xlu0 %v4781, 4
  %v4912 = vpop.permute.xlu0 %4911
  %4913 = vrot.lane.b32.xlu0 %v4782, 4
  %v4914 = vpop.permute.xlu0 %4913
  %4915 = vrot.lane.b32.xlu0 %v4783, 4
  %v4916 = vpop.permute.xlu0 %4915
  %4917 = vrot.lane.b32.xlu0 %v4784, 4
  %v4918 = vpop.permute.xlu0 %4917
  %4919 = vrot.lane.b32.xlu0 %v4785, 4
  %v4920 = vpop.permute.xlu0 %4919
  %4921 = vrot.lane.b32.xlu0 %v4786, 4
  %v4922 = vpop.permute.xlu0 %4921
  %4923 = vrot.lane.b32.xlu0 %v4787, 4
  %v4924 = vpop.permute.xlu0 %4923
  %4925 = vrot.lane.b32.xlu0 %v4788, 4
  %v4926 = vpop.permute.xlu0 %4925
  %4927 = vrot.lane.b32.xlu0 %v4789, 4
  %v4928 = vpop.permute.xlu0 %4927
  %4929 = vrot.lane.b32.xlu0 %v4790, 4
  %v4930 = vpop.permute.xlu0 %4929
  %4931 = vrot.lane.b32.xlu0 %v4791, 4
  %v4932 = vpop.permute.xlu0 %4931
  %4933 = vrot.lane.b32.xlu0 %v4792, 4
  %v4934 = vpop.permute.xlu0 %4933
  %4935 = vrot.lane.b32.xlu0 %v4793, 4
  %v4936 = vpop.permute.xlu0 %4935
  %4937 = vrot.lane.b32.xlu0 %v4794, 4
  %v4938 = vpop.permute.xlu0 %4937
  %4939 = vrot.lane.b32.xlu0 %v4795, 4
  %v4940 = vpop.permute.xlu0 %4939
  %4941 = vrot.lane.b32.xlu0 %v4796, 4
  %v4942 = vpop.permute.xlu0 %4941
  %4943 = vrot.lane.b32.xlu0 %v4797, 4
  %v4944 = vpop.permute.xlu0 %4943
  %4945 = vrot.lane.b32.xlu0 %v4798, 4
  %v4946 = vpop.permute.xlu0 %4945
  %4947 = vrot.lane.b32.xlu0 %v4799, 4
  %v4948 = vpop.permute.xlu0 %4947
  %4949 = vrot.lane.b32.xlu0 %v4800, 4
  %v4950 = vpop.permute.xlu0 %4949
  %4951 = vrot.lane.b32.xlu0 %v4801, 4
  %v4952 = vpop.permute.xlu0 %4951
  %4953 = vrot.lane.b32.xlu0 %v4802, 4
  %v4954 = vpop.permute.xlu0 %4953
  %4955 = vrot.lane.b32.xlu0 %v4803, 4
  %v4956 = vpop.permute.xlu0 %4955
  %4957 = vrot.lane.b32.xlu0 %v4804, 4
  %v4958 = vpop.permute.xlu0 %4957
  %4959 = vrot.lane.b32.xlu0 %v4805, 4
  %v4960 = vpop.permute.xlu0 %4959
  %4961 = vrot.lane.b32.xlu0 %v4806, 4
  %v4962 = vpop.permute.xlu0 %4961
  %4963 = vrot.lane.b32.xlu0 %v4807, 4
  %v4964 = vpop.permute.xlu0 %4963
  %4965 = vrot.lane.b32.xlu0 %v4808, 4
  %v4966 = vpop.permute.xlu0 %4965
  %4967 = vrot.lane.b32.xlu0 %v4809, 4
  %v4968 = vpop.permute.xlu0 %4967
  %4969 = vrot.lane.b32.xlu0 %v4810, 4
  %v4970 = vpop.permute.xlu0 %4969
  %4971 = vrot.lane.b32.xlu0 %v4811, 4
  %v4972 = vpop.permute.xlu0 %4971
  %4973 = vrot.lane.b32.xlu0 %v4812, 4
  %v4974 = vpop.permute.xlu0 %4973
  %4975 = vrot.lane.b32.xlu0 %v4813, 4
  %v4976 = vpop.permute.xlu0 %4975
  %4977 = vrot.lane.b32.xlu0 %v4814, 4
  %v4978 = vpop.permute.xlu0 %4977
  %4979 = vrot.lane.b32.xlu0 %v4815, 4
  %v4980 = vpop.permute.xlu0 %4979
  %4981 = vrot.lane.b32.xlu0 %v4816, 4
  %v4982 = vpop.permute.xlu0 %4981
  %4983 = vrot.lane.b32.xlu0 %v4817, 4
  %v4984 = vpop.permute.xlu0 %4983
  %4985 = vrot.lane.b32.xlu0 %v4818, 4
  %v4986 = vpop.permute.xlu0 %4985
  %4987 = vrot.lane.b32.xlu0 %v4819, 4
  %v4988 = vpop.permute.xlu0 %4987
  %4989 = vrot.lane.b32.xlu0 %v4820, 4
  %v4990 = vpop.permute.xlu0 %4989
  %4991 = vrot.lane.b32.xlu0 %v4821, 4
  %v4992 = vpop.permute.xlu0 %4991
  %4993 = vrot.lane.b32.xlu0 %v4822, 4
  %v4994 = vpop.permute.xlu0 %4993
  %4995 = vrot.lane.b32.xlu0 %v4823, 4
  %v4996 = vpop.permute.xlu0 %4995
  %4997 = vrot.lane.b32.xlu0 %v4824, 4
  %v4998 = vpop.permute.xlu0 %4997
  %4999 = vrot.lane.b32.xlu0 %v4825, 4
  %v5000 = vpop.permute.xlu0 %4999
  %5001 = vrot.lane.b32.xlu0 %v4826, 4
  %v5002 = vpop.permute.xlu0 %5001
  %5003 = vrot.lane.b32.xlu0 %v4827, 4
  %v5004 = vpop.permute.xlu0 %5003
  %5005 = vrot.lane.b32.xlu0 %v4828, 4
  %v5006 = vpop.permute.xlu0 %5005
  %5007 = vrot.lane.b32.xlu0 %v4829, 4
  %v5008 = vpop.permute.xlu0 %5007
  %5009 = vrot.lane.b32.xlu0 %v4830, 4
  %v5010 = vpop.permute.xlu0 %5009
  %5011 = vrot.lane.b32.xlu0 %v4831, 4
  %v5012 = vpop.permute.xlu0 %5011
  %5013 = vrot.lane.b32.xlu0 %v4832, 4
  %v5014 = vpop.permute.xlu0 %5013
  %5015 = vrot.lane.b32.xlu0 %v4833, 4
  %v5016 = vpop.permute.xlu0 %5015
  %5017 = vrot.lane.b32.xlu0 %v4834, 4
  %v5018 = vpop.permute.xlu0 %5017
  %5019 = vrot.lane.b32.xlu0 %v4835, 4
  %v5020 = vpop.permute.xlu0 %5019
  %5021 = vrot.lane.b32.xlu0 %v4836, 4
  %v5022 = vpop.permute.xlu0 %5021
  %5023 = vrot.lane.b32.xlu0 %v4837, 4
  %v5024 = vpop.permute.xlu0 %5023
  %5025 = vrot.lane.b32.xlu0 %v4838, 4
  %v5026 = vpop.permute.xlu0 %5025
  %5027 = vrot.lane.b32.xlu0 %v4839, 4
  %v5028 = vpop.permute.xlu0 %5027
  %5029 = vrot.lane.b32.xlu0 %v4840, 4
  %v5030 = vpop.permute.xlu0 %5029
  %5031 = vrot.lane.b32.xlu0 %v4841, 4
  %v5032 = vpop.permute.xlu0 %5031
  %5033 = vrot.lane.b32.xlu0 %v4842, 4
  %v5034 = vpop.permute.xlu0 %5033
  %5099 = vst.msk [vmem:[#allocation3] sm:$0xff] %vm714, %v4908
  %5100 = vst.msk [vmem:[#allocation3 + $0x8] sm:$0xff] %vm714, %v4910
  %5101 = vst.msk [vmem:[#allocation3 + $0x10] sm:$0xff] %vm714, %v4912
  %5102 = vst.msk [vmem:[#allocation3 + $0x18] sm:$0xff] %vm714, %v4914
  %5103 = vst.msk [vmem:[#allocation3 + $0x20] sm:$0xff] %vm714, %v4916
  %5104 = vst.msk [vmem:[#allocation3 + $0x28] sm:$0xff] %vm714, %v4918
  %5105 = vst.msk [vmem:[#allocation3 + $0x30] sm:$0xff] %vm714, %v4920
  %5106 = vst.msk [vmem:[#allocation3 + $0x38] sm:$0xff] %vm714, %v4922
  %5107 = vst.msk [vmem:[#allocation3 + $0x40] sm:$0xff] %vm714, %v4924
  %5108 = vst.msk [vmem:[#allocation3 + $0x48] sm:$0xff] %vm714, %v4926
  %5109 = vst.msk [vmem:[#allocation3 + $0x50] sm:$0xff] %vm714, %v4928
  %5110 = vst.msk [vmem:[#allocation3 + $0x58] sm:$0xff] %vm714, %v4930
  %5111 = vst.msk [vmem:[#allocation3 + $0x60] sm:$0xff] %vm714, %v4932
  %5112 = vst.msk [vmem:[#allocation3 + $0x68] sm:$0xff] %vm714, %v4934
  %5113 = vst.msk [vmem:[#allocation3 + $0x70] sm:$0xff] %vm714, %v4936
  %5114 = vst.msk [vmem:[#allocation3 + $0x78] sm:$0xff] %vm714, %v4938
  %5115 = vst.msk [vmem:[#allocation3 + $0x80] sm:$0xff] %vm714, %v4940
  %5116 = vst.msk [vmem:[#allocation3 + $0x88] sm:$0xff] %vm714, %v4942
  %5117 = vst.msk [vmem:[#allocation3 + $0x90] sm:$0xff] %vm714, %v4944
  %5118 = vst.msk [vmem:[#allocation3 + $0x98] sm:$0xff] %vm714, %v4946
  %5119 = vst.msk [vmem:[#allocation3 + $0xa0] sm:$0xff] %vm714, %v4948
  %5120 = vst.msk [vmem:[#allocation3 + $0xa8] sm:$0xff] %vm714, %v4950
  %5121 = vst.msk [vmem:[#allocation3 + $0xb0] sm:$0xff] %vm714, %v4952
  %5122 = vst.msk [vmem:[#allocation3 + $0xb8] sm:$0xff] %vm714, %v4954
  %5123 = vst.msk [vmem:[#allocation3 + $0xc0] sm:$0xff] %vm714, %v4956
  %5124 = vst.msk [vmem:[#allocation3 + $0xc8] sm:$0xff] %vm714, %v4958
  %5125 = vst.msk [vmem:[#allocation3 + $0xd0] sm:$0xff] %vm714, %v4960
  %5126 = vst.msk [vmem:[#allocation3 + $0xd8] sm:$0xff] %vm714, %v4962
  %5127 = vst.msk [vmem:[#allocation3 + $0xe0] sm:$0xff] %vm714, %v4964
  %5128 = vst.msk [vmem:[#allocation3 + $0xe8] sm:$0xff] %vm714, %v4966
  %5129 = vst.msk [vmem:[#allocation3 + $0xf0] sm:$0xff] %vm714, %v4968
  %5130 = vst.msk [vmem:[#allocation3 + $0xf8] sm:$0xff] %vm714, %v4970
  %5131 = vst.msk [vmem:[#allocation3 + $0x100] sm:$0xff] %vm714, %v4972
  %5132 = vst.msk [vmem:[#allocation3 + $0x108] sm:$0xff] %vm714, %v4974
  %5133 = vst.msk [vmem:[#allocation3 + $0x110] sm:$0xff] %vm714, %v4976
  %5134 = vst.msk [vmem:[#allocation3 + $0x118] sm:$0xff] %vm714, %v4978
  %5135 = vst.msk [vmem:[#allocation3 + $0x120] sm:$0xff] %vm714, %v4980
  %5136 = vst.msk [vmem:[#allocation3 + $0x128] sm:$0xff] %vm714, %v4982
  %5137 = vst.msk [vmem:[#allocation3 + $0x130] sm:$0xff] %vm714, %v4984
  %5138 = vst.msk [vmem:[#allocation3 + $0x138] sm:$0xff] %vm714, %v4986
  %5139 = vst.msk [vmem:[#allocation3 + $0x140] sm:$0xff] %vm714, %v4988
  %5140 = vst.msk [vmem:[#allocation3 + $0x148] sm:$0xff] %vm714, %v4990
  %5141 = vst.msk [vmem:[#allocation3 + $0x150] sm:$0xff] %vm714, %v4992
  %5142 = vst.msk [vmem:[#allocation3 + $0x158] sm:$0xff] %vm714, %v4994
  %5143 = vst.msk [vmem:[#allocation3 + $0x160] sm:$0xff] %vm714, %v4996
  %5144 = vst.msk [vmem:[#allocation3 + $0x168] sm:$0xff] %vm714, %v4998
  %5145 = vst.msk [vmem:[#allocation3 + $0x170] sm:$0xff] %vm714, %v5000
  %5146 = vst.msk [vmem:[#allocation3 + $0x178] sm:$0xff] %vm714, %v5002
  %5147 = vst.msk [vmem:[#allocation3 + $0x180] sm:$0xff] %vm714, %v5004
  %5148 = vst.msk [vmem:[#allocation3 + $0x188] sm:$0xff] %vm714, %v5006
  %5149 = vst.msk [vmem:[#allocation3 + $0x190] sm:$0xff] %vm714, %v5008
  %5150 = vst.msk [vmem:[#allocation3 + $0x198] sm:$0xff] %vm714, %v5010
  %5151 = vst.msk [vmem:[#allocation3 + $0x1a0] sm:$0xff] %vm714, %v5012
  %5152 = vst.msk [vmem:[#allocation3 + $0x1a8] sm:$0xff] %vm714, %v5014
  %5153 = vst.msk [vmem:[#allocation3 + $0x1b0] sm:$0xff] %vm714, %v5016
  %5154 = vst.msk [vmem:[#allocation3 + $0x1b8] sm:$0xff] %vm714, %v5018
  %5155 = vst.msk [vmem:[#allocation3 + $0x1c0] sm:$0xff] %vm714, %v5020
  %5156 = vst.msk [vmem:[#allocation3 + $0x1c8] sm:$0xff] %vm714, %v5022
  %5157 = vst.msk [vmem:[#allocation3 + $0x1d0] sm:$0xff] %vm714, %v5024
  %5158 = vst.msk [vmem:[#allocation3 + $0x1d8] sm:$0xff] %vm714, %v5026
  %5159 = vst.msk [vmem:[#allocation3 + $0x1e0] sm:$0xff] %vm714, %v5028
  %5160 = vst.msk [vmem:[#allocation3 + $0x1e8] sm:$0xff] %vm714, %v5030
  %5161 = vst.msk [vmem:[#allocation3 + $0x1f0] sm:$0xff] %vm714, %v5032
  %5162 = vst.msk [vmem:[#allocation3 + $0x1f8] sm:$0xff] %vm714, %v5034
  %v5163 = vld [vmem:[#allocation2 + $0x2] sm:$0xff]
  %v5164 = vld [vmem:[#allocation2 + $0xa] sm:$0xff]
  %v5165 = vld [vmem:[#allocation2 + $0x1a] sm:$0xff]
  %v5166 = vld [vmem:[#allocation2 + $0x22] sm:$0xff]
  %v5167 = vld [vmem:[#allocation2 + $0x32] sm:$0xff]
  %v5168 = vld [vmem:[#allocation2 + $0x3a] sm:$0xff]
  %v5169 = vld [vmem:[#allocation2 + $0x4a] sm:$0xff]
  %v5170 = vld [vmem:[#allocation2 + $0x52] sm:$0xff]
  %v5171 = vld [vmem:[#allocation2 + $0x62] sm:$0xff]
  %v5172 = vld [vmem:[#allocation2 + $0x6a] sm:$0xff]
  %v5173 = vld [vmem:[#allocation2 + $0x7a] sm:$0xff]
  %v5174 = vld [vmem:[#allocation2 + $0x82] sm:$0xff]
  %v5175 = vld [vmem:[#allocation2 + $0x92] sm:$0xff]
  %v5176 = vld [vmem:[#allocation2 + $0x9a] sm:$0xff]
  %v5177 = vld [vmem:[#allocation2 + $0xaa] sm:$0xff]
  %v5178 = vld [vmem:[#allocation2 + $0xb2] sm:$0xff]
  %v5179 = vld [vmem:[#allocation2 + $0xc2] sm:$0xff]
  %v5180 = vld [vmem:[#allocation2 + $0xca] sm:$0xff]
  %v5181 = vld [vmem:[#allocation2 + $0xda] sm:$0xff]
  %v5182 = vld [vmem:[#allocation2 + $0xe2] sm:$0xff]
  %v5183 = vld [vmem:[#allocation2 + $0xf2] sm:$0xff]
  %v5184 = vld [vmem:[#allocation2 + $0xfa] sm:$0xff]
  %v5185 = vld [vmem:[#allocation2 + $0x10a] sm:$0xff]
  %v5186 = vld [vmem:[#allocation2 + $0x112] sm:$0xff]
  %v5187 = vld [vmem:[#allocation2 + $0x122] sm:$0xff]
  %v5188 = vld [vmem:[#allocation2 + $0x12a] sm:$0xff]
  %v5189 = vld [vmem:[#allocation2 + $0x13a] sm:$0xff]
  %v5190 = vld [vmem:[#allocation2 + $0x142] sm:$0xff]
  %v5191 = vld [vmem:[#allocation2 + $0x152] sm:$0xff]
  %v5192 = vld [vmem:[#allocation2 + $0x15a] sm:$0xff]
  %v5193 = vld [vmem:[#allocation2 + $0x16a] sm:$0xff]
  %v5194 = vld [vmem:[#allocation2 + $0x172] sm:$0xff]
  %v5195 = vld [vmem:[#allocation2 + $0x1b2] sm:$0xff]
  %v5196 = vld [vmem:[#allocation2 + $0x1ba] sm:$0xff]
  %v5197 = vld [vmem:[#allocation2 + $0x1ca] sm:$0xff]
  %v5198 = vld [vmem:[#allocation2 + $0x1d2] sm:$0xff]
  %v5199 = vld [vmem:[#allocation2 + $0x1e2] sm:$0xff]
  %v5200 = vld [vmem:[#allocation2 + $0x1ea] sm:$0xff]
  %v5201 = vld [vmem:[#allocation2 + $0x1fa] sm:$0xff]
  %v5202 = vld [vmem:[#allocation2 + $0x202] sm:$0xff]
  %v5203 = vld [vmem:[#allocation2 + $0x212] sm:$0xff]
  %v5204 = vld [vmem:[#allocation2 + $0x21a] sm:$0xff]
  %v5205 = vld [vmem:[#allocation2 + $0x22a] sm:$0xff]
  %v5206 = vld [vmem:[#allocation2 + $0x232] sm:$0xff]
  %v5207 = vld [vmem:[#allocation2 + $0x242] sm:$0xff]
  %v5208 = vld [vmem:[#allocation2 + $0x24a] sm:$0xff]
  %v5209 = vld [vmem:[#allocation2 + $0x25a] sm:$0xff]
  %v5210 = vld [vmem:[#allocation2 + $0x262] sm:$0xff]
  %v5211 = vld [vmem:[#allocation2 + $0x272] sm:$0xff]
  %v5212 = vld [vmem:[#allocation2 + $0x27a] sm:$0xff]
  %v5213 = vld [vmem:[#allocation2 + $0x28a] sm:$0xff]
  %v5214 = vld [vmem:[#allocation2 + $0x292] sm:$0xff]
  %v5215 = vld [vmem:[#allocation2 + $0x2a2] sm:$0xff]
  %v5216 = vld [vmem:[#allocation2 + $0x2aa] sm:$0xff]
  %v5217 = vld [vmem:[#allocation2 + $0x2ba] sm:$0xff]
  %v5218 = vld [vmem:[#allocation2 + $0x2c2] sm:$0xff]
  %v5219 = vld [vmem:[#allocation2 + $0x2d2] sm:$0xff]
  %v5220 = vld [vmem:[#allocation2 + $0x2da] sm:$0xff]
  %v5221 = vld [vmem:[#allocation2 + $0x2ea] sm:$0xff]
  %v5222 = vld [vmem:[#allocation2 + $0x2f2] sm:$0xff]
  %v5223 = vld [vmem:[#allocation2 + $0x302] sm:$0xff]
  %v5224 = vld [vmem:[#allocation2 + $0x30a] sm:$0xff]
  %v5225 = vld [vmem:[#allocation2 + $0x31a] sm:$0xff]
  %v5226 = vld [vmem:[#allocation2 + $0x322] sm:$0xff]
  %5291 = vrot.lane.b32.xlu0 %v5163, 8
  %v5292 = vpop.permute.xlu0 %5291
  %5293 = vrot.lane.b32.xlu0 %v5164, 8
  %v5294 = vpop.permute.xlu0 %5293
  %5295 = vrot.lane.b32.xlu0 %v5165, 8
  %v5296 = vpop.permute.xlu0 %5295
  %5297 = vrot.lane.b32.xlu0 %v5166, 8
  %v5298 = vpop.permute.xlu0 %5297
  %5299 = vrot.lane.b32.xlu0 %v5167, 8
  %v5300 = vpop.permute.xlu0 %5299
  %5301 = vrot.lane.b32.xlu0 %v5168, 8
  %v5302 = vpop.permute.xlu0 %5301
  %5303 = vrot.lane.b32.xlu0 %v5169, 8
  %v5304 = vpop.permute.xlu0 %5303
  %5305 = vrot.lane.b32.xlu0 %v5170, 8
  %v5306 = vpop.permute.xlu0 %5305
  %5307 = vrot.lane.b32.xlu0 %v5171, 8
  %v5308 = vpop.permute.xlu0 %5307
  %5309 = vrot.lane.b32.xlu0 %v5172, 8
  %v5310 = vpop.permute.xlu0 %5309
  %5311 = vrot.lane.b32.xlu0 %v5173, 8
  %v5312 = vpop.permute.xlu0 %5311
  %5313 = vrot.lane.b32.xlu0 %v5174, 8
  %v5314 = vpop.permute.xlu0 %5313
  %5315 = vrot.lane.b32.xlu0 %v5175, 8
  %v5316 = vpop.permute.xlu0 %5315
  %5317 = vrot.lane.b32.xlu0 %v5176, 8
  %v5318 = vpop.permute.xlu0 %5317
  %5319 = vrot.lane.b32.xlu0 %v5177, 8
  %v5320 = vpop.permute.xlu0 %5319
  %5321 = vrot.lane.b32.xlu0 %v5178, 8
  %v5322 = vpop.permute.xlu0 %5321
  %5323 = vrot.lane.b32.xlu0 %v5179, 8
  %v5324 = vpop.permute.xlu0 %5323
  %5325 = vrot.lane.b32.xlu0 %v5180, 8
  %v5326 = vpop.permute.xlu0 %5325
  %5327 = vrot.lane.b32.xlu0 %v5181, 8
  %v5328 = vpop.permute.xlu0 %5327
  %5329 = vrot.lane.b32.xlu0 %v5182, 8
  %v5330 = vpop.permute.xlu0 %5329
  %5331 = vrot.lane.b32.xlu0 %v5183, 8
  %v5332 = vpop.permute.xlu0 %5331
  %5333 = vrot.lane.b32.xlu0 %v5184, 8
  %v5334 = vpop.permute.xlu0 %5333
  %5335 = vrot.lane.b32.xlu0 %v5185, 8
  %v5336 = vpop.permute.xlu0 %5335
  %5337 = vrot.lane.b32.xlu0 %v5186, 8
  %v5338 = vpop.permute.xlu0 %5337
  %5339 = vrot.lane.b32.xlu0 %v5187, 8
  %v5340 = vpop.permute.xlu0 %5339
  %5341 = vrot.lane.b32.xlu0 %v5188, 8
  %v5342 = vpop.permute.xlu0 %5341
  %5343 = vrot.lane.b32.xlu0 %v5189, 8
  %v5344 = vpop.permute.xlu0 %5343
  %5345 = vrot.lane.b32.xlu0 %v5190, 8
  %v5346 = vpop.permute.xlu0 %5345
  %5347 = vrot.lane.b32.xlu0 %v5191, 8
  %v5348 = vpop.permute.xlu0 %5347
  %5349 = vrot.lane.b32.xlu0 %v5192, 8
  %v5350 = vpop.permute.xlu0 %5349
  %5351 = vrot.lane.b32.xlu0 %v5193, 8
  %v5352 = vpop.permute.xlu0 %5351
  %5353 = vrot.lane.b32.xlu0 %v5194, 8
  %v5354 = vpop.permute.xlu0 %5353
  %5355 = vrot.lane.b32.xlu0 %v5195, 8
  %v5356 = vpop.permute.xlu0 %5355
  %5357 = vrot.lane.b32.xlu0 %v5196, 8
  %v5358 = vpop.permute.xlu0 %5357
  %5359 = vrot.lane.b32.xlu0 %v5197, 8
  %v5360 = vpop.permute.xlu0 %5359
  %5361 = vrot.lane.b32.xlu0 %v5198, 8
  %v5362 = vpop.permute.xlu0 %5361
  %5363 = vrot.lane.b32.xlu0 %v5199, 8
  %v5364 = vpop.permute.xlu0 %5363
  %5365 = vrot.lane.b32.xlu0 %v5200, 8
  %v5366 = vpop.permute.xlu0 %5365
  %5367 = vrot.lane.b32.xlu0 %v5201, 8
  %v5368 = vpop.permute.xlu0 %5367
  %5369 = vrot.lane.b32.xlu0 %v5202, 8
  %v5370 = vpop.permute.xlu0 %5369
  %5371 = vrot.lane.b32.xlu0 %v5203, 8
  %v5372 = vpop.permute.xlu0 %5371
  %5373 = vrot.lane.b32.xlu0 %v5204, 8
  %v5374 = vpop.permute.xlu0 %5373
  %5375 = vrot.lane.b32.xlu0 %v5205, 8
  %v5376 = vpop.permute.xlu0 %5375
  %5377 = vrot.lane.b32.xlu0 %v5206, 8
  %v5378 = vpop.permute.xlu0 %5377
  %5379 = vrot.lane.b32.xlu0 %v5207, 8
  %v5380 = vpop.permute.xlu0 %5379
  %5381 = vrot.lane.b32.xlu0 %v5208, 8
  %v5382 = vpop.permute.xlu0 %5381
  %5383 = vrot.lane.b32.xlu0 %v5209, 8
  %v5384 = vpop.permute.xlu0 %5383
  %5385 = vrot.lane.b32.xlu0 %v5210, 8
  %v5386 = vpop.permute.xlu0 %5385
  %5387 = vrot.lane.b32.xlu0 %v5211, 8
  %v5388 = vpop.permute.xlu0 %5387
  %5389 = vrot.lane.b32.xlu0 %v5212, 8
  %v5390 = vpop.permute.xlu0 %5389
  %5391 = vrot.lane.b32.xlu0 %v5213, 8
  %v5392 = vpop.permute.xlu0 %5391
  %5393 = vrot.lane.b32.xlu0 %v5214, 8
  %v5394 = vpop.permute.xlu0 %5393
  %5395 = vrot.lane.b32.xlu0 %v5215, 8
  %v5396 = vpop.permute.xlu0 %5395
  %5397 = vrot.lane.b32.xlu0 %v5216, 8
  %v5398 = vpop.permute.xlu0 %5397
  %5399 = vrot.lane.b32.xlu0 %v5217, 8
  %v5400 = vpop.permute.xlu0 %5399
  %5401 = vrot.lane.b32.xlu0 %v5218, 8
  %v5402 = vpop.permute.xlu0 %5401
  %5403 = vrot.lane.b32.xlu0 %v5219, 8
  %v5404 = vpop.permute.xlu0 %5403
  %5405 = vrot.lane.b32.xlu0 %v5220, 8
  %v5406 = vpop.permute.xlu0 %5405
  %5407 = vrot.lane.b32.xlu0 %v5221, 8
  %v5408 = vpop.permute.xlu0 %5407
  %5409 = vrot.lane.b32.xlu0 %v5222, 8
  %v5410 = vpop.permute.xlu0 %5409
  %5411 = vrot.lane.b32.xlu0 %v5223, 8
  %v5412 = vpop.permute.xlu0 %5411
  %5413 = vrot.lane.b32.xlu0 %v5224, 8
  %v5414 = vpop.permute.xlu0 %5413
  %5415 = vrot.lane.b32.xlu0 %v5225, 8
  %v5416 = vpop.permute.xlu0 %5415
  %5417 = vrot.lane.b32.xlu0 %v5226, 8
  %v5418 = vpop.permute.xlu0 %5417
  %5483 = vst.msk [vmem:[#allocation3] sm:$0xff] %vm1099, %v5292
  %5484 = vst.msk [vmem:[#allocation3 + $0x8] sm:$0xff] %vm1099, %v5294
  %5485 = vst.msk [vmem:[#allocation3 + $0x10] sm:$0xff] %vm1099, %v5296
  %5486 = vst.msk [vmem:[#allocation3 + $0x18] sm:$0xff] %vm1099, %v5298
  %5487 = vst.msk [vmem:[#allocation3 + $0x20] sm:$0xff] %vm1099, %v5300
  %5488 = vst.msk [vmem:[#allocation3 + $0x28] sm:$0xff] %vm1099, %v5302
  %5489 = vst.msk [vmem:[#allocation3 + $0x30] sm:$0xff] %vm1099, %v5304
  %5490 = vst.msk [vmem:[#allocation3 + $0x38] sm:$0xff] %vm1099, %v5306
  %5491 = vst.msk [vmem:[#allocation3 + $0x40] sm:$0xff] %vm1099, %v5308
  %5492 = vst.msk [vmem:[#allocation3 + $0x48] sm:$0xff] %vm1099, %v5310
  %5493 = vst.msk [vmem:[#allocation3 + $0x50] sm:$0xff] %vm1099, %v5312
  %5494 = vst.msk [vmem:[#allocation3 + $0x58] sm:$0xff] %vm1099, %v5314
  %5495 = vst.msk [vmem:[#allocation3 + $0x60] sm:$0xff] %vm1099, %v5316
  %5496 = vst.msk [vmem:[#allocation3 + $0x68] sm:$0xff] %vm1099, %v5318
  %5497 = vst.msk [vmem:[#allocation3 + $0x70] sm:$0xff] %vm1099, %v5320
  %5498 = vst.msk [vmem:[#allocation3 + $0x78] sm:$0xff] %vm1099, %v5322
  %5499 = vst.msk [vmem:[#allocation3 + $0x80] sm:$0xff] %vm1099, %v5324
  %5500 = vst.msk [vmem:[#allocation3 + $0x88] sm:$0xff] %vm1099, %v5326
  %5501 = vst.msk [vmem:[#allocation3 + $0x90] sm:$0xff] %vm1099, %v5328
  %5502 = vst.msk [vmem:[#allocation3 + $0x98] sm:$0xff] %vm1099, %v5330
  %5503 = vst.msk [vmem:[#allocation3 + $0xa0] sm:$0xff] %vm1099, %v5332
  %5504 = vst.msk [vmem:[#allocation3 + $0xa8] sm:$0xff] %vm1099, %v5334
  %5505 = vst.msk [vmem:[#allocation3 + $0xb0] sm:$0xff] %vm1099, %v5336
  %5506 = vst.msk [vmem:[#allocation3 + $0xb8] sm:$0xff] %vm1099, %v5338
  %5507 = vst.msk [vmem:[#allocation3 + $0xc0] sm:$0xff] %vm1099, %v5340
  %5508 = vst.msk [vmem:[#allocation3 + $0xc8] sm:$0xff] %vm1099, %v5342
  %5509 = vst.msk [vmem:[#allocation3 + $0xd0] sm:$0xff] %vm1099, %v5344
  %5510 = vst.msk [vmem:[#allocation3 + $0xd8] sm:$0xff] %vm1099, %v5346
  %5511 = vst.msk [vmem:[#allocation3 + $0xe0] sm:$0xff] %vm1099, %v5348
  %5512 = vst.msk [vmem:[#allocation3 + $0xe8] sm:$0xff] %vm1099, %v5350
  %5513 = vst.msk [vmem:[#allocation3 + $0xf0] sm:$0xff] %vm1099, %v5352
  %5514 = vst.msk [vmem:[#allocation3 + $0xf8] sm:$0xff] %vm1099, %v5354
  %5515 = vst.msk [vmem:[#allocation3 + $0x100] sm:$0xff] %vm1099, %v5356
  %5516 = vst.msk [vmem:[#allocation3 + $0x108] sm:$0xff] %vm1099, %v5358
  %5517 = vst.msk [vmem:[#allocation3 + $0x110] sm:$0xff] %vm1099, %v5360
  %5518 = vst.msk [vmem:[#allocation3 + $0x118] sm:$0xff] %vm1099, %v5362
  %5519 = vst.msk [vmem:[#allocation3 + $0x120] sm:$0xff] %vm1099, %v5364
  %5520 = vst.msk [vmem:[#allocation3 + $0x128] sm:$0xff] %vm1099, %v5366
  %5521 = vst.msk [vmem:[#allocation3 + $0x130] sm:$0xff] %vm1099, %v5368
  %5522 = vst.msk [vmem:[#allocation3 + $0x138] sm:$0xff] %vm1099, %v5370
  %5523 = vst.msk [vmem:[#allocation3 + $0x140] sm:$0xff] %vm1099, %v5372
  %5524 = vst.msk [vmem:[#allocation3 + $0x148] sm:$0xff] %vm1099, %v5374
  %5525 = vst.msk [vmem:[#allocation3 + $0x150] sm:$0xff] %vm1099, %v5376
  %5526 = vst.msk [vmem:[#allocation3 + $0x158] sm:$0xff] %vm1099, %v5378
  %5527 = vst.msk [vmem:[#allocation3 + $0x160] sm:$0xff] %vm1099, %v5380
  %5528 = vst.msk [vmem:[#allocation3 + $0x168] sm:$0xff] %vm1099, %v5382
  %5529 = vst.msk [vmem:[#allocation3 + $0x170] sm:$0xff] %vm1099, %v5384
  %5530 = vst.msk [vmem:[#allocation3 + $0x178] sm:$0xff] %vm1099, %v5386
  %5531 = vst.msk [vmem:[#allocation3 + $0x180] sm:$0xff] %vm1099, %v5388
  %5532 = vst.msk [vmem:[#allocation3 + $0x188] sm:$0xff] %vm1099, %v5390
  %5533 = vst.msk [vmem:[#allocation3 + $0x190] sm:$0xff] %vm1099, %v5392
  %5534 = vst.msk [vmem:[#allocation3 + $0x198] sm:$0xff] %vm1099, %v5394
  %5535 = vst.msk [vmem:[#allocation3 + $0x1a0] sm:$0xff] %vm1099, %v5396
  %5536 = vst.msk [vmem:[#allocation3 + $0x1a8] sm:$0xff] %vm1099, %v5398
  %5537 = vst.msk [vmem:[#allocation3 + $0x1b0] sm:$0xff] %vm1099, %v5400
  %5538 = vst.msk [vmem:[#allocation3 + $0x1b8] sm:$0xff] %vm1099, %v5402
  %5539 = vst.msk [vmem:[#allocation3 + $0x1c0] sm:$0xff] %vm1099, %v5404
  %5540 = vst.msk [vmem:[#allocation3 + $0x1c8] sm:$0xff] %vm1099, %v5406
  %5541 = vst.msk [vmem:[#allocation3 + $0x1d0] sm:$0xff] %vm1099, %v5408
  %5542 = vst.msk [vmem:[#allocation3 + $0x1d8] sm:$0xff] %vm1099, %v5410
  %5543 = vst.msk [vmem:[#allocation3 + $0x1e0] sm:$0xff] %vm1099, %v5412
  %5544 = vst.msk [vmem:[#allocation3 + $0x1e8] sm:$0xff] %vm1099, %v5414
  %5545 = vst.msk [vmem:[#allocation3 + $0x1f0] sm:$0xff] %vm1099, %v5416
  %5546 = vst.msk [vmem:[#allocation3 + $0x1f8] sm:$0xff] %vm1099, %v5418
  %v5547 = vld [vmem:[%s201] sm:$0xff]
  %v5548 = vld [vmem:[%s201 + $0x8] sm:$0xff]
  %v5549 = vld [vmem:[%s201 + $0x18] sm:$0xff]
  %v5550 = vld [vmem:[%s201 + $0x20] sm:$0xff]
  %v5551 = vld [vmem:[%s201 + $0x30] sm:$0xff]
  %v5552 = vld [vmem:[%s201 + $0x38] sm:$0xff]
  %v5553 = vld [vmem:[%s201 + $0x48] sm:$0xff]
  %v5554 = vld [vmem:[%s201 + $0x50] sm:$0xff]
  %v5555 = vld [vmem:[%s201 + $0x60] sm:$0xff]
  %v5556 = vld [vmem:[%s201 + $0x68] sm:$0xff]
  %v5557 = vld [vmem:[%s201 + $0x78] sm:$0xff]
  %v5558 = vld [vmem:[%s201 + $0x80] sm:$0xff]
  %v5559 = vld [vmem:[%s201 + $0x90] sm:$0xff]
  %v5560 = vld [vmem:[%s201 + $0x98] sm:$0xff]
  %v5561 = vld [vmem:[%s201 + $0xa8] sm:$0xff]
  %v5562 = vld [vmem:[%s201 + $0xb0] sm:$0xff]
  %v5563 = vld [vmem:[%s201 + $0xc0] sm:$0xff]
  %v5564 = vld [vmem:[%s201 + $0xc8] sm:$0xff]
  %v5565 = vld [vmem:[%s201 + $0xd8] sm:$0xff]
  %v5566 = vld [vmem:[%s201 + $0xe0] sm:$0xff]
  %v5567 = vld [vmem:[%s201 + $0xf0] sm:$0xff]
  %v5568 = vld [vmem:[%s201 + $0xf8] sm:$0xff]
  %v5569 = vld [vmem:[%s201 + $0x108] sm:$0xff]
  %v5570 = vld [vmem:[%s201 + $0x110] sm:$0xff]
  %v5571 = vld [vmem:[%s201 + $0x120] sm:$0xff]
  %v5572 = vld [vmem:[%s201 + $0x128] sm:$0xff]
  %v5573 = vld [vmem:[%s201 + $0x138] sm:$0xff]
  %v5574 = vld [vmem:[%s201 + $0x140] sm:$0xff]
  %v5575 = vld [vmem:[%s201 + $0x150] sm:$0xff]
  %v5576 = vld [vmem:[%s201 + $0x158] sm:$0xff]
  %v5577 = vld [vmem:[%s201 + $0x168] sm:$0xff]
  %v5578 = vld [vmem:[%s201 + $0x170] sm:$0xff]
  %v5579 = vld [vmem:[%s201 + $0x1b0] sm:$0xff]
  %v5580 = vld [vmem:[%s201 + $0x1b8] sm:$0xff]
  %v5581 = vld [vmem:[%s201 + $0x1c8] sm:$0xff]
  %v5582 = vld [vmem:[%s201 + $0x1d0] sm:$0xff]
  %v5583 = vld [vmem:[%s201 + $0x1e0] sm:$0xff]
  %v5584 = vld [vmem:[%s201 + $0x1e8] sm:$0xff]
  %v5585 = vld [vmem:[%s201 + $0x1f8] sm:$0xff]
  %v5586 = vld [vmem:[%s201 + $0x200] sm:$0xff]
  %v5587 = vld [vmem:[%s201 + $0x210] sm:$0xff]
  %v5588 = vld [vmem:[%s201 + $0x218] sm:$0xff]
  %v5589 = vld [vmem:[%s201 + $0x228] sm:$0xff]
  %v5590 = vld [vmem:[%s201 + $0x230] sm:$0xff]
  %v5591 = vld [vmem:[%s201 + $0x240] sm:$0xff]
  %v5592 = vld [vmem:[%s201 + $0x248] sm:$0xff]
  %v5593 = vld [vmem:[%s201 + $0x258] sm:$0xff]
  %v5594 = vld [vmem:[%s201 + $0x260] sm:$0xff]
  %v5595 = vld [vmem:[%s201 + $0x270] sm:$0xff]
  %v5596 = vld [vmem:[%s201 + $0x278] sm:$0xff]
  %v5597 = vld [vmem:[%s201 + $0x288] sm:$0xff]
  %v5598 = vld [vmem:[%s201 + $0x290] sm:$0xff]
  %v5599 = vld [vmem:[%s201 + $0x2a0] sm:$0xff]
  %v5600 = vld [vmem:[%s201 + $0x2a8] sm:$0xff]
  %v5601 = vld [vmem:[%s201 + $0x2b8] sm:$0xff]
  %v5602 = vld [vmem:[%s201 + $0x2c0] sm:$0xff]
  %v5603 = vld [vmem:[%s201 + $0x2d0] sm:$0xff]
  %v5604 = vld [vmem:[%s201 + $0x2d8] sm:$0xff]
  %v5605 = vld [vmem:[%s201 + $0x2e8] sm:$0xff]
  %v5606 = vld [vmem:[%s201 + $0x2f0] sm:$0xff]
  %v5607 = vld [vmem:[%s201 + $0x300] sm:$0xff]
  %v5608 = vld [vmem:[%s201 + $0x308] sm:$0xff]
  %v5609 = vld [vmem:[%s201 + $0x318] sm:$0xff]
  %v5610 = vld [vmem:[%s201 + $0x320] sm:$0xff]
  %5675 = vrot.lane.b32.xlu0 %v5547, 12
  %v5676 = vpop.permute.xlu0 %5675
  %5677 = vrot.lane.b32.xlu0 %v5548, 12
  %v5678 = vpop.permute.xlu0 %5677
  %5679 = vrot.lane.b32.xlu0 %v5549, 12
  %v5680 = vpop.permute.xlu0 %5679
  %5681 = vrot.lane.b32.xlu0 %v5550, 12
  %v5682 = vpop.permute.xlu0 %5681
  %5683 = vrot.lane.b32.xlu0 %v5551, 12
  %v5684 = vpop.permute.xlu0 %5683
  %5685 = vrot.lane.b32.xlu0 %v5552, 12
  %v5686 = vpop.permute.xlu0 %5685
  %5687 = vrot.lane.b32.xlu0 %v5553, 12
  %v5688 = vpop.permute.xlu0 %5687
  %5689 = vrot.lane.b32.xlu0 %v5554, 12
  %v5690 = vpop.permute.xlu0 %5689
  %5691 = vrot.lane.b32.xlu0 %v5555, 12
  %v5692 = vpop.permute.xlu0 %5691
  %5693 = vrot.lane.b32.xlu0 %v5556, 12
  %v5694 = vpop.permute.xlu0 %5693
  %5695 = vrot.lane.b32.xlu0 %v5557, 12
  %v5696 = vpop.permute.xlu0 %5695
  %5697 = vrot.lane.b32.xlu0 %v5558, 12
  %v5698 = vpop.permute.xlu0 %5697
  %5699 = vrot.lane.b32.xlu0 %v5559, 12
  %v5700 = vpop.permute.xlu0 %5699
  %5701 = vrot.lane.b32.xlu0 %v5560, 12
  %v5702 = vpop.permute.xlu0 %5701
  %5703 = vrot.lane.b32.xlu0 %v5561, 12
  %v5704 = vpop.permute.xlu0 %5703
  %5705 = vrot.lane.b32.xlu0 %v5562, 12
  %v5706 = vpop.permute.xlu0 %5705
  %5707 = vrot.lane.b32.xlu0 %v5563, 12
  %v5708 = vpop.permute.xlu0 %5707
  %5709 = vrot.lane.b32.xlu0 %v5564, 12
  %v5710 = vpop.permute.xlu0 %5709
  %5711 = vrot.lane.b32.xlu0 %v5565, 12
  %v5712 = vpop.permute.xlu0 %5711
  %5713 = vrot.lane.b32.xlu0 %v5566, 12
  %v5714 = vpop.permute.xlu0 %5713
  %5715 = vrot.lane.b32.xlu0 %v5567, 12
  %v5716 = vpop.permute.xlu0 %5715
  %5717 = vrot.lane.b32.xlu0 %v5568, 12
  %v5718 = vpop.permute.xlu0 %5717
  %5719 = vrot.lane.b32.xlu0 %v5569, 12
  %v5720 = vpop.permute.xlu0 %5719
  %5721 = vrot.lane.b32.xlu0 %v5570, 12
  %v5722 = vpop.permute.xlu0 %5721
  %5723 = vrot.lane.b32.xlu0 %v5571, 12
  %v5724 = vpop.permute.xlu0 %5723
  %5725 = vrot.lane.b32.xlu0 %v5572, 12
  %v5726 = vpop.permute.xlu0 %5725
  %5727 = vrot.lane.b32.xlu0 %v5573, 12
  %v5728 = vpop.permute.xlu0 %5727
  %5729 = vrot.lane.b32.xlu0 %v5574, 12
  %v5730 = vpop.permute.xlu0 %5729
  %5731 = vrot.lane.b32.xlu0 %v5575, 12
  %v5732 = vpop.permute.xlu0 %5731
  %5733 = vrot.lane.b32.xlu0 %v5576, 12
  %v5734 = vpop.permute.xlu0 %5733
  %5735 = vrot.lane.b32.xlu0 %v5577, 12
  %v5736 = vpop.permute.xlu0 %5735
  %5737 = vrot.lane.b32.xlu0 %v5578, 12
  %v5738 = vpop.permute.xlu0 %5737
  %5739 = vrot.lane.b32.xlu0 %v5579, 12
  %v5740 = vpop.permute.xlu0 %5739
  %5741 = vrot.lane.b32.xlu0 %v5580, 12
  %v5742 = vpop.permute.xlu0 %5741
  %5743 = vrot.lane.b32.xlu0 %v5581, 12
  %v5744 = vpop.permute.xlu0 %5743
  %5745 = vrot.lane.b32.xlu0 %v5582, 12
  %v5746 = vpop.permute.xlu0 %5745
  %5747 = vrot.lane.b32.xlu0 %v5583, 12
  %v5748 = vpop.permute.xlu0 %5747
  %5749 = vrot.lane.b32.xlu0 %v5584, 12
  %v5750 = vpop.permute.xlu0 %5749
  %5751 = vrot.lane.b32.xlu0 %v5585, 12
  %v5752 = vpop.permute.xlu0 %5751
  %5753 = vrot.lane.b32.xlu0 %v5586, 12
  %v5754 = vpop.permute.xlu0 %5753
  %5755 = vrot.lane.b32.xlu0 %v5587, 12
  %v5756 = vpop.permute.xlu0 %5755
  %5757 = vrot.lane.b32.xlu0 %v5588, 12
  %v5758 = vpop.permute.xlu0 %5757
  %5759 = vrot.lane.b32.xlu0 %v5589, 12
  %v5760 = vpop.permute.xlu0 %5759
  %5761 = vrot.lane.b32.xlu0 %v5590, 12
  %v5762 = vpop.permute.xlu0 %5761
  %5763 = vrot.lane.b32.xlu0 %v5591, 12
  %v5764 = vpop.permute.xlu0 %5763
  %5765 = vrot.lane.b32.xlu0 %v5592, 12
  %v5766 = vpop.permute.xlu0 %5765
  %5767 = vrot.lane.b32.xlu0 %v5593, 12
  %v5768 = vpop.permute.xlu0 %5767
  %5769 = vrot.lane.b32.xlu0 %v5594, 12
  %v5770 = vpop.permute.xlu0 %5769
  %5771 = vrot.lane.b32.xlu0 %v5595, 12
  %v5772 = vpop.permute.xlu0 %5771
  %5773 = vrot.lane.b32.xlu0 %v5596, 12
  %v5774 = vpop.permute.xlu0 %5773
  %5775 = vrot.lane.b32.xlu0 %v5597, 12
  %v5776 = vpop.permute.xlu0 %5775
  %5777 = vrot.lane.b32.xlu0 %v5598, 12
  %v5778 = vpop.permute.xlu0 %5777
  %5779 = vrot.lane.b32.xlu0 %v5599, 12
  %v5780 = vpop.permute.xlu0 %5779
  %5781 = vrot.lane.b32.xlu0 %v5600, 12
  %v5782 = vpop.permute.xlu0 %5781
  %5783 = vrot.lane.b32.xlu0 %v5601, 12
  %v5784 = vpop.permute.xlu0 %5783
  %5785 = vrot.lane.b32.xlu0 %v5602, 12
  %v5786 = vpop.permute.xlu0 %5785
  %5787 = vrot.lane.b32.xlu0 %v5603, 12
  %v5788 = vpop.permute.xlu0 %5787
  %5789 = vrot.lane.b32.xlu0 %v5604, 12
  %v5790 = vpop.permute.xlu0 %5789
  %5791 = vrot.lane.b32.xlu0 %v5605, 12
  %v5792 = vpop.permute.xlu0 %5791
  %5793 = vrot.lane.b32.xlu0 %v5606, 12
  %v5794 = vpop.permute.xlu0 %5793
  %5795 = vrot.lane.b32.xlu0 %v5607, 12
  %v5796 = vpop.permute.xlu0 %5795
  %5797 = vrot.lane.b32.xlu0 %v5608, 12
  %v5798 = vpop.permute.xlu0 %5797
  %5799 = vrot.lane.b32.xlu0 %v5609, 12
  %v5800 = vpop.permute.xlu0 %5799
  %5801 = vrot.lane.b32.xlu0 %v5610, 12
  %v5802 = vpop.permute.xlu0 %5801
  %5867 = vst.msk [vmem:[#allocation3] sm:$0xff] %vm1484, %v5676
  %5868 = vst.msk [vmem:[#allocation3 + $0x8] sm:$0xff] %vm1484, %v5678
  %5869 = vst.msk [vmem:[#allocation3 + $0x10] sm:$0xff] %vm1484, %v5680
  %5870 = vst.msk [vmem:[#allocation3 + $0x18] sm:$0xff] %vm1484, %v5682
  %5871 = vst.msk [vmem:[#allocation3 + $0x20] sm:$0xff] %vm1484, %v5684
  %5872 = vst.msk [vmem:[#allocation3 + $0x28] sm:$0xff] %vm1484, %v5686
  %5873 = vst.msk [vmem:[#allocation3 + $0x30] sm:$0xff] %vm1484, %v5688
  %5874 = vst.msk [vmem:[#allocation3 + $0x38] sm:$0xff] %vm1484, %v5690
  %5875 = vst.msk [vmem:[#allocation3 + $0x40] sm:$0xff] %vm1484, %v5692
  %5876 = vst.msk [vmem:[#allocation3 + $0x48] sm:$0xff] %vm1484, %v5694
  %5877 = vst.msk [vmem:[#allocation3 + $0x50] sm:$0xff] %vm1484, %v5696
  %5878 = vst.msk [vmem:[#allocation3 + $0x58] sm:$0xff] %vm1484, %v5698
  %5879 = vst.msk [vmem:[#allocation3 + $0x60] sm:$0xff] %vm1484, %v5700
  %5880 = vst.msk [vmem:[#allocation3 + $0x68] sm:$0xff] %vm1484, %v5702
  %5881 = vst.msk [vmem:[#allocation3 + $0x70] sm:$0xff] %vm1484, %v5704
  %5882 = vst.msk [vmem:[#allocation3 + $0x78] sm:$0xff] %vm1484, %v5706
  %5883 = vst.msk [vmem:[#allocation3 + $0x80] sm:$0xff] %vm1484, %v5708
  %5884 = vst.msk [vmem:[#allocation3 + $0x88] sm:$0xff] %vm1484, %v5710
  %5885 = vst.msk [vmem:[#allocation3 + $0x90] sm:$0xff] %vm1484, %v5712
  %5886 = vst.msk [vmem:[#allocation3 + $0x98] sm:$0xff] %vm1484, %v5714
  %5887 = vst.msk [vmem:[#allocation3 + $0xa0] sm:$0xff] %vm1484, %v5716
  %5888 = vst.msk [vmem:[#allocation3 + $0xa8] sm:$0xff] %vm1484, %v5718
  %5889 = vst.msk [vmem:[#allocation3 + $0xb0] sm:$0xff] %vm1484, %v5720
  %5890 = vst.msk [vmem:[#allocation3 + $0xb8] sm:$0xff] %vm1484, %v5722
  %5891 = vst.msk [vmem:[#allocation3 + $0xc0] sm:$0xff] %vm1484, %v5724
  %5892 = vst.msk [vmem:[#allocation3 + $0xc8] sm:$0xff] %vm1484, %v5726
  %5893 = vst.msk [vmem:[#allocation3 + $0xd0] sm:$0xff] %vm1484, %v5728
  %5894 = vst.msk [vmem:[#allocation3 + $0xd8] sm:$0xff] %vm1484, %v5730
  %5895 = vst.msk [vmem:[#allocation3 + $0xe0] sm:$0xff] %vm1484, %v5732
  %5896 = vst.msk [vmem:[#allocation3 + $0xe8] sm:$0xff] %vm1484, %v5734
  %5897 = vst.msk [vmem:[#allocation3 + $0xf0] sm:$0xff] %vm1484, %v5736
  %5898 = vst.msk [vmem:[#allocation3 + $0xf8] sm:$0xff] %vm1484, %v5738
  %5899 = vst.msk [vmem:[#allocation3 + $0x100] sm:$0xff] %vm1484, %v5740
  %5900 = vst.msk [vmem:[#allocation3 + $0x108] sm:$0xff] %vm1484, %v5742
  %5901 = vst.msk [vmem:[#allocation3 + $0x110] sm:$0xff] %vm1484, %v5744
  %5902 = vst.msk [vmem:[#allocation3 + $0x118] sm:$0xff] %vm1484, %v5746
  %5903 = vst.msk [vmem:[#allocation3 + $0x120] sm:$0xff] %vm1484, %v5748
  %5904 = vst.msk [vmem:[#allocation3 + $0x128] sm:$0xff] %vm1484, %v5750
  %5905 = vst.msk [vmem:[#allocation3 + $0x130] sm:$0xff] %vm1484, %v5752
  %5906 = vst.msk [vmem:[#allocation3 + $0x138] sm:$0xff] %vm1484, %v5754
  %5907 = vst.msk [vmem:[#allocation3 + $0x140] sm:$0xff] %vm1484, %v5756
  %5908 = vst.msk [vmem:[#allocation3 + $0x148] sm:$0xff] %vm1484, %v5758
  %5909 = vst.msk [vmem:[#allocation3 + $0x150] sm:$0xff] %vm1484, %v5760
  %5910 = vst.msk [vmem:[#allocation3 + $0x158] sm:$0xff] %vm1484, %v5762
  %5911 = vst.msk [vmem:[#allocation3 + $0x160] sm:$0xff] %vm1484, %v5764
  %5912 = vst.msk [vmem:[#allocation3 + $0x168] sm:$0xff] %vm1484, %v5766
  %5913 = vst.msk [vmem:[#allocation3 + $0x170] sm:$0xff] %vm1484, %v5768
  %5914 = vst.msk [vmem:[#allocation3 + $0x178] sm:$0xff] %vm1484, %v5770
  %5915 = vst.msk [vmem:[#allocation3 + $0x180] sm:$0xff] %vm1484, %v5772
  %5916 = vst.msk [vmem:[#allocation3 + $0x188] sm:$0xff] %vm1484, %v5774
  %5917 = vst.msk [vmem:[#allocation3 + $0x190] sm:$0xff] %vm1484, %v5776
  %5918 = vst.msk [vmem:[#allocation3 + $0x198] sm:$0xff] %vm1484, %v5778
  %5919 = vst.msk [vmem:[#allocation3 + $0x1a0] sm:$0xff] %vm1484, %v5780
  %5920 = vst.msk [vmem:[#allocation3 + $0x1a8] sm:$0xff] %vm1484, %v5782
  %5921 = vst.msk [vmem:[#allocation3 + $0x1b0] sm:$0xff] %vm1484, %v5784
  %5922 = vst.msk [vmem:[#allocation3 + $0x1b8] sm:$0xff] %vm1484, %v5786
  %5923 = vst.msk [vmem:[#allocation3 + $0x1c0] sm:$0xff] %vm1484, %v5788
  %5924 = vst.msk [vmem:[#allocation3 + $0x1c8] sm:$0xff] %vm1484, %v5790
  %5925 = vst.msk [vmem:[#allocation3 + $0x1d0] sm:$0xff] %vm1484, %v5792
  %5926 = vst.msk [vmem:[#allocation3 + $0x1d8] sm:$0xff] %vm1484, %v5794
  %5927 = vst.msk [vmem:[#allocation3 + $0x1e0] sm:$0xff] %vm1484, %v5796
  %5928 = vst.msk [vmem:[#allocation3 + $0x1e8] sm:$0xff] %vm1484, %v5798
  %5929 = vst.msk [vmem:[#allocation3 + $0x1f0] sm:$0xff] %vm1484, %v5800
  %5930 = vst.msk [vmem:[#allocation3 + $0x1f8] sm:$0xff] %vm1484, %v5802
  %v5931 = vld [vmem:[%s201 + $0x1] sm:$0xff]
  %v5932 = vld [vmem:[%s201 + $0x9] sm:$0xff]
  %v5933 = vld [vmem:[%s201 + $0x19] sm:$0xff]
  %v5934 = vld [vmem:[%s201 + $0x21] sm:$0xff]
  %v5935 = vld [vmem:[%s201 + $0x31] sm:$0xff]
  %v5936 = vld [vmem:[%s201 + $0x39] sm:$0xff]
  %v5937 = vld [vmem:[%s201 + $0x49] sm:$0xff]
  %v5938 = vld [vmem:[%s201 + $0x51] sm:$0xff]
  %v5939 = vld [vmem:[%s201 + $0x61] sm:$0xff]
  %v5940 = vld [vmem:[%s201 + $0x69] sm:$0xff]
  %v5941 = vld [vmem:[%s201 + $0x79] sm:$0xff]
  %v5942 = vld [vmem:[%s201 + $0x81] sm:$0xff]
  %v5943 = vld [vmem:[%s201 + $0x91] sm:$0xff]
  %v5944 = vld [vmem:[%s201 + $0x99] sm:$0xff]
  %v5945 = vld [vmem:[%s201 + $0xa9] sm:$0xff]
  %v5946 = vld [vmem:[%s201 + $0xb1] sm:$0xff]
  %v5947 = vld [vmem:[%s201 + $0xc1] sm:$0xff]
  %v5948 = vld [vmem:[%s201 + $0xc9] sm:$0xff]
  %v5949 = vld [vmem:[%s201 + $0xd9] sm:$0xff]
  %v5950 = vld [vmem:[%s201 + $0xe1] sm:$0xff]
  %v5951 = vld [vmem:[%s201 + $0xf1] sm:$0xff]
  %v5952 = vld [vmem:[%s201 + $0xf9] sm:$0xff]
  %v5953 = vld [vmem:[%s201 + $0x109] sm:$0xff]
  %v5954 = vld [vmem:[%s201 + $0x111] sm:$0xff]
  %v5955 = vld [vmem:[%s201 + $0x121] sm:$0xff]
  %v5956 = vld [vmem:[%s201 + $0x129] sm:$0xff]
  %v5957 = vld [vmem:[%s201 + $0x139] sm:$0xff]
  %v5958 = vld [vmem:[%s201 + $0x141] sm:$0xff]
  %v5959 = vld [vmem:[%s201 + $0x151] sm:$0xff]
  %v5960 = vld [vmem:[%s201 + $0x159] sm:$0xff]
  %v5961 = vld [vmem:[%s201 + $0x169] sm:$0xff]
  %v5962 = vld [vmem:[%s201 + $0x171] sm:$0xff]
  %v5963 = vld [vmem:[%s201 + $0x1b1] sm:$0xff]
  %v5964 = vld [vmem:[%s201 + $0x1b9] sm:$0xff]
  %v5965 = vld [vmem:[%s201 + $0x1c9] sm:$0xff]
  %v5966 = vld [vmem:[%s201 + $0x1d1] sm:$0xff]
  %v5967 = vld [vmem:[%s201 + $0x1e1] sm:$0xff]
  %v5968 = vld [vmem:[%s201 + $0x1e9] sm:$0xff]
  %v5969 = vld [vmem:[%s201 + $0x1f9] sm:$0xff]
  %v5970 = vld [vmem:[%s201 + $0x201] sm:$0xff]
  %v5971 = vld [vmem:[%s201 + $0x211] sm:$0xff]
  %v5972 = vld [vmem:[%s201 + $0x219] sm:$0xff]
  %v5973 = vld [vmem:[%s201 + $0x229] sm:$0xff]
  %v5974 = vld [vmem:[%s201 + $0x231] sm:$0xff]
  %v5975 = vld [vmem:[%s201 + $0x241] sm:$0xff]
  %v5976 = vld [vmem:[%s201 + $0x249] sm:$0xff]
  %v5977 = vld [vmem:[%s201 + $0x259] sm:$0xff]
  %v5978 = vld [vmem:[%s201 + $0x261] sm:$0xff]
  %v5979 = vld [vmem:[%s201 + $0x271] sm:$0xff]
  %v5980 = vld [vmem:[%s201 + $0x279] sm:$0xff]
  %v5981 = vld [vmem:[%s201 + $0x289] sm:$0xff]
  %v5982 = vld [vmem:[%s201 + $0x291] sm:$0xff]
  %v5983 = vld [vmem:[%s201 + $0x2a1] sm:$0xff]
  %v5984 = vld [vmem:[%s201 + $0x2a9] sm:$0xff]
  %v5985 = vld [vmem:[%s201 + $0x2b9] sm:$0xff]
  %v5986 = vld [vmem:[%s201 + $0x2c1] sm:$0xff]
  %v5987 = vld [vmem:[%s201 + $0x2d1] sm:$0xff]
  %v5988 = vld [vmem:[%s201 + $0x2d9] sm:$0xff]
  %v5989 = vld [vmem:[%s201 + $0x2e9] sm:$0xff]
  %v5990 = vld [vmem:[%s201 + $0x2f1] sm:$0xff]
  %v5991 = vld [vmem:[%s201 + $0x301] sm:$0xff]
  %v5992 = vld [vmem:[%s201 + $0x309] sm:$0xff]
  %v5993 = vld [vmem:[%s201 + $0x319] sm:$0xff]
  %v5994 = vld [vmem:[%s201 + $0x321] sm:$0xff]
  %6059 = vrot.lane.b32.xlu0 %v5931, 16
  %v6060 = vpop.permute.xlu0 %6059
  %6061 = vrot.lane.b32.xlu0 %v5932, 16
  %v6062 = vpop.permute.xlu0 %6061
  %6063 = vrot.lane.b32.xlu0 %v5933, 16
  %v6064 = vpop.permute.xlu0 %6063
  %6065 = vrot.lane.b32.xlu0 %v5934, 16
  %v6066 = vpop.permute.xlu0 %6065
  %6067 = vrot.lane.b32.xlu0 %v5935, 16
  %v6068 = vpop.permute.xlu0 %6067
  %6069 = vrot.lane.b32.xlu0 %v5936, 16
  %v6070 = vpop.permute.xlu0 %6069
  %6071 = vrot.lane.b32.xlu0 %v5937, 16
  %v6072 = vpop.permute.xlu0 %6071
  %6073 = vrot.lane.b32.xlu0 %v5938, 16
  %v6074 = vpop.permute.xlu0 %6073
  %6075 = vrot.lane.b32.xlu0 %v5939, 16
  %v6076 = vpop.permute.xlu0 %6075
  %6077 = vrot.lane.b32.xlu0 %v5940, 16
  %v6078 = vpop.permute.xlu0 %6077
  %6079 = vrot.lane.b32.xlu0 %v5941, 16
  %v6080 = vpop.permute.xlu0 %6079
  %6081 = vrot.lane.b32.xlu0 %v5942, 16
  %v6082 = vpop.permute.xlu0 %6081
  %6083 = vrot.lane.b32.xlu0 %v5943, 16
  %v6084 = vpop.permute.xlu0 %6083
  %6085 = vrot.lane.b32.xlu0 %v5944, 16
  %v6086 = vpop.permute.xlu0 %6085
  %6087 = vrot.lane.b32.xlu0 %v5945, 16
  %v6088 = vpop.permute.xlu0 %6087
  %6089 = vrot.lane.b32.xlu0 %v5946, 16
  %v6090 = vpop.permute.xlu0 %6089
  %6091 = vrot.lane.b32.xlu0 %v5947, 16
  %v6092 = vpop.permute.xlu0 %6091
  %6093 = vrot.lane.b32.xlu0 %v5948, 16
  %v6094 = vpop.permute.xlu0 %6093
  %6095 = vrot.lane.b32.xlu0 %v5949, 16
  %v6096 = vpop.permute.xlu0 %6095
  %6097 = vrot.lane.b32.xlu0 %v5950, 16
  %v6098 = vpop.permute.xlu0 %6097
  %6099 = vrot.lane.b32.xlu0 %v5951, 16
  %v6100 = vpop.permute.xlu0 %6099
  %6101 = vrot.lane.b32.xlu0 %v5952, 16
  %v6102 = vpop.permute.xlu0 %6101
  %6103 = vrot.lane.b32.xlu0 %v5953, 16
  %v6104 = vpop.permute.xlu0 %6103
  %6105 = vrot.lane.b32.xlu0 %v5954, 16
  %v6106 = vpop.permute.xlu0 %6105
  %6107 = vrot.lane.b32.xlu0 %v5955, 16
  %v6108 = vpop.permute.xlu0 %6107
  %6109 = vrot.lane.b32.xlu0 %v5956, 16
  %v6110 = vpop.permute.xlu0 %6109
  %6111 = vrot.lane.b32.xlu0 %v5957, 16
  %v6112 = vpop.permute.xlu0 %6111
  %6113 = vrot.lane.b32.xlu0 %v5958, 16
  %v6114 = vpop.permute.xlu0 %6113
  %6115 = vrot.lane.b32.xlu0 %v5959, 16
  %v6116 = vpop.permute.xlu0 %6115
  %6117 = vrot.lane.b32.xlu0 %v5960, 16
  %v6118 = vpop.permute.xlu0 %6117
  %6119 = vrot.lane.b32.xlu0 %v5961, 16
  %v6120 = vpop.permute.xlu0 %6119
  %6121 = vrot.lane.b32.xlu0 %v5962, 16
  %v6122 = vpop.permute.xlu0 %6121
  %6123 = vrot.lane.b32.xlu0 %v5963, 16
  %v6124 = vpop.permute.xlu0 %6123
  %6125 = vrot.lane.b32.xlu0 %v5964, 16
  %v6126 = vpop.permute.xlu0 %6125
  %6127 = vrot.lane.b32.xlu0 %v5965, 16
  %v6128 = vpop.permute.xlu0 %6127
  %6129 = vrot.lane.b32.xlu0 %v5966, 16
  %v6130 = vpop.permute.xlu0 %6129
  %6131 = vrot.lane.b32.xlu0 %v5967, 16
  %v6132 = vpop.permute.xlu0 %6131
  %6133 = vrot.lane.b32.xlu0 %v5968, 16
  %v6134 = vpop.permute.xlu0 %6133
  %6135 = vrot.lane.b32.xlu0 %v5969, 16
  %v6136 = vpop.permute.xlu0 %6135
  %6137 = vrot.lane.b32.xlu0 %v5970, 16
  %v6138 = vpop.permute.xlu0 %6137
  %6139 = vrot.lane.b32.xlu0 %v5971, 16
  %v6140 = vpop.permute.xlu0 %6139
  %6141 = vrot.lane.b32.xlu0 %v5972, 16
  %v6142 = vpop.permute.xlu0 %6141
  %6143 = vrot.lane.b32.xlu0 %v5973, 16
  %v6144 = vpop.permute.xlu0 %6143
  %6145 = vrot.lane.b32.xlu0 %v5974, 16
  %v6146 = vpop.permute.xlu0 %6145
  %6147 = vrot.lane.b32.xlu0 %v5975, 16
  %v6148 = vpop.permute.xlu0 %6147
  %6149 = vrot.lane.b32.xlu0 %v5976, 16
  %v6150 = vpop.permute.xlu0 %6149
  %6151 = vrot.lane.b32.xlu0 %v5977, 16
  %v6152 = vpop.permute.xlu0 %6151
  %6153 = vrot.lane.b32.xlu0 %v5978, 16
  %v6154 = vpop.permute.xlu0 %6153
  %6155 = vrot.lane.b32.xlu0 %v5979, 16
  %v6156 = vpop.permute.xlu0 %6155
  %6157 = vrot.lane.b32.xlu0 %v5980, 16
  %v6158 = vpop.permute.xlu0 %6157
  %6159 = vrot.lane.b32.xlu0 %v5981, 16
  %v6160 = vpop.permute.xlu0 %6159
  %6161 = vrot.lane.b32.xlu0 %v5982, 16
  %v6162 = vpop.permute.xlu0 %6161
  %6163 = vrot.lane.b32.xlu0 %v5983, 16
  %v6164 = vpop.permute.xlu0 %6163
  %6165 = vrot.lane.b32.xlu0 %v5984, 16
  %v6166 = vpop.permute.xlu0 %6165
  %6167 = vrot.lane.b32.xlu0 %v5985, 16
  %v6168 = vpop.permute.xlu0 %6167
  %6169 = vrot.lane.b32.xlu0 %v5986, 16
  %v6170 = vpop.permute.xlu0 %6169
  %6171 = vrot.lane.b32.xlu0 %v5987, 16
  %v6172 = vpop.permute.xlu0 %6171
  %6173 = vrot.lane.b32.xlu0 %v5988, 16
  %v6174 = vpop.permute.xlu0 %6173
  %6175 = vrot.lane.b32.xlu0 %v5989, 16
  %v6176 = vpop.permute.xlu0 %6175
  %6177 = vrot.lane.b32.xlu0 %v5990, 16
  %v6178 = vpop.permute.xlu0 %6177
  %6179 = vrot.lane.b32.xlu0 %v5991, 16
  %v6180 = vpop.permute.xlu0 %6179
  %6181 = vrot.lane.b32.xlu0 %v5992, 16
  %v6182 = vpop.permute.xlu0 %6181
  %6183 = vrot.lane.b32.xlu0 %v5993, 16
  %v6184 = vpop.permute.xlu0 %6183
  %6185 = vrot.lane.b32.xlu0 %v5994, 16
  %v6186 = vpop.permute.xlu0 %6185
  %6251 = vst.msk [vmem:[#allocation3] sm:$0xff] %vm1869, %v6060
  %6252 = vst.msk [vmem:[#allocation3 + $0x8] sm:$0xff] %vm1869, %v6062
  %6253 = vst.msk [vmem:[#allocation3 + $0x10] sm:$0xff] %vm1869, %v6064
  %6254 = vst.msk [vmem:[#allocation3 + $0x18] sm:$0xff] %vm1869, %v6066
  %6255 = vst.msk [vmem:[#allocation3 + $0x20] sm:$0xff] %vm1869, %v6068
  %6256 = vst.msk [vmem:[#allocation3 + $0x28] sm:$0xff] %vm1869, %v6070
  %6257 = vst.msk [vmem:[#allocation3 + $0x30] sm:$0xff] %vm1869, %v6072
  %6258 = vst.msk [vmem:[#allocation3 + $0x38] sm:$0xff] %vm1869, %v6074
  %6259 = vst.msk [vmem:[#allocation3 + $0x40] sm:$0xff] %vm1869, %v6076
  %6260 = vst.msk [vmem:[#allocation3 + $0x48] sm:$0xff] %vm1869, %v6078
  %6261 = vst.msk [vmem:[#allocation3 + $0x50] sm:$0xff] %vm1869, %v6080
  %6262 = vst.msk [vmem:[#allocation3 + $0x58] sm:$0xff] %vm1869, %v6082
  %6263 = vst.msk [vmem:[#allocation3 + $0x60] sm:$0xff] %vm1869, %v6084
  %6264 = vst.msk [vmem:[#allocation3 + $0x68] sm:$0xff] %vm1869, %v6086
  %6265 = vst.msk [vmem:[#allocation3 + $0x70] sm:$0xff] %vm1869, %v6088
  %6266 = vst.msk [vmem:[#allocation3 + $0x78] sm:$0xff] %vm1869, %v6090
  %6267 = vst.msk [vmem:[#allocation3 + $0x80] sm:$0xff] %vm1869, %v6092
  %6268 = vst.msk [vmem:[#allocation3 + $0x88] sm:$0xff] %vm1869, %v6094
  %6269 = vst.msk [vmem:[#allocation3 + $0x90] sm:$0xff] %vm1869, %v6096
  %6270 = vst.msk [vmem:[#allocation3 + $0x98] sm:$0xff] %vm1869, %v6098
  %6271 = vst.msk [vmem:[#allocation3 + $0xa0] sm:$0xff] %vm1869, %v6100
  %6272 = vst.msk [vmem:[#allocation3 + $0xa8] sm:$0xff] %vm1869, %v6102
  %6273 = vst.msk [vmem:[#allocation3 + $0xb0] sm:$0xff] %vm1869, %v6104
  %6274 = vst.msk [vmem:[#allocation3 + $0xb8] sm:$0xff] %vm1869, %v6106
  %6275 = vst.msk [vmem:[#allocation3 + $0xc0] sm:$0xff] %vm1869, %v6108
  %6276 = vst.msk [vmem:[#allocation3 + $0xc8] sm:$0xff] %vm1869, %v6110
  %6277 = vst.msk [vmem:[#allocation3 + $0xd0] sm:$0xff] %vm1869, %v6112
  %6278 = vst.msk [vmem:[#allocation3 + $0xd8] sm:$0xff] %vm1869, %v6114
  %6279 = vst.msk [vmem:[#allocation3 + $0xe0] sm:$0xff] %vm1869, %v6116
  %6280 = vst.msk [vmem:[#allocation3 + $0xe8] sm:$0xff] %vm1869, %v6118
  %6281 = vst.msk [vmem:[#allocation3 + $0xf0] sm:$0xff] %vm1869, %v6120
  %6282 = vst.msk [vmem:[#allocation3 + $0xf8] sm:$0xff] %vm1869, %v6122
  %6283 = vst.msk [vmem:[#allocation3 + $0x100] sm:$0xff] %vm1869, %v6124
  %6284 = vst.msk [vmem:[#allocation3 + $0x108] sm:$0xff] %vm1869, %v6126
  %6285 = vst.msk [vmem:[#allocation3 + $0x110] sm:$0xff] %vm1869, %v6128
  %6286 = vst.msk [vmem:[#allocation3 + $0x118] sm:$0xff] %vm1869, %v6130
  %6287 = vst.msk [vmem:[#allocation3 + $0x120] sm:$0xff] %vm1869, %v6132
  %6288 = vst.msk [vmem:[#allocation3 + $0x128] sm:$0xff] %vm1869, %v6134
  %6289 = vst.msk [vmem:[#allocation3 + $0x130] sm:$0xff] %vm1869, %v6136
  %6290 = vst.msk [vmem:[#allocation3 + $0x138] sm:$0xff] %vm1869, %v6138
  %6291 = vst.msk [vmem:[#allocation3 + $0x140] sm:$0xff] %vm1869, %v6140
  %6292 = vst.msk [vmem:[#allocation3 + $0x148] sm:$0xff] %vm1869, %v6142
  %6293 = vst.msk [vmem:[#allocation3 + $0x150] sm:$0xff] %vm1869, %v6144
  %6294 = vst.msk [vmem:[#allocation3 + $0x158] sm:$0xff] %vm1869, %v6146
  %6295 = vst.msk [vmem:[#allocation3 + $0x160] sm:$0xff] %vm1869, %v6148
  %6296 = vst.msk [vmem:[#allocation3 + $0x168] sm:$0xff] %vm1869, %v6150
  %6297 = vst.msk [vmem:[#allocation3 + $0x170] sm:$0xff] %vm1869, %v6152
  %6298 = vst.msk [vmem:[#allocation3 + $0x178] sm:$0xff] %vm1869, %v6154
  %6299 = vst.msk [vmem:[#allocation3 + $0x180] sm:$0xff] %vm1869, %v6156
  %6300 = vst.msk [vmem:[#allocation3 + $0x188] sm:$0xff] %vm1869, %v6158
  %6301 = vst.msk [vmem:[#allocation3 + $0x190] sm:$0xff] %vm1869, %v6160
  %6302 = vst.msk [vmem:[#allocation3 + $0x198] sm:$0xff] %vm1869, %v6162
  %6303 = vst.msk [vmem:[#allocation3 + $0x1a0] sm:$0xff] %vm1869, %v6164
  %6304 = vst.msk [vmem:[#allocation3 + $0x1a8] sm:$0xff] %vm1869, %v6166
  %6305 = vst.msk [vmem:[#allocation3 + $0x1b0] sm:$0xff] %vm1869, %v6168
  %6306 = vst.msk [vmem:[#allocation3 + $0x1b8] sm:$0xff] %vm1869, %v6170
  %6307 = vst.msk [vmem:[#allocation3 + $0x1c0] sm:$0xff] %vm1869, %v6172
  %6308 = vst.msk [vmem:[#allocation3 + $0x1c8] sm:$0xff] %vm1869, %v6174
  %6309 = vst.msk [vmem:[#allocation3 + $0x1d0] sm:$0xff] %vm1869, %v6176
  %6310 = vst.msk [vmem:[#allocation3 + $0x1d8] sm:$0xff] %vm1869, %v6178
  %6311 = vst.msk [vmem:[#allocation3 + $0x1e0] sm:$0xff] %vm1869, %v6180
  %6312 = vst.msk [vmem:[#allocation3 + $0x1e8] sm:$0xff] %vm1869, %v6182
  %6313 = vst.msk [vmem:[#allocation3 + $0x1f0] sm:$0xff] %vm1869, %v6184
  %6314 = vst.msk [vmem:[#allocation3 + $0x1f8] sm:$0xff] %vm1869, %v6186
  %v6315 = vld [vmem:[%s201 + $0x2] sm:$0xff]
  %v6316 = vld [vmem:[%s201 + $0xa] sm:$0xff]
  %v6317 = vld [vmem:[%s201 + $0x1a] sm:$0xff]
  %v6318 = vld [vmem:[%s201 + $0x22] sm:$0xff]
  %v6319 = vld [vmem:[%s201 + $0x32] sm:$0xff]
  %v6320 = vld [vmem:[%s201 + $0x3a] sm:$0xff]
  %v6321 = vld [vmem:[%s201 + $0x4a] sm:$0xff]
  %v6322 = vld [vmem:[%s201 + $0x52] sm:$0xff]
  %v6323 = vld [vmem:[%s201 + $0x62] sm:$0xff]
  %v6324 = vld [vmem:[%s201 + $0x6a] sm:$0xff]
  %v6325 = vld [vmem:[%s201 + $0x7a] sm:$0xff]
  %v6326 = vld [vmem:[%s201 + $0x82] sm:$0xff]
  %v6327 = vld [vmem:[%s201 + $0x92] sm:$0xff]
  %v6328 = vld [vmem:[%s201 + $0x9a] sm:$0xff]
  %v6329 = vld [vmem:[%s201 + $0xaa] sm:$0xff]
  %v6330 = vld [vmem:[%s201 + $0xb2] sm:$0xff]
  %v6331 = vld [vmem:[%s201 + $0xc2] sm:$0xff]
  %v6332 = vld [vmem:[%s201 + $0xca] sm:$0xff]
  %v6333 = vld [vmem:[%s201 + $0xda] sm:$0xff]
  %v6334 = vld [vmem:[%s201 + $0xe2] sm:$0xff]
  %v6335 = vld [vmem:[%s201 + $0xf2] sm:$0xff]
  %v6336 = vld [vmem:[%s201 + $0xfa] sm:$0xff]
  %v6337 = vld [vmem:[%s201 + $0x10a] sm:$0xff]
  %v6338 = vld [vmem:[%s201 + $0x112] sm:$0xff]
  %v6339 = vld [vmem:[%s201 + $0x122] sm:$0xff]
  %v6340 = vld [vmem:[%s201 + $0x12a] sm:$0xff]
  %v6341 = vld [vmem:[%s201 + $0x13a] sm:$0xff]
  %v6342 = vld [vmem:[%s201 + $0x142] sm:$0xff]
  %v6343 = vld [vmem:[%s201 + $0x152] sm:$0xff]
  %v6344 = vld [vmem:[%s201 + $0x15a] sm:$0xff]
  %v6345 = vld [vmem:[%s201 + $0x16a] sm:$0xff]
  %v6346 = vld [vmem:[%s201 + $0x172] sm:$0xff]
  %v6347 = vld [vmem:[%s201 + $0x1b2] sm:$0xff]
  %v6348 = vld [vmem:[%s201 + $0x1ba] sm:$0xff]
  %v6349 = vld [vmem:[%s201 + $0x1ca] sm:$0xff]
  %v6350 = vld [vmem:[%s201 + $0x1d2] sm:$0xff]
  %v6351 = vld [vmem:[%s201 + $0x1e2] sm:$0xff]
  %v6352 = vld [vmem:[%s201 + $0x1ea] sm:$0xff]
  %v6353 = vld [vmem:[%s201 + $0x1fa] sm:$0xff]
  %v6354 = vld [vmem:[%s201 + $0x202] sm:$0xff]
  %v6355 = vld [vmem:[%s201 + $0x212] sm:$0xff]
  %v6356 = vld [vmem:[%s201 + $0x21a] sm:$0xff]
  %v6357 = vld [vmem:[%s201 + $0x22a] sm:$0xff]
  %v6358 = vld [vmem:[%s201 + $0x232] sm:$0xff]
  %v6359 = vld [vmem:[%s201 + $0x242] sm:$0xff]
  %v6360 = vld [vmem:[%s201 + $0x24a] sm:$0xff]
  %v6361 = vld [vmem:[%s201 + $0x25a] sm:$0xff]
  %v6362 = vld [vmem:[%s201 + $0x262] sm:$0xff]
  %v6363 = vld [vmem:[%s201 + $0x272] sm:$0xff]
  %v6364 = vld [vmem:[%s201 + $0x27a] sm:$0xff]
  %v6365 = vld [vmem:[%s201 + $0x28a] sm:$0xff]
  %v6366 = vld [vmem:[%s201 + $0x292] sm:$0xff]
  %v6367 = vld [vmem:[%s201 + $0x2a2] sm:$0xff]
  %v6368 = vld [vmem:[%s201 + $0x2aa] sm:$0xff]
  %v6369 = vld [vmem:[%s201 + $0x2ba] sm:$0xff]
  %v6370 = vld [vmem:[%s201 + $0x2c2] sm:$0xff]
  %v6371 = vld [vmem:[%s201 + $0x2d2] sm:$0xff]
  %v6372 = vld [vmem:[%s201 + $0x2da] sm:$0xff]
  %v6373 = vld [vmem:[%s201 + $0x2ea] sm:$0xff]
  %v6374 = vld [vmem:[%s201 + $0x2f2] sm:$0xff]
  %v6375 = vld [vmem:[%s201 + $0x302] sm:$0xff]
  %v6376 = vld [vmem:[%s201 + $0x30a] sm:$0xff]
  %v6377 = vld [vmem:[%s201 + $0x31a] sm:$0xff]
  %v6378 = vld [vmem:[%s201 + $0x322] sm:$0xff]
  %6443 = vrot.lane.b32.xlu0 %v6315, 20
  %v6444 = vpop.permute.xlu0 %6443
  %6445 = vrot.lane.b32.xlu0 %v6316, 20
  %v6446 = vpop.permute.xlu0 %6445
  %6447 = vrot.lane.b32.xlu0 %v6317, 20
  %v6448 = vpop.permute.xlu0 %6447
  %6449 = vrot.lane.b32.xlu0 %v6318, 20
  %v6450 = vpop.permute.xlu0 %6449
  %6451 = vrot.lane.b32.xlu0 %v6319, 20
  %v6452 = vpop.permute.xlu0 %6451
  %6453 = vrot.lane.b32.xlu0 %v6320, 20
  %v6454 = vpop.permute.xlu0 %6453
  %6455 = vrot.lane.b32.xlu0 %v6321, 20
  %v6456 = vpop.permute.xlu0 %6455
  %6457 = vrot.lane.b32.xlu0 %v6322, 20
  %v6458 = vpop.permute.xlu0 %6457
  %6459 = vrot.lane.b32.xlu0 %v6323, 20
  %v6460 = vpop.permute.xlu0 %6459
  %6461 = vrot.lane.b32.xlu0 %v6324, 20
  %v6462 = vpop.permute.xlu0 %6461
  %6463 = vrot.lane.b32.xlu0 %v6325, 20
  %v6464 = vpop.permute.xlu0 %6463
  %6465 = vrot.lane.b32.xlu0 %v6326, 20
  %v6466 = vpop.permute.xlu0 %6465
  %6467 = vrot.lane.b32.xlu0 %v6327, 20
  %v6468 = vpop.permute.xlu0 %6467
  %6469 = vrot.lane.b32.xlu0 %v6328, 20
  %v6470 = vpop.permute.xlu0 %6469
  %6471 = vrot.lane.b32.xlu0 %v6329, 20
  %v6472 = vpop.permute.xlu0 %6471
  %6473 = vrot.lane.b32.xlu0 %v6330, 20
  %v6474 = vpop.permute.xlu0 %6473
  %6475 = vrot.lane.b32.xlu0 %v6331, 20
  %v6476 = vpop.permute.xlu0 %6475
  %6477 = vrot.lane.b32.xlu0 %v6332, 20
  %v6478 = vpop.permute.xlu0 %6477
  %6479 = vrot.lane.b32.xlu0 %v6333, 20
  %v6480 = vpop.permute.xlu0 %6479
  %6481 = vrot.lane.b32.xlu0 %v6334, 20
  %v6482 = vpop.permute.xlu0 %6481
  %6483 = vrot.lane.b32.xlu0 %v6335, 20
  %v6484 = vpop.permute.xlu0 %6483
  %6485 = vrot.lane.b32.xlu0 %v6336, 20
  %v6486 = vpop.permute.xlu0 %6485
  %6487 = vrot.lane.b32.xlu0 %v6337, 20
  %v6488 = vpop.permute.xlu0 %6487
  %6489 = vrot.lane.b32.xlu0 %v6338, 20
  %v6490 = vpop.permute.xlu0 %6489
  %6491 = vrot.lane.b32.xlu0 %v6339, 20
  %v6492 = vpop.permute.xlu0 %6491
  %6493 = vrot.lane.b32.xlu0 %v6340, 20
  %v6494 = vpop.permute.xlu0 %6493
  %6495 = vrot.lane.b32.xlu0 %v6341, 20
  %v6496 = vpop.permute.xlu0 %6495
  %6497 = vrot.lane.b32.xlu0 %v6342, 20
  %v6498 = vpop.permute.xlu0 %6497
  %6499 = vrot.lane.b32.xlu0 %v6343, 20
  %v6500 = vpop.permute.xlu0 %6499
  %6501 = vrot.lane.b32.xlu0 %v6344, 20
  %v6502 = vpop.permute.xlu0 %6501
  %6503 = vrot.lane.b32.xlu0 %v6345, 20
  %v6504 = vpop.permute.xlu0 %6503
  %6505 = vrot.lane.b32.xlu0 %v6346, 20
  %v6506 = vpop.permute.xlu0 %6505
  %6507 = vrot.lane.b32.xlu0 %v6347, 20
  %v6508 = vpop.permute.xlu0 %6507
  %6509 = vrot.lane.b32.xlu0 %v6348, 20
  %v6510 = vpop.permute.xlu0 %6509
  %6511 = vrot.lane.b32.xlu0 %v6349, 20
  %v6512 = vpop.permute.xlu0 %6511
  %6513 = vrot.lane.b32.xlu0 %v6350, 20
  %v6514 = vpop.permute.xlu0 %6513
  %6515 = vrot.lane.b32.xlu0 %v6351, 20
  %v6516 = vpop.permute.xlu0 %6515
  %6517 = vrot.lane.b32.xlu0 %v6352, 20
  %v6518 = vpop.permute.xlu0 %6517
  %6519 = vrot.lane.b32.xlu0 %v6353, 20
  %v6520 = vpop.permute.xlu0 %6519
  %6521 = vrot.lane.b32.xlu0 %v6354, 20
  %v6522 = vpop.permute.xlu0 %6521
  %6523 = vrot.lane.b32.xlu0 %v6355, 20
  %v6524 = vpop.permute.xlu0 %6523
  %6525 = vrot.lane.b32.xlu0 %v6356, 20
  %v6526 = vpop.permute.xlu0 %6525
  %6527 = vrot.lane.b32.xlu0 %v6357, 20
  %v6528 = vpop.permute.xlu0 %6527
  %6529 = vrot.lane.b32.xlu0 %v6358, 20
  %v6530 = vpop.permute.xlu0 %6529
  %6531 = vrot.lane.b32.xlu0 %v6359, 20
  %v6532 = vpop.permute.xlu0 %6531
  %6533 = vrot.lane.b32.xlu0 %v6360, 20
  %v6534 = vpop.permute.xlu0 %6533
  %6535 = vrot.lane.b32.xlu0 %v6361, 20
  %v6536 = vpop.permute.xlu0 %6535
  %6537 = vrot.lane.b32.xlu0 %v6362, 20
  %v6538 = vpop.permute.xlu0 %6537
  %6539 = vrot.lane.b32.xlu0 %v6363, 20
  %v6540 = vpop.permute.xlu0 %6539
  %6541 = vrot.lane.b32.xlu0 %v6364, 20
  %v6542 = vpop.permute.xlu0 %6541
  %6543 = vrot.lane.b32.xlu0 %v6365, 20
  %v6544 = vpop.permute.xlu0 %6543
  %6545 = vrot.lane.b32.xlu0 %v6366, 20
  %v6546 = vpop.permute.xlu0 %6545
  %6547 = vrot.lane.b32.xlu0 %v6367, 20
  %v6548 = vpop.permute.xlu0 %6547
  %6549 = vrot.lane.b32.xlu0 %v6368, 20
  %v6550 = vpop.permute.xlu0 %6549
  %6551 = vrot.lane.b32.xlu0 %v6369, 20
  %v6552 = vpop.permute.xlu0 %6551
  %6553 = vrot.lane.b32.xlu0 %v6370, 20
  %v6554 = vpop.permute.xlu0 %6553
  %6555 = vrot.lane.b32.xlu0 %v6371, 20
  %v6556 = vpop.permute.xlu0 %6555
  %6557 = vrot.lane.b32.xlu0 %v6372, 20
  %v6558 = vpop.permute.xlu0 %6557
  %6559 = vrot.lane.b32.xlu0 %v6373, 20
  %v6560 = vpop.permute.xlu0 %6559
  %6561 = vrot.lane.b32.xlu0 %v6374, 20
  %v6562 = vpop.permute.xlu0 %6561
  %6563 = vrot.lane.b32.xlu0 %v6375, 20
  %v6564 = vpop.permute.xlu0 %6563
  %6565 = vrot.lane.b32.xlu0 %v6376, 20
  %v6566 = vpop.permute.xlu0 %6565
  %6567 = vrot.lane.b32.xlu0 %v6377, 20
  %v6568 = vpop.permute.xlu0 %6567
  %6569 = vrot.lane.b32.xlu0 %v6378, 20
  %v6570 = vpop.permute.xlu0 %6569
  %6635 = vst.msk [vmem:[#allocation3] sm:$0xff] %vm2254, %v6444
  %6636 = vst.msk [vmem:[#allocation3 + $0x8] sm:$0xff] %vm2254, %v6446
  %6637 = vst.msk [vmem:[#allocation3 + $0x10] sm:$0xff] %vm2254, %v6448
  %6638 = vst.msk [vmem:[#allocation3 + $0x18] sm:$0xff] %vm2254, %v6450
  %6639 = vst.msk [vmem:[#allocation3 + $0x20] sm:$0xff] %vm2254, %v6452
  %6640 = vst.msk [vmem:[#allocation3 + $0x28] sm:$0xff] %vm2254, %v6454
  %6641 = vst.msk [vmem:[#allocation3 + $0x30] sm:$0xff] %vm2254, %v6456
  %6642 = vst.msk [vmem:[#allocation3 + $0x38] sm:$0xff] %vm2254, %v6458
  %6643 = vst.msk [vmem:[#allocation3 + $0x40] sm:$0xff] %vm2254, %v6460
  %6644 = vst.msk [vmem:[#allocation3 + $0x48] sm:$0xff] %vm2254, %v6462
  %6645 = vst.msk [vmem:[#allocation3 + $0x50] sm:$0xff] %vm2254, %v6464
  %6646 = vst.msk [vmem:[#allocation3 + $0x58] sm:$0xff] %vm2254, %v6466
  %6647 = vst.msk [vmem:[#allocation3 + $0x60] sm:$0xff] %vm2254, %v6468
  %6648 = vst.msk [vmem:[#allocation3 + $0x68] sm:$0xff] %vm2254, %v6470
  %6649 = vst.msk [vmem:[#allocation3 + $0x70] sm:$0xff] %vm2254, %v6472
  %6650 = vst.msk [vmem:[#allocation3 + $0x78] sm:$0xff] %vm2254, %v6474
  %6651 = vst.msk [vmem:[#allocation3 + $0x80] sm:$0xff] %vm2254, %v6476
  %6652 = vst.msk [vmem:[#allocation3 + $0x88] sm:$0xff] %vm2254, %v6478
  %6653 = vst.msk [vmem:[#allocation3 + $0x90] sm:$0xff] %vm2254, %v6480
  %6654 = vst.msk [vmem:[#allocation3 + $0x98] sm:$0xff] %vm2254, %v6482
  %6655 = vst.msk [vmem:[#allocation3 + $0xa0] sm:$0xff] %vm2254, %v6484
  %6656 = vst.msk [vmem:[#allocation3 + $0xa8] sm:$0xff] %vm2254, %v6486
  %6657 = vst.msk [vmem:[#allocation3 + $0xb0] sm:$0xff] %vm2254, %v6488
  %6658 = vst.msk [vmem:[#allocation3 + $0xb8] sm:$0xff] %vm2254, %v6490
  %6659 = vst.msk [vmem:[#allocation3 + $0xc0] sm:$0xff] %vm2254, %v6492
  %6660 = vst.msk [vmem:[#allocation3 + $0xc8] sm:$0xff] %vm2254, %v6494
  %6661 = vst.msk [vmem:[#allocation3 + $0xd0] sm:$0xff] %vm2254, %v6496
  %6662 = vst.msk [vmem:[#allocation3 + $0xd8] sm:$0xff] %vm2254, %v6498
  %6663 = vst.msk [vmem:[#allocation3 + $0xe0] sm:$0xff] %vm2254, %v6500
  %6664 = vst.msk [vmem:[#allocation3 + $0xe8] sm:$0xff] %vm2254, %v6502
  %6665 = vst.msk [vmem:[#allocation3 + $0xf0] sm:$0xff] %vm2254, %v6504
  %6666 = vst.msk [vmem:[#allocation3 + $0xf8] sm:$0xff] %vm2254, %v6506
  %6667 = vst.msk [vmem:[#allocation3 + $0x100] sm:$0xff] %vm2254, %v6508
  %6668 = vst.msk [vmem:[#allocation3 + $0x108] sm:$0xff] %vm2254, %v6510
  %6669 = vst.msk [vmem:[#allocation3 + $0x110] sm:$0xff] %vm2254, %v6512
  %6670 = vst.msk [vmem:[#allocation3 + $0x118] sm:$0xff] %vm2254, %v6514
  %6671 = vst.msk [vmem:[#allocation3 + $0x120] sm:$0xff] %vm2254, %v6516
  %6672 = vst.msk [vmem:[#allocation3 + $0x128] sm:$0xff] %vm2254, %v6518
  %6673 = vst.msk [vmem:[#allocation3 + $0x130] sm:$0xff] %vm2254, %v6520
  %6674 = vst.msk [vmem:[#allocation3 + $0x138] sm:$0xff] %vm2254, %v6522
  %6675 = vst.msk [vmem:[#allocation3 + $0x140] sm:$0xff] %vm2254, %v6524
  %6676 = vst.msk [vmem:[#allocation3 + $0x148] sm:$0xff] %vm2254, %v6526
  %6677 = vst.msk [vmem:[#allocation3 + $0x150] sm:$0xff] %vm2254, %v6528
  %6678 = vst.msk [vmem:[#allocation3 + $0x158] sm:$0xff] %vm2254, %v6530
  %6679 = vst.msk [vmem:[#allocation3 + $0x160] sm:$0xff] %vm2254, %v6532
  %6680 = vst.msk [vmem:[#allocation3 + $0x168] sm:$0xff] %vm2254, %v6534
  %6681 = vst.msk [vmem:[#allocation3 + $0x170] sm:$0xff] %vm2254, %v6536
  %6682 = vst.msk [vmem:[#allocation3 + $0x178] sm:$0xff] %vm2254, %v6538
  %6683 = vst.msk [vmem:[#allocation3 + $0x180] sm:$0xff] %vm2254, %v6540
  %6684 = vst.msk [vmem:[#allocation3 + $0x188] sm:$0xff] %vm2254, %v6542
  %6685 = vst.msk [vmem:[#allocation3 + $0x190] sm:$0xff] %vm2254, %v6544
  %6686 = vst.msk [vmem:[#allocation3 + $0x198] sm:$0xff] %vm2254, %v6546
  %6687 = vst.msk [vmem:[#allocation3 + $0x1a0] sm:$0xff] %vm2254, %v6548
  %6688 = vst.msk [vmem:[#allocation3 + $0x1a8] sm:$0xff] %vm2254, %v6550
  %6689 = vst.msk [vmem:[#allocation3 + $0x1b0] sm:$0xff] %vm2254, %v6552
  %6690 = vst.msk [vmem:[#allocation3 + $0x1b8] sm:$0xff] %vm2254, %v6554
  %6691 = vst.msk [vmem:[#allocation3 + $0x1c0] sm:$0xff] %vm2254, %v6556
  %6692 = vst.msk [vmem:[#allocation3 + $0x1c8] sm:$0xff] %vm2254, %v6558
  %6693 = vst.msk [vmem:[#allocation3 + $0x1d0] sm:$0xff] %vm2254, %v6560
  %6694 = vst.msk [vmem:[#allocation3 + $0x1d8] sm:$0xff] %vm2254, %v6562
  %6695 = vst.msk [vmem:[#allocation3 + $0x1e0] sm:$0xff] %vm2254, %v6564
  %6696 = vst.msk [vmem:[#allocation3 + $0x1e8] sm:$0xff] %vm2254, %v6566
  %6697 = vst.msk [vmem:[#allocation3 + $0x1f0] sm:$0xff] %vm2254, %v6568
  %6698 = vst.msk [vmem:[#allocation3 + $0x1f8] sm:$0xff] %vm2254, %v6570
  %v6699 = vld [vmem:[%s2319] sm:$0xff]
  %v6700 = vld [vmem:[%s2319 + $0x8] sm:$0xff]
  %v6701 = vld [vmem:[%s2319 + $0x18] sm:$0xff]
  %v6702 = vld [vmem:[%s2319 + $0x20] sm:$0xff]
  %v6703 = vld [vmem:[%s2319 + $0x30] sm:$0xff]
  %v6704 = vld [vmem:[%s2319 + $0x38] sm:$0xff]
  %v6705 = vld [vmem:[%s2319 + $0x48] sm:$0xff]
  %v6706 = vld [vmem:[%s2319 + $0x50] sm:$0xff]
  %v6707 = vld [vmem:[%s2319 + $0x60] sm:$0xff]
  %v6708 = vld [vmem:[%s2319 + $0x68] sm:$0xff]
  %v6709 = vld [vmem:[%s2319 + $0x78] sm:$0xff]
  %v6710 = vld [vmem:[%s2319 + $0x80] sm:$0xff]
  %v6711 = vld [vmem:[%s2319 + $0x90] sm:$0xff]
  %v6712 = vld [vmem:[%s2319 + $0x98] sm:$0xff]
  %v6713 = vld [vmem:[%s2319 + $0xa8] sm:$0xff]
  %v6714 = vld [vmem:[%s2319 + $0xb0] sm:$0xff]
  %v6715 = vld [vmem:[%s2319 + $0xc0] sm:$0xff]
  %v6716 = vld [vmem:[%s2319 + $0xc8] sm:$0xff]
  %v6717 = vld [vmem:[%s2319 + $0xd8] sm:$0xff]
  %v6718 = vld [vmem:[%s2319 + $0xe0] sm:$0xff]
  %v6719 = vld [vmem:[%s2319 + $0xf0] sm:$0xff]
  %v6720 = vld [vmem:[%s2319 + $0xf8] sm:$0xff]
  %v6721 = vld [vmem:[%s2319 + $0x108] sm:$0xff]
  %v6722 = vld [vmem:[%s2319 + $0x110] sm:$0xff]
  %v6723 = vld [vmem:[%s2319 + $0x120] sm:$0xff]
  %v6724 = vld [vmem:[%s2319 + $0x128] sm:$0xff]
  %v6725 = vld [vmem:[%s2319 + $0x138] sm:$0xff]
  %v6726 = vld [vmem:[%s2319 + $0x140] sm:$0xff]
  %v6727 = vld [vmem:[%s2319 + $0x150] sm:$0xff]
  %v6728 = vld [vmem:[%s2319 + $0x158] sm:$0xff]
  %v6729 = vld [vmem:[%s2319 + $0x168] sm:$0xff]
  %v6730 = vld [vmem:[%s2319 + $0x170] sm:$0xff]
  %v6731 = vld [vmem:[%s2319 + $0x1b0] sm:$0xff]
  %v6732 = vld [vmem:[%s2319 + $0x1b8] sm:$0xff]
  %v6733 = vld [vmem:[%s2319 + $0x1c8] sm:$0xff]
  %v6734 = vld [vmem:[%s2319 + $0x1d0] sm:$0xff]
  %v6735 = vld [vmem:[%s2319 + $0x1e0] sm:$0xff]
  %v6736 = vld [vmem:[%s2319 + $0x1e8] sm:$0xff]
  %v6737 = vld [vmem:[%s2319 + $0x1f8] sm:$0xff]
  %v6738 = vld [vmem:[%s2319 + $0x200] sm:$0xff]
  %v6739 = vld [vmem:[%s2319 + $0x210] sm:$0xff]
  %v6740 = vld [vmem:[%s2319 + $0x218] sm:$0xff]
  %v6741 = vld [vmem:[%s2319 + $0x228] sm:$0xff]
  %v6742 = vld [vmem:[%s2319 + $0x230] sm:$0xff]
  %v6743 = vld [vmem:[%s2319 + $0x240] sm:$0xff]
  %v6744 = vld [vmem:[%s2319 + $0x248] sm:$0xff]
  %v6745 = vld [vmem:[%s2319 + $0x258] sm:$0xff]
  %v6746 = vld [vmem:[%s2319 + $0x260] sm:$0xff]
  %v6747 = vld [vmem:[%s2319 + $0x270] sm:$0xff]
  %v6748 = vld [vmem:[%s2319 + $0x278] sm:$0xff]
  %v6749 = vld [vmem:[%s2319 + $0x288] sm:$0xff]
  %v6750 = vld [vmem:[%s2319 + $0x290] sm:$0xff]
  %v6751 = vld [vmem:[%s2319 + $0x2a0] sm:$0xff]
  %v6752 = vld [vmem:[%s2319 + $0x2a8] sm:$0xff]
  %v6753 = vld [vmem:[%s2319 + $0x2b8] sm:$0xff]
  %v6754 = vld [vmem:[%s2319 + $0x2c0] sm:$0xff]
  %v6755 = vld [vmem:[%s2319 + $0x2d0] sm:$0xff]
  %v6756 = vld [vmem:[%s2319 + $0x2d8] sm:$0xff]
  %v6757 = vld [vmem:[%s2319 + $0x2e8] sm:$0xff]
  %v6758 = vld [vmem:[%s2319 + $0x2f0] sm:$0xff]
  %v6759 = vld [vmem:[%s2319 + $0x300] sm:$0xff]
  %v6760 = vld [vmem:[%s2319 + $0x308] sm:$0xff]
  %v6761 = vld [vmem:[%s2319 + $0x318] sm:$0xff]
  %v6762 = vld [vmem:[%s2319 + $0x320] sm:$0xff]
  %6827 = vrot.lane.b32.xlu0 %v6699, 24
  %v6828 = vpop.permute.xlu0 %6827
  %6829 = vrot.lane.b32.xlu0 %v6700, 24
  %v6830 = vpop.permute.xlu0 %6829
  %6831 = vrot.lane.b32.xlu0 %v6701, 24
  %v6832 = vpop.permute.xlu0 %6831
  %6833 = vrot.lane.b32.xlu0 %v6702, 24
  %v6834 = vpop.permute.xlu0 %6833
  %6835 = vrot.lane.b32.xlu0 %v6703, 24
  %v6836 = vpop.permute.xlu0 %6835
  %6837 = vrot.lane.b32.xlu0 %v6704, 24
  %v6838 = vpop.permute.xlu0 %6837
  %6839 = vrot.lane.b32.xlu0 %v6705, 24
  %v6840 = vpop.permute.xlu0 %6839
  %6841 = vrot.lane.b32.xlu0 %v6706, 24
  %v6842 = vpop.permute.xlu0 %6841
  %6843 = vrot.lane.b32.xlu0 %v6707, 24
  %v6844 = vpop.permute.xlu0 %6843
  %6845 = vrot.lane.b32.xlu0 %v6708, 24
  %v6846 = vpop.permute.xlu0 %6845
  %6847 = vrot.lane.b32.xlu0 %v6709, 24
  %v6848 = vpop.permute.xlu0 %6847
  %6849 = vrot.lane.b32.xlu0 %v6710, 24
  %v6850 = vpop.permute.xlu0 %6849
  %6851 = vrot.lane.b32.xlu0 %v6711, 24
  %v6852 = vpop.permute.xlu0 %6851
  %6853 = vrot.lane.b32.xlu0 %v6712, 24
  %v6854 = vpop.permute.xlu0 %6853
  %6855 = vrot.lane.b32.xlu0 %v6713, 24
  %v6856 = vpop.permute.xlu0 %6855
  %6857 = vrot.lane.b32.xlu0 %v6714, 24
  %v6858 = vpop.permute.xlu0 %6857
  %6859 = vrot.lane.b32.xlu0 %v6715, 24
  %v6860 = vpop.permute.xlu0 %6859
  %6861 = vrot.lane.b32.xlu0 %v6716, 24
  %v6862 = vpop.permute.xlu0 %6861
  %6863 = vrot.lane.b32.xlu0 %v6717, 24
  %v6864 = vpop.permute.xlu0 %6863
  %6865 = vrot.lane.b32.xlu0 %v6718, 24
  %v6866 = vpop.permute.xlu0 %6865
  %6867 = vrot.lane.b32.xlu0 %v6719, 24
  %v6868 = vpop.permute.xlu0 %6867
  %6869 = vrot.lane.b32.xlu0 %v6720, 24
  %v6870 = vpop.permute.xlu0 %6869
  %6871 = vrot.lane.b32.xlu0 %v6721, 24
  %v6872 = vpop.permute.xlu0 %6871
  %6873 = vrot.lane.b32.xlu0 %v6722, 24
  %v6874 = vpop.permute.xlu0 %6873
  %6875 = vrot.lane.b32.xlu0 %v6723, 24
  %v6876 = vpop.permute.xlu0 %6875
  %6877 = vrot.lane.b32.xlu0 %v6724, 24
  %v6878 = vpop.permute.xlu0 %6877
  %6879 = vrot.lane.b32.xlu0 %v6725, 24
  %v6880 = vpop.permute.xlu0 %6879
  %6881 = vrot.lane.b32.xlu0 %v6726, 24
  %v6882 = vpop.permute.xlu0 %6881
  %6883 = vrot.lane.b32.xlu0 %v6727, 24
  %v6884 = vpop.permute.xlu0 %6883
  %6885 = vrot.lane.b32.xlu0 %v6728, 24
  %v6886 = vpop.permute.xlu0 %6885
  %6887 = vrot.lane.b32.xlu0 %v6729, 24
  %v6888 = vpop.permute.xlu0 %6887
  %6889 = vrot.lane.b32.xlu0 %v6730, 24
  %v6890 = vpop.permute.xlu0 %6889
  %6891 = vrot.lane.b32.xlu0 %v6731, 24
  %v6892 = vpop.permute.xlu0 %6891
  %6893 = vrot.lane.b32.xlu0 %v6732, 24
  %v6894 = vpop.permute.xlu0 %6893
  %6895 = vrot.lane.b32.xlu0 %v6733, 24
  %v6896 = vpop.permute.xlu0 %6895
  %6897 = vrot.lane.b32.xlu0 %v6734, 24
  %v6898 = vpop.permute.xlu0 %6897
  %6899 = vrot.lane.b32.xlu0 %v6735, 24
  %v6900 = vpop.permute.xlu0 %6899
  %6901 = vrot.lane.b32.xlu0 %v6736, 24
  %v6902 = vpop.permute.xlu0 %6901
  %6903 = vrot.lane.b32.xlu0 %v6737, 24
  %v6904 = vpop.permute.xlu0 %6903
  %6905 = vrot.lane.b32.xlu0 %v6738, 24
  %v6906 = vpop.permute.xlu0 %6905
  %6907 = vrot.lane.b32.xlu0 %v6739, 24
  %v6908 = vpop.permute.xlu0 %6907
  %6909 = vrot.lane.b32.xlu0 %v6740, 24
  %v6910 = vpop.permute.xlu0 %6909
  %6911 = vrot.lane.b32.xlu0 %v6741, 24
  %v6912 = vpop.permute.xlu0 %6911
  %6913 = vrot.lane.b32.xlu0 %v6742, 24
  %v6914 = vpop.permute.xlu0 %6913
  %6915 = vrot.lane.b32.xlu0 %v6743, 24
  %v6916 = vpop.permute.xlu0 %6915
  %6917 = vrot.lane.b32.xlu0 %v6744, 24
  %v6918 = vpop.permute.xlu0 %6917
  %6919 = vrot.lane.b32.xlu0 %v6745, 24
  %v6920 = vpop.permute.xlu0 %6919
  %6921 = vrot.lane.b32.xlu0 %v6746, 24
  %v6922 = vpop.permute.xlu0 %6921
  %6923 = vrot.lane.b32.xlu0 %v6747, 24
  %v6924 = vpop.permute.xlu0 %6923
  %6925 = vrot.lane.b32.xlu0 %v6748, 24
  %v6926 = vpop.permute.xlu0 %6925
  %6927 = vrot.lane.b32.xlu0 %v6749, 24
  %v6928 = vpop.permute.xlu0 %6927
  %6929 = vrot.lane.b32.xlu0 %v6750, 24
  %v6930 = vpop.permute.xlu0 %6929
  %6931 = vrot.lane.b32.xlu0 %v6751, 24
  %v6932 = vpop.permute.xlu0 %6931
  %6933 = vrot.lane.b32.xlu0 %v6752, 24
  %v6934 = vpop.permute.xlu0 %6933
  %6935 = vrot.lane.b32.xlu0 %v6753, 24
  %v6936 = vpop.permute.xlu0 %6935
  %6937 = vrot.lane.b32.xlu0 %v6754, 24
  %v6938 = vpop.permute.xlu0 %6937
  %6939 = vrot.lane.b32.xlu0 %v6755, 24
  %v6940 = vpop.permute.xlu0 %6939
  %6941 = vrot.lane.b32.xlu0 %v6756, 24
  %v6942 = vpop.permute.xlu0 %6941
  %6943 = vrot.lane.b32.xlu0 %v6757, 24
  %v6944 = vpop.permute.xlu0 %6943
  %6945 = vrot.lane.b32.xlu0 %v6758, 24
  %v6946 = vpop.permute.xlu0 %6945
  %6947 = vrot.lane.b32.xlu0 %v6759, 24
  %v6948 = vpop.permute.xlu0 %6947
  %6949 = vrot.lane.b32.xlu0 %v6760, 24
  %v6950 = vpop.permute.xlu0 %6949
  %6951 = vrot.lane.b32.xlu0 %v6761, 24
  %v6952 = vpop.permute.xlu0 %6951
  %6953 = vrot.lane.b32.xlu0 %v6762, 24
  %v6954 = vpop.permute.xlu0 %6953
  %7019 = vst.msk [vmem:[#allocation3] sm:$0xff] %vm2640, %v6828
  %7020 = vst.msk [vmem:[#allocation3 + $0x8] sm:$0xff] %vm2640, %v6830
  %7021 = vst.msk [vmem:[#allocation3 + $0x10] sm:$0xff] %vm2640, %v6832
  %7022 = vst.msk [vmem:[#allocation3 + $0x18] sm:$0xff] %vm2640, %v6834
  %7023 = vst.msk [vmem:[#allocation3 + $0x20] sm:$0xff] %vm2640, %v6836
  %7024 = vst.msk [vmem:[#allocation3 + $0x28] sm:$0xff] %vm2640, %v6838
  %7025 = vst.msk [vmem:[#allocation3 + $0x30] sm:$0xff] %vm2640, %v6840
  %7026 = vst.msk [vmem:[#allocation3 + $0x38] sm:$0xff] %vm2640, %v6842
  %7027 = vst.msk [vmem:[#allocation3 + $0x40] sm:$0xff] %vm2640, %v6844
  %7028 = vst.msk [vmem:[#allocation3 + $0x48] sm:$0xff] %vm2640, %v6846
  %7029 = vst.msk [vmem:[#allocation3 + $0x50] sm:$0xff] %vm2640, %v6848
  %7030 = vst.msk [vmem:[#allocation3 + $0x58] sm:$0xff] %vm2640, %v6850
  %7031 = vst.msk [vmem:[#allocation3 + $0x60] sm:$0xff] %vm2640, %v6852
  %7032 = vst.msk [vmem:[#allocation3 + $0x68] sm:$0xff] %vm2640, %v6854
  %7033 = vst.msk [vmem:[#allocation3 + $0x70] sm:$0xff] %vm2640, %v6856
  %7034 = vst.msk [vmem:[#allocation3 + $0x78] sm:$0xff] %vm2640, %v6858
  %7035 = vst.msk [vmem:[#allocation3 + $0x80] sm:$0xff] %vm2640, %v6860
  %7036 = vst.msk [vmem:[#allocation3 + $0x88] sm:$0xff] %vm2640, %v6862
  %7037 = vst.msk [vmem:[#allocation3 + $0x90] sm:$0xff] %vm2640, %v6864
  %7038 = vst.msk [vmem:[#allocation3 + $0x98] sm:$0xff] %vm2640, %v6866
  %7039 = vst.msk [vmem:[#allocation3 + $0xa0] sm:$0xff] %vm2640, %v6868
  %7040 = vst.msk [vmem:[#allocation3 + $0xa8] sm:$0xff] %vm2640, %v6870
  %7041 = vst.msk [vmem:[#allocation3 + $0xb0] sm:$0xff] %vm2640, %v6872
  %7042 = vst.msk [vmem:[#allocation3 + $0xb8] sm:$0xff] %vm2640, %v6874
  %7043 = vst.msk [vmem:[#allocation3 + $0xc0] sm:$0xff] %vm2640, %v6876
  %7044 = vst.msk [vmem:[#allocation3 + $0xc8] sm:$0xff] %vm2640, %v6878
  %7045 = vst.msk [vmem:[#allocation3 + $0xd0] sm:$0xff] %vm2640, %v6880
  %7046 = vst.msk [vmem:[#allocation3 + $0xd8] sm:$0xff] %vm2640, %v6882
  %7047 = vst.msk [vmem:[#allocation3 + $0xe0] sm:$0xff] %vm2640, %v6884
  %7048 = vst.msk [vmem:[#allocation3 + $0xe8] sm:$0xff] %vm2640, %v6886
  %7049 = vst.msk [vmem:[#allocation3 + $0xf0] sm:$0xff] %vm2640, %v6888
  %7050 = vst.msk [vmem:[#allocation3 + $0xf8] sm:$0xff] %vm2640, %v6890
  %7051 = vst.msk [vmem:[#allocation3 + $0x100] sm:$0xff] %vm2640, %v6892
  %7052 = vst.msk [vmem:[#allocation3 + $0x108] sm:$0xff] %vm2640, %v6894
  %7053 = vst.msk [vmem:[#allocation3 + $0x110] sm:$0xff] %vm2640, %v6896
  %7054 = vst.msk [vmem:[#allocation3 + $0x118] sm:$0xff] %vm2640, %v6898
  %7055 = vst.msk [vmem:[#allocation3 + $0x120] sm:$0xff] %vm2640, %v6900
  %7056 = vst.msk [vmem:[#allocation3 + $0x128] sm:$0xff] %vm2640, %v6902
  %7057 = vst.msk [vmem:[#allocation3 + $0x130] sm:$0xff] %vm2640, %v6904
  %7058 = vst.msk [vmem:[#allocation3 + $0x138] sm:$0xff] %vm2640, %v6906
  %7059 = vst.msk [vmem:[#allocation3 + $0x140] sm:$0xff] %vm2640, %v6908
  %7060 = vst.msk [vmem:[#allocation3 + $0x148] sm:$0xff] %vm2640, %v6910
  %7061 = vst.msk [vmem:[#allocation3 + $0x150] sm:$0xff] %vm2640, %v6912
  %7062 = vst.msk [vmem:[#allocation3 + $0x158] sm:$0xff] %vm2640, %v6914
  %7063 = vst.msk [vmem:[#allocation3 + $0x160] sm:$0xff] %vm2640, %v6916
  %7064 = vst.msk [vmem:[#allocation3 + $0x168] sm:$0xff] %vm2640, %v6918
  %7065 = vst.msk [vmem:[#allocation3 + $0x170] sm:$0xff] %vm2640, %v6920
  %7066 = vst.msk [vmem:[#allocation3 + $0x178] sm:$0xff] %vm2640, %v6922
  %7067 = vst.msk [vmem:[#allocation3 + $0x180] sm:$0xff] %vm2640, %v6924
  %7068 = vst.msk [vmem:[#allocation3 + $0x188] sm:$0xff] %vm2640, %v6926
  %7069 = vst.msk [vmem:[#allocation3 + $0x190] sm:$0xff] %vm2640, %v6928
  %7070 = vst.msk [vmem:[#allocation3 + $0x198] sm:$0xff] %vm2640, %v6930
  %7071 = vst.msk [vmem:[#allocation3 + $0x1a0] sm:$0xff] %vm2640, %v6932
  %7072 = vst.msk [vmem:[#allocation3 + $0x1a8] sm:$0xff] %vm2640, %v6934
  %7073 = vst.msk [vmem:[#allocation3 + $0x1b0] sm:$0xff] %vm2640, %v6936
  %7074 = vst.msk [vmem:[#allocation3 + $0x1b8] sm:$0xff] %vm2640, %v6938
  %7075 = vst.msk [vmem:[#allocation3 + $0x1c0] sm:$0xff] %vm2640, %v6940
  %7076 = vst.msk [vmem:[#allocation3 + $0x1c8] sm:$0xff] %vm2640, %v6942
  %7077 = vst.msk [vmem:[#allocation3 + $0x1d0] sm:$0xff] %vm2640, %v6944
  %7078 = vst.msk [vmem:[#allocation3 + $0x1d8] sm:$0xff] %vm2640, %v6946
  %7079 = vst.msk [vmem:[#allocation3 + $0x1e0] sm:$0xff] %vm2640, %v6948
  %7080 = vst.msk [vmem:[#allocation3 + $0x1e8] sm:$0xff] %vm2640, %v6950
  %7081 = vst.msk [vmem:[#allocation3 + $0x1f0] sm:$0xff] %vm2640, %v6952
  %7082 = vst.msk [vmem:[#allocation3 + $0x1f8] sm:$0xff] %vm2640, %v6954
  %v7083 = vld [vmem:[%s2319 + $0x1] sm:$0xff]
  %v7084 = vld [vmem:[%s2319 + $0x9] sm:$0xff]
  %v7085 = vld [vmem:[%s2319 + $0x19] sm:$0xff]
  %v7086 = vld [vmem:[%s2319 + $0x21] sm:$0xff]
  %v7087 = vld [vmem:[%s2319 + $0x31] sm:$0xff]
  %v7088 = vld [vmem:[%s2319 + $0x39] sm:$0xff]
  %v7089 = vld [vmem:[%s2319 + $0x49] sm:$0xff]
  %v7090 = vld [vmem:[%s2319 + $0x51] sm:$0xff]
  %v7091 = vld [vmem:[%s2319 + $0x61] sm:$0xff]
  %v7092 = vld [vmem:[%s2319 + $0x69] sm:$0xff]
  %v7093 = vld [vmem:[%s2319 + $0x79] sm:$0xff]
  %v7094 = vld [vmem:[%s2319 + $0x81] sm:$0xff]
  %v7095 = vld [vmem:[%s2319 + $0x91] sm:$0xff]
  %v7096 = vld [vmem:[%s2319 + $0x99] sm:$0xff]
  %v7097 = vld [vmem:[%s2319 + $0xa9] sm:$0xff]
  %v7098 = vld [vmem:[%s2319 + $0xb1] sm:$0xff]
  %v7099 = vld [vmem:[%s2319 + $0xc1] sm:$0xff]
  %v7100 = vld [vmem:[%s2319 + $0xc9] sm:$0xff]
  %v7101 = vld [vmem:[%s2319 + $0xd9] sm:$0xff]
  %v7102 = vld [vmem:[%s2319 + $0xe1] sm:$0xff]
  %v7103 = vld [vmem:[%s2319 + $0xf1] sm:$0xff]
  %v7104 = vld [vmem:[%s2319 + $0xf9] sm:$0xff]
  %v7105 = vld [vmem:[%s2319 + $0x109] sm:$0xff]
  %v7106 = vld [vmem:[%s2319 + $0x111] sm:$0xff]
  %v7107 = vld [vmem:[%s2319 + $0x121] sm:$0xff]
  %v7108 = vld [vmem:[%s2319 + $0x129] sm:$0xff]
  %v7109 = vld [vmem:[%s2319 + $0x139] sm:$0xff]
  %v7110 = vld [vmem:[%s2319 + $0x141] sm:$0xff]
  %v7111 = vld [vmem:[%s2319 + $0x151] sm:$0xff]
  %v7112 = vld [vmem:[%s2319 + $0x159] sm:$0xff]
  %v7113 = vld [vmem:[%s2319 + $0x169] sm:$0xff]
  %v7114 = vld [vmem:[%s2319 + $0x171] sm:$0xff]
  %v7115 = vld [vmem:[%s2319 + $0x1b1] sm:$0xff]
  %v7116 = vld [vmem:[%s2319 + $0x1b9] sm:$0xff]
  %v7117 = vld [vmem:[%s2319 + $0x1c9] sm:$0xff]
  %v7118 = vld [vmem:[%s2319 + $0x1d1] sm:$0xff]
  %v7119 = vld [vmem:[%s2319 + $0x1e1] sm:$0xff]
  %v7120 = vld [vmem:[%s2319 + $0x1e9] sm:$0xff]
  %v7121 = vld [vmem:[%s2319 + $0x1f9] sm:$0xff]
  %v7122 = vld [vmem:[%s2319 + $0x201] sm:$0xff]
  %v7123 = vld [vmem:[%s2319 + $0x211] sm:$0xff]
  %v7124 = vld [vmem:[%s2319 + $0x219] sm:$0xff]
  %v7125 = vld [vmem:[%s2319 + $0x229] sm:$0xff]
  %v7126 = vld [vmem:[%s2319 + $0x231] sm:$0xff]
  %v7127 = vld [vmem:[%s2319 + $0x241] sm:$0xff]
  %v7128 = vld [vmem:[%s2319 + $0x249] sm:$0xff]
  %v7129 = vld [vmem:[%s2319 + $0x259] sm:$0xff]
  %v7130 = vld [vmem:[%s2319 + $0x261] sm:$0xff]
  %v7131 = vld [vmem:[%s2319 + $0x271] sm:$0xff]
  %v7132 = vld [vmem:[%s2319 + $0x279] sm:$0xff]
  %v7133 = vld [vmem:[%s2319 + $0x289] sm:$0xff]
  %v7134 = vld [vmem:[%s2319 + $0x291] sm:$0xff]
  %v7135 = vld [vmem:[%s2319 + $0x2a1] sm:$0xff]
  %v7136 = vld [vmem:[%s2319 + $0x2a9] sm:$0xff]
  %v7137 = vld [vmem:[%s2319 + $0x2b9] sm:$0xff]
  %v7138 = vld [vmem:[%s2319 + $0x2c1] sm:$0xff]
  %v7139 = vld [vmem:[%s2319 + $0x2d1] sm:$0xff]
  %v7140 = vld [vmem:[%s2319 + $0x2d9] sm:$0xff]
  %v7141 = vld [vmem:[%s2319 + $0x2e9] sm:$0xff]
  %v7142 = vld [vmem:[%s2319 + $0x2f1] sm:$0xff]
  %v7143 = vld [vmem:[%s2319 + $0x301] sm:$0xff]
  %v7144 = vld [vmem:[%s2319 + $0x309] sm:$0xff]
  %v7145 = vld [vmem:[%s2319 + $0x319] sm:$0xff]
  %v7146 = vld [vmem:[%s2319 + $0x321] sm:$0xff]
  %7211 = vrot.lane.b32.xlu0 %v7083, 28
  %v7212 = vpop.permute.xlu0 %7211
  %7213 = vrot.lane.b32.xlu0 %v7084, 28
  %v7214 = vpop.permute.xlu0 %7213
  %7215 = vrot.lane.b32.xlu0 %v7085, 28
  %v7216 = vpop.permute.xlu0 %7215
  %7217 = vrot.lane.b32.xlu0 %v7086, 28
  %v7218 = vpop.permute.xlu0 %7217
  %7219 = vrot.lane.b32.xlu0 %v7087, 28
  %v7220 = vpop.permute.xlu0 %7219
  %7221 = vrot.lane.b32.xlu0 %v7088, 28
  %v7222 = vpop.permute.xlu0 %7221
  %7223 = vrot.lane.b32.xlu0 %v7089, 28
  %v7224 = vpop.permute.xlu0 %7223
  %7225 = vrot.lane.b32.xlu0 %v7090, 28
  %v7226 = vpop.permute.xlu0 %7225
  %7227 = vrot.lane.b32.xlu0 %v7091, 28
  %v7228 = vpop.permute.xlu0 %7227
  %7229 = vrot.lane.b32.xlu0 %v7092, 28
  %v7230 = vpop.permute.xlu0 %7229
  %7231 = vrot.lane.b32.xlu0 %v7093, 28
  %v7232 = vpop.permute.xlu0 %7231
  %7233 = vrot.lane.b32.xlu0 %v7094, 28
  %v7234 = vpop.permute.xlu0 %7233
  %7235 = vrot.lane.b32.xlu0 %v7095, 28
  %v7236 = vpop.permute.xlu0 %7235
  %7237 = vrot.lane.b32.xlu0 %v7096, 28
  %v7238 = vpop.permute.xlu0 %7237
  %7239 = vrot.lane.b32.xlu0 %v7097, 28
  %v7240 = vpop.permute.xlu0 %7239
  %7241 = vrot.lane.b32.xlu0 %v7098, 28
  %v7242 = vpop.permute.xlu0 %7241
  %7243 = vrot.lane.b32.xlu0 %v7099, 28
  %v7244 = vpop.permute.xlu0 %7243
  %7245 = vrot.lane.b32.xlu0 %v7100, 28
  %v7246 = vpop.permute.xlu0 %7245
  %7247 = vrot.lane.b32.xlu0 %v7101, 28
  %v7248 = vpop.permute.xlu0 %7247
  %7249 = vrot.lane.b32.xlu0 %v7102, 28
  %v7250 = vpop.permute.xlu0 %7249
  %7251 = vrot.lane.b32.xlu0 %v7103, 28
  %v7252 = vpop.permute.xlu0 %7251
  %7253 = vrot.lane.b32.xlu0 %v7104, 28
  %v7254 = vpop.permute.xlu0 %7253
  %7255 = vrot.lane.b32.xlu0 %v7105, 28
  %v7256 = vpop.permute.xlu0 %7255
  %7257 = vrot.lane.b32.xlu0 %v7106, 28
  %v7258 = vpop.permute.xlu0 %7257
  %7259 = vrot.lane.b32.xlu0 %v7107, 28
  %v7260 = vpop.permute.xlu0 %7259
  %7261 = vrot.lane.b32.xlu0 %v7108, 28
  %v7262 = vpop.permute.xlu0 %7261
  %7263 = vrot.lane.b32.xlu0 %v7109, 28
  %v7264 = vpop.permute.xlu0 %7263
  %7265 = vrot.lane.b32.xlu0 %v7110, 28
  %v7266 = vpop.permute.xlu0 %7265
  %7267 = vrot.lane.b32.xlu0 %v7111, 28
  %v7268 = vpop.permute.xlu0 %7267
  %7269 = vrot.lane.b32.xlu0 %v7112, 28
  %v7270 = vpop.permute.xlu0 %7269
  %7271 = vrot.lane.b32.xlu0 %v7113, 28
  %v7272 = vpop.permute.xlu0 %7271
  %7273 = vrot.lane.b32.xlu0 %v7114, 28
  %v7274 = vpop.permute.xlu0 %7273
  %7275 = vrot.lane.b32.xlu0 %v7115, 28
  %v7276 = vpop.permute.xlu0 %7275
  %7277 = vrot.lane.b32.xlu0 %v7116, 28
  %v7278 = vpop.permute.xlu0 %7277
  %7279 = vrot.lane.b32.xlu0 %v7117, 28
  %v7280 = vpop.permute.xlu0 %7279
  %7281 = vrot.lane.b32.xlu0 %v7118, 28
  %v7282 = vpop.permute.xlu0 %7281
  %7283 = vrot.lane.b32.xlu0 %v7119, 28
  %v7284 = vpop.permute.xlu0 %7283
  %7285 = vrot.lane.b32.xlu0 %v7120, 28
  %v7286 = vpop.permute.xlu0 %7285
  %7287 = vrot.lane.b32.xlu0 %v7121, 28
  %v7288 = vpop.permute.xlu0 %7287
  %7289 = vrot.lane.b32.xlu0 %v7122, 28
  %v7290 = vpop.permute.xlu0 %7289
  %7291 = vrot.lane.b32.xlu0 %v7123, 28
  %v7292 = vpop.permute.xlu0 %7291
  %7293 = vrot.lane.b32.xlu0 %v7124, 28
  %v7294 = vpop.permute.xlu0 %7293
  %7295 = vrot.lane.b32.xlu0 %v7125, 28
  %v7296 = vpop.permute.xlu0 %7295
  %7297 = vrot.lane.b32.xlu0 %v7126, 28
  %v7298 = vpop.permute.xlu0 %7297
  %7299 = vrot.lane.b32.xlu0 %v7127, 28
  %v7300 = vpop.permute.xlu0 %7299
  %7301 = vrot.lane.b32.xlu0 %v7128, 28
  %v7302 = vpop.permute.xlu0 %7301
  %7303 = vrot.lane.b32.xlu0 %v7129, 28
  %v7304 = vpop.permute.xlu0 %7303
  %7305 = vrot.lane.b32.xlu0 %v7130, 28
  %v7306 = vpop.permute.xlu0 %7305
  %7307 = vrot.lane.b32.xlu0 %v7131, 28
  %v7308 = vpop.permute.xlu0 %7307
  %7309 = vrot.lane.b32.xlu0 %v7132, 28
  %v7310 = vpop.permute.xlu0 %7309
  %7311 = vrot.lane.b32.xlu0 %v7133, 28
  %v7312 = vpop.permute.xlu0 %7311
  %7313 = vrot.lane.b32.xlu0 %v7134, 28
  %v7314 = vpop.permute.xlu0 %7313
  %7315 = vrot.lane.b32.xlu0 %v7135, 28
  %v7316 = vpop.permute.xlu0 %7315
  %7317 = vrot.lane.b32.xlu0 %v7136, 28
  %v7318 = vpop.permute.xlu0 %7317
  %7319 = vrot.lane.b32.xlu0 %v7137, 28
  %v7320 = vpop.permute.xlu0 %7319
  %7321 = vrot.lane.b32.xlu0 %v7138, 28
  %v7322 = vpop.permute.xlu0 %7321
  %7323 = vrot.lane.b32.xlu0 %v7139, 28
  %v7324 = vpop.permute.xlu0 %7323
  %7325 = vrot.lane.b32.xlu0 %v7140, 28
  %v7326 = vpop.permute.xlu0 %7325
  %7327 = vrot.lane.b32.xlu0 %v7141, 28
  %v7328 = vpop.permute.xlu0 %7327
  %7329 = vrot.lane.b32.xlu0 %v7142, 28
  %v7330 = vpop.permute.xlu0 %7329
  %7331 = vrot.lane.b32.xlu0 %v7143, 28
  %v7332 = vpop.permute.xlu0 %7331
  %7333 = vrot.lane.b32.xlu0 %v7144, 28
  %v7334 = vpop.permute.xlu0 %7333
  %7335 = vrot.lane.b32.xlu0 %v7145, 28
  %v7336 = vpop.permute.xlu0 %7335
  %7337 = vrot.lane.b32.xlu0 %v7146, 28
  %v7338 = vpop.permute.xlu0 %7337
  %7403 = vst.msk [vmem:[#allocation3] sm:$0xff] %vm3025, %v7212
  %7404 = vst.msk [vmem:[#allocation3 + $0x8] sm:$0xff] %vm3025, %v7214
  %7405 = vst.msk [vmem:[#allocation3 + $0x10] sm:$0xff] %vm3025, %v7216
  %7406 = vst.msk [vmem:[#allocation3 + $0x18] sm:$0xff] %vm3025, %v7218
  %7407 = vst.msk [vmem:[#allocation3 + $0x20] sm:$0xff] %vm3025, %v7220
  %7408 = vst.msk [vmem:[#allocation3 + $0x28] sm:$0xff] %vm3025, %v7222
  %7409 = vst.msk [vmem:[#allocation3 + $0x30] sm:$0xff] %vm3025, %v7224
  %7410 = vst.msk [vmem:[#allocation3 + $0x38] sm:$0xff] %vm3025, %v7226
  %7411 = vst.msk [vmem:[#allocation3 + $0x40] sm:$0xff] %vm3025, %v7228
  %7412 = vst.msk [vmem:[#allocation3 + $0x48] sm:$0xff] %vm3025, %v7230
  %7413 = vst.msk [vmem:[#allocation3 + $0x50] sm:$0xff] %vm3025, %v7232
  %7414 = vst.msk [vmem:[#allocation3 + $0x58] sm:$0xff] %vm3025, %v7234
  %7415 = vst.msk [vmem:[#allocation3 + $0x60] sm:$0xff] %vm3025, %v7236
  %7416 = vst.msk [vmem:[#allocation3 + $0x68] sm:$0xff] %vm3025, %v7238
  %7417 = vst.msk [vmem:[#allocation3 + $0x70] sm:$0xff] %vm3025, %v7240
  %7418 = vst.msk [vmem:[#allocation3 + $0x78] sm:$0xff] %vm3025, %v7242
  %7419 = vst.msk [vmem:[#allocation3 + $0x80] sm:$0xff] %vm3025, %v7244
  %7420 = vst.msk [vmem:[#allocation3 + $0x88] sm:$0xff] %vm3025, %v7246
  %7421 = vst.msk [vmem:[#allocation3 + $0x90] sm:$0xff] %vm3025, %v7248
  %7422 = vst.msk [vmem:[#allocation3 + $0x98] sm:$0xff] %vm3025, %v7250
  %7423 = vst.msk [vmem:[#allocation3 + $0xa0] sm:$0xff] %vm3025, %v7252
  %7424 = vst.msk [vmem:[#allocation3 + $0xa8] sm:$0xff] %vm3025, %v7254
  %7425 = vst.msk [vmem:[#allocation3 + $0xb0] sm:$0xff] %vm3025, %v7256
  %7426 = vst.msk [vmem:[#allocation3 + $0xb8] sm:$0xff] %vm3025, %v7258
  %7427 = vst.msk [vmem:[#allocation3 + $0xc0] sm:$0xff] %vm3025, %v7260
  %7428 = vst.msk [vmem:[#allocation3 + $0xc8] sm:$0xff] %vm3025, %v7262
  %7429 = vst.msk [vmem:[#allocation3 + $0xd0] sm:$0xff] %vm3025, %v7264
  %7430 = vst.msk [vmem:[#allocation3 + $0xd8] sm:$0xff] %vm3025, %v7266
  %7431 = vst.msk [vmem:[#allocation3 + $0xe0] sm:$0xff] %vm3025, %v7268
  %7432 = vst.msk [vmem:[#allocation3 + $0xe8] sm:$0xff] %vm3025, %v7270
  %7433 = vst.msk [vmem:[#allocation3 + $0xf0] sm:$0xff] %vm3025, %v7272
  %7434 = vst.msk [vmem:[#allocation3 + $0xf8] sm:$0xff] %vm3025, %v7274
  %7435 = vst.msk [vmem:[#allocation3 + $0x100] sm:$0xff] %vm3025, %v7276
  %7436 = vst.msk [vmem:[#allocation3 + $0x108] sm:$0xff] %vm3025, %v7278
  %7437 = vst.msk [vmem:[#allocation3 + $0x110] sm:$0xff] %vm3025, %v7280
  %7438 = vst.msk [vmem:[#allocation3 + $0x118] sm:$0xff] %vm3025, %v7282
  %7439 = vst.msk [vmem:[#allocation3 + $0x120] sm:$0xff] %vm3025, %v7284
  %7440 = vst.msk [vmem:[#allocation3 + $0x128] sm:$0xff] %vm3025, %v7286
  %7441 = vst.msk [vmem:[#allocation3 + $0x130] sm:$0xff] %vm3025, %v7288
  %7442 = vst.msk [vmem:[#allocation3 + $0x138] sm:$0xff] %vm3025, %v7290
  %7443 = vst.msk [vmem:[#allocation3 + $0x140] sm:$0xff] %vm3025, %v7292
  %7444 = vst.msk [vmem:[#allocation3 + $0x148] sm:$0xff] %vm3025, %v7294
  %7445 = vst.msk [vmem:[#allocation3 + $0x150] sm:$0xff] %vm3025, %v7296
  %7446 = vst.msk [vmem:[#allocation3 + $0x158] sm:$0xff] %vm3025, %v7298
  %7447 = vst.msk [vmem:[#allocation3 + $0x160] sm:$0xff] %vm3025, %v7300
  %7448 = vst.msk [vmem:[#allocation3 + $0x168] sm:$0xff] %vm3025, %v7302
  %7449 = vst.msk [vmem:[#allocation3 + $0x170] sm:$0xff] %vm3025, %v7304
  %7450 = vst.msk [vmem:[#allocation3 + $0x178] sm:$0xff] %vm3025, %v7306
  %7451 = vst.msk [vmem:[#allocation3 + $0x180] sm:$0xff] %vm3025, %v7308
  %7452 = vst.msk [vmem:[#allocation3 + $0x188] sm:$0xff] %vm3025, %v7310
  %7453 = vst.msk [vmem:[#allocation3 + $0x190] sm:$0xff] %vm3025, %v7312
  %7454 = vst.msk [vmem:[#allocation3 + $0x198] sm:$0xff] %vm3025, %v7314
  %7455 = vst.msk [vmem:[#allocation3 + $0x1a0] sm:$0xff] %vm3025, %v7316
  %7456 = vst.msk [vmem:[#allocation3 + $0x1a8] sm:$0xff] %vm3025, %v7318
  %7457 = vst.msk [vmem:[#allocation3 + $0x1b0] sm:$0xff] %vm3025, %v7320
  %7458 = vst.msk [vmem:[#allocation3 + $0x1b8] sm:$0xff] %vm3025, %v7322
  %7459 = vst.msk [vmem:[#allocation3 + $0x1c0] sm:$0xff] %vm3025, %v7324
  %7460 = vst.msk [vmem:[#allocation3 + $0x1c8] sm:$0xff] %vm3025, %v7326
  %7461 = vst.msk [vmem:[#allocation3 + $0x1d0] sm:$0xff] %vm3025, %v7328
  %7462 = vst.msk [vmem:[#allocation3 + $0x1d8] sm:$0xff] %vm3025, %v7330
  %7463 = vst.msk [vmem:[#allocation3 + $0x1e0] sm:$0xff] %vm3025, %v7332
  %7464 = vst.msk [vmem:[#allocation3 + $0x1e8] sm:$0xff] %vm3025, %v7334
  %7465 = vst.msk [vmem:[#allocation3 + $0x1f0] sm:$0xff] %vm3025, %v7336
  %7466 = vst.msk [vmem:[#allocation3 + $0x1f8] sm:$0xff] %vm3025, %v7338
  %v7467 = vld [vmem:[%s2319 + $0x2] sm:$0xff]
  %v7468 = vld [vmem:[%s2319 + $0xa] sm:$0xff]
  %v7469 = vld [vmem:[%s2319 + $0x1a] sm:$0xff]
  %v7470 = vld [vmem:[%s2319 + $0x22] sm:$0xff]
  %v7471 = vld [vmem:[%s2319 + $0x32] sm:$0xff]
  %v7472 = vld [vmem:[%s2319 + $0x3a] sm:$0xff]
  %v7473 = vld [vmem:[%s2319 + $0x4a] sm:$0xff]
  %v7474 = vld [vmem:[%s2319 + $0x52] sm:$0xff]
  %v7475 = vld [vmem:[%s2319 + $0x62] sm:$0xff]
  %v7476 = vld [vmem:[%s2319 + $0x6a] sm:$0xff]
  %v7477 = vld [vmem:[%s2319 + $0x7a] sm:$0xff]
  %v7478 = vld [vmem:[%s2319 + $0x82] sm:$0xff]
  %v7479 = vld [vmem:[%s2319 + $0x92] sm:$0xff]
  %v7480 = vld [vmem:[%s2319 + $0x9a] sm:$0xff]
  %v7481 = vld [vmem:[%s2319 + $0xaa] sm:$0xff]
  %v7482 = vld [vmem:[%s2319 + $0xb2] sm:$0xff]
  %v7483 = vld [vmem:[%s2319 + $0xc2] sm:$0xff]
  %v7484 = vld [vmem:[%s2319 + $0xca] sm:$0xff]
  %v7485 = vld [vmem:[%s2319 + $0xda] sm:$0xff]
  %v7486 = vld [vmem:[%s2319 + $0xe2] sm:$0xff]
  %v7487 = vld [vmem:[%s2319 + $0xf2] sm:$0xff]
  %v7488 = vld [vmem:[%s2319 + $0xfa] sm:$0xff]
  %v7489 = vld [vmem:[%s2319 + $0x10a] sm:$0xff]
  %v7490 = vld [vmem:[%s2319 + $0x112] sm:$0xff]
  %v7491 = vld [vmem:[%s2319 + $0x122] sm:$0xff]
  %v7492 = vld [vmem:[%s2319 + $0x12a] sm:$0xff]
  %v7493 = vld [vmem:[%s2319 + $0x13a] sm:$0xff]
  %v7494 = vld [vmem:[%s2319 + $0x142] sm:$0xff]
  %v7495 = vld [vmem:[%s2319 + $0x152] sm:$0xff]
  %v7496 = vld [vmem:[%s2319 + $0x15a] sm:$0xff]
  %v7497 = vld [vmem:[%s2319 + $0x16a] sm:$0xff]
  %v7498 = vld [vmem:[%s2319 + $0x172] sm:$0xff]
  %v7499 = vld [vmem:[%s2319 + $0x1b2] sm:$0xff]
  %v7500 = vld [vmem:[%s2319 + $0x1ba] sm:$0xff]
  %v7501 = vld [vmem:[%s2319 + $0x1ca] sm:$0xff]
  %v7502 = vld [vmem:[%s2319 + $0x1d2] sm:$0xff]
  %v7503 = vld [vmem:[%s2319 + $0x1e2] sm:$0xff]
  %v7504 = vld [vmem:[%s2319 + $0x1ea] sm:$0xff]
  %v7505 = vld [vmem:[%s2319 + $0x1fa] sm:$0xff]
  %v7506 = vld [vmem:[%s2319 + $0x202] sm:$0xff]
  %v7507 = vld [vmem:[%s2319 + $0x212] sm:$0xff]
  %v7508 = vld [vmem:[%s2319 + $0x21a] sm:$0xff]
  %v7509 = vld [vmem:[%s2319 + $0x22a] sm:$0xff]
  %v7510 = vld [vmem:[%s2319 + $0x232] sm:$0xff]
  %v7511 = vld [vmem:[%s2319 + $0x242] sm:$0xff]
  %v7512 = vld [vmem:[%s2319 + $0x24a] sm:$0xff]
  %v7513 = vld [vmem:[%s2319 + $0x25a] sm:$0xff]
  %v7514 = vld [vmem:[%s2319 + $0x262] sm:$0xff]
  %v7515 = vld [vmem:[%s2319 + $0x272] sm:$0xff]
  %v7516 = vld [vmem:[%s2319 + $0x27a] sm:$0xff]
  %v7517 = vld [vmem:[%s2319 + $0x28a] sm:$0xff]
  %v7518 = vld [vmem:[%s2319 + $0x292] sm:$0xff]
  %v7519 = vld [vmem:[%s2319 + $0x2a2] sm:$0xff]
  %v7520 = vld [vmem:[%s2319 + $0x2aa] sm:$0xff]
  %v7521 = vld [vmem:[%s2319 + $0x2ba] sm:$0xff]
  %v7522 = vld [vmem:[%s2319 + $0x2c2] sm:$0xff]
  %v7523 = vld [vmem:[%s2319 + $0x2d2] sm:$0xff]
  %v7524 = vld [vmem:[%s2319 + $0x2da] sm:$0xff]
  %v7525 = vld [vmem:[%s2319 + $0x2ea] sm:$0xff]
  %v7526 = vld [vmem:[%s2319 + $0x2f2] sm:$0xff]
  %v7527 = vld [vmem:[%s2319 + $0x302] sm:$0xff]
  %v7528 = vld [vmem:[%s2319 + $0x30a] sm:$0xff]
  %v7529 = vld [vmem:[%s2319 + $0x31a] sm:$0xff]
  %v7530 = vld [vmem:[%s2319 + $0x322] sm:$0xff]
  %7595 = vrot.lane.b32.xlu0 %v7467, 32
  %v7596 = vpop.permute.xlu0 %7595
  %7597 = vrot.lane.b32.xlu0 %v7468, 32
  %v7598 = vpop.permute.xlu0 %7597
  %7599 = vrot.lane.b32.xlu0 %v7469, 32
  %v7600 = vpop.permute.xlu0 %7599
  %7601 = vrot.lane.b32.xlu0 %v7470, 32
  %v7602 = vpop.permute.xlu0 %7601
  %7603 = vrot.lane.b32.xlu0 %v7471, 32
  %v7604 = vpop.permute.xlu0 %7603
  %7605 = vrot.lane.b32.xlu0 %v7472, 32
  %v7606 = vpop.permute.xlu0 %7605
  %7607 = vrot.lane.b32.xlu0 %v7473, 32
  %v7608 = vpop.permute.xlu0 %7607
  %7609 = vrot.lane.b32.xlu0 %v7474, 32
  %v7610 = vpop.permute.xlu0 %7609
  %7611 = vrot.lane.b32.xlu0 %v7475, 32
  %v7612 = vpop.permute.xlu0 %7611
  %7613 = vrot.lane.b32.xlu0 %v7476, 32
  %v7614 = vpop.permute.xlu0 %7613
  %7615 = vrot.lane.b32.xlu0 %v7477, 32
  %v7616 = vpop.permute.xlu0 %7615
  %7617 = vrot.lane.b32.xlu0 %v7478, 32
  %v7618 = vpop.permute.xlu0 %7617
  %7619 = vrot.lane.b32.xlu0 %v7479, 32
  %v7620 = vpop.permute.xlu0 %7619
  %7621 = vrot.lane.b32.xlu0 %v7480, 32
  %v7622 = vpop.permute.xlu0 %7621
  %7623 = vrot.lane.b32.xlu0 %v7481, 32
  %v7624 = vpop.permute.xlu0 %7623
  %7625 = vrot.lane.b32.xlu0 %v7482, 32
  %v7626 = vpop.permute.xlu0 %7625
  %7627 = vrot.lane.b32.xlu0 %v7483, 32
  %v7628 = vpop.permute.xlu0 %7627
  %7629 = vrot.lane.b32.xlu0 %v7484, 32
  %v7630 = vpop.permute.xlu0 %7629
  %7631 = vrot.lane.b32.xlu0 %v7485, 32
  %v7632 = vpop.permute.xlu0 %7631
  %7633 = vrot.lane.b32.xlu0 %v7486, 32
  %v7634 = vpop.permute.xlu0 %7633
  %7635 = vrot.lane.b32.xlu0 %v7487, 32
  %v7636 = vpop.permute.xlu0 %7635
  %7637 = vrot.lane.b32.xlu0 %v7488, 32
  %v7638 = vpop.permute.xlu0 %7637
  %7639 = vrot.lane.b32.xlu0 %v7489, 32
  %v7640 = vpop.permute.xlu0 %7639
  %7641 = vrot.lane.b32.xlu0 %v7490, 32
  %v7642 = vpop.permute.xlu0 %7641
  %7643 = vrot.lane.b32.xlu0 %v7491, 32
  %v7644 = vpop.permute.xlu0 %7643
  %7645 = vrot.lane.b32.xlu0 %v7492, 32
  %v7646 = vpop.permute.xlu0 %7645
  %7647 = vrot.lane.b32.xlu0 %v7493, 32
  %v7648 = vpop.permute.xlu0 %7647
  %7649 = vrot.lane.b32.xlu0 %v7494, 32
  %v7650 = vpop.permute.xlu0 %7649
  %7651 = vrot.lane.b32.xlu0 %v7495, 32
  %v7652 = vpop.permute.xlu0 %7651
  %7653 = vrot.lane.b32.xlu0 %v7496, 32
  %v7654 = vpop.permute.xlu0 %7653
  %7655 = vrot.lane.b32.xlu0 %v7497, 32
  %v7656 = vpop.permute.xlu0 %7655
  %7657 = vrot.lane.b32.xlu0 %v7498, 32
  %v7658 = vpop.permute.xlu0 %7657
  %7659 = vrot.lane.b32.xlu0 %v7499, 32
  %v7660 = vpop.permute.xlu0 %7659
  %7661 = vrot.lane.b32.xlu0 %v7500, 32
  %v7662 = vpop.permute.xlu0 %7661
  %7663 = vrot.lane.b32.xlu0 %v7501, 32
  %v7664 = vpop.permute.xlu0 %7663
  %7665 = vrot.lane.b32.xlu0 %v7502, 32
  %v7666 = vpop.permute.xlu0 %7665
  %7667 = vrot.lane.b32.xlu0 %v7503, 32
  %v7668 = vpop.permute.xlu0 %7667
  %7669 = vrot.lane.b32.xlu0 %v7504, 32
  %v7670 = vpop.permute.xlu0 %7669
  %7671 = vrot.lane.b32.xlu0 %v7505, 32
  %v7672 = vpop.permute.xlu0 %7671
  %7673 = vrot.lane.b32.xlu0 %v7506, 32
  %v7674 = vpop.permute.xlu0 %7673
  %7675 = vrot.lane.b32.xlu0 %v7507, 32
  %v7676 = vpop.permute.xlu0 %7675
  %7677 = vrot.lane.b32.xlu0 %v7508, 32
  %v7678 = vpop.permute.xlu0 %7677
  %7679 = vrot.lane.b32.xlu0 %v7509, 32
  %v7680 = vpop.permute.xlu0 %7679
  %7681 = vrot.lane.b32.xlu0 %v7510, 32
  %v7682 = vpop.permute.xlu0 %7681
  %7683 = vrot.lane.b32.xlu0 %v7511, 32
  %v7684 = vpop.permute.xlu0 %7683
  %7685 = vrot.lane.b32.xlu0 %v7512, 32
  %v7686 = vpop.permute.xlu0 %7685
  %7687 = vrot.lane.b32.xlu0 %v7513, 32
  %v7688 = vpop.permute.xlu0 %7687
  %7689 = vrot.lane.b32.xlu0 %v7514, 32
  %v7690 = vpop.permute.xlu0 %7689
  %7691 = vrot.lane.b32.xlu0 %v7515, 32
  %v7692 = vpop.permute.xlu0 %7691
  %7693 = vrot.lane.b32.xlu0 %v7516, 32
  %v7694 = vpop.permute.xlu0 %7693
  %7695 = vrot.lane.b32.xlu0 %v7517, 32
  %v7696 = vpop.permute.xlu0 %7695
  %7697 = vrot.lane.b32.xlu0 %v7518, 32
  %v7698 = vpop.permute.xlu0 %7697
  %7699 = vrot.lane.b32.xlu0 %v7519, 32
  %v7700 = vpop.permute.xlu0 %7699
  %7701 = vrot.lane.b32.xlu0 %v7520, 32
  %v7702 = vpop.permute.xlu0 %7701
  %7703 = vrot.lane.b32.xlu0 %v7521, 32
  %v7704 = vpop.permute.xlu0 %7703
  %7705 = vrot.lane.b32.xlu0 %v7522, 32
  %v7706 = vpop.permute.xlu0 %7705
  %7707 = vrot.lane.b32.xlu0 %v7523, 32
  %v7708 = vpop.permute.xlu0 %7707
  %7709 = vrot.lane.b32.xlu0 %v7524, 32
  %v7710 = vpop.permute.xlu0 %7709
  %7711 = vrot.lane.b32.xlu0 %v7525, 32
  %v7712 = vpop.permute.xlu0 %7711
  %7713 = vrot.lane.b32.xlu0 %v7526, 32
  %v7714 = vpop.permute.xlu0 %7713
  %7715 = vrot.lane.b32.xlu0 %v7527, 32
  %v7716 = vpop.permute.xlu0 %7715
  %7717 = vrot.lane.b32.xlu0 %v7528, 32
  %v7718 = vpop.permute.xlu0 %7717
  %7719 = vrot.lane.b32.xlu0 %v7529, 32
  %v7720 = vpop.permute.xlu0 %7719
  %7721 = vrot.lane.b32.xlu0 %v7530, 32
  %v7722 = vpop.permute.xlu0 %7721
  %7787 = vst.msk [vmem:[#allocation3] sm:$0xff] %vm3410, %v7596
  %7788 = vst.msk [vmem:[#allocation3 + $0x8] sm:$0xff] %vm3410, %v7598
  %7789 = vst.msk [vmem:[#allocation3 + $0x10] sm:$0xff] %vm3410, %v7600
  %7790 = vst.msk [vmem:[#allocation3 + $0x18] sm:$0xff] %vm3410, %v7602
  %7791 = vst.msk [vmem:[#allocation3 + $0x20] sm:$0xff] %vm3410, %v7604
  %7792 = vst.msk [vmem:[#allocation3 + $0x28] sm:$0xff] %vm3410, %v7606
  %7793 = vst.msk [vmem:[#allocation3 + $0x30] sm:$0xff] %vm3410, %v7608
  %7794 = vst.msk [vmem:[#allocation3 + $0x38] sm:$0xff] %vm3410, %v7610
  %7795 = vst.msk [vmem:[#allocation3 + $0x40] sm:$0xff] %vm3410, %v7612
  %7796 = vst.msk [vmem:[#allocation3 + $0x48] sm:$0xff] %vm3410, %v7614
  %7797 = vst.msk [vmem:[#allocation3 + $0x50] sm:$0xff] %vm3410, %v7616
  %7798 = vst.msk [vmem:[#allocation3 + $0x58] sm:$0xff] %vm3410, %v7618
  %7799 = vst.msk [vmem:[#allocation3 + $0x60] sm:$0xff] %vm3410, %v7620
  %7800 = vst.msk [vmem:[#allocation3 + $0x68] sm:$0xff] %vm3410, %v7622
  %7801 = vst.msk [vmem:[#allocation3 + $0x70] sm:$0xff] %vm3410, %v7624
  %7802 = vst.msk [vmem:[#allocation3 + $0x78] sm:$0xff] %vm3410, %v7626
  %7803 = vst.msk [vmem:[#allocation3 + $0x80] sm:$0xff] %vm3410, %v7628
  %7804 = vst.msk [vmem:[#allocation3 + $0x88] sm:$0xff] %vm3410, %v7630
  %7805 = vst.msk [vmem:[#allocation3 + $0x90] sm:$0xff] %vm3410, %v7632
  %7806 = vst.msk [vmem:[#allocation3 + $0x98] sm:$0xff] %vm3410, %v7634
  %7807 = vst.msk [vmem:[#allocation3 + $0xa0] sm:$0xff] %vm3410, %v7636
  %7808 = vst.msk [vmem:[#allocation3 + $0xa8] sm:$0xff] %vm3410, %v7638
  %7809 = vst.msk [vmem:[#allocation3 + $0xb0] sm:$0xff] %vm3410, %v7640
  %7810 = vst.msk [vmem:[#allocation3 + $0xb8] sm:$0xff] %vm3410, %v7642
  %7811 = vst.msk [vmem:[#allocation3 + $0xc0] sm:$0xff] %vm3410, %v7644
  %7812 = vst.msk [vmem:[#allocation3 + $0xc8] sm:$0xff] %vm3410, %v7646
  %7813 = vst.msk [vmem:[#allocation3 + $0xd0] sm:$0xff] %vm3410, %v7648
  %7814 = vst.msk [vmem:[#allocation3 + $0xd8] sm:$0xff] %vm3410, %v7650
  %7815 = vst.msk [vmem:[#allocation3 + $0xe0] sm:$0xff] %vm3410, %v7652
  %7816 = vst.msk [vmem:[#allocation3 + $0xe8] sm:$0xff] %vm3410, %v7654
  %7817 = vst.msk [vmem:[#allocation3 + $0xf0] sm:$0xff] %vm3410, %v7656
  %7818 = vst.msk [vmem:[#allocation3 + $0xf8] sm:$0xff] %vm3410, %v7658
  %7819 = vst.msk [vmem:[#allocation3 + $0x100] sm:$0xff] %vm3410, %v7660
  %7820 = vst.msk [vmem:[#allocation3 + $0x108] sm:$0xff] %vm3410, %v7662
  %7821 = vst.msk [vmem:[#allocation3 + $0x110] sm:$0xff] %vm3410, %v7664
  %7822 = vst.msk [vmem:[#allocation3 + $0x118] sm:$0xff] %vm3410, %v7666
  %7823 = vst.msk [vmem:[#allocation3 + $0x120] sm:$0xff] %vm3410, %v7668
  %7824 = vst.msk [vmem:[#allocation3 + $0x128] sm:$0xff] %vm3410, %v7670
  %7825 = vst.msk [vmem:[#allocation3 + $0x130] sm:$0xff] %vm3410, %v7672
  %7826 = vst.msk [vmem:[#allocation3 + $0x138] sm:$0xff] %vm3410, %v7674
  %7827 = vst.msk [vmem:[#allocation3 + $0x140] sm:$0xff] %vm3410, %v7676
  %7828 = vst.msk [vmem:[#allocation3 + $0x148] sm:$0xff] %vm3410, %v7678
  %7829 = vst.msk [vmem:[#allocation3 + $0x150] sm:$0xff] %vm3410, %v7680
  %7830 = vst.msk [vmem:[#allocation3 + $0x158] sm:$0xff] %vm3410, %v7682
  %7831 = vst.msk [vmem:[#allocation3 + $0x160] sm:$0xff] %vm3410, %v7684
  %7832 = vst.msk [vmem:[#allocation3 + $0x168] sm:$0xff] %vm3410, %v7686
  %7833 = vst.msk [vmem:[#allocation3 + $0x170] sm:$0xff] %vm3410, %v7688
  %7834 = vst.msk [vmem:[#allocation3 + $0x178] sm:$0xff] %vm3410, %v7690
  %7835 = vst.msk [vmem:[#allocation3 + $0x180] sm:$0xff] %vm3410, %v7692
  %7836 = vst.msk [vmem:[#allocation3 + $0x188] sm:$0xff] %vm3410, %v7694
  %7837 = vst.msk [vmem:[#allocation3 + $0x190] sm:$0xff] %vm3410, %v7696
  %7838 = vst.msk [vmem:[#allocation3 + $0x198] sm:$0xff] %vm3410, %v7698
  %7839 = vst.msk [vmem:[#allocation3 + $0x1a0] sm:$0xff] %vm3410, %v7700
  %7840 = vst.msk [vmem:[#allocation3 + $0x1a8] sm:$0xff] %vm3410, %v7702
  %7841 = vst.msk [vmem:[#allocation3 + $0x1b0] sm:$0xff] %vm3410, %v7704
  %7842 = vst.msk [vmem:[#allocation3 + $0x1b8] sm:$0xff] %vm3410, %v7706
  %7843 = vst.msk [vmem:[#allocation3 + $0x1c0] sm:$0xff] %vm3410, %v7708
  %7844 = vst.msk [vmem:[#allocation3 + $0x1c8] sm:$0xff] %vm3410, %v7710
  %7845 = vst.msk [vmem:[#allocation3 + $0x1d0] sm:$0xff] %vm3410, %v7712
  %7846 = vst.msk [vmem:[#allocation3 + $0x1d8] sm:$0xff] %vm3410, %v7714
  %7847 = vst.msk [vmem:[#allocation3 + $0x1e0] sm:$0xff] %vm3410, %v7716
  %7848 = vst.msk [vmem:[#allocation3 + $0x1e8] sm:$0xff] %vm3410, %v7718
  %7849 = vst.msk [vmem:[#allocation3 + $0x1f0] sm:$0xff] %vm3410, %v7720
  %7850 = vst.msk [vmem:[#allocation3 + $0x1f8] sm:$0xff] %vm3410, %v7722
  %v7851 = vld [vmem:[#allocation3] sm:$0xff]
  %v7852 = vld [vmem:[#allocation3 + $0x8] sm:$0xff]
  %v7853 = vld [vmem:[#allocation3 + $0x10] sm:$0xff]
  %v7854 = vld [vmem:[#allocation3 + $0x18] sm:$0xff]
  %v7855 = vld [vmem:[#allocation3 + $0x20] sm:$0xff]
  %v7856 = vld [vmem:[#allocation3 + $0x28] sm:$0xff]
  %v7857 = vld [vmem:[#allocation3 + $0x30] sm:$0xff]
  %v7858 = vld [vmem:[#allocation3 + $0x38] sm:$0xff]
  %v7859 = vld [vmem:[#allocation3 + $0x40] sm:$0xff]
  %v7860 = vld [vmem:[#allocation3 + $0x48] sm:$0xff]
  %v7861 = vld [vmem:[#allocation3 + $0x50] sm:$0xff]
  %v7862 = vld [vmem:[#allocation3 + $0x58] sm:$0xff]
  %v7863 = vld [vmem:[#allocation3 + $0x60] sm:$0xff]
  %v7864 = vld [vmem:[#allocation3 + $0x68] sm:$0xff]
  %v7865 = vld [vmem:[#allocation3 + $0x70] sm:$0xff]
  %v7866 = vld [vmem:[#allocation3 + $0x78] sm:$0xff]
  %v7867 = vld [vmem:[#allocation3 + $0x80] sm:$0xff]
  %v7868 = vld [vmem:[#allocation3 + $0x88] sm:$0xff]
  %v7869 = vld [vmem:[#allocation3 + $0x90] sm:$0xff]
  %v7870 = vld [vmem:[#allocation3 + $0x98] sm:$0xff]
  %v7871 = vld [vmem:[#allocation3 + $0xa0] sm:$0xff]
  %v7872 = vld [vmem:[#allocation3 + $0xa8] sm:$0xff]
  %v7873 = vld [vmem:[#allocation3 + $0xb0] sm:$0xff]
  %v7874 = vld [vmem:[#allocation3 + $0xb8] sm:$0xff]
  %v7875 = vld [vmem:[#allocation3 + $0xc0] sm:$0xff]
  %v7876 = vld [vmem:[#allocation3 + $0xc8] sm:$0xff]
  %v7877 = vld [vmem:[#allocation3 + $0xd0] sm:$0xff]
  %v7878 = vld [vmem:[#allocation3 + $0xd8] sm:$0xff]
  %v7879 = vld [vmem:[#allocation3 + $0xe0] sm:$0xff]
  %v7880 = vld [vmem:[#allocation3 + $0xe8] sm:$0xff]
  %v7881 = vld [vmem:[#allocation3 + $0xf0] sm:$0xff]
  %v7882 = vld [vmem:[#allocation3 + $0xf8] sm:$0xff]
  %v7883 = vld [vmem:[#allocation3 + $0x100] sm:$0xff]
  %v7884 = vld [vmem:[#allocation3 + $0x108] sm:$0xff]
  %v7885 = vld [vmem:[#allocation3 + $0x110] sm:$0xff]
  %v7886 = vld [vmem:[#allocation3 + $0x118] sm:$0xff]
  %v7887 = vld [vmem:[#allocation3 + $0x120] sm:$0xff]
  %v7888 = vld [vmem:[#allocation3 + $0x128] sm:$0xff]
  %v7889 = vld [vmem:[#allocation3 + $0x130] sm:$0xff]
  %v7890 = vld [vmem:[#allocation3 + $0x138] sm:$0xff]
  %v7891 = vld [vmem:[#allocation3 + $0x140] sm:$0xff]
  %v7892 = vld [vmem:[#allocation3 + $0x148] sm:$0xff]
  %v7893 = vld [vmem:[#allocation3 + $0x150] sm:$0xff]
  %v7894 = vld [vmem:[#allocation3 + $0x158] sm:$0xff]
  %v7895 = vld [vmem:[#allocation3 + $0x160] sm:$0xff]
  %v7896 = vld [vmem:[#allocation3 + $0x168] sm:$0xff]
  %v7897 = vld [vmem:[#allocation3 + $0x170] sm:$0xff]
  %v7898 = vld [vmem:[#allocation3 + $0x178] sm:$0xff]
  %v7899 = vld [vmem:[#allocation3 + $0x180] sm:$0xff]
  %v7900 = vld [vmem:[#allocation3 + $0x188] sm:$0xff]
  %v7901 = vld [vmem:[#allocation3 + $0x190] sm:$0xff]
  %v7902 = vld [vmem:[#allocation3 + $0x198] sm:$0xff]
  %v7903 = vld [vmem:[#allocation3 + $0x1a0] sm:$0xff]
  %v7904 = vld [vmem:[#allocation3 + $0x1a8] sm:$0xff]
  %v7905 = vld [vmem:[#allocation3 + $0x1b0] sm:$0xff]
  %v7906 = vld [vmem:[#allocation3 + $0x1b8] sm:$0xff]
  %v7907 = vld [vmem:[#allocation3 + $0x1c0] sm:$0xff]
  %v7908 = vld [vmem:[#allocation3 + $0x1c8] sm:$0xff]
  %v7909 = vld [vmem:[#allocation3 + $0x1d0] sm:$0xff]
  %v7910 = vld [vmem:[#allocation3 + $0x1d8] sm:$0xff]
  %v7911 = vld [vmem:[#allocation3 + $0x1e0] sm:$0xff]
  %v7912 = vld [vmem:[#allocation3 + $0x1e8] sm:$0xff]
  %v7913 = vld [vmem:[#allocation3 + $0x1f0] sm:$0xff]
  %v7914 = vld [vmem:[#allocation3 + $0x1f8] sm:$0xff]
  %v7915 = vpack.c.bf16 %v7852, %v7851
  %v7916 = vpack.c.bf16 %v7854, %v7853
  %v7917 = vpack.c.bf16 %v7856, %v7855
  %v7918 = vpack.c.bf16 %v7858, %v7857
  %v7919 = vpack.c.bf16 %v7860, %v7859
  %v7920 = vpack.c.bf16 %v7862, %v7861
  %v7921 = vpack.c.bf16 %v7864, %v7863
  %v7922 = vpack.c.bf16 %v7866, %v7865
  %v7923 = vpack.c.bf16 %v7868, %v7867
  %v7924 = vpack.c.bf16 %v7870, %v7869
  %v7925 = vpack.c.bf16 %v7872, %v7871
  %v7926 = vpack.c.bf16 %v7874, %v7873
  %v7927 = vpack.c.bf16 %v7876, %v7875
  %v7928 = vpack.c.bf16 %v7878, %v7877
  %v7929 = vpack.c.bf16 %v7880, %v7879
  %v7930 = vpack.c.bf16 %v7882, %v7881
  %v7931 = vpack.c.bf16 %v7884, %v7883
  %v7932 = vpack.c.bf16 %v7886, %v7885
  %v7933 = vpack.c.bf16 %v7888, %v7887
  %v7934 = vpack.c.bf16 %v7890, %v7889
  %v7935 = vpack.c.bf16 %v7892, %v7891
  %v7936 = vpack.c.bf16 %v7894, %v7893
  %v7937 = vpack.c.bf16 %v7896, %v7895
  %v7938 = vpack.c.bf16 %v7898, %v7897
  %v7939 = vpack.c.bf16 %v7900, %v7899
  %v7940 = vpack.c.bf16 %v7902, %v7901
  %v7941 = vpack.c.bf16 %v7904, %v7903
  %v7942 = vpack.c.bf16 %v7906, %v7905
  %v7943 = vpack.c.bf16 %v7908, %v7907
  %v7944 = vpack.c.bf16 %v7910, %v7909
  %v7945 = vpack.c.bf16 %v7912, %v7911
  %v7946 = vpack.c.bf16 %v7914, %v7913
  %v7947 = vld [vmem:[%s4] sm:$0xf]
  %v7948 = vld [vmem:[%s4 + $0x4] sm:$0xf]
  %v7949 = vld [vmem:[%s4 + $0x8] sm:$0xf]
  %v7950 = vld [vmem:[%s4 + $0xc] sm:$0xf]
  %v7951 = vld [vmem:[%s4 + $0x10] sm:$0x3]
  %v7957 = vunpack.c.l.b16 %v7947
  %v7958 = vunpack.c.l.b16 %v7948
  %v7959 = vunpack.c.l.b16 %v7949
  %v7960 = vunpack.c.l.b16 %v7950
  %v7961 = vunpack.c.l.b16 %v7951
  %v7962 = vpack.c.b16 %v7958, %v7957
  %v7963 = vpack.c.b16 %v7960, %v7959
  %v7964 = vpack.c.b16 %v7961, %v7961
  %v7968 = vsel %vm3591, %v7915, 0
  %v7971 = vsel %vm3591, %v7916, 0
  %v7974 = vsel %vm3591, %v7917, 0
  %v7977 = vsel %vm3591, %v7918, 0
  %v7980 = vsel %vm3591, %v7919, 0
  %v7983 = vsel %vm3591, %v7920, 0
  %v7986 = vsel %vm3591, %v7921, 0
  %v7989 = vsel %vm3591, %v7922, 0
  %v7992 = vsel %vm3591, %v7923, 0
  %v7995 = vsel %vm3591, %v7924, 0
  %v7998 = vsel %vm3591, %v7925, 0
  %v8001 = vsel %vm3591, %v7926, 0
  %v8004 = vsel %vm3591, %v7927, 0
  %v8007 = vsel %vm3591, %v7928, 0
  %v8010 = vsel %vm3591, %v7929, 0
  %v8013 = vsel %vm3591, %v7930, 0
  %v8016 = vsel %vm3591, %v7931, 0
  %v8019 = vsel %vm3591, %v7932, 0
  %v8022 = vsel %vm3591, %v7933, 0
  %v8025 = vsel %vm3591, %v7934, 0
  %v8028 = vsel %vm3591, %v7935, 0
  %v8031 = vsel %vm3591, %v7936, 0
  %v8034 = vsel %vm3591, %v7937, 0
  %v8037 = vsel %vm3591, %v7938, 0
  %v8040 = vsel %vm3591, %v7939, 0
  %v8043 = vsel %vm3591, %v7940, 0
  %v8046 = vsel %vm3591, %v7941, 0
  %v8049 = vsel %vm3591, %v7942, 0
  %v8052 = vsel %vm3591, %v7943, 0
  %v8055 = vsel %vm3591, %v7944, 0
  %v8058 = vsel %vm3591, %v7945, 0
  %v8061 = vsel %vm3591, %v7946, 0
  %v8064 = vsel %vm3688, %v7964, 0
  %8066 = vmatprep.subr.bf16.mxu0 0
  %8067 = vmatpush1.bf16.msra.mxu0 0
  %8068 = vmatprep.subr.bf16.mxu0 0
  %8069 = vmatpush1.bf16.msra.mxu0 0
  %8070 = vmatprep.subr.bf16.mxu0 0
  %8071 = vmatpush1.bf16.msra.mxu0 0
  %8072 = vmatprep.subr.bf16.mxu0 0
  %8073 = vmatpush1.bf16.msra.mxu0 0
  %8074 = vmatprep.subr.bf16.mxu0 0
  %8075 = vmatpush1.bf16.msra.mxu0 0
  %8076 = vmatprep.subr.bf16.mxu0 0
  %8077 = vmatpush1.bf16.msra.mxu0 %v8064
  %8078 = vmatprep.subr.bf16.mxu0 0
  %8079 = vmatpush1.bf16.msra.mxu0 %v7963
  %8080 = vmatprep.subr.bf16.mxu0 0
  %8081 = vmatpush1.bf16.msra.mxu0 %v7962
  %8082 = vmatprep.subr.bf16.mxu0 0
  %8083 = vmatpush2.bf16.msra.mxu0 0
  %8084 = vmatprep.subr.bf16.mxu0 0
  %8085 = vmatpush2.bf16.msra.mxu0 0
  %8086 = vmatprep.subr.bf16.mxu0 0
  %8087 = vmatpush2.bf16.msra.mxu0 0
  %8088 = vmatprep.subr.bf16.mxu0 0
  %8089 = vmatpush2.bf16.msra.mxu0 0
  %8090 = vmatprep.subr.bf16.mxu0 0
  %8091 = vmatpush2.bf16.msra.mxu0 0
  %8092 = vmatprep.subr.bf16.mxu0 0
  %8093 = vmatpush2.bf16.msra.mxu0 0
  %8094 = vmatprep.subr.bf16.mxu0 0
  %8095 = vmatpush2.bf16.msra.mxu0 0
  %8096 = vmatprep.subr.bf16.mxu0 0
  %8097 = vmatpush2.bf16.msra.mxu0 0
  %8098 = vmatprep.mubr.bf16.mxu0 0
  %8099 = vmatmul.mubr.bf16.gmra.mxu0 %v7968
  %v8100 = vpop.f32.mrf.mxu0
  %v8101 = vadd.f32 0.0, %v8100
  %v8102 = vpop.f32.mrf.mxu0
  %v8103 = vpop.f32.mrf.mxu0
  %v8104 = vadd.f32 0.0, %v8103
  %v8105 = vpop.f32.mrf.mxu0
  %8106 = vmatprep.mubr.bf16.mxu0 0
  %8107 = vmatmul.mubr.bf16.gmra.mxu0 %v7971
  %v8108 = vpop.f32.mrf.mxu0
  %v8109 = vadd.f32 0.0, %v8108
  %v8110 = vpop.f32.mrf.mxu0
  %v8111 = vpop.f32.mrf.mxu0
  %v8112 = vadd.f32 0.0, %v8111
  %v8113 = vpop.f32.mrf.mxu0
  %8114 = vmatprep.mubr.bf16.mxu0 0
  %8115 = vmatmul.mubr.bf16.gmra.mxu0 %v7974
  %v8116 = vpop.f32.mrf.mxu0
  %v8117 = vadd.f32 0.0, %v8116
  %v8118 = vpop.f32.mrf.mxu0
  %v8119 = vpop.f32.mrf.mxu0
  %v8120 = vadd.f32 0.0, %v8119
  %v8121 = vpop.f32.mrf.mxu0
  %8122 = vmatprep.mubr.bf16.mxu0 0
  %8123 = vmatmul.mubr.bf16.gmra.mxu0 %v7977
  %v8124 = vpop.f32.mrf.mxu0
  %v8125 = vadd.f32 0.0, %v8124
  %v8126 = vpop.f32.mrf.mxu0
  %v8127 = vpop.f32.mrf.mxu0
  %v8128 = vadd.f32 0.0, %v8127
  %v8129 = vpop.f32.mrf.mxu0
  %8130 = vmatprep.mubr.bf16.mxu0 0
  %8131 = vmatmul.mubr.bf16.gmra.mxu0 %v7980
  %v8132 = vpop.f32.mrf.mxu0
  %v8133 = vadd.f32 0.0, %v8132
  %v8134 = vpop.f32.mrf.mxu0
  %v8135 = vpop.f32.mrf.mxu0
  %v8136 = vadd.f32 0.0, %v8135
  %v8137 = vpop.f32.mrf.mxu0
  %8138 = vmatprep.mubr.bf16.mxu0 0
  %8139 = vmatmul.mubr.bf16.gmra.mxu0 %v7983
  %v8140 = vpop.f32.mrf.mxu0
  %v8141 = vadd.f32 0.0, %v8140
  %v8142 = vpop.f32.mrf.mxu0
  %v8143 = vpop.f32.mrf.mxu0
  %v8144 = vadd.f32 0.0, %v8143
  %v8145 = vpop.f32.mrf.mxu0
  %8146 = vmatprep.mubr.bf16.mxu0 0
  %8147 = vmatmul.mubr.bf16.gmra.mxu0 %v7986
  %v8148 = vpop.f32.mrf.mxu0
  %v8149 = vadd.f32 0.0, %v8148
  %v8150 = vpop.f32.mrf.mxu0
  %v8151 = vpop.f32.mrf.mxu0
  %v8152 = vadd.f32 0.0, %v8151
  %v8153 = vpop.f32.mrf.mxu0
  %8154 = vmatprep.mubr.bf16.mxu0 0
  %8155 = vmatmul.mubr.bf16.gmra.mxu0 %v7989
  %v8156 = vpop.f32.mrf.mxu0
  %v8157 = vadd.f32 0.0, %v8156
  %v8158 = vpop.f32.mrf.mxu0
  %v8159 = vpop.f32.mrf.mxu0
  %v8160 = vadd.f32 0.0, %v8159
  %v8161 = vpop.f32.mrf.mxu0
  %8162 = vmatprep.mubr.bf16.mxu0 0
  %8163 = vmatmul.mubr.bf16.gmra.mxu0 %v7992
  %v8164 = vpop.f32.mrf.mxu0
  %v8165 = vadd.f32 0.0, %v8164
  %v8166 = vpop.f32.mrf.mxu0
  %v8167 = vpop.f32.mrf.mxu0
  %v8168 = vadd.f32 0.0, %v8167
  %v8169 = vpop.f32.mrf.mxu0
  %8170 = vmatprep.mubr.bf16.mxu0 0
  %8171 = vmatmul.mubr.bf16.gmra.mxu0 %v7995
  %v8172 = vpop.f32.mrf.mxu0
  %v8173 = vadd.f32 0.0, %v8172
  %v8174 = vpop.f32.mrf.mxu0
  %v8175 = vpop.f32.mrf.mxu0
  %v8176 = vadd.f32 0.0, %v8175
  %v8177 = vpop.f32.mrf.mxu0
  %8178 = vmatprep.mubr.bf16.mxu0 0
  %8179 = vmatmul.mubr.bf16.gmra.mxu0 %v7998
  %v8180 = vpop.f32.mrf.mxu0
  %v8181 = vadd.f32 0.0, %v8180
  %v8182 = vpop.f32.mrf.mxu0
  %v8183 = vpop.f32.mrf.mxu0
  %v8184 = vadd.f32 0.0, %v8183
  %v8185 = vpop.f32.mrf.mxu0
  %8186 = vmatprep.mubr.bf16.mxu0 0
  %8187 = vmatmul.mubr.bf16.gmra.mxu0 %v8001
  %v8188 = vpop.f32.mrf.mxu0
  %v8189 = vadd.f32 0.0, %v8188
  %v8190 = vpop.f32.mrf.mxu0
  %v8191 = vpop.f32.mrf.mxu0
  %v8192 = vadd.f32 0.0, %v8191
  %v8193 = vpop.f32.mrf.mxu0
  %8194 = vmatprep.mubr.bf16.mxu0 0
  %8195 = vmatmul.mubr.bf16.gmra.mxu0 %v8004
  %v8196 = vpop.f32.mrf.mxu0
  %v8197 = vadd.f32 0.0, %v8196
  %v8198 = vpop.f32.mrf.mxu0
  %v8199 = vpop.f32.mrf.mxu0
  %v8200 = vadd.f32 0.0, %v8199
  %v8201 = vpop.f32.mrf.mxu0
  %8202 = vmatprep.mubr.bf16.mxu0 0
  %8203 = vmatmul.mubr.bf16.gmra.mxu0 %v8007
  %v8204 = vpop.f32.mrf.mxu0
  %v8205 = vadd.f32 0.0, %v8204
  %v8206 = vpop.f32.mrf.mxu0
  %v8207 = vpop.f32.mrf.mxu0
  %v8208 = vadd.f32 0.0, %v8207
  %v8209 = vpop.f32.mrf.mxu0
  %8210 = vmatprep.mubr.bf16.mxu0 0
  %8211 = vmatmul.mubr.bf16.gmra.mxu0 %v8010
  %v8212 = vpop.f32.mrf.mxu0
  %v8213 = vadd.f32 0.0, %v8212
  %v8214 = vpop.f32.mrf.mxu0
  %v8215 = vpop.f32.mrf.mxu0
  %v8216 = vadd.f32 0.0, %v8215
  %v8217 = vpop.f32.mrf.mxu0
  %8218 = vmatprep.mubr.bf16.mxu0 0
  %8219 = vmatmul.mubr.bf16.gmra.mxu0 %v8013
  %v8220 = vpop.f32.mrf.mxu0
  %v8221 = vadd.f32 0.0, %v8220
  %v8222 = vpop.f32.mrf.mxu0
  %v8223 = vpop.f32.mrf.mxu0
  %v8224 = vadd.f32 0.0, %v8223
  %v8225 = vpop.f32.mrf.mxu0
  %8226 = vmatprep.mubr.bf16.mxu0 0
  %8227 = vmatmul.mubr.bf16.gmra.mxu0 %v8016
  %v8228 = vpop.f32.mrf.mxu0
  %v8229 = vadd.f32 0.0, %v8228
  %v8230 = vpop.f32.mrf.mxu0
  %v8231 = vpop.f32.mrf.mxu0
  %v8232 = vadd.f32 0.0, %v8231
  %v8233 = vpop.f32.mrf.mxu0
  %8234 = vmatprep.mubr.bf16.mxu0 0
  %8235 = vmatmul.mubr.bf16.gmra.mxu0 %v8019
  %v8236 = vpop.f32.mrf.mxu0
  %v8237 = vadd.f32 0.0, %v8236
  %v8238 = vpop.f32.mrf.mxu0
  %v8239 = vpop.f32.mrf.mxu0
  %v8240 = vadd.f32 0.0, %v8239
  %v8241 = vpop.f32.mrf.mxu0
  %8242 = vmatprep.mubr.bf16.mxu0 0
  %8243 = vmatmul.mubr.bf16.gmra.mxu0 %v8022
  %v8244 = vpop.f32.mrf.mxu0
  %v8245 = vadd.f32 0.0, %v8244
  %v8246 = vpop.f32.mrf.mxu0
  %v8247 = vpop.f32.mrf.mxu0
  %v8248 = vadd.f32 0.0, %v8247
  %v8249 = vpop.f32.mrf.mxu0
  %8250 = vmatprep.mubr.bf16.mxu0 0
  %8251 = vmatmul.mubr.bf16.gmra.mxu0 %v8025
  %v8252 = vpop.f32.mrf.mxu0
  %v8253 = vadd.f32 0.0, %v8252
  %v8254 = vpop.f32.mrf.mxu0
  %v8255 = vpop.f32.mrf.mxu0
  %v8256 = vadd.f32 0.0, %v8255
  %v8257 = vpop.f32.mrf.mxu0
  %8258 = vmatprep.mubr.bf16.mxu0 0
  %8259 = vmatmul.mubr.bf16.gmra.mxu0 %v8028
  %v8260 = vpop.f32.mrf.mxu0
  %v8261 = vadd.f32 0.0, %v8260
  %v8262 = vpop.f32.mrf.mxu0
  %v8263 = vpop.f32.mrf.mxu0
  %v8264 = vadd.f32 0.0, %v8263
  %v8265 = vpop.f32.mrf.mxu0
  %8266 = vmatprep.mubr.bf16.mxu0 0
  %8267 = vmatmul.mubr.bf16.gmra.mxu0 %v8031
  %v8268 = vpop.f32.mrf.mxu0
  %v8269 = vadd.f32 0.0, %v8268
  %v8270 = vpop.f32.mrf.mxu0
  %v8271 = vpop.f32.mrf.mxu0
  %v8272 = vadd.f32 0.0, %v8271
  %v8273 = vpop.f32.mrf.mxu0
  %8274 = vmatprep.mubr.bf16.mxu0 0
  %8275 = vmatmul.mubr.bf16.gmra.mxu0 %v8034
  %v8276 = vpop.f32.mrf.mxu0
  %v8277 = vadd.f32 0.0, %v8276
  %v8278 = vpop.f32.mrf.mxu0
  %v8279 = vpop.f32.mrf.mxu0
  %v8280 = vadd.f32 0.0, %v8279
  %v8281 = vpop.f32.mrf.mxu0
  %8282 = vmatprep.mubr.bf16.mxu0 0
  %8283 = vmatmul.mubr.bf16.gmra.mxu0 %v8037
  %v8284 = vpop.f32.mrf.mxu0
  %v8285 = vadd.f32 0.0, %v8284
  %v8286 = vpop.f32.mrf.mxu0
  %v8287 = vpop.f32.mrf.mxu0
  %v8288 = vadd.f32 0.0, %v8287
  %v8289 = vpop.f32.mrf.mxu0
  %8290 = vmatprep.mubr.bf16.mxu0 0
  %8291 = vmatmul.mubr.bf16.gmra.mxu0 %v8040
  %v8292 = vpop.f32.mrf.mxu0
  %v8293 = vadd.f32 0.0, %v8292
  %v8294 = vpop.f32.mrf.mxu0
  %v8295 = vpop.f32.mrf.mxu0
  %v8296 = vadd.f32 0.0, %v8295
  %v8297 = vpop.f32.mrf.mxu0
  %8298 = vmatprep.mubr.bf16.mxu0 0
  %8299 = vmatmul.mubr.bf16.gmra.mxu0 %v8043
  %v8300 = vpop.f32.mrf.mxu0
  %v8301 = vadd.f32 0.0, %v8300
  %v8302 = vpop.f32.mrf.mxu0
  %v8303 = vpop.f32.mrf.mxu0
  %v8304 = vadd.f32 0.0, %v8303
  %v8305 = vpop.f32.mrf.mxu0
  %8306 = vmatprep.mubr.bf16.mxu0 0
  %8307 = vmatmul.mubr.bf16.gmra.mxu0 %v8046
  %v8308 = vpop.f32.mrf.mxu0
  %v8309 = vadd.f32 0.0, %v8308
  %v8310 = vpop.f32.mrf.mxu0
  %v8311 = vpop.f32.mrf.mxu0
  %v8312 = vadd.f32 0.0, %v8311
  %v8313 = vpop.f32.mrf.mxu0
  %8314 = vmatprep.mubr.bf16.mxu0 0
  %8315 = vmatmul.mubr.bf16.gmra.mxu0 %v8049
  %v8316 = vpop.f32.mrf.mxu0
  %v8317 = vadd.f32 0.0, %v8316
  %v8318 = vpop.f32.mrf.mxu0
  %v8319 = vpop.f32.mrf.mxu0
  %v8320 = vadd.f32 0.0, %v8319
  %v8321 = vpop.f32.mrf.mxu0
  %8322 = vmatprep.mubr.bf16.mxu0 0
  %8323 = vmatmul.mubr.bf16.gmra.mxu0 %v8052
  %v8324 = vpop.f32.mrf.mxu0
  %v8325 = vadd.f32 0.0, %v8324
  %v8326 = vpop.f32.mrf.mxu0
  %v8327 = vpop.f32.mrf.mxu0
  %v8328 = vadd.f32 0.0, %v8327
  %v8329 = vpop.f32.mrf.mxu0
  %8330 = vmatprep.mubr.bf16.mxu0 0
  %8331 = vmatmul.mubr.bf16.gmra.mxu0 %v8055
  %v8332 = vpop.f32.mrf.mxu0
  %v8333 = vadd.f32 0.0, %v8332
  %v8334 = vpop.f32.mrf.mxu0
  %v8335 = vpop.f32.mrf.mxu0
  %v8336 = vadd.f32 0.0, %v8335
  %v8337 = vpop.f32.mrf.mxu0
  %8338 = vmatprep.mubr.bf16.mxu0 0
  %8339 = vmatmul.mubr.bf16.gmra.mxu0 %v8058
  %v8340 = vpop.f32.mrf.mxu0
  %v8341 = vadd.f32 0.0, %v8340
  %v8342 = vpop.f32.mrf.mxu0
  %v8343 = vpop.f32.mrf.mxu0
  %v8344 = vadd.f32 0.0, %v8343
  %v8345 = vpop.f32.mrf.mxu0
  %8346 = vmatprep.mubr.bf16.mxu0 0
  %8347 = vmatmul.mubr.bf16.gmra.mxu0 %v8061
  %v8348 = vpop.f32.mrf.mxu0
  %v8349 = vadd.f32 0.0, %v8348
  %v8350 = vpop.f32.mrf.mxu0
  %v8351 = vpop.f32.mrf.mxu0
  %v8352 = vadd.f32 0.0, %v8351
  %v8353 = vpop.f32.mrf.mxu0
  %8354 = vdwg.mxu0
  %v8355 = vld [vmem:[%s5] sm:$0x1]
  %v8356 = vld [vmem:[%s6] sm:$0x1]
  %v8357 = vsel %vm27, %v8101, 0.0
  %v8358 = vsel %vm27, %v8104, 0.0
  %v8359 = vadd.f32 %v8357, %v8358
  %v8360 = vsel %vm27, %v8109, 0.0
  %v8361 = vadd.f32 %v8359, %v8360
  %v8362 = vsel %vm27, %v8112, 0.0
  %v8363 = vadd.f32 %v8361, %v8362
  %v8364 = vsel %vm27, %v8117, 0.0
  %v8365 = vadd.f32 %v8363, %v8364
  %v8366 = vsel %vm27, %v8120, 0.0
  %v8367 = vadd.f32 %v8365, %v8366
  %v8368 = vsel %vm27, %v8125, 0.0
  %v8369 = vadd.f32 %v8367, %v8368
  %v8370 = vsel %vm27, %v8128, 0.0
  %v8371 = vadd.f32 %v8369, %v8370
  %v8372 = vsel %vm27, %v8133, 0.0
  %v8373 = vadd.f32 %v8371, %v8372
  %v8374 = vsel %vm27, %v8136, 0.0
  %v8375 = vadd.f32 %v8373, %v8374
  %v8376 = vsel %vm27, %v8141, 0.0
  %v8377 = vadd.f32 %v8375, %v8376
  %v8378 = vsel %vm27, %v8144, 0.0
  %v8379 = vadd.f32 %v8377, %v8378
  %v8380 = vsel %vm27, %v8149, 0.0
  %v8381 = vadd.f32 %v8379, %v8380
  %v8382 = vsel %vm27, %v8152, 0.0
  %v8383 = vadd.f32 %v8381, %v8382
  %v8384 = vsel %vm27, %v8157, 0.0
  %v8385 = vadd.f32 %v8383, %v8384
  %v8386 = vsel %vm27, %v8160, 0.0
  %v8387 = vadd.f32 %v8385, %v8386
  %v8388 = vsel %vm27, %v8165, 0.0
  %v8389 = vadd.f32 %v8387, %v8388
  %v8390 = vsel %vm27, %v8168, 0.0
  %v8391 = vadd.f32 %v8389, %v8390
  %v8392 = vsel %vm27, %v8173, 0.0
  %v8393 = vadd.f32 %v8391, %v8392
  %v8394 = vsel %vm27, %v8176, 0.0
  %v8395 = vadd.f32 %v8393, %v8394
  %v8396 = vsel %vm27, %v8181, 0.0
  %v8397 = vadd.f32 %v8395, %v8396
  %v8398 = vsel %vm27, %v8184, 0.0
  %v8399 = vadd.f32 %v8397, %v8398
  %v8400 = vsel %vm27, %v8189, 0.0
  %v8401 = vadd.f32 %v8399, %v8400
  %v8402 = vsel %vm27, %v8192, 0.0
  %v8403 = vadd.f32 %v8401, %v8402
  %v8404 = vsel %vm27, %v8197, 0.0
  %v8405 = vadd.f32 %v8403, %v8404
  %v8406 = vsel %vm27, %v8200, 0.0
  %v8407 = vadd.f32 %v8405, %v8406
  %v8408 = vsel %vm27, %v8205, 0.0
  %v8409 = vadd.f32 %v8407, %v8408
  %v8410 = vsel %vm27, %v8208, 0.0
  %v8411 = vadd.f32 %v8409, %v8410
  %v8412 = vsel %vm27, %v8213, 0.0
  %v8413 = vadd.f32 %v8411, %v8412
  %v8414 = vsel %vm27, %v8216, 0.0
  %v8415 = vadd.f32 %v8413, %v8414
  %v8416 = vsel %vm27, %v8221, 0.0
  %v8417 = vadd.f32 %v8415, %v8416
  %v8418 = vsel %vm27, %v8224, 0.0
  %v8419 = vadd.f32 %v8417, %v8418
  %v8420 = vsel %vm27, %v8229, 0.0
  %v8421 = vadd.f32 %v8419, %v8420
  %v8422 = vsel %vm27, %v8232, 0.0
  %v8423 = vadd.f32 %v8421, %v8422
  %v8424 = vsel %vm27, %v8237, 0.0
  %v8425 = vadd.f32 %v8423, %v8424
  %v8426 = vsel %vm27, %v8240, 0.0
  %v8427 = vadd.f32 %v8425, %v8426
  %v8428 = vsel %vm27, %v8245, 0.0
  %v8429 = vadd.f32 %v8427, %v8428
  %v8430 = vsel %vm27, %v8248, 0.0
  %v8431 = vadd.f32 %v8429, %v8430
  %v8432 = vsel %vm27, %v8253, 0.0
  %v8433 = vadd.f32 %v8431, %v8432
  %v8434 = vsel %vm27, %v8256, 0.0
  %v8435 = vadd.f32 %v8433, %v8434
  %v8436 = vsel %vm27, %v8261, 0.0
  %v8437 = vadd.f32 %v8435, %v8436
  %v8438 = vsel %vm27, %v8264, 0.0
  %v8439 = vadd.f32 %v8437, %v8438
  %v8440 = vsel %vm27, %v8269, 0.0
  %v8441 = vadd.f32 %v8439, %v8440
  %v8442 = vsel %vm27, %v8272, 0.0
  %v8443 = vadd.f32 %v8441, %v8442
  %v8444 = vsel %vm27, %v8277, 0.0
  %v8445 = vadd.f32 %v8443, %v8444
  %v8446 = vsel %vm27, %v8280, 0.0
  %v8447 = vadd.f32 %v8445, %v8446
  %v8448 = vsel %vm27, %v8285, 0.0
  %v8449 = vadd.f32 %v8447, %v8448
  %v8450 = vsel %vm27, %v8288, 0.0
  %v8451 = vadd.f32 %v8449, %v8450
  %v8452 = vsel %vm27, %v8293, 0.0
  %v8453 = vadd.f32 %v8451, %v8452
  %v8454 = vsel %vm27, %v8296, 0.0
  %v8455 = vadd.f32 %v8453, %v8454
  %v8456 = vsel %vm27, %v8301, 0.0
  %v8457 = vadd.f32 %v8455, %v8456
  %v8458 = vsel %vm27, %v8304, 0.0
  %v8459 = vadd.f32 %v8457, %v8458
  %v8460 = vsel %vm27, %v8309, 0.0
  %v8461 = vadd.f32 %v8459, %v8460
  %v8462 = vsel %vm27, %v8312, 0.0
  %v8463 = vadd.f32 %v8461, %v8462
  %v8464 = vsel %vm27, %v8317, 0.0
  %v8465 = vadd.f32 %v8463, %v8464
  %v8466 = vsel %vm27, %v8320, 0.0
  %v8467 = vadd.f32 %v8465, %v8466
  %v8468 = vsel %vm27, %v8325, 0.0
  %v8469 = vadd.f32 %v8467, %v8468
  %v8470 = vsel %vm27, %v8328, 0.0
  %v8471 = vadd.f32 %v8469, %v8470
  %v8472 = vsel %vm27, %v8333, 0.0
  %v8473 = vadd.f32 %v8471, %v8472
  %v8474 = vsel %vm27, %v8336, 0.0
  %v8475 = vadd.f32 %v8473, %v8474
  %v8476 = vsel %vm27, %v8341, 0.0
  %v8477 = vadd.f32 %v8475, %v8476
  %v8478 = vsel %vm27, %v8344, 0.0
  %v8479 = vadd.f32 %v8477, %v8478
  %v8480 = vsel %vm27, %v8349, 0.0
  %v8481 = vadd.f32 %v8479, %v8480
  %v8482 = vsel %vm27, %v8352, 0.0
  %v8483 = vadd.f32 %v8481, %v8482
  %v8484 = vrot.slane %v8483, 4
  %v8485 = vadd.f32 %v8483, %v8484
  %v8486 = vrot.slane %v8485, 2
  %v8487 = vadd.f32 %v8485, %v8486
  %v8488 = vrot.slane %v8487, 1
  %v8489 = vadd.f32 %v8487, %v8488
  %v8490 = vmul.f32 %v8489, %v4116
  %v8491 = vsub.f32 %v8101, %v8490
  %v8492 = vsub.f32 %v8104, %v8490
  %v8493 = vsub.f32 %v8109, %v8490
  %v8494 = vsub.f32 %v8112, %v8490
  %v8495 = vsub.f32 %v8117, %v8490
  %v8496 = vsub.f32 %v8120, %v8490
  %v8497 = vsub.f32 %v8125, %v8490
  %v8498 = vsub.f32 %v8128, %v8490
  %v8499 = vsub.f32 %v8133, %v8490
  %v8500 = vsub.f32 %v8136, %v8490
  %v8501 = vsub.f32 %v8141, %v8490
  %v8502 = vsub.f32 %v8144, %v8490
  %v8503 = vsub.f32 %v8149, %v8490
  %v8504 = vsub.f32 %v8152, %v8490
  %v8505 = vsub.f32 %v8157, %v8490
  %v8506 = vsub.f32 %v8160, %v8490
  %v8507 = vsub.f32 %v8165, %v8490
  %v8508 = vsub.f32 %v8168, %v8490
  %v8509 = vsub.f32 %v8173, %v8490
  %v8510 = vsub.f32 %v8176, %v8490
  %v8511 = vsub.f32 %v8181, %v8490
  %v8512 = vsub.f32 %v8184, %v8490
  %v8513 = vsub.f32 %v8189, %v8490
  %v8514 = vsub.f32 %v8192, %v8490
  %v8515 = vsub.f32 %v8197, %v8490
  %v8516 = vsub.f32 %v8200, %v8490
  %v8517 = vsub.f32 %v8205, %v8490
  %v8518 = vsub.f32 %v8208, %v8490
  %v8519 = vsub.f32 %v8213, %v8490
  %v8520 = vsub.f32 %v8216, %v8490
  %v8521 = vsub.f32 %v8221, %v8490
  %v8522 = vsub.f32 %v8224, %v8490
  %v8523 = vsub.f32 %v8229, %v8490
  %v8524 = vsub.f32 %v8232, %v8490
  %v8525 = vsub.f32 %v8237, %v8490
  %v8526 = vsub.f32 %v8240, %v8490
  %v8527 = vsub.f32 %v8245, %v8490
  %v8528 = vsub.f32 %v8248, %v8490
  %v8529 = vsub.f32 %v8253, %v8490
  %v8530 = vsub.f32 %v8256, %v8490
  %v8531 = vsub.f32 %v8261, %v8490
  %v8532 = vsub.f32 %v8264, %v8490
  %v8533 = vsub.f32 %v8269, %v8490
  %v8534 = vsub.f32 %v8272, %v8490
  %v8535 = vsub.f32 %v8277, %v8490
  %v8536 = vsub.f32 %v8280, %v8490
  %v8537 = vsub.f32 %v8285, %v8490
  %v8538 = vsub.f32 %v8288, %v8490
  %v8539 = vsub.f32 %v8293, %v8490
  %v8540 = vsub.f32 %v8296, %v8490
  %v8541 = vsub.f32 %v8301, %v8490
  %v8542 = vsub.f32 %v8304, %v8490
  %v8543 = vsub.f32 %v8309, %v8490
  %v8544 = vsub.f32 %v8312, %v8490
  %v8545 = vsub.f32 %v8317, %v8490
  %v8546 = vsub.f32 %v8320, %v8490
  %v8547 = vsub.f32 %v8325, %v8490
  %v8548 = vsub.f32 %v8328, %v8490
  %v8549 = vsub.f32 %v8333, %v8490
  %v8550 = vsub.f32 %v8336, %v8490
  %v8551 = vsub.f32 %v8341, %v8490
  %v8552 = vsub.f32 %v8344, %v8490
  %v8553 = vsub.f32 %v8349, %v8490
  %v8554 = vsub.f32 %v8352, %v8490
  %v8555 = vmul.f32 %v8491, %v8491
  %v8556 = vmul.f32 %v8492, %v8492
  %v8557 = vmul.f32 %v8493, %v8493
  %v8558 = vmul.f32 %v8494, %v8494
  %v8559 = vmul.f32 %v8495, %v8495
  %v8560 = vmul.f32 %v8496, %v8496
  %v8561 = vmul.f32 %v8497, %v8497
  %v8562 = vmul.f32 %v8498, %v8498
  %v8563 = vmul.f32 %v8499, %v8499
  %v8564 = vmul.f32 %v8500, %v8500
  %v8565 = vmul.f32 %v8501, %v8501
  %v8566 = vmul.f32 %v8502, %v8502
  %v8567 = vmul.f32 %v8503, %v8503
  %v8568 = vmul.f32 %v8504, %v8504
  %v8569 = vmul.f32 %v8505, %v8505
  %v8570 = vmul.f32 %v8506, %v8506
  %v8571 = vmul.f32 %v8507, %v8507
  %v8572 = vmul.f32 %v8508, %v8508
  %v8573 = vmul.f32 %v8509, %v8509
  %v8574 = vmul.f32 %v8510, %v8510
  %v8575 = vmul.f32 %v8511, %v8511
  %v8576 = vmul.f32 %v8512, %v8512
  %v8577 = vmul.f32 %v8513, %v8513
  %v8578 = vmul.f32 %v8514, %v8514
  %v8579 = vmul.f32 %v8515, %v8515
  %v8580 = vmul.f32 %v8516, %v8516
  %v8581 = vmul.f32 %v8517, %v8517
  %v8582 = vmul.f32 %v8518, %v8518
  %v8583 = vmul.f32 %v8519, %v8519
  %v8584 = vmul.f32 %v8520, %v8520
  %v8585 = vmul.f32 %v8521, %v8521
  %v8586 = vmul.f32 %v8522, %v8522
  %v8587 = vmul.f32 %v8523, %v8523
  %v8588 = vmul.f32 %v8524, %v8524
  %v8589 = vmul.f32 %v8525, %v8525
  %v8590 = vmul.f32 %v8526, %v8526
  %v8591 = vmul.f32 %v8527, %v8527
  %v8592 = vmul.f32 %v8528, %v8528
  %v8593 = vmul.f32 %v8529, %v8529
  %v8594 = vmul.f32 %v8530, %v8530
  %v8595 = vmul.f32 %v8531, %v8531
  %v8596 = vmul.f32 %v8532, %v8532
  %v8597 = vmul.f32 %v8533, %v8533
  %v8598 = vmul.f32 %v8534, %v8534
  %v8599 = vmul.f32 %v8535, %v8535
  %v8600 = vmul.f32 %v8536, %v8536
  %v8601 = vmul.f32 %v8537, %v8537
  %v8602 = vmul.f32 %v8538, %v8538
  %v8603 = vmul.f32 %v8539, %v8539
  %v8604 = vmul.f32 %v8540, %v8540
  %v8605 = vmul.f32 %v8541, %v8541
  %v8606 = vmul.f32 %v8542, %v8542
  %v8607 = vmul.f32 %v8543, %v8543
  %v8608 = vmul.f32 %v8544, %v8544
  %v8609 = vmul.f32 %v8545, %v8545
  %v8610 = vmul.f32 %v8546, %v8546
  %v8611 = vmul.f32 %v8547, %v8547
  %v8612 = vmul.f32 %v8548, %v8548
  %v8613 = vmul.f32 %v8549, %v8549
  %v8614 = vmul.f32 %v8550, %v8550
  %v8615 = vmul.f32 %v8551, %v8551
  %v8616 = vmul.f32 %v8552, %v8552
  %v8617 = vmul.f32 %v8553, %v8553
  %v8618 = vmul.f32 %v8554, %v8554
  %v8619 = vsel %vm27, %v8555, 0.0
  %v8620 = vsel %vm27, %v8556, 0.0
  %v8621 = vadd.f32 %v8619, %v8620
  %v8622 = vsel %vm27, %v8557, 0.0
  %v8623 = vadd.f32 %v8621, %v8622
  %v8624 = vsel %vm27, %v8558, 0.0
  %v8625 = vadd.f32 %v8623, %v8624
  %v8626 = vsel %vm27, %v8559, 0.0
  %v8627 = vadd.f32 %v8625, %v8626
  %v8628 = vsel %vm27, %v8560, 0.0
  %v8629 = vadd.f32 %v8627, %v8628
  %v8630 = vsel %vm27, %v8561, 0.0
  %v8631 = vadd.f32 %v8629, %v8630
  %v8632 = vsel %vm27, %v8562, 0.0
  %v8633 = vadd.f32 %v8631, %v8632
  %v8634 = vsel %vm27, %v8563, 0.0
  %v8635 = vadd.f32 %v8633, %v8634
  %v8636 = vsel %vm27, %v8564, 0.0
  %v8637 = vadd.f32 %v8635, %v8636
  %v8638 = vsel %vm27, %v8565, 0.0
  %v8639 = vadd.f32 %v8637, %v8638
  %v8640 = vsel %vm27, %v8566, 0.0
  %v8641 = vadd.f32 %v8639, %v8640
  %v8642 = vsel %vm27, %v8567, 0.0
  %v8643 = vadd.f32 %v8641, %v8642
  %v8644 = vsel %vm27, %v8568, 0.0
  %v8645 = vadd.f32 %v8643, %v8644
  %v8646 = vsel %vm27, %v8569, 0.0
  %v8647 = vadd.f32 %v8645, %v8646
  %v8648 = vsel %vm27, %v8570, 0.0
  %v8649 = vadd.f32 %v8647, %v8648
  %v8650 = vsel %vm27, %v8571, 0.0
  %v8651 = vadd.f32 %v8649, %v8650
  %v8652 = vsel %vm27, %v8572, 0.0
  %v8653 = vadd.f32 %v8651, %v8652
  %v8654 = vsel %vm27, %v8573, 0.0
  %v8655 = vadd.f32 %v8653, %v8654
  %v8656 = vsel %vm27, %v8574, 0.0
  %v8657 = vadd.f32 %v8655, %v8656
  %v8658 = vsel %vm27, %v8575, 0.0
  %v8659 = vadd.f32 %v8657, %v8658
  %v8660 = vsel %vm27, %v8576, 0.0
  %v8661 = vadd.f32 %v8659, %v8660
  %v8662 = vsel %vm27, %v8577, 0.0
  %v8663 = vadd.f32 %v8661, %v8662
  %v8664 = vsel %vm27, %v8578, 0.0
  %v8665 = vadd.f32 %v8663, %v8664
  %v8666 = vsel %vm27, %v8579, 0.0
  %v8667 = vadd.f32 %v8665, %v8666
  %v8668 = vsel %vm27, %v8580, 0.0
  %v8669 = vadd.f32 %v8667, %v8668
  %v8670 = vsel %vm27, %v8581, 0.0
  %v8671 = vadd.f32 %v8669, %v8670
  %v8672 = vsel %vm27, %v8582, 0.0
  %v8673 = vadd.f32 %v8671, %v8672
  %v8674 = vsel %vm27, %v8583, 0.0
  %v8675 = vadd.f32 %v8673, %v8674
  %v8676 = vsel %vm27, %v8584, 0.0
  %v8677 = vadd.f32 %v8675, %v8676
  %v8678 = vsel %vm27, %v8585, 0.0
  %v8679 = vadd.f32 %v8677, %v8678
  %v8680 = vsel %vm27, %v8586, 0.0
  %v8681 = vadd.f32 %v8679, %v8680
  %v8682 = vsel %vm27, %v8587, 0.0
  %v8683 = vadd.f32 %v8681, %v8682
  %v8684 = vsel %vm27, %v8588, 0.0
  %v8685 = vadd.f32 %v8683, %v8684
  %v8686 = vsel %vm27, %v8589, 0.0
  %v8687 = vadd.f32 %v8685, %v8686
  %v8688 = vsel %vm27, %v8590, 0.0
  %v8689 = vadd.f32 %v8687, %v8688
  %v8690 = vsel %vm27, %v8591, 0.0
  %v8691 = vadd.f32 %v8689, %v8690
  %v8692 = vsel %vm27, %v8592, 0.0
  %v8693 = vadd.f32 %v8691, %v8692
  %v8694 = vsel %vm27, %v8593, 0.0
  %v8695 = vadd.f32 %v8693, %v8694
  %v8696 = vsel %vm27, %v8594, 0.0
  %v8697 = vadd.f32 %v8695, %v8696
  %v8698 = vsel %vm27, %v8595, 0.0
  %v8699 = vadd.f32 %v8697, %v8698
  %v8700 = vsel %vm27, %v8596, 0.0
  %v8701 = vadd.f32 %v8699, %v8700
  %v8702 = vsel %vm27, %v8597, 0.0
  %v8703 = vadd.f32 %v8701, %v8702
  %v8704 = vsel %vm27, %v8598, 0.0
  %v8705 = vadd.f32 %v8703, %v8704
  %v8706 = vsel %vm27, %v8599, 0.0
  %v8707 = vadd.f32 %v8705, %v8706
  %v8708 = vsel %vm27, %v8600, 0.0
  %v8709 = vadd.f32 %v8707, %v8708
  %v8710 = vsel %vm27, %v8601, 0.0
  %v8711 = vadd.f32 %v8709, %v8710
  %v8712 = vsel %vm27, %v8602, 0.0
  %v8713 = vadd.f32 %v8711, %v8712
  %v8714 = vsel %vm27, %v8603, 0.0
  %v8715 = vadd.f32 %v8713, %v8714
  %v8716 = vsel %vm27, %v8604, 0.0
  %v8717 = vadd.f32 %v8715, %v8716
  %v8718 = vsel %vm27, %v8605, 0.0
  %v8719 = vadd.f32 %v8717, %v8718
  %v8720 = vsel %vm27, %v8606, 0.0
  %v8721 = vadd.f32 %v8719, %v8720
  %v8722 = vsel %vm27, %v8607, 0.0
  %v8723 = vadd.f32 %v8721, %v8722
  %v8724 = vsel %vm27, %v8608, 0.0
  %v8725 = vadd.f32 %v8723, %v8724
  %v8726 = vsel %vm27, %v8609, 0.0
  %v8727 = vadd.f32 %v8725, %v8726
  %v8728 = vsel %vm27, %v8610, 0.0
  %v8729 = vadd.f32 %v8727, %v8728
  %v8730 = vsel %vm27, %v8611, 0.0
  %v8731 = vadd.f32 %v8729, %v8730
  %v8732 = vsel %vm27, %v8612, 0.0
  %v8733 = vadd.f32 %v8731, %v8732
  %v8734 = vsel %vm27, %v8613, 0.0
  %v8735 = vadd.f32 %v8733, %v8734
  %v8736 = vsel %vm27, %v8614, 0.0
  %v8737 = vadd.f32 %v8735, %v8736
  %v8738 = vsel %vm27, %v8615, 0.0
  %v8739 = vadd.f32 %v8737, %v8738
  %v8740 = vsel %vm27, %v8616, 0.0
  %v8741 = vadd.f32 %v8739, %v8740
  %v8742 = vsel %vm27, %v8617, 0.0
  %v8743 = vadd.f32 %v8741, %v8742
  %v8744 = vsel %vm27, %v8618, 0.0
  %v8745 = vadd.f32 %v8743, %v8744
  %v8746 = vrot.slane %v8745, 4
  %v8747 = vadd.f32 %v8745, %v8746
  %v8748 = vrot.slane %v8747, 2
  %v8749 = vadd.f32 %v8747, %v8748
  %v8750 = vrot.slane %v8749, 1
  %v8751 = vadd.f32 %v8749, %v8750
  %v8752 = vmul.f32 %v8751, %v4116
  %v8753 = vadd.f32 %v8752, 1e-05
  %v8754 = vrsqrt.pop %v8753
  %v8755 = vmul.f32 %v8355, %v8754
  %v8757 = vlaneseq
  %v8758 = vshrl.u32 %v8757, 7
  %v8759 = vsub.s32 0, %v8758
  %v8760 = vrot.slane %v8755, %v8759
  %v8762 = vmul.f32 %v8491, %v8760
  %v8763 = vmul.f32 %v8492, %v8760
  %v8764 = vmul.f32 %v8493, %v8760
  %v8765 = vmul.f32 %v8494, %v8760
  %v8766 = vmul.f32 %v8495, %v8760
  %v8767 = vmul.f32 %v8496, %v8760
  %v8768 = vmul.f32 %v8497, %v8760
  %v8769 = vmul.f32 %v8498, %v8760
  %v8770 = vmul.f32 %v8499, %v8760
  %v8771 = vmul.f32 %v8500, %v8760
  %v8772 = vmul.f32 %v8501, %v8760
  %v8773 = vmul.f32 %v8502, %v8760
  %v8774 = vmul.f32 %v8503, %v8760
  %v8775 = vmul.f32 %v8504, %v8760
  %v8776 = vmul.f32 %v8505, %v8760
  %v8777 = vmul.f32 %v8506, %v8760
  %v8778 = vmul.f32 %v8507, %v8760
  %v8779 = vmul.f32 %v8508, %v8760
  %v8780 = vmul.f32 %v8509, %v8760
  %v8781 = vmul.f32 %v8510, %v8760
  %v8782 = vmul.f32 %v8511, %v8760
  %v8783 = vmul.f32 %v8512, %v8760
  %v8784 = vmul.f32 %v8513, %v8760
  %v8785 = vmul.f32 %v8514, %v8760
  %v8786 = vmul.f32 %v8515, %v8760
  %v8787 = vmul.f32 %v8516, %v8760
  %v8788 = vmul.f32 %v8517, %v8760
  %v8789 = vmul.f32 %v8518, %v8760
  %v8790 = vmul.f32 %v8519, %v8760
  %v8791 = vmul.f32 %v8520, %v8760
  %v8792 = vmul.f32 %v8521, %v8760
  %v8793 = vmul.f32 %v8522, %v8760
  %v8794 = vmul.f32 %v8523, %v8760
  %v8795 = vmul.f32 %v8524, %v8760
  %v8796 = vmul.f32 %v8525, %v8760
  %v8797 = vmul.f32 %v8526, %v8760
  %v8798 = vmul.f32 %v8527, %v8760
  %v8799 = vmul.f32 %v8528, %v8760
  %v8800 = vmul.f32 %v8529, %v8760
  %v8801 = vmul.f32 %v8530, %v8760
  %v8802 = vmul.f32 %v8531, %v8760
  %v8803 = vmul.f32 %v8532, %v8760
  %v8804 = vmul.f32 %v8533, %v8760
  %v8805 = vmul.f32 %v8534, %v8760
  %v8806 = vmul.f32 %v8535, %v8760
  %v8807 = vmul.f32 %v8536, %v8760
  %v8808 = vmul.f32 %v8537, %v8760
  %v8809 = vmul.f32 %v8538, %v8760
  %v8810 = vmul.f32 %v8539, %v8760
  %v8811 = vmul.f32 %v8540, %v8760
  %v8812 = vmul.f32 %v8541, %v8760
  %v8813 = vmul.f32 %v8542, %v8760
  %v8814 = vmul.f32 %v8543, %v8760
  %v8815 = vmul.f32 %v8544, %v8760
  %v8816 = vmul.f32 %v8545, %v8760
  %v8817 = vmul.f32 %v8546, %v8760
  %v8818 = vmul.f32 %v8547, %v8760
  %v8819 = vmul.f32 %v8548, %v8760
  %v8820 = vmul.f32 %v8549, %v8760
  %v8821 = vmul.f32 %v8550, %v8760
  %v8822 = vmul.f32 %v8551, %v8760
  %v8823 = vmul.f32 %v8552, %v8760
  %v8824 = vmul.f32 %v8553, %v8760
  %v8825 = vmul.f32 %v8554, %v8760
  %v8827 = vlaneseq
  %v8828 = vshrl.u32 %v8827, 7
  %v8829 = vsub.s32 0, %v8828
  %v8830 = vrot.slane %v8356, %v8829
  %v8832 = vadd.f32 %v8762, %v8830
  %v8833 = vadd.f32 %v8763, %v8830
  %v8834 = vadd.f32 %v8764, %v8830
  %v8835 = vadd.f32 %v8765, %v8830
  %v8836 = vadd.f32 %v8766, %v8830
  %v8837 = vadd.f32 %v8767, %v8830
  %v8838 = vadd.f32 %v8768, %v8830
  %v8839 = vadd.f32 %v8769, %v8830
  %v8840 = vadd.f32 %v8770, %v8830
  %v8841 = vadd.f32 %v8771, %v8830
  %v8842 = vadd.f32 %v8772, %v8830
  %v8843 = vadd.f32 %v8773, %v8830
  %v8844 = vadd.f32 %v8774, %v8830
  %v8845 = vadd.f32 %v8775, %v8830
  %v8846 = vadd.f32 %v8776, %v8830
  %v8847 = vadd.f32 %v8777, %v8830
  %v8848 = vadd.f32 %v8778, %v8830
  %v8849 = vadd.f32 %v8779, %v8830
  %v8850 = vadd.f32 %v8780, %v8830
  %v8851 = vadd.f32 %v8781, %v8830
  %v8852 = vadd.f32 %v8782, %v8830
  %v8853 = vadd.f32 %v8783, %v8830
  %v8854 = vadd.f32 %v8784, %v8830
  %v8855 = vadd.f32 %v8785, %v8830
  %v8856 = vadd.f32 %v8786, %v8830
  %v8857 = vadd.f32 %v8787, %v8830
  %v8858 = vadd.f32 %v8788, %v8830
  %v8859 = vadd.f32 %v8789, %v8830
  %v8860 = vadd.f32 %v8790, %v8830
  %v8861 = vadd.f32 %v8791, %v8830
  %v8862 = vadd.f32 %v8792, %v8830
  %v8863 = vadd.f32 %v8793, %v8830
  %v8864 = vadd.f32 %v8794, %v8830
  %v8865 = vadd.f32 %v8795, %v8830
  %v8866 = vadd.f32 %v8796, %v8830
  %v8867 = vadd.f32 %v8797, %v8830
  %v8868 = vadd.f32 %v8798, %v8830
  %v8869 = vadd.f32 %v8799, %v8830
  %v8870 = vadd.f32 %v8800, %v8830
  %v8871 = vadd.f32 %v8801, %v8830
  %v8872 = vadd.f32 %v8802, %v8830
  %v8873 = vadd.f32 %v8803, %v8830
  %v8874 = vadd.f32 %v8804, %v8830
  %v8875 = vadd.f32 %v8805, %v8830
  %v8876 = vadd.f32 %v8806, %v8830
  %v8877 = vadd.f32 %v8807, %v8830
  %v8878 = vadd.f32 %v8808, %v8830
  %v8879 = vadd.f32 %v8809, %v8830
  %v8880 = vadd.f32 %v8810, %v8830
  %v8881 = vadd.f32 %v8811, %v8830
  %v8882 = vadd.f32 %v8812, %v8830
  %v8883 = vadd.f32 %v8813, %v8830
  %v8884 = vadd.f32 %v8814, %v8830
  %v8885 = vadd.f32 %v8815, %v8830
  %v8886 = vadd.f32 %v8816, %v8830
  %v8887 = vadd.f32 %v8817, %v8830
  %v8888 = vadd.f32 %v8818, %v8830
  %v8889 = vadd.f32 %v8819, %v8830
  %v8890 = vadd.f32 %v8820, %v8830
  %v8891 = vadd.f32 %v8821, %v8830
  %v8892 = vadd.f32 %v8822, %v8830
  %v8893 = vadd.f32 %v8823, %v8830
  %v8894 = vadd.f32 %v8824, %v8830
  %v8895 = vadd.f32 %v8825, %v8830
  %v8896 = vadd.f32 %v137, %v8832
  %v8897 = vadd.f32 %v138, %v8833
  %v8898 = vadd.f32 %v139, %v8834
  %v8899 = vadd.f32 %v140, %v8835
  %v8900 = vadd.f32 %v141, %v8836
  %v8901 = vadd.f32 %v142, %v8837
  %v8902 = vadd.f32 %v143, %v8838
  %v8903 = vadd.f32 %v144, %v8839
  %v8904 = vadd.f32 %v145, %v8840
  %v8905 = vadd.f32 %v146, %v8841
  %v8906 = vadd.f32 %v147, %v8842
  %v8907 = vadd.f32 %v148, %v8843
  %v8908 = vadd.f32 %v149, %v8844
  %v8909 = vadd.f32 %v150, %v8845
  %v8910 = vadd.f32 %v151, %v8846
  %v8911 = vadd.f32 %v152, %v8847
  %v8912 = vadd.f32 %v153, %v8848
  %v8913 = vadd.f32 %v154, %v8849
  %v8914 = vadd.f32 %v155, %v8850
  %v8915 = vadd.f32 %v156, %v8851
  %v8916 = vadd.f32 %v157, %v8852
  %v8917 = vadd.f32 %v158, %v8853
  %v8918 = vadd.f32 %v159, %v8854
  %v8919 = vadd.f32 %v160, %v8855
  %v8920 = vadd.f32 %v161, %v8856
  %v8921 = vadd.f32 %v162, %v8857
  %v8922 = vadd.f32 %v163, %v8858
  %v8923 = vadd.f32 %v164, %v8859
  %v8924 = vadd.f32 %v165, %v8860
  %v8925 = vadd.f32 %v166, %v8861
  %v8926 = vadd.f32 %v167, %v8862
  %v8927 = vadd.f32 %v168, %v8863
  %v8928 = vadd.f32 %v169, %v8864
  %v8929 = vadd.f32 %v170, %v8865
  %v8930 = vadd.f32 %v171, %v8866
  %v8931 = vadd.f32 %v172, %v8867
  %v8932 = vadd.f32 %v173, %v8868
  %v8933 = vadd.f32 %v174, %v8869
  %v8934 = vadd.f32 %v175, %v8870
  %v8935 = vadd.f32 %v176, %v8871
  %v8936 = vadd.f32 %v177, %v8872
  %v8937 = vadd.f32 %v178, %v8873
  %v8938 = vadd.f32 %v179, %v8874
  %v8939 = vadd.f32 %v180, %v8875
  %v8940 = vadd.f32 %v181, %v8876
  %v8941 = vadd.f32 %v182, %v8877
  %v8942 = vadd.f32 %v183, %v8878
  %v8943 = vadd.f32 %v184, %v8879
  %v8944 = vadd.f32 %v185, %v8880
  %v8945 = vadd.f32 %v186, %v8881
  %v8946 = vadd.f32 %v187, %v8882
  %v8947 = vadd.f32 %v188, %v8883
  %v8948 = vadd.f32 %v189, %v8884
  %v8949 = vadd.f32 %v190, %v8885
  %v8950 = vadd.f32 %v191, %v8886
  %v8951 = vadd.f32 %v192, %v8887
  %v8952 = vadd.f32 %v193, %v8888
  %v8953 = vadd.f32 %v194, %v8889
  %v8954 = vadd.f32 %v195, %v8890
  %v8955 = vadd.f32 %v196, %v8891
  %v8956 = vadd.f32 %v197, %v8892
  %v8957 = vadd.f32 %v198, %v8893
  %v8958 = vadd.f32 %v199, %v8894
  %v8959 = vadd.f32 %v200, %v8895
  %8960 = vst.msk [vmem:[%s7] sm:$0xff] %vm27, %v8896
  %8961 = vst.msk [vmem:[%s7 + $0x8] sm:$0xff] %vm27, %v8897
  %8962 = vst.msk [vmem:[%s7 + $0x10] sm:$0xff] %vm27, %v8898
  %8963 = vst.msk [vmem:[%s7 + $0x18] sm:$0xff] %vm27, %v8899
  %8964 = vst.msk [vmem:[%s7 + $0x20] sm:$0xff] %vm27, %v8900
  %8965 = vst.msk [vmem:[%s7 + $0x28] sm:$0xff] %vm27, %v8901
  %8966 = vst.msk [vmem:[%s7 + $0x30] sm:$0xff] %vm27, %v8902
  %8967 = vst.msk [vmem:[%s7 + $0x38] sm:$0xff] %vm27, %v8903
  %8968 = vst.msk [vmem:[%s7 + $0x40] sm:$0xff] %vm27, %v8904
  %8969 = vst.msk [vmem:[%s7 + $0x48] sm:$0xff] %vm27, %v8905
  %8970 = vst.msk [vmem:[%s7 + $0x50] sm:$0xff] %vm27, %v8906
  %8971 = vst.msk [vmem:[%s7 + $0x58] sm:$0xff] %vm27, %v8907
  %8972 = vst.msk [vmem:[%s7 + $0x60] sm:$0xff] %vm27, %v8908
  %8973 = vst.msk [vmem:[%s7 + $0x68] sm:$0xff] %vm27, %v8909
  %8974 = vst.msk [vmem:[%s7 + $0x70] sm:$0xff] %vm27, %v8910
  %8975 = vst.msk [vmem:[%s7 + $0x78] sm:$0xff] %vm27, %v8911
  %8976 = vst.msk [vmem:[%s7 + $0x80] sm:$0xff] %vm27, %v8912
  %8977 = vst.msk [vmem:[%s7 + $0x88] sm:$0xff] %vm27, %v8913
  %8978 = vst.msk [vmem:[%s7 + $0x90] sm:$0xff] %vm27, %v8914
  %8979 = vst.msk [vmem:[%s7 + $0x98] sm:$0xff] %vm27, %v8915
  %8980 = vst.msk [vmem:[%s7 + $0xa0] sm:$0xff] %vm27, %v8916
  %8981 = vst.msk [vmem:[%s7 + $0xa8] sm:$0xff] %vm27, %v8917
  %8982 = vst.msk [vmem:[%s7 + $0xb0] sm:$0xff] %vm27, %v8918
  %8983 = vst.msk [vmem:[%s7 + $0xb8] sm:$0xff] %vm27, %v8919
  %8984 = vst.msk [vmem:[%s7 + $0xc0] sm:$0xff] %vm27, %v8920
  %8985 = vst.msk [vmem:[%s7 + $0xc8] sm:$0xff] %vm27, %v8921
  %8986 = vst.msk [vmem:[%s7 + $0xd0] sm:$0xff] %vm27, %v8922
  %8987 = vst.msk [vmem:[%s7 + $0xd8] sm:$0xff] %vm27, %v8923
  %8988 = vst.msk [vmem:[%s7 + $0xe0] sm:$0xff] %vm27, %v8924
  %8989 = vst.msk [vmem:[%s7 + $0xe8] sm:$0xff] %vm27, %v8925
  %8990 = vst.msk [vmem:[%s7 + $0xf0] sm:$0xff] %vm27, %v8926
  %8991 = vst.msk [vmem:[%s7 + $0xf8] sm:$0xff] %vm27, %v8927
  %8992 = vst.msk [vmem:[%s7 + $0x100] sm:$0xff] %vm27, %v8928
  %8993 = vst.msk [vmem:[%s7 + $0x108] sm:$0xff] %vm27, %v8929
  %8994 = vst.msk [vmem:[%s7 + $0x110] sm:$0xff] %vm27, %v8930
  %8995 = vst.msk [vmem:[%s7 + $0x118] sm:$0xff] %vm27, %v8931
  %8996 = vst.msk [vmem:[%s7 + $0x120] sm:$0xff] %vm27, %v8932
  %8997 = vst.msk [vmem:[%s7 + $0x128] sm:$0xff] %vm27, %v8933
  %8998 = vst.msk [vmem:[%s7 + $0x130] sm:$0xff] %vm27, %v8934
  %8999 = vst.msk [vmem:[%s7 + $0x138] sm:$0xff] %vm27, %v8935
  %9000 = vst.msk [vmem:[%s7 + $0x140] sm:$0xff] %vm27, %v8936
  %9001 = vst.msk [vmem:[%s7 + $0x148] sm:$0xff] %vm27, %v8937
  %9002 = vst.msk [vmem:[%s7 + $0x150] sm:$0xff] %vm27, %v8938
  %9003 = vst.msk [vmem:[%s7 + $0x158] sm:$0xff] %vm27, %v8939
  %9004 = vst.msk [vmem:[%s7 + $0x160] sm:$0xff] %vm27, %v8940
  %9005 = vst.msk [vmem:[%s7 + $0x168] sm:$0xff] %vm27, %v8941
  %9006 = vst.msk [vmem:[%s7 + $0x170] sm:$0xff] %vm27, %v8942
  %9007 = vst.msk [vmem:[%s7 + $0x178] sm:$0xff] %vm27, %v8943
  %9008 = vst.msk [vmem:[%s7 + $0x180] sm:$0xff] %vm27, %v8944
  %9009 = vst.msk [vmem:[%s7 + $0x188] sm:$0xff] %vm27, %v8945
  %9010 = vst.msk [vmem:[%s7 + $0x190] sm:$0xff] %vm27, %v8946
  %9011 = vst.msk [vmem:[%s7 + $0x198] sm:$0xff] %vm27, %v8947
  %9012 = vst.msk [vmem:[%s7 + $0x1a0] sm:$0xff] %vm27, %v8948
  %9013 = vst.msk [vmem:[%s7 + $0x1a8] sm:$0xff] %vm27, %v8949
  %9014 = vst.msk [vmem:[%s7 + $0x1b0] sm:$0xff] %vm27, %v8950
  %9015 = vst.msk [vmem:[%s7 + $0x1b8] sm:$0xff] %vm27, %v8951
  %9016 = vst.msk [vmem:[%s7 + $0x1c0] sm:$0xff] %vm27, %v8952
  %9017 = vst.msk [vmem:[%s7 + $0x1c8] sm:$0xff] %vm27, %v8953
  %9018 = vst.msk [vmem:[%s7 + $0x1d0] sm:$0xff] %vm27, %v8954
  %9019 = vst.msk [vmem:[%s7 + $0x1d8] sm:$0xff] %vm27, %v8955
  %9020 = vst.msk [vmem:[%s7 + $0x1e0] sm:$0xff] %vm27, %v8956
  %9021 = vst.msk [vmem:[%s7 + $0x1e8] sm:$0xff] %vm27, %v8957
  %9022 = vst.msk [vmem:[%s7 + $0x1f0] sm:$0xff] %vm27, %v8958
  %9023 = vst.msk [vmem:[%s7 + $0x1f8] sm:$0xff] %vm27, %v8959
  // Predicated region
  $region30: #{residual_block.1} parent=0 // pred_check
    _
  $region31: #{residual_block.1} parent=0 // pred_check_branch
    %9025 = sbr.rel (0) target = $region33
  $region32: #{residual_block.1} parent=0 // pred_region
    _
  $region33: #{residual_block.1} parent=0 // pred_fallthru
    _
  // Predicated region
  $region34: #{residual_block.1} parent=0 // pred_check
    _
  $region35: #{residual_block.1} parent=0 // pred_check_branch
    %9027 = sbr.rel (0) target = $region37
  $region36: #{residual_block.1} parent=0 // pred_region
    _
  $region37: #{residual_block.1} parent=0 // pred_fallthru
    _

</llo_original>
